<compile_context>
chip_gen: v7x
topology: tpu7x:2x2x1
jax: 0.10.0
libtpu: 0.0.40
codegen_flags: <defaults>
</compile_context>

<pallas_src>
import functools

import numpy as np
import jax
import jax.numpy as jnp
from jax.experimental import pallas as pl
from jax.experimental.pallas import tpu as pltpu

_EPS = 1e-5  # PyTorch InstanceNorm2d default eps

# f32-accurate MXU matmul (keeps the correctness check tight).
_dot = functools.partial(jnp.dot, preferred_element_type=jnp.float32,
                         precision=jax.lax.Precision.HIGHEST)


# ----------------------------------------------------------------------------
# Fused kernel
# ----------------------------------------------------------------------------
def _make_kernel(Hh, Wh, B, Cin, Cout):
    inv_n = 1.0 / float(Hh * Wh)   # InstanceNorm reduces over Hh*Wh per (sample, ch)

    def conv_in_relu(a, w_ref, apad_ref, s_ref, st_ref):
        """3x3 'same' conv (3 banded matmuls over a vertically zero-padded VMEM
        scratch) fused with InstanceNorm (biased var) + ReLU.
        a: (Hh, B*Wh*Ci) lane-packed activation."""
        L = a.shape[1]
        zero_row = jnp.zeros((1, L), jnp.float32)
        # Only the two border rows need zeros; interior rows are written below.
        # (Zeroed every step — NOT under pl.when(pid==0) — so the kernel is safe
        #  when a parallel grid is partitioned across cores with per-core scratch.)
        apad_ref[pl.ds(0, 1), :] = zero_row
        apad_ref[pl.ds(Hh + 1, 1), :] = zero_row
        apad_ref[pl.ds(1, Hh), :] = a

        # Center tap reads the live value; shifted taps read the padded scratch.
        y = _dot(a, w_ref[1])
        y = y + _dot(apad_ref[pl.ds(0, Hh), :], w_ref[0])
        y = y + _dot(apad_ref[pl.ds(2, Hh), :], w_ref[2])      # (Hh, B*Wh*Cout)

        # Fused single-pass IN stats: one selector matmul for sum AND sum-of-sq.
        yy = jnp.concatenate([y, y * y], axis=0)               # (2*Hh, B*Wh*Cout)
        stats = _dot(yy, s_ref[...])                           # (2*Hh, B*Cout)
        sum_c = jnp.sum(stats[:Hh], axis=0, keepdims=True)     # (1, B*Cout)
        sumsq_c = jnp.sum(stats[Hh:], axis=0, keepdims=True)   # (1, B*Cout)
        mean = sum_c * inv_n
        var = jnp.maximum(sumsq_c * inv_n - mean * mean, 0.0)  # clamp f32 cancellation
        istd = jax.lax.rsqrt(var + _EPS)

        # Scale/shift rows stay (1, B*Wh*Cout); sublane broadcast is free on VPU.
        scale_w = _dot(istd, st_ref[...])                      # (1, B*Wh*Cout)
        shift_w = _dot(-mean * istd, st_ref[...])               # (1, B*Wh*Cout)
        return jnp.maximum(y * scale_w + shift_w, 0.0)          # ReLU

    def kernel(x_ref, w1_ref, w2_ref, s_ref, st_ref, o_ref, apad1_ref, apad2_ref):
        # MaxPool2d(2): the wrapper delivers the four 2x2-window taps as leading
        # slices, so pooling is pure VPU max — no MXU, no selectors.
        p = jnp.maximum(jnp.maximum(x_ref[0, 0], x_ref[0, 1]),
                        jnp.maximum(x_ref[0, 2], x_ref[0, 3]))  # (Hh, B*Wh*Cin)

        # double_conv: activations never leave VMEM.
        a1 = conv_in_relu(p, w1_ref, apad1_ref, s_ref, st_ref)   # (Hh, B*Wh*Cout)
        a2 = conv_in_relu(a1, w2_ref, apad2_ref, s_ref, st_ref)  # (Hh, B*Wh*Cout)
        o_ref[0] = a2                                            # lane-dense store

    return kernel


# ----------------------------------------------------------------------------
# Forward wrapper (NCHW in / NCHW out, matching the PyTorch module)
# ----------------------------------------------------------------------------
def unet_down_forward(x_nchw, prep):
    N, Cin, H, W = x_nchw.shape
    assert H % 2 == 0 and W % 2 == 0, "MaxPool2d(2) odd-size floor not handled"
    Hh, Wh = H // 2, W // 2

    w1b = prep["w1b"]                       # (3, B*Wh*Cin, B*Wh*Cout)
    B = w1b.shape[1] // (Wh * Cin)
    Cout = w1b.shape[2] // (B * Wh)
    assert N % B == 0
    G = N // B
    Lin, Lout = B * Wh * Cin, B * Wh * Cout

    # Layout plumbing (no arithmetic): NCHW -> quadrant-split, lane-packed slabs.
    # xq[g, 2*dy+dx, hh, b*Wh*Cin + w*Cin + c] = x[g*B+b, c, 2*hh+dy, 2*w+dx]
    xq = jnp.transpose(x_nchw, (0, 2, 3, 1))                         # (N,H,W,Cin)
    xq = xq.reshape(G, B, Hh, 2, Wh, 2, Cin)
    xq = jnp.transpose(xq, (0, 3, 5, 2, 1, 4, 6)).reshape(G, 4, Hh, Lin)

    kernel = _make_kernel(Hh, Wh, B, Cin, Cout)
    out_flat = pl.pallas_call(
        kernel,
        out_shape=jax.ShapeDtypeStruct((G, Hh, Lout), jnp.float32),
        grid=(G,),
        in_specs=[
            pl.BlockSpec((1, 4, Hh, Lin), lambda g: (g, 0, 0, 0)),
            pl.BlockSpec((3, Lin, Lout), lambda g: (0, 0, 0)),
            pl.BlockSpec((3, Lout, Lout), lambda g: (0, 0, 0)),
            pl.BlockSpec((Lout, B * Cout), lambda g: (0, 0)),
            pl.BlockSpec((B * Cout, Lout), lambda g: (0, 0)),
        ],
        out_specs=pl.BlockSpec((1, Hh, Lout), lambda g: (g, 0, 0)),
        scratch_shapes=[
            pltpu.VMEM((Hh + 2, Lin), jnp.float32),    # padded act, conv1
            pltpu.VMEM((Hh + 2, Lout), jnp.float32),   # padded act, conv2
        ],
        compiler_params=pltpu.CompilerParams(
            dimension_semantics=("parallel",),
            vmem_limit_bytes=32 * 1024 * 1024),
    )(xq, prep["w1b"], prep["w2b"], prep["s"], prep["st"])

    # Lane-packed (G, Hh, B*Wh*Cout) -> NCHW
    y = out_flat.reshape(G, Hh, B, Wh, Cout)
    return jnp.transpose(y, (0, 2, 4, 1, 3)).reshape(N, Cout, Hh, Wh)


# ----------------------------------------------------------------------------
# One-time host-side preparation (hoisted off the forward path)
# ----------------------------------------------------------------------------
def init_params(key, in_ch, out_ch):
    k1, k2 = jax.random.split(key)
    # PyTorch Conv2d weight layout (Co, Ci, kH, kW); biases omitted (IN cancels them).
    return {
        "w1": jax.random.normal(k1, (out_ch, in_ch, 3, 3), jnp.float32) * 0.1,
        "w2": jax.random.normal(k2, (out_ch, out_ch, 3, 3), jnp.float32) * 0.1,
    }


def pick_lane_batch(N, Wh, Cout):
    """Largest divisor of N that fills >=128 output lanes (B*Wh*Cout)."""
    B = max(1, min(N, 128 // max(Wh * Cout, 1)))
    while N % B:
        B -= 1
    return max(B, 1)


def prepare(params, H, W, B):
    """Pre-pack banded conv weights (block-diagonal over the B lane-packed
    samples) and the 0/1 InstanceNorm stat selectors.  Host-side, once."""
    w1 = np.asarray(params["w1"], np.float32)
    w2 = np.asarray(params["w2"], np.float32)
    Cout, Cin = w1.shape[0], w1.shape[1]
    Hh, Wh = H // 2, W // 2

    def band(w_pt):
        co, ci = w_pt.shape[0], w_pt.shape[1]
        wk = w_pt.transpose(2, 3, 1, 0)                  # (kh, kw, ci, co)
        b1 = np.zeros((3, Wh * ci, Wh * co), np.float32)
        for dy in range(3):
            for dx in range(3):
                for jo in range(Wh):
                    ji = jo + dx - 1
                    if 0 <= ji < Wh:
                        b1[dy, ji * ci:(ji + 1) * ci, jo * co:(jo + 1) * co] = wk[dy, dx]
        bB = np.zeros((3, B * Wh * ci, B * Wh * co), np.float32)
        for b in range(B):                               # block-diag over samples
            bB[:, b * Wh * ci:(b + 1) * Wh * ci,
                  b * Wh * co:(b + 1) * Wh * co] = b1
        return bB

    # Per-(sample, channel) sum selector: lane b*Wh*Cout + w*Cout + c -> col b*Cout + c
    s = np.zeros((B * Wh * Cout, B * Cout), np.float32)
    for b in range(B):
        for w in range(Wh):
            for c in range(Cout):
                s[b * Wh * Cout + w * Cout + c, b * Cout + c] = 1.0

    return {
        "w1b": jnp.asarray(band(w1)),
        "w2b": jnp.asarray(band(w2)),
        "s": jnp.asarray(s),
        "st": jnp.asarray(np.ascontiguousarray(s.T)),
    }


# ----------------------------------------------------------------------------
# Pure-JAX reference (for correctness check)
# ----------------------------------------------------------------------------
def reference_forward(x_nchw, params):
    N, Cin, H, W = x_nchw.shape
    xp = x_nchw.reshape(N, Cin, H // 2, 2, W // 2, 2).max(axis=(3, 5))

    def conv_in_relu(x, w):
        y = jax.lax.conv_general_dilated(
            x, w, window_strides=(1, 1), padding=((1, 1), (1, 1)),
            dimension_numbers=("NCHW", "OIHW", "NCHW"),
            precision=jax.lax.Precision.HIGHEST)
        mean = jnp.mean(y, axis=(2, 3), keepdims=True)
        var = jnp.mean((y - mean) ** 2, axis=(2, 3), keepdims=True)
        return jnp.maximum((y - mean) * jax.lax.rsqrt(var + _EPS), 0.0)

    h = conv_in_relu(xp, params["w1"])
    return conv_in_relu(h, params["w2"])


if __name__ == "__main__":
    key = jax.random.PRNGKey(0)
    kx, kp = jax.random.split(key)
    N, in_ch, out_ch, H, W = 2, 4, 8, 16, 16

    x = jax.random.normal(kx, (N, in_ch, H, W), jnp.float32)
    params = init_params(kp, in_ch, out_ch)
    B = pick_lane_batch(N, W // 2, out_ch)          # = 2 here -> 128 output lanes
    prep = prepare(params, H, W, B)

    fwd = jax.jit(unet_down_forward)
    y = fwd(x, prep)
    jax.block_until_ready(y)

    assert y.shape == (N, out_ch, H // 2, W // 2), y.shape
    assert bool(jnp.all(jnp.isfinite(y)))

    y_ref = reference_forward(x, params)
    err = float(jnp.max(jnp.abs(y - y_ref)))
    assert err < 1e-3, f"max abs err vs reference: {err}"

    print("KERNEL_OK")
</pallas_src>

<mosaic_0001>
module attributes {stable_mosaic.version = 11 : i64} {
  func.func @kernel(%arg0: i32, %arg1: memref<1x4x8x64xf32, #tpu.memory_space<vmem>>, %arg2: memref<3x64x128xf32, #tpu.memory_space<vmem>>, %arg3: memref<3x128x128xf32, #tpu.memory_space<vmem>>, %arg4: memref<128x16xf32, #tpu.memory_space<vmem>>, %arg5: memref<16x128xf32, #tpu.memory_space<vmem>>, %arg6: memref<1x8x128xf32, #tpu.memory_space<vmem>>, %arg7: memref<10x64xf32, #tpu.memory_space<vmem>>, %arg8: memref<10x128xf32, #tpu.memory_space<vmem>>) attributes {dimension_semantics = [#tpu.dimension_semantics<parallel>], iteration_bounds = array<i64: 1>, scalar_prefetch = 0 : i64, scratch_operands = 2 : i64, tpu.core_type = #tpu.core_type<tc>, window_params = [{transform_indices = @transform_0, window_bounds = array<i64: 1, 4, 8, 64>}, {pipeline_mode = #tpu.pipeline_mode<synchronous>, transform_indices = @transform_1, window_bounds = array<i64: 3, 64, 128>}, {pipeline_mode = #tpu.pipeline_mode<synchronous>, transform_indices = @transform_2, window_bounds = array<i64: 3, 128, 128>}, {pipeline_mode = #tpu.pipeline_mode<synchronous>, transform_indices = @transform_3, window_bounds = array<i64: 128, 16>}, {pipeline_mode = #tpu.pipeline_mode<synchronous>, transform_indices = @transform_4, window_bounds = array<i64: 16, 128>}, {transform_indices = @transform_5, window_bounds = array<i64: 1, 8, 128>}]} {
    %c0 = arith.constant 0 : index
    %c0_0 = arith.constant 0 : index
    %c0_1 = arith.constant 0 : index
    %c0_2 = arith.constant 0 : index
    %0 = vector.load %arg1[%c0, %c0_0, %c0_1, %c0_2] : memref<1x4x8x64xf32, #tpu.memory_space<vmem>>, vector<1x1x8x64xf32>
    %1 = vector.shape_cast %0 : vector<1x1x8x64xf32> to vector<8x64xf32>
    %c0_3 = arith.constant 0 : index
    %c1 = arith.constant 1 : index
    %c0_4 = arith.constant 0 : index
    %c0_5 = arith.constant 0 : index
    %2 = vector.load %arg1[%c0_3, %c1, %c0_4, %c0_5] : memref<1x4x8x64xf32, #tpu.memory_space<vmem>>, vector<1x1x8x64xf32>
    %3 = vector.shape_cast %2 : vector<1x1x8x64xf32> to vector<8x64xf32>
    %4 = arith.maximumf %1, %3 : vector<8x64xf32>
    %c0_6 = arith.constant 0 : index
    %c2 = arith.constant 2 : index
    %c0_7 = arith.constant 0 : index
    %c0_8 = arith.constant 0 : index
    %5 = vector.load %arg1[%c0_6, %c2, %c0_7, %c0_8] : memref<1x4x8x64xf32, #tpu.memory_space<vmem>>, vector<1x1x8x64xf32>
    %6 = vector.shape_cast %5 : vector<1x1x8x64xf32> to vector<8x64xf32>
    %c0_9 = arith.constant 0 : index
    %c3 = arith.constant 3 : index
    %c0_10 = arith.constant 0 : index
    %c0_11 = arith.constant 0 : index
    %7 = vector.load %arg1[%c0_9, %c3, %c0_10, %c0_11] : memref<1x4x8x64xf32, #tpu.memory_space<vmem>>, vector<1x1x8x64xf32>
    %8 = vector.shape_cast %7 : vector<1x1x8x64xf32> to vector<8x64xf32>
    %9 = arith.maximumf %6, %8 : vector<8x64xf32>
    %10 = arith.maximumf %4, %9 : vector<8x64xf32>
    %cst = arith.constant 0.000000e+00 : f32
    %11 = vector.broadcast %cst : f32 to vector<1x64xf32>
    %c0_12 = arith.constant 0 : index
    %c0_13 = arith.constant 0 : index
    %12 = vector.load %arg7[%c0_12, %c0_13] : memref<10x64xf32, #tpu.memory_space<vmem>>, vector<1x64xf32>
    tpu.vector_store %arg7[%c0_12, %c0_13], %11 {strides = array<i32>} : memref<10x64xf32, #tpu.memory_space<vmem>>, vector<1x64xf32>,
    %c9 = arith.constant 9 : index
    %c0_14 = arith.constant 0 : index
    %13 = vector.load %arg7[%c9, %c0_14] : memref<10x64xf32, #tpu.memory_space<vmem>>, vector<1x64xf32>
    tpu.vector_store %arg7[%c9, %c0_14], %11 {strides = array<i32>} : memref<10x64xf32, #tpu.memory_space<vmem>>, vector<1x64xf32>,
    %c1_15 = arith.constant 1 : index
    %c0_16 = arith.constant 0 : index
    %14 = vector.load %arg7[%c1_15, %c0_16] : memref<10x64xf32, #tpu.memory_space<vmem>>, vector<8x64xf32>
    tpu.vector_store %arg7[%c1_15, %c0_16], %10 {strides = array<i32>} : memref<10x64xf32, #tpu.memory_space<vmem>>, vector<8x64xf32>,
    %c1_17 = arith.constant 1 : index
    %c0_18 = arith.constant 0 : index
    %c0_19 = arith.constant 0 : index
    %15 = vector.load %arg2[%c1_17, %c0_18, %c0_19] : memref<3x64x128xf32, #tpu.memory_space<vmem>>, vector<1x64x128xf32>
    %16 = vector.shape_cast %15 : vector<1x64x128xf32> to vector<64x128xf32>
    %cst_20 = arith.constant dense<0.000000e+00> : vector<8x128xf32>
    %17 = tpu.matmul %10, %16, %cst_20 {dimension_numbers = #tpu.dot_dimension_numbers<[1], [0], [0], [1], [0, 0, 1, 1], [], []>, precision = #tpu.contract_precision<fp32>} : vector<8x64xf32>, vector<64x128xf32>, vector<8x128xf32> -> vector<8x128xf32>
    %c0_21 = arith.constant 0 : index
    %c0_22 = arith.constant 0 : index
    %18 = vector.load %arg7[%c0_21, %c0_22] : memref<10x64xf32, #tpu.memory_space<vmem>>, vector<8x64xf32>
    %c0_23 = arith.constant 0 : index
    %c0_24 = arith.constant 0 : index
    %c0_25 = arith.constant 0 : index
    %19 = vector.load %arg2[%c0_23, %c0_24, %c0_25] : memref<3x64x128xf32, #tpu.memory_space<vmem>>, vector<1x64x128xf32>
    %20 = vector.shape_cast %19 : vector<1x64x128xf32> to vector<64x128xf32>
    %cst_26 = arith.constant dense<0.000000e+00> : vector<8x128xf32>
    %21 = tpu.matmul %18, %20, %cst_26 {dimension_numbers = #tpu.dot_dimension_numbers<[1], [0], [0], [1], [0, 0, 1, 1], [], []>, precision = #tpu.contract_precision<fp32>} : vector<8x64xf32>, vector<64x128xf32>, vector<8x128xf32> -> vector<8x128xf32>
    %22 = arith.addf %17, %21 : vector<8x128xf32>
    %c2_27 = arith.constant 2 : index
    %c0_28 = arith.constant 0 : index
    %23 = vector.load %arg7[%c2_27, %c0_28] : memref<10x64xf32, #tpu.memory_space<vmem>>, vector<8x64xf32>
    %c2_29 = arith.constant 2 : index
    %c0_30 = arith.constant 0 : index
    %c0_31 = arith.constant 0 : index
    %24 = vector.load %arg2[%c2_29, %c0_30, %c0_31] : memref<3x64x128xf32, #tpu.memory_space<vmem>>, vector<1x64x128xf32>
    %25 = vector.shape_cast %24 : vector<1x64x128xf32> to vector<64x128xf32>
    %cst_32 = arith.constant dense<0.000000e+00> : vector<8x128xf32>
    %26 = tpu.matmul %23, %25, %cst_32 {dimension_numbers = #tpu.dot_dimension_numbers<[1], [0], [0], [1], [0, 0, 1, 1], [], []>, precision = #tpu.contract_precision<fp32>} : vector<8x64xf32>, vector<64x128xf32>, vector<8x128xf32> -> vector<8x128xf32>
    %27 = arith.addf %22, %26 : vector<8x128xf32>
    %28 = arith.mulf %27, %27 : vector<8x128xf32>
    %29 = tpu.concatenate %27, %28 in 0 : vector<8x128xf32>, vector<8x128xf32> -> vector<16x128xf32>
    %c0_33 = arith.constant 0 : index
    %c0_34 = arith.constant 0 : index
    %30 = vector.load %arg4[%c0_33, %c0_34] : memref<128x16xf32, #tpu.memory_space<vmem>>, vector<128x16xf32>
    %cst_35 = arith.constant dense<0.000000e+00> : vector<16x16xf32>
    %31 = tpu.matmul %29, %30, %cst_35 {dimension_numbers = #tpu.dot_dimension_numbers<[1], [0], [0], [1], [0, 0, 1, 1], [], []>, precision = #tpu.contract_precision<fp32>} : vector<16x128xf32>, vector<128x16xf32>, vector<16x16xf32> -> vector<16x16xf32>
    %32 = vector.extract_strided_slice %31 {offsets = [0, 0], sizes = [8, 16], strides = [1, 1]} : vector<16x16xf32> to vector<8x16xf32>
    %cst_36 = arith.constant dense<0.000000e+00> : vector<16xf32>
    %33 = vector.multi_reduction <add>, %32, %cst_36 [0] : vector<8x16xf32> to vector<16xf32>
    %34 = vector.shape_cast %33 : vector<16xf32> to vector<1x16xf32>
    %35 = vector.extract_strided_slice %31 {offsets = [8, 0], sizes = [8, 16], strides = [1, 1]} : vector<16x16xf32> to vector<8x16xf32>
    %cst_37 = arith.constant dense<0.000000e+00> : vector<16xf32>
    %36 = vector.multi_reduction <add>, %35, %cst_37 [0] : vector<8x16xf32> to vector<16xf32>
    %37 = vector.shape_cast %36 : vector<16xf32> to vector<1x16xf32>
    %cst_38 = arith.constant 1.562500e-02 : f32
    %38 = vector.broadcast %cst_38 : f32 to vector<1x16xf32>
    %39 = arith.mulf %34, %38 : vector<1x16xf32>
    %cst_39 = arith.constant 1.562500e-02 : f32
    %40 = vector.broadcast %cst_39 : f32 to vector<1x16xf32>
    %41 = arith.mulf %37, %40 : vector<1x16xf32>
    %42 = arith.mulf %39, %39 : vector<1x16xf32>
    %43 = arith.subf %41, %42 : vector<1x16xf32>
    %cst_40 = arith.constant 0.000000e+00 : f32
    %44 = vector.broadcast %cst_40 : f32 to vector<1x16xf32>
    %45 = arith.maximumf %43, %44 : vector<1x16xf32>
    %cst_41 = arith.constant 9.99999974E-6 : f32
    %46 = vector.broadcast %cst_41 : f32 to vector<1x16xf32>
    %47 = arith.addf %45, %46 : vector<1x16xf32>
    %48 = math.rsqrt %47 : vector<1x16xf32>
    %c0_42 = arith.constant 0 : index
    %c0_43 = arith.constant 0 : index
    %49 = vector.load %arg5[%c0_42, %c0_43] : memref<16x128xf32, #tpu.memory_space<vmem>>, vector<16x128xf32>
    %cst_44 = arith.constant dense<0.000000e+00> : vector<1x128xf32>
    %50 = tpu.matmul %48, %49, %cst_44 {dimension_numbers = #tpu.dot_dimension_numbers<[1], [0], [0], [1], [0, 0, 1, 1], [], []>, precision = #tpu.contract_precision<fp32>} : vector<1x16xf32>, vector<16x128xf32>, vector<1x128xf32> -> vector<1x128xf32>
    %cst_45 = arith.constant 0.000000e+00 : f32
    %51 = vector.broadcast %cst_45 : f32 to vector<1x16xf32>
    %52 = arith.subf %51, %39 : vector<1x16xf32>
    %53 = arith.mulf %52, %48 : vector<1x16xf32>
    %c0_46 = arith.constant 0 : index
    %c0_47 = arith.constant 0 : index
    %54 = vector.load %arg5[%c0_46, %c0_47] : memref<16x128xf32, #tpu.memory_space<vmem>>, vector<16x128xf32>
    %cst_48 = arith.constant dense<0.000000e+00> : vector<1x128xf32>
    %55 = tpu.matmul %53, %54, %cst_48 {dimension_numbers = #tpu.dot_dimension_numbers<[1], [0], [0], [1], [0, 0, 1, 1], [], []>, precision = #tpu.contract_precision<fp32>} : vector<1x16xf32>, vector<16x128xf32>, vector<1x128xf32> -> vector<1x128xf32>
    %56 = vector.broadcast %50 : vector<1x128xf32> to vector<8x128xf32>
    %57 = arith.mulf %27, %56 : vector<8x128xf32>
    %58 = vector.broadcast %55 : vector<1x128xf32> to vector<8x128xf32>
    %59 = arith.addf %57, %58 : vector<8x128xf32>
    %cst_49 = arith.constant 0.000000e+00 : f32
    %60 = vector.broadcast %cst_49 : f32 to vector<8x128xf32>
    %61 = arith.maximumf %59, %60 : vector<8x128xf32>
    %cst_50 = arith.constant 0.000000e+00 : f32
    %62 = vector.broadcast %cst_50 : f32 to vector<1x128xf32>
    %c0_51 = arith.constant 0 : index
    %c0_52 = arith.constant 0 : index
    %63 = vector.load %arg8[%c0_51, %c0_52] : memref<10x128xf32, #tpu.memory_space<vmem>>, vector<1x128xf32>
    tpu.vector_store %arg8[%c0_51, %c0_52], %62 {strides = array<i32>} : memref<10x128xf32, #tpu.memory_space<vmem>>, vector<1x128xf32>,
    %c9_53 = arith.constant 9 : index
    %c0_54 = arith.constant 0 : index
    %64 = vector.load %arg8[%c9_53, %c0_54] : memref<10x128xf32, #tpu.memory_space<vmem>>, vector<1x128xf32>
    tpu.vector_store %arg8[%c9_53, %c0_54], %62 {strides = array<i32>} : memref<10x128xf32, #tpu.memory_space<vmem>>, vector<1x128xf32>,
    %c1_55 = arith.constant 1 : index
    %c0_56 = arith.constant 0 : index
    %65 = vector.load %arg8[%c1_55, %c0_56] : memref<10x128xf32, #tpu.memory_space<vmem>>, vector<8x128xf32>
    tpu.vector_store %arg8[%c1_55, %c0_56], %61 {strides = array<i32>} : memref<10x128xf32, #tpu.memory_space<vmem>>, vector<8x128xf32>,
    %c1_57 = arith.constant 1 : index
    %c0_58 = arith.constant 0 : index
    %c0_59 = arith.constant 0 : index
    %66 = vector.load %arg3[%c1_57, %c0_58, %c0_59] : memref<3x128x128xf32, #tpu.memory_space<vmem>>, vector<1x128x128xf32>
    %67 = vector.shape_cast %66 : vector<1x128x128xf32> to vector<128x128xf32>
    %cst_60 = arith.constant dense<0.000000e+00> : vector<8x128xf32>
    %68 = tpu.matmul %61, %67, %cst_60 {dimension_numbers = #tpu.dot_dimension_numbers<[1], [0], [0], [1], [0, 0, 1, 1], [], []>, precision = #tpu.contract_precision<fp32>} : vector<8x128xf32>, vector<128x128xf32>, vector<8x128xf32> -> vector<8x128xf32>
    %c0_61 = arith.constant 0 : index
    %c0_62 = arith.constant 0 : index
    %69 = vector.load %arg8[%c0_61, %c0_62] : memref<10x128xf32, #tpu.memory_space<vmem>>, vector<8x128xf32>
    %c0_63 = arith.constant 0 : index
    %c0_64 = arith.constant 0 : index
    %c0_65 = arith.constant 0 : index
    %70 = vector.load %arg3[%c0_63, %c0_64, %c0_65] : memref<3x128x128xf32, #tpu.memory_space<vmem>>, vector<1x128x128xf32>
    %71 = vector.shape_cast %70 : vector<1x128x128xf32> to vector<128x128xf32>
    %cst_66 = arith.constant dense<0.000000e+00> : vector<8x128xf32>
    %72 = tpu.matmul %69, %71, %cst_66 {dimension_numbers = #tpu.dot_dimension_numbers<[1], [0], [0], [1], [0, 0, 1, 1], [], []>, precision = #tpu.contract_precision<fp32>} : vector<8x128xf32>, vector<128x128xf32>, vector<8x128xf32> -> vector<8x128xf32>
    %73 = arith.addf %68, %72 : vector<8x128xf32>
    %c2_67 = arith.constant 2 : index
    %c0_68 = arith.constant 0 : index
    %74 = vector.load %arg8[%c2_67, %c0_68] : memref<10x128xf32, #tpu.memory_space<vmem>>, vector<8x128xf32>
    %c2_69 = arith.constant 2 : index
    %c0_70 = arith.constant 0 : index
    %c0_71 = arith.constant 0 : index
    %75 = vector.load %arg3[%c2_69, %c0_70, %c0_71] : memref<3x128x128xf32, #tpu.memory_space<vmem>>, vector<1x128x128xf32>
    %76 = vector.shape_cast %75 : vector<1x128x128xf32> to vector<128x128xf32>
    %cst_72 = arith.constant dense<0.000000e+00> : vector<8x128xf32>
    %77 = tpu.matmul %74, %76, %cst_72 {dimension_numbers = #tpu.dot_dimension_numbers<[1], [0], [0], [1], [0, 0, 1, 1], [], []>, precision = #tpu.contract_precision<fp32>} : vector<8x128xf32>, vector<128x128xf32>, vector<8x128xf32> -> vector<8x128xf32>
    %78 = arith.addf %73, %77 : vector<8x128xf32>
    %79 = arith.mulf %78, %78 : vector<8x128xf32>
    %80 = tpu.concatenate %78, %79 in 0 : vector<8x128xf32>, vector<8x128xf32> -> vector<16x128xf32>
    %c0_73 = arith.constant 0 : index
    %c0_74 = arith.constant 0 : index
    %81 = vector.load %arg4[%c0_73, %c0_74] : memref<128x16xf32, #tpu.memory_space<vmem>>, vector<128x16xf32>
    %cst_75 = arith.constant dense<0.000000e+00> : vector<16x16xf32>
    %82 = tpu.matmul %80, %81, %cst_75 {dimension_numbers = #tpu.dot_dimension_numbers<[1], [0], [0], [1], [0, 0, 1, 1], [], []>, precision = #tpu.contract_precision<fp32>} : vector<16x128xf32>, vector<128x16xf32>, vector<16x16xf32> -> vector<16x16xf32>
    %83 = vector.extract_strided_slice %82 {offsets = [0, 0], sizes = [8, 16], strides = [1, 1]} : vector<16x16xf32> to vector<8x16xf32>
    %cst_76 = arith.constant dense<0.000000e+00> : vector<16xf32>
    %84 = vector.multi_reduction <add>, %83, %cst_76 [0] : vector<8x16xf32> to vector<16xf32>
    %85 = vector.shape_cast %84 : vector<16xf32> to vector<1x16xf32>
    %86 = vector.extract_strided_slice %82 {offsets = [8, 0], sizes = [8, 16], strides = [1, 1]} : vector<16x16xf32> to vector<8x16xf32>
    %cst_77 = arith.constant dense<0.000000e+00> : vector<16xf32>
    %87 = vector.multi_reduction <add>, %86, %cst_77 [0] : vector<8x16xf32> to vector<16xf32>
    %88 = vector.shape_cast %87 : vector<16xf32> to vector<1x16xf32>
    %cst_78 = arith.constant 1.562500e-02 : f32
    %89 = vector.broadcast %cst_78 : f32 to vector<1x16xf32>
    %90 = arith.mulf %85, %89 : vector<1x16xf32>
    %cst_79 = arith.constant 1.562500e-02 : f32
    %91 = vector.broadcast %cst_79 : f32 to vector<1x16xf32>
    %92 = arith.mulf %88, %91 : vector<1x16xf32>
    %93 = arith.mulf %90, %90 : vector<1x16xf32>
    %94 = arith.subf %92, %93 : vector<1x16xf32>
    %cst_80 = arith.constant 0.000000e+00 : f32
    %95 = vector.broadcast %cst_80 : f32 to vector<1x16xf32>
    %96 = arith.maximumf %94, %95 : vector<1x16xf32>
    %cst_81 = arith.constant 9.99999974E-6 : f32
    %97 = vector.broadcast %cst_81 : f32 to vector<1x16xf32>
    %98 = arith.addf %96, %97 : vector<1x16xf32>
    %99 = math.rsqrt %98 : vector<1x16xf32>
    %c0_82 = arith.constant 0 : index
    %c0_83 = arith.constant 0 : index
    %100 = vector.load %arg5[%c0_82, %c0_83] : memref<16x128xf32, #tpu.memory_space<vmem>>, vector<16x128xf32>
    %cst_84 = arith.constant dense<0.000000e+00> : vector<1x128xf32>
    %101 = tpu.matmul %99, %100, %cst_84 {dimension_numbers = #tpu.dot_dimension_numbers<[1], [0], [0], [1], [0, 0, 1, 1], [], []>, precision = #tpu.contract_precision<fp32>} : vector<1x16xf32>, vector<16x128xf32>, vector<1x128xf32> -> vector<1x128xf32>
    %cst_85 = arith.constant 0.000000e+00 : f32
    %102 = vector.broadcast %cst_85 : f32 to vector<1x16xf32>
    %103 = arith.subf %102, %90 : vector<1x16xf32>
    %104 = arith.mulf %103, %99 : vector<1x16xf32>
    %c0_86 = arith.constant 0 : index
    %c0_87 = arith.constant 0 : index
    %105 = vector.load %arg5[%c0_86, %c0_87] : memref<16x128xf32, #tpu.memory_space<vmem>>, vector<16x128xf32>
    %cst_88 = arith.constant dense<0.000000e+00> : vector<1x128xf32>
    %106 = tpu.matmul %104, %105, %cst_88 {dimension_numbers = #tpu.dot_dimension_numbers<[1], [0], [0], [1], [0, 0, 1, 1], [], []>, precision = #tpu.contract_precision<fp32>} : vector<1x16xf32>, vector<16x128xf32>, vector<1x128xf32> -> vector<1x128xf32>
    %107 = vector.broadcast %101 : vector<1x128xf32> to vector<8x128xf32>
    %108 = arith.mulf %78, %107 : vector<8x128xf32>
    %109 = vector.broadcast %106 : vector<1x128xf32> to vector<8x128xf32>
    %110 = arith.addf %108, %109 : vector<8x128xf32>
    %cst_89 = arith.constant 0.000000e+00 : f32
    %111 = vector.broadcast %cst_89 : f32 to vector<8x128xf32>
    %112 = arith.maximumf %110, %111 : vector<8x128xf32>
    %c0_90 = arith.constant 0 : index
    %c0_91 = arith.constant 0 : index
    %c0_92 = arith.constant 0 : index
    %113 = vector.load %arg6[%c0_90, %c0_91, %c0_92] : memref<1x8x128xf32, #tpu.memory_space<vmem>>, vector<1x8x128xf32>
    %114 = vector.shape_cast %113 : vector<1x8x128xf32> to vector<8x128xf32>
    %115 = vector.shape_cast %112 : vector<8x128xf32> to vector<1x8x128xf32>
    tpu.vector_store %arg6[%c0_90, %c0_91, %c0_92], %115 {strides = array<i32>} : memref<1x8x128xf32, #tpu.memory_space<vmem>>, vector<1x8x128xf32>,
    return
  }
  func.func @transform_0(%arg0: i32) -> (i32, i32, i32, i32) {
    %c0_i32 = arith.constant 0 : i32
    %c0_i32_0 = arith.constant 0 : i32
    %c0_i32_1 = arith.constant 0 : i32
    %c0_i32_2 = arith.constant 0 : i32
    return %arg0, %c0_i32, %c0_i32_0, %c0_i32_1 : i32, i32, i32, i32
  }
  func.func @transform_1(%arg0: i32) -> (i32, i32, i32) {
    %c0_i32 = arith.constant 0 : i32
    %c0_i32_0 = arith.constant 0 : i32
    %c0_i32_1 = arith.constant 0 : i32
    %c0_i32_2 = arith.constant 0 : i32
    return %c0_i32, %c0_i32_0, %c0_i32_1 : i32, i32, i32
  }
  func.func @transform_2(%arg0: i32) -> (i32, i32, i32) {
    %c0_i32 = arith.constant 0 : i32
    %c0_i32_0 = arith.constant 0 : i32
    %c0_i32_1 = arith.constant 0 : i32
    %c0_i32_2 = arith.constant 0 : i32
    return %c0_i32, %c0_i32_0, %c0_i32_1 : i32, i32, i32
  }
  func.func @transform_3(%arg0: i32) -> (i32, i32) {
    %c0_i32 = arith.constant 0 : i32
    %c0_i32_0 = arith.constant 0 : i32
    %c0_i32_1 = arith.constant 0 : i32
    return %c0_i32, %c0_i32_0 : i32, i32
  }
  func.func @transform_4(%arg0: i32) -> (i32, i32) {
    %c0_i32 = arith.constant 0 : i32
    %c0_i32_0 = arith.constant 0 : i32
    %c0_i32_1 = arith.constant 0 : i32
    return %c0_i32, %c0_i32_0 : i32, i32
  }
  func.func @transform_5(%arg0: i32) -> (i32, i32, i32) {
    %c0_i32 = arith.constant 0 : i32
    %c0_i32_0 = arith.constant 0 : i32
    %c0_i32_1 = arith.constant 0 : i32
    return %arg0, %c0_i32, %c0_i32_0 : i32, i32, i32
  }
}

</mosaic_0001>

<llo_original>
// kernel: unet_down_forward.1
$region0: #{unet_down_forward.1}
  #allocation0 [shape = 'u32[]', space=smem, size = 0x4, offset = 0x4, fixed_abs, tag = 'smem constant byte address 0x4 - core index']
  #allocation1 [shape = 'u32[144,128]{1,0:T(1,128)}', space=vmem, size = 0x12000, scoped, tag = 'internal scratch']
  #allocation2 [shape = 'f32[10,64]{1,0:T(8,128)}', space=vmem, size = 0x2000, scoped, tag = 'scratch operand']
  #allocation3 [shape = 'f32[10,128]{1,0:T(8,128)}', space=vmem, size = 0x2000, scoped, tag = 'scratch operand']
  %s0 = inlined_call_operand.vmem [shape: f32[1,4,8,64], index: 0, kind: input, shape index: {}]
  %s1 = inlined_call_operand.vmem [shape: f32[3,64,128], index: 1, kind: input, shape index: {}]
  %s2 = inlined_call_operand.vmem [shape: f32[3,128,128], index: 2, kind: input, shape index: {}]
  %s3 = inlined_call_operand.vmem [shape: f32[128,16], index: 3, kind: input, shape index: {}]
  %s4 = inlined_call_operand.vmem [shape: f32[16,128], index: 4, kind: input, shape index: {}]
  %s5 = inlined_call_operand.vmem [shape: f32[1,8,128], index: 5, kind: output, shape index: {}]
  %s6 = sld [smem:[#allocation0]]
  $region30: #{unet_down_forward.1} parent=0
    _
  %s8 = ssub.s32 1, %s6
  %s9 = scalar_select 0, %s8, %s6
  // Predicated region
  $region2: #{unet_down_forward.1} parent=0 // pred_check
    _
  $region3: #{unet_down_forward.1} parent=0 // pred_check_branch
    %11 = sbr.rel (0) target = $region5
  $region4: #{unet_down_forward.1} parent=0 // pred_region
    _
  $region5: #{unet_down_forward.1} parent=0 // pred_fallthru
    _
  // Predicated region
  $region6: #{unet_down_forward.1} parent=0 // pred_check
    _
  $region7: #{unet_down_forward.1} parent=0 // pred_check_branch
    %13 = sbr.rel (0) target = $region9
  $region8: #{unet_down_forward.1} parent=0 // pred_region
    _
  $region9: #{unet_down_forward.1} parent=0 // pred_fallthru
    _
  // Predicated region
  $region10: #{unet_down_forward.1} parent=0 // pred_check
    _
  $region11: #{unet_down_forward.1} parent=0 // pred_check_branch
    %15 = sbr.rel (0) target = $region13
  $region12: #{unet_down_forward.1} parent=0 // pred_region
    _
  $region13: #{unet_down_forward.1} parent=0 // pred_fallthru
    _
  // Predicated region
  $region14: #{unet_down_forward.1} parent=0 // pred_check
    _
  $region15: #{unet_down_forward.1} parent=0 // pred_check_branch
    %17 = sbr.rel (0) target = $region17
  $region16: #{unet_down_forward.1} parent=0 // pred_region
    _
  $region17: #{unet_down_forward.1} parent=0 // pred_fallthru
    _
  // Predicated region
  $region18: #{unet_down_forward.1} parent=0 // pred_check
    _
  $region19: #{unet_down_forward.1} parent=0 // pred_check_branch
    %19 = sbr.rel (0) target = $region21
  $region20: #{unet_down_forward.1} parent=0 // pred_region
    _
  $region21: #{unet_down_forward.1} parent=0 // pred_fallthru
    _
  %v20 = vld [vmem:[%s0] sm:$0xff]
  %s21 = scalar_lea.vmem %s0, 8
  %v22 = vld [vmem:[%s21] sm:$0xff]
  %v23 = vmax.f32 %v20, %v22
  %s24 = scalar_lea.vmem %s0, 16
  %v25 = vld [vmem:[%s24] sm:$0xff]
  %s26 = scalar_lea.vmem %s0, 24
  %v27 = vld [vmem:[%s26] sm:$0xff]
  %v28 = vmax.f32 %v25, %v27
  %v29 = vmax.f32 %v23, %v28
  %vm30 = vcmask 516096
  %31 = vst.msk [vmem:[#allocation2] sm:$0x1] %vm30, 0.0
  %32 = vst.msk [vmem:[#allocation2 + $0x9] sm:$0x1] %vm30, 0.0
  %vm33 = vcmask 523264
  %34 = vst.msk [vmem:[#allocation2 + $0x1] sm:$0xff] %vm33, %v29
  %s35 = scalar_lea.vmem %s1, 64
  %v36 = vld [vmem:[%s35] sm:$0xff]
  %v37 = vld [vmem:[%s35 + $0x8] sm:$0xff]
  %v38 = vld [vmem:[%s35 + $0x10] sm:$0xff]
  %v39 = vld [vmem:[%s35 + $0x18] sm:$0xff]
  %v40 = vld [vmem:[%s35 + $0x20] sm:$0xff]
  %v41 = vld [vmem:[%s35 + $0x28] sm:$0xff]
  %v42 = vld [vmem:[%s35 + $0x30] sm:$0xff]
  %v43 = vld [vmem:[%s35 + $0x38] sm:$0xff]
  %v44 = vld [vmem:[#allocation2] sm:$0xff]
  %v45 = vld [vmem:[%s1] sm:$0xff]
  %v46 = vld [vmem:[%s1 + $0x8] sm:$0xff]
  %v47 = vld [vmem:[%s1 + $0x10] sm:$0xff]
  %v48 = vld [vmem:[%s1 + $0x18] sm:$0xff]
  %v49 = vld [vmem:[%s1 + $0x20] sm:$0xff]
  %v50 = vld [vmem:[%s1 + $0x28] sm:$0xff]
  %v51 = vld [vmem:[%s1 + $0x30] sm:$0xff]
  %v52 = vld [vmem:[%s1 + $0x38] sm:$0xff]
  %v54 = vsel %vm33, %v44, 0
  %56 = vmatprep.subr.mxu0 0.0
  %v57 = vand.u32 %v45, 4294901760
  %58 = vmatpush1.msra.mxu0 %v57
  %59 = vmatprep.subr.mxu0 0.0
  %v60 = vand.u32 %v46, 4294901760
  %61 = vmatpush1.msra.mxu0 %v60
  %62 = vmatprep.subr.mxu0 0.0
  %v63 = vand.u32 %v47, 4294901760
  %64 = vmatpush1.msra.mxu0 %v63
  %65 = vmatprep.subr.mxu0 0.0
  %v66 = vand.u32 %v48, 4294901760
  %67 = vmatpush1.msra.mxu0 %v66
  %68 = vmatprep.subr.mxu0 0.0
  %v69 = vand.u32 %v49, 4294901760
  %70 = vmatpush1.msra.mxu0 %v69
  %71 = vmatprep.subr.mxu0 0.0
  %v72 = vand.u32 %v50, 4294901760
  %73 = vmatpush1.msra.mxu0 %v72
  %74 = vmatprep.subr.mxu0 0.0
  %v75 = vand.u32 %v51, 4294901760
  %76 = vmatpush1.msra.mxu0 %v75
  %77 = vmatprep.subr.mxu0 0.0
  %v78 = vand.u32 %v52, 4294901760
  %79 = vmatpush1.msra.mxu0 %v78
  %80 = vmatprep.subr.mxu0 0.0
  %81 = vmatpush1.msra.mxu0 0.0
  %82 = vmatprep.subr.mxu0 0.0
  %83 = vmatpush1.msra.mxu0 0.0
  %84 = vmatprep.subr.mxu0 0.0
  %85 = vmatpush1.msra.mxu0 0.0
  %86 = vmatprep.subr.mxu0 0.0
  %87 = vmatpush1.msra.mxu0 0.0
  %88 = vmatprep.subr.mxu0 0.0
  %89 = vmatpush1.msra.mxu0 0.0
  %90 = vmatprep.subr.mxu0 0.0
  %91 = vmatpush1.msra.mxu0 0.0
  %92 = vmatprep.subr.mxu0 0.0
  %93 = vmatpush1.msra.mxu0 0.0
  %94 = vmatprep.subr.mxu0 0.0
  %95 = vmatpush1.msra.mxu0 0.0
  %96 = vmatprep.subr.mxu0 0.0
  %97 = vmatpush1.msra.mxu0 0.0
  %98 = vmatprep.subr.mxu0 0.0
  %99 = vmatpush1.msra.mxu0 0.0
  %100 = vmatprep.subr.mxu0 0.0
  %101 = vmatpush1.msra.mxu0 0.0
  %102 = vmatprep.subr.mxu0 0.0
  %103 = vmatpush1.msra.mxu0 0.0
  %104 = vmatprep.subr.mxu0 0.0
  %105 = vmatpush1.msra.mxu0 0.0
  %106 = vmatprep.subr.mxu0 0.0
  %107 = vmatpush1.msra.mxu0 0.0
  %108 = vmatprep.subr.mxu0 0.0
  %109 = vmatpush1.msra.mxu0 0.0
  %110 = vmatprep.subr.mxu0 0.0
  %111 = vmatpush1.msra.mxu0 0.0
  %112 = vmatprep.subr.mxu0 0.0
  %113 = vmatpush1.msra.mxu0 0.0
  %114 = vmatprep.subr.mxu0 0.0
  %115 = vmatpush1.msra.mxu0 0.0
  %116 = vmatprep.subr.mxu0 0.0
  %117 = vmatpush1.msra.mxu0 0.0
  %118 = vmatprep.subr.mxu0 0.0
  %119 = vmatpush1.msra.mxu0 0.0
  %120 = vmatprep.subr.mxu0 0.0
  %121 = vmatpush1.msra.mxu0 0.0
  %122 = vmatprep.subr.mxu0 0.0
  %123 = vmatpush1.msra.mxu0 0.0
  %124 = vmatprep.subr.mxu0 0.0
  %125 = vmatpush1.msra.mxu0 0.0
  %126 = vmatprep.subr.mxu0 0.0
  %127 = vmatpush1.msra.mxu0 0.0
  %128 = vmatprep.mubr.f32.mxu0 0.0
  %v129 = vand.u32 %v54, 4294901760
  %v130 = vsub.f32 %v54, %v129
  %v131 = vand.u32 %v130, 4294901760
  %v132 = vsub.f32 %v130, %v131
  %v133 = vand.u32 %v132, 4294901760
  %134 = vmatmul.mubr.f32.gmra.mrb[0].mxu0 %v133
  %v135 = vpop.f32.mrb[0].mxu0
  %v136 = vadd.f32 0.0, %v135
  %v137 = vpop.f32.mrb[0].mxu0
  %138 = vdwg.mxu0
  %139 = vmatprep.subr.mxu0 0.0
  %v140 = vand.u32 %v45, 4294901760
  %v141 = vsub.f32 %v45, %v140
  %v142 = vand.u32 %v141, 4294901760
  %v143 = vsub.f32 %v141, %v142
  %v144 = vand.u32 %v143, 4294901760
  %145 = vmatpush1.msra.mxu0 %v144
  %146 = vmatprep.subr.mxu0 0.0
  %v147 = vand.u32 %v46, 4294901760
  %v148 = vsub.f32 %v46, %v147
  %v149 = vand.u32 %v148, 4294901760
  %v150 = vsub.f32 %v148, %v149
  %v151 = vand.u32 %v150, 4294901760
  %152 = vmatpush1.msra.mxu0 %v151
  %153 = vmatprep.subr.mxu0 0.0
  %v154 = vand.u32 %v47, 4294901760
  %v155 = vsub.f32 %v47, %v154
  %v156 = vand.u32 %v155, 4294901760
  %v157 = vsub.f32 %v155, %v156
  %v158 = vand.u32 %v157, 4294901760
  %159 = vmatpush1.msra.mxu0 %v158
  %160 = vmatprep.subr.mxu0 0.0
  %v161 = vand.u32 %v48, 4294901760
  %v162 = vsub.f32 %v48, %v161
  %v163 = vand.u32 %v162, 4294901760
  %v164 = vsub.f32 %v162, %v163
  %v165 = vand.u32 %v164, 4294901760
  %166 = vmatpush1.msra.mxu0 %v165
  %167 = vmatprep.subr.mxu0 0.0
  %v168 = vand.u32 %v49, 4294901760
  %v169 = vsub.f32 %v49, %v168
  %v170 = vand.u32 %v169, 4294901760
  %v171 = vsub.f32 %v169, %v170
  %v172 = vand.u32 %v171, 4294901760
  %173 = vmatpush1.msra.mxu0 %v172
  %174 = vmatprep.subr.mxu0 0.0
  %v175 = vand.u32 %v50, 4294901760
  %v176 = vsub.f32 %v50, %v175
  %v177 = vand.u32 %v176, 4294901760
  %v178 = vsub.f32 %v176, %v177
  %v179 = vand.u32 %v178, 4294901760
  %180 = vmatpush1.msra.mxu0 %v179
  %181 = vmatprep.subr.mxu0 0.0
  %v182 = vand.u32 %v51, 4294901760
  %v183 = vsub.f32 %v51, %v182
  %v184 = vand.u32 %v183, 4294901760
  %v185 = vsub.f32 %v183, %v184
  %v186 = vand.u32 %v185, 4294901760
  %187 = vmatpush1.msra.mxu0 %v186
  %188 = vmatprep.subr.mxu0 0.0
  %v189 = vand.u32 %v52, 4294901760
  %v190 = vsub.f32 %v52, %v189
  %v191 = vand.u32 %v190, 4294901760
  %v192 = vsub.f32 %v190, %v191
  %v193 = vand.u32 %v192, 4294901760
  %194 = vmatpush1.msra.mxu0 %v193
  %195 = vmatprep.subr.mxu0 0.0
  %196 = vmatpush1.msra.mxu0 0.0
  %197 = vmatprep.subr.mxu0 0.0
  %198 = vmatpush1.msra.mxu0 0.0
  %199 = vmatprep.subr.mxu0 0.0
  %200 = vmatpush1.msra.mxu0 0.0
  %201 = vmatprep.subr.mxu0 0.0
  %202 = vmatpush1.msra.mxu0 0.0
  %203 = vmatprep.subr.mxu0 0.0
  %204 = vmatpush1.msra.mxu0 0.0
  %205 = vmatprep.subr.mxu0 0.0
  %206 = vmatpush1.msra.mxu0 0.0
  %207 = vmatprep.subr.mxu0 0.0
  %208 = vmatpush1.msra.mxu0 0.0
  %209 = vmatprep.subr.mxu0 0.0
  %210 = vmatpush1.msra.mxu0 0.0
  %211 = vmatprep.subr.mxu0 0.0
  %212 = vmatpush1.msra.mxu0 0.0
  %213 = vmatprep.subr.mxu0 0.0
  %214 = vmatpush1.msra.mxu0 0.0
  %215 = vmatprep.subr.mxu0 0.0
  %216 = vmatpush1.msra.mxu0 0.0
  %217 = vmatprep.subr.mxu0 0.0
  %218 = vmatpush1.msra.mxu0 0.0
  %219 = vmatprep.subr.mxu0 0.0
  %220 = vmatpush1.msra.mxu0 0.0
  %221 = vmatprep.subr.mxu0 0.0
  %222 = vmatpush1.msra.mxu0 0.0
  %223 = vmatprep.subr.mxu0 0.0
  %224 = vmatpush1.msra.mxu0 0.0
  %225 = vmatprep.subr.mxu0 0.0
  %226 = vmatpush1.msra.mxu0 0.0
  %227 = vmatprep.subr.mxu0 0.0
  %228 = vmatpush1.msra.mxu0 0.0
  %229 = vmatprep.subr.mxu0 0.0
  %230 = vmatpush1.msra.mxu0 0.0
  %231 = vmatprep.subr.mxu0 0.0
  %232 = vmatpush1.msra.mxu0 0.0
  %233 = vmatprep.subr.mxu0 0.0
  %234 = vmatpush1.msra.mxu0 0.0
  %235 = vmatprep.subr.mxu0 0.0
  %236 = vmatpush1.msra.mxu0 0.0
  %237 = vmatprep.subr.mxu0 0.0
  %238 = vmatpush1.msra.mxu0 0.0
  %239 = vmatprep.subr.mxu0 0.0
  %240 = vmatpush1.msra.mxu0 0.0
  %241 = vmatprep.subr.mxu0 0.0
  %242 = vmatpush1.msra.mxu0 0.0
  %243 = vmatprep.mubr.f32.mxu0 0.0
  %v244 = vand.u32 %v54, 4294901760
  %245 = vmatmul.mubr.f32.gmra.mrb[0].mxu0 %v244
  %v246 = vpop.f32.mrb[0].mxu0
  %v247 = vadd.f32 %v136, %v246
  %v248 = vpop.f32.mrb[0].mxu0
  %249 = vdwg.mxu0
  %250 = vmatprep.subr.mxu0 0.0
  %v251 = vand.u32 %v45, 4294901760
  %v252 = vsub.f32 %v45, %v251
  %253 = vmatpush1.msra.mxu0 %v252
  %254 = vmatprep.subr.mxu0 0.0
  %v255 = vand.u32 %v46, 4294901760
  %v256 = vsub.f32 %v46, %v255
  %257 = vmatpush1.msra.mxu0 %v256
  %258 = vmatprep.subr.mxu0 0.0
  %v259 = vand.u32 %v47, 4294901760
  %v260 = vsub.f32 %v47, %v259
  %261 = vmatpush1.msra.mxu0 %v260
  %262 = vmatprep.subr.mxu0 0.0
  %v263 = vand.u32 %v48, 4294901760
  %v264 = vsub.f32 %v48, %v263
  %265 = vmatpush1.msra.mxu0 %v264
  %266 = vmatprep.subr.mxu0 0.0
  %v267 = vand.u32 %v49, 4294901760
  %v268 = vsub.f32 %v49, %v267
  %269 = vmatpush1.msra.mxu0 %v268
  %270 = vmatprep.subr.mxu0 0.0
  %v271 = vand.u32 %v50, 4294901760
  %v272 = vsub.f32 %v50, %v271
  %273 = vmatpush1.msra.mxu0 %v272
  %274 = vmatprep.subr.mxu0 0.0
  %v275 = vand.u32 %v51, 4294901760
  %v276 = vsub.f32 %v51, %v275
  %277 = vmatpush1.msra.mxu0 %v276
  %278 = vmatprep.subr.mxu0 0.0
  %v279 = vand.u32 %v52, 4294901760
  %v280 = vsub.f32 %v52, %v279
  %281 = vmatpush1.msra.mxu0 %v280
  %282 = vmatprep.subr.mxu0 0.0
  %283 = vmatpush1.msra.mxu0 0.0
  %284 = vmatprep.subr.mxu0 0.0
  %285 = vmatpush1.msra.mxu0 0.0
  %286 = vmatprep.subr.mxu0 0.0
  %287 = vmatpush1.msra.mxu0 0.0
  %288 = vmatprep.subr.mxu0 0.0
  %289 = vmatpush1.msra.mxu0 0.0
  %290 = vmatprep.subr.mxu0 0.0
  %291 = vmatpush1.msra.mxu0 0.0
  %292 = vmatprep.subr.mxu0 0.0
  %293 = vmatpush1.msra.mxu0 0.0
  %294 = vmatprep.subr.mxu0 0.0
  %295 = vmatpush1.msra.mxu0 0.0
  %296 = vmatprep.subr.mxu0 0.0
  %297 = vmatpush1.msra.mxu0 0.0
  %298 = vmatprep.subr.mxu0 0.0
  %299 = vmatpush1.msra.mxu0 0.0
  %300 = vmatprep.subr.mxu0 0.0
  %301 = vmatpush1.msra.mxu0 0.0
  %302 = vmatprep.subr.mxu0 0.0
  %303 = vmatpush1.msra.mxu0 0.0
  %304 = vmatprep.subr.mxu0 0.0
  %305 = vmatpush1.msra.mxu0 0.0
  %306 = vmatprep.subr.mxu0 0.0
  %307 = vmatpush1.msra.mxu0 0.0
  %308 = vmatprep.subr.mxu0 0.0
  %309 = vmatpush1.msra.mxu0 0.0
  %310 = vmatprep.subr.mxu0 0.0
  %311 = vmatpush1.msra.mxu0 0.0
  %312 = vmatprep.subr.mxu0 0.0
  %313 = vmatpush1.msra.mxu0 0.0
  %314 = vmatprep.subr.mxu0 0.0
  %315 = vmatpush1.msra.mxu0 0.0
  %316 = vmatprep.subr.mxu0 0.0
  %317 = vmatpush1.msra.mxu0 0.0
  %318 = vmatprep.subr.mxu0 0.0
  %319 = vmatpush1.msra.mxu0 0.0
  %320 = vmatprep.subr.mxu0 0.0
  %321 = vmatpush1.msra.mxu0 0.0
  %322 = vmatprep.subr.mxu0 0.0
  %323 = vmatpush1.msra.mxu0 0.0
  %324 = vmatprep.subr.mxu0 0.0
  %325 = vmatpush1.msra.mxu0 0.0
  %326 = vmatprep.subr.mxu0 0.0
  %327 = vmatpush1.msra.mxu0 0.0
  %328 = vmatprep.subr.mxu0 0.0
  %329 = vmatpush1.msra.mxu0 0.0
  %330 = vmatprep.mubr.f32.mxu0 0.0
  %v331 = vand.u32 %v54, 4294901760
  %v332 = vsub.f32 %v54, %v331
  %333 = vmatmul.mubr.f32.gmra.mrb[0].mxu0 %v332
  %v334 = vpop.f32.mrb[0].mxu0
  %v335 = vadd.f32 %v247, %v334
  %v336 = vpop.f32.mrb[0].mxu0
  %337 = vdwg.mxu0
  %338 = vmatprep.subr.mxu0 0.0
  %v339 = vand.u32 %v45, 4294901760
  %340 = vmatpush1.msra.mxu0 %v339
  %341 = vmatprep.subr.mxu0 0.0
  %v342 = vand.u32 %v46, 4294901760
  %343 = vmatpush1.msra.mxu0 %v342
  %344 = vmatprep.subr.mxu0 0.0
  %v345 = vand.u32 %v47, 4294901760
  %346 = vmatpush1.msra.mxu0 %v345
  %347 = vmatprep.subr.mxu0 0.0
  %v348 = vand.u32 %v48, 4294901760
  %349 = vmatpush1.msra.mxu0 %v348
  %350 = vmatprep.subr.mxu0 0.0
  %v351 = vand.u32 %v49, 4294901760
  %352 = vmatpush1.msra.mxu0 %v351
  %353 = vmatprep.subr.mxu0 0.0
  %v354 = vand.u32 %v50, 4294901760
  %355 = vmatpush1.msra.mxu0 %v354
  %356 = vmatprep.subr.mxu0 0.0
  %v357 = vand.u32 %v51, 4294901760
  %358 = vmatpush1.msra.mxu0 %v357
  %359 = vmatprep.subr.mxu0 0.0
  %v360 = vand.u32 %v52, 4294901760
  %361 = vmatpush1.msra.mxu0 %v360
  %362 = vmatprep.subr.mxu0 0.0
  %363 = vmatpush1.msra.mxu0 0.0
  %364 = vmatprep.subr.mxu0 0.0
  %365 = vmatpush1.msra.mxu0 0.0
  %366 = vmatprep.subr.mxu0 0.0
  %367 = vmatpush1.msra.mxu0 0.0
  %368 = vmatprep.subr.mxu0 0.0
  %369 = vmatpush1.msra.mxu0 0.0
  %370 = vmatprep.subr.mxu0 0.0
  %371 = vmatpush1.msra.mxu0 0.0
  %372 = vmatprep.subr.mxu0 0.0
  %373 = vmatpush1.msra.mxu0 0.0
  %374 = vmatprep.subr.mxu0 0.0
  %375 = vmatpush1.msra.mxu0 0.0
  %376 = vmatprep.subr.mxu0 0.0
  %377 = vmatpush1.msra.mxu0 0.0
  %378 = vmatprep.subr.mxu0 0.0
  %379 = vmatpush1.msra.mxu0 0.0
  %380 = vmatprep.subr.mxu0 0.0
  %381 = vmatpush1.msra.mxu0 0.0
  %382 = vmatprep.subr.mxu0 0.0
  %383 = vmatpush1.msra.mxu0 0.0
  %384 = vmatprep.subr.mxu0 0.0
  %385 = vmatpush1.msra.mxu0 0.0
  %386 = vmatprep.subr.mxu0 0.0
  %387 = vmatpush1.msra.mxu0 0.0
  %388 = vmatprep.subr.mxu0 0.0
  %389 = vmatpush1.msra.mxu0 0.0
  %390 = vmatprep.subr.mxu0 0.0
  %391 = vmatpush1.msra.mxu0 0.0
  %392 = vmatprep.subr.mxu0 0.0
  %393 = vmatpush1.msra.mxu0 0.0
  %394 = vmatprep.subr.mxu0 0.0
  %395 = vmatpush1.msra.mxu0 0.0
  %396 = vmatprep.subr.mxu0 0.0
  %397 = vmatpush1.msra.mxu0 0.0
  %398 = vmatprep.subr.mxu0 0.0
  %399 = vmatpush1.msra.mxu0 0.0
  %400 = vmatprep.subr.mxu0 0.0
  %401 = vmatpush1.msra.mxu0 0.0
  %402 = vmatprep.subr.mxu0 0.0
  %403 = vmatpush1.msra.mxu0 0.0
  %404 = vmatprep.subr.mxu0 0.0
  %405 = vmatpush1.msra.mxu0 0.0
  %406 = vmatprep.subr.mxu0 0.0
  %407 = vmatpush1.msra.mxu0 0.0
  %408 = vmatprep.subr.mxu0 0.0
  %409 = vmatpush1.msra.mxu0 0.0
  %410 = vmatprep.mubr.f32.mxu0 0.0
  %v411 = vand.u32 %v54, 4294901760
  %v412 = vsub.f32 %v54, %v411
  %v413 = vand.u32 %v412, 4294901760
  %414 = vmatmul.mubr.f32.gmra.mrb[0].mxu0 %v413
  %v415 = vpop.f32.mrb[0].mxu0
  %v416 = vadd.f32 %v335, %v415
  %v417 = vpop.f32.mrb[0].mxu0
  %418 = vdwg.mxu0
  %419 = vmatprep.subr.mxu0 0.0
  %v420 = vand.u32 %v45, 4294901760
  %v421 = vsub.f32 %v45, %v420
  %v422 = vand.u32 %v421, 4294901760
  %423 = vmatpush1.msra.mxu0 %v422
  %424 = vmatprep.subr.mxu0 0.0
  %v425 = vand.u32 %v46, 4294901760
  %v426 = vsub.f32 %v46, %v425
  %v427 = vand.u32 %v426, 4294901760
  %428 = vmatpush1.msra.mxu0 %v427
  %429 = vmatprep.subr.mxu0 0.0
  %v430 = vand.u32 %v47, 4294901760
  %v431 = vsub.f32 %v47, %v430
  %v432 = vand.u32 %v431, 4294901760
  %433 = vmatpush1.msra.mxu0 %v432
  %434 = vmatprep.subr.mxu0 0.0
  %v435 = vand.u32 %v48, 4294901760
  %v436 = vsub.f32 %v48, %v435
  %v437 = vand.u32 %v436, 4294901760
  %438 = vmatpush1.msra.mxu0 %v437
  %439 = vmatprep.subr.mxu0 0.0
  %v440 = vand.u32 %v49, 4294901760
  %v441 = vsub.f32 %v49, %v440
  %v442 = vand.u32 %v441, 4294901760
  %443 = vmatpush1.msra.mxu0 %v442
  %444 = vmatprep.subr.mxu0 0.0
  %v445 = vand.u32 %v50, 4294901760
  %v446 = vsub.f32 %v50, %v445
  %v447 = vand.u32 %v446, 4294901760
  %448 = vmatpush1.msra.mxu0 %v447
  %449 = vmatprep.subr.mxu0 0.0
  %v450 = vand.u32 %v51, 4294901760
  %v451 = vsub.f32 %v51, %v450
  %v452 = vand.u32 %v451, 4294901760
  %453 = vmatpush1.msra.mxu0 %v452
  %454 = vmatprep.subr.mxu0 0.0
  %v455 = vand.u32 %v52, 4294901760
  %v456 = vsub.f32 %v52, %v455
  %v457 = vand.u32 %v456, 4294901760
  %458 = vmatpush1.msra.mxu0 %v457
  %459 = vmatprep.subr.mxu0 0.0
  %460 = vmatpush1.msra.mxu0 0.0
  %461 = vmatprep.subr.mxu0 0.0
  %462 = vmatpush1.msra.mxu0 0.0
  %463 = vmatprep.subr.mxu0 0.0
  %464 = vmatpush1.msra.mxu0 0.0
  %465 = vmatprep.subr.mxu0 0.0
  %466 = vmatpush1.msra.mxu0 0.0
  %467 = vmatprep.subr.mxu0 0.0
  %468 = vmatpush1.msra.mxu0 0.0
  %469 = vmatprep.subr.mxu0 0.0
  %470 = vmatpush1.msra.mxu0 0.0
  %471 = vmatprep.subr.mxu0 0.0
  %472 = vmatpush1.msra.mxu0 0.0
  %473 = vmatprep.subr.mxu0 0.0
  %474 = vmatpush1.msra.mxu0 0.0
  %475 = vmatprep.subr.mxu0 0.0
  %476 = vmatpush1.msra.mxu0 0.0
  %477 = vmatprep.subr.mxu0 0.0
  %478 = vmatpush1.msra.mxu0 0.0
  %479 = vmatprep.subr.mxu0 0.0
  %480 = vmatpush1.msra.mxu0 0.0
  %481 = vmatprep.subr.mxu0 0.0
  %482 = vmatpush1.msra.mxu0 0.0
  %483 = vmatprep.subr.mxu0 0.0
  %484 = vmatpush1.msra.mxu0 0.0
  %485 = vmatprep.subr.mxu0 0.0
  %486 = vmatpush1.msra.mxu0 0.0
  %487 = vmatprep.subr.mxu0 0.0
  %488 = vmatpush1.msra.mxu0 0.0
  %489 = vmatprep.subr.mxu0 0.0
  %490 = vmatpush1.msra.mxu0 0.0
  %491 = vmatprep.subr.mxu0 0.0
  %492 = vmatpush1.msra.mxu0 0.0
  %493 = vmatprep.subr.mxu0 0.0
  %494 = vmatpush1.msra.mxu0 0.0
  %495 = vmatprep.subr.mxu0 0.0
  %496 = vmatpush1.msra.mxu0 0.0
  %497 = vmatprep.subr.mxu0 0.0
  %498 = vmatpush1.msra.mxu0 0.0
  %499 = vmatprep.subr.mxu0 0.0
  %500 = vmatpush1.msra.mxu0 0.0
  %501 = vmatprep.subr.mxu0 0.0
  %502 = vmatpush1.msra.mxu0 0.0
  %503 = vmatprep.subr.mxu0 0.0
  %504 = vmatpush1.msra.mxu0 0.0
  %505 = vmatprep.subr.mxu0 0.0
  %506 = vmatpush1.msra.mxu0 0.0
  %507 = vmatprep.mubr.f32.mxu0 0.0
  %v508 = vand.u32 %v54, 4294901760
  %509 = vmatmul.mubr.f32.gmra.mrb[0].mxu0 %v508
  %v510 = vpop.f32.mrb[0].mxu0
  %v511 = vadd.f32 %v416, %v510
  %v512 = vpop.f32.mrb[0].mxu0
  %513 = vdwg.mxu0
  %514 = vmatprep.subr.mxu0 0.0
  %v515 = vand.u32 %v45, 4294901760
  %516 = vmatpush1.msra.mxu0 %v515
  %517 = vmatprep.subr.mxu0 0.0
  %v518 = vand.u32 %v46, 4294901760
  %519 = vmatpush1.msra.mxu0 %v518
  %520 = vmatprep.subr.mxu0 0.0
  %v521 = vand.u32 %v47, 4294901760
  %522 = vmatpush1.msra.mxu0 %v521
  %523 = vmatprep.subr.mxu0 0.0
  %v524 = vand.u32 %v48, 4294901760
  %525 = vmatpush1.msra.mxu0 %v524
  %526 = vmatprep.subr.mxu0 0.0
  %v527 = vand.u32 %v49, 4294901760
  %528 = vmatpush1.msra.mxu0 %v527
  %529 = vmatprep.subr.mxu0 0.0
  %v530 = vand.u32 %v50, 4294901760
  %531 = vmatpush1.msra.mxu0 %v530
  %532 = vmatprep.subr.mxu0 0.0
  %v533 = vand.u32 %v51, 4294901760
  %534 = vmatpush1.msra.mxu0 %v533
  %535 = vmatprep.subr.mxu0 0.0
  %v536 = vand.u32 %v52, 4294901760
  %537 = vmatpush1.msra.mxu0 %v536
  %538 = vmatprep.subr.mxu0 0.0
  %539 = vmatpush1.msra.mxu0 0.0
  %540 = vmatprep.subr.mxu0 0.0
  %541 = vmatpush1.msra.mxu0 0.0
  %542 = vmatprep.subr.mxu0 0.0
  %543 = vmatpush1.msra.mxu0 0.0
  %544 = vmatprep.subr.mxu0 0.0
  %545 = vmatpush1.msra.mxu0 0.0
  %546 = vmatprep.subr.mxu0 0.0
  %547 = vmatpush1.msra.mxu0 0.0
  %548 = vmatprep.subr.mxu0 0.0
  %549 = vmatpush1.msra.mxu0 0.0
  %550 = vmatprep.subr.mxu0 0.0
  %551 = vmatpush1.msra.mxu0 0.0
  %552 = vmatprep.subr.mxu0 0.0
  %553 = vmatpush1.msra.mxu0 0.0
  %554 = vmatprep.subr.mxu0 0.0
  %555 = vmatpush1.msra.mxu0 0.0
  %556 = vmatprep.subr.mxu0 0.0
  %557 = vmatpush1.msra.mxu0 0.0
  %558 = vmatprep.subr.mxu0 0.0
  %559 = vmatpush1.msra.mxu0 0.0
  %560 = vmatprep.subr.mxu0 0.0
  %561 = vmatpush1.msra.mxu0 0.0
  %562 = vmatprep.subr.mxu0 0.0
  %563 = vmatpush1.msra.mxu0 0.0
  %564 = vmatprep.subr.mxu0 0.0
  %565 = vmatpush1.msra.mxu0 0.0
  %566 = vmatprep.subr.mxu0 0.0
  %567 = vmatpush1.msra.mxu0 0.0
  %568 = vmatprep.subr.mxu0 0.0
  %569 = vmatpush1.msra.mxu0 0.0
  %570 = vmatprep.subr.mxu0 0.0
  %571 = vmatpush1.msra.mxu0 0.0
  %572 = vmatprep.subr.mxu0 0.0
  %573 = vmatpush1.msra.mxu0 0.0
  %574 = vmatprep.subr.mxu0 0.0
  %575 = vmatpush1.msra.mxu0 0.0
  %576 = vmatprep.subr.mxu0 0.0
  %577 = vmatpush1.msra.mxu0 0.0
  %578 = vmatprep.subr.mxu0 0.0
  %579 = vmatpush1.msra.mxu0 0.0
  %580 = vmatprep.subr.mxu0 0.0
  %581 = vmatpush1.msra.mxu0 0.0
  %582 = vmatprep.subr.mxu0 0.0
  %583 = vmatpush1.msra.mxu0 0.0
  %584 = vmatprep.subr.mxu0 0.0
  %585 = vmatpush1.msra.mxu0 0.0
  %586 = vmatprep.mubr.f32.mxu0 0.0
  %v587 = vand.u32 %v54, 4294901760
  %588 = vmatmul.mubr.f32.gmra.mrb[0].mxu0 %v587
  %v589 = vpop.f32.mrb[0].mxu0
  %v590 = vadd.f32 %v511, %v589
  %v591 = vpop.f32.mrb[0].mxu0
  %592 = vdwg.mxu0
  %v594 = vsel %vm33, %v29, 0
  %596 = vmatprep.subr.mxu0 0.0
  %v597 = vand.u32 %v36, 4294901760
  %598 = vmatpush1.msra.mxu0 %v597
  %599 = vmatprep.subr.mxu0 0.0
  %v600 = vand.u32 %v37, 4294901760
  %601 = vmatpush1.msra.mxu0 %v600
  %602 = vmatprep.subr.mxu0 0.0
  %v603 = vand.u32 %v38, 4294901760
  %604 = vmatpush1.msra.mxu0 %v603
  %605 = vmatprep.subr.mxu0 0.0
  %v606 = vand.u32 %v39, 4294901760
  %607 = vmatpush1.msra.mxu0 %v606
  %608 = vmatprep.subr.mxu0 0.0
  %v609 = vand.u32 %v40, 4294901760
  %610 = vmatpush1.msra.mxu0 %v609
  %611 = vmatprep.subr.mxu0 0.0
  %v612 = vand.u32 %v41, 4294901760
  %613 = vmatpush1.msra.mxu0 %v612
  %614 = vmatprep.subr.mxu0 0.0
  %v615 = vand.u32 %v42, 4294901760
  %616 = vmatpush1.msra.mxu0 %v615
  %617 = vmatprep.subr.mxu0 0.0
  %v618 = vand.u32 %v43, 4294901760
  %619 = vmatpush1.msra.mxu0 %v618
  %620 = vmatprep.subr.mxu0 0.0
  %621 = vmatpush1.msra.mxu0 0.0
  %622 = vmatprep.subr.mxu0 0.0
  %623 = vmatpush1.msra.mxu0 0.0
  %624 = vmatprep.subr.mxu0 0.0
  %625 = vmatpush1.msra.mxu0 0.0
  %626 = vmatprep.subr.mxu0 0.0
  %627 = vmatpush1.msra.mxu0 0.0
  %628 = vmatprep.subr.mxu0 0.0
  %629 = vmatpush1.msra.mxu0 0.0
  %630 = vmatprep.subr.mxu0 0.0
  %631 = vmatpush1.msra.mxu0 0.0
  %632 = vmatprep.subr.mxu0 0.0
  %633 = vmatpush1.msra.mxu0 0.0
  %634 = vmatprep.subr.mxu0 0.0
  %635 = vmatpush1.msra.mxu0 0.0
  %636 = vmatprep.subr.mxu0 0.0
  %637 = vmatpush1.msra.mxu0 0.0
  %638 = vmatprep.subr.mxu0 0.0
  %639 = vmatpush1.msra.mxu0 0.0
  %640 = vmatprep.subr.mxu0 0.0
  %641 = vmatpush1.msra.mxu0 0.0
  %642 = vmatprep.subr.mxu0 0.0
  %643 = vmatpush1.msra.mxu0 0.0
  %644 = vmatprep.subr.mxu0 0.0
  %645 = vmatpush1.msra.mxu0 0.0
  %646 = vmatprep.subr.mxu0 0.0
  %647 = vmatpush1.msra.mxu0 0.0
  %648 = vmatprep.subr.mxu0 0.0
  %649 = vmatpush1.msra.mxu0 0.0
  %650 = vmatprep.subr.mxu0 0.0
  %651 = vmatpush1.msra.mxu0 0.0
  %652 = vmatprep.subr.mxu0 0.0
  %653 = vmatpush1.msra.mxu0 0.0
  %654 = vmatprep.subr.mxu0 0.0
  %655 = vmatpush1.msra.mxu0 0.0
  %656 = vmatprep.subr.mxu0 0.0
  %657 = vmatpush1.msra.mxu0 0.0
  %658 = vmatprep.subr.mxu0 0.0
  %659 = vmatpush1.msra.mxu0 0.0
  %660 = vmatprep.subr.mxu0 0.0
  %661 = vmatpush1.msra.mxu0 0.0
  %662 = vmatprep.subr.mxu0 0.0
  %663 = vmatpush1.msra.mxu0 0.0
  %664 = vmatprep.subr.mxu0 0.0
  %665 = vmatpush1.msra.mxu0 0.0
  %666 = vmatprep.subr.mxu0 0.0
  %667 = vmatpush1.msra.mxu0 0.0
  %668 = vmatprep.mubr.f32.mxu0 0.0
  %v669 = vand.u32 %v594, 4294901760
  %v670 = vsub.f32 %v594, %v669
  %v671 = vand.u32 %v670, 4294901760
  %v672 = vsub.f32 %v670, %v671
  %v673 = vand.u32 %v672, 4294901760
  %674 = vmatmul.mubr.f32.gmra.mrb[0].mxu0 %v673
  %v675 = vpop.f32.mrb[0].mxu0
  %v676 = vadd.f32 %v590, %v675
  %v677 = vpop.f32.mrb[0].mxu0
  %678 = vdwg.mxu0
  %679 = vmatprep.subr.mxu0 0.0
  %v680 = vand.u32 %v36, 4294901760
  %v681 = vsub.f32 %v36, %v680
  %v682 = vand.u32 %v681, 4294901760
  %v683 = vsub.f32 %v681, %v682
  %v684 = vand.u32 %v683, 4294901760
  %685 = vmatpush1.msra.mxu0 %v684
  %686 = vmatprep.subr.mxu0 0.0
  %v687 = vand.u32 %v37, 4294901760
  %v688 = vsub.f32 %v37, %v687
  %v689 = vand.u32 %v688, 4294901760
  %v690 = vsub.f32 %v688, %v689
  %v691 = vand.u32 %v690, 4294901760
  %692 = vmatpush1.msra.mxu0 %v691
  %693 = vmatprep.subr.mxu0 0.0
  %v694 = vand.u32 %v38, 4294901760
  %v695 = vsub.f32 %v38, %v694
  %v696 = vand.u32 %v695, 4294901760
  %v697 = vsub.f32 %v695, %v696
  %v698 = vand.u32 %v697, 4294901760
  %699 = vmatpush1.msra.mxu0 %v698
  %700 = vmatprep.subr.mxu0 0.0
  %v701 = vand.u32 %v39, 4294901760
  %v702 = vsub.f32 %v39, %v701
  %v703 = vand.u32 %v702, 4294901760
  %v704 = vsub.f32 %v702, %v703
  %v705 = vand.u32 %v704, 4294901760
  %706 = vmatpush1.msra.mxu0 %v705
  %707 = vmatprep.subr.mxu0 0.0
  %v708 = vand.u32 %v40, 4294901760
  %v709 = vsub.f32 %v40, %v708
  %v710 = vand.u32 %v709, 4294901760
  %v711 = vsub.f32 %v709, %v710
  %v712 = vand.u32 %v711, 4294901760
  %713 = vmatpush1.msra.mxu0 %v712
  %714 = vmatprep.subr.mxu0 0.0
  %v715 = vand.u32 %v41, 4294901760
  %v716 = vsub.f32 %v41, %v715
  %v717 = vand.u32 %v716, 4294901760
  %v718 = vsub.f32 %v716, %v717
  %v719 = vand.u32 %v718, 4294901760
  %720 = vmatpush1.msra.mxu0 %v719
  %721 = vmatprep.subr.mxu0 0.0
  %v722 = vand.u32 %v42, 4294901760
  %v723 = vsub.f32 %v42, %v722
  %v724 = vand.u32 %v723, 4294901760
  %v725 = vsub.f32 %v723, %v724
  %v726 = vand.u32 %v725, 4294901760
  %727 = vmatpush1.msra.mxu0 %v726
  %728 = vmatprep.subr.mxu0 0.0
  %v729 = vand.u32 %v43, 4294901760
  %v730 = vsub.f32 %v43, %v729
  %v731 = vand.u32 %v730, 4294901760
  %v732 = vsub.f32 %v730, %v731
  %v733 = vand.u32 %v732, 4294901760
  %734 = vmatpush1.msra.mxu0 %v733
  %735 = vmatprep.subr.mxu0 0.0
  %736 = vmatpush1.msra.mxu0 0.0
  %737 = vmatprep.subr.mxu0 0.0
  %738 = vmatpush1.msra.mxu0 0.0
  %739 = vmatprep.subr.mxu0 0.0
  %740 = vmatpush1.msra.mxu0 0.0
  %741 = vmatprep.subr.mxu0 0.0
  %742 = vmatpush1.msra.mxu0 0.0
  %743 = vmatprep.subr.mxu0 0.0
  %744 = vmatpush1.msra.mxu0 0.0
  %745 = vmatprep.subr.mxu0 0.0
  %746 = vmatpush1.msra.mxu0 0.0
  %747 = vmatprep.subr.mxu0 0.0
  %748 = vmatpush1.msra.mxu0 0.0
  %749 = vmatprep.subr.mxu0 0.0
  %750 = vmatpush1.msra.mxu0 0.0
  %751 = vmatprep.subr.mxu0 0.0
  %752 = vmatpush1.msra.mxu0 0.0
  %753 = vmatprep.subr.mxu0 0.0
  %754 = vmatpush1.msra.mxu0 0.0
  %755 = vmatprep.subr.mxu0 0.0
  %756 = vmatpush1.msra.mxu0 0.0
  %757 = vmatprep.subr.mxu0 0.0
  %758 = vmatpush1.msra.mxu0 0.0
  %759 = vmatprep.subr.mxu0 0.0
  %760 = vmatpush1.msra.mxu0 0.0
  %761 = vmatprep.subr.mxu0 0.0
  %762 = vmatpush1.msra.mxu0 0.0
  %763 = vmatprep.subr.mxu0 0.0
  %764 = vmatpush1.msra.mxu0 0.0
  %765 = vmatprep.subr.mxu0 0.0
  %766 = vmatpush1.msra.mxu0 0.0
  %767 = vmatprep.subr.mxu0 0.0
  %768 = vmatpush1.msra.mxu0 0.0
  %769 = vmatprep.subr.mxu0 0.0
  %770 = vmatpush1.msra.mxu0 0.0
  %771 = vmatprep.subr.mxu0 0.0
  %772 = vmatpush1.msra.mxu0 0.0
  %773 = vmatprep.subr.mxu0 0.0
  %774 = vmatpush1.msra.mxu0 0.0
  %775 = vmatprep.subr.mxu0 0.0
  %776 = vmatpush1.msra.mxu0 0.0
  %777 = vmatprep.subr.mxu0 0.0
  %778 = vmatpush1.msra.mxu0 0.0
  %779 = vmatprep.subr.mxu0 0.0
  %780 = vmatpush1.msra.mxu0 0.0
  %781 = vmatprep.subr.mxu0 0.0
  %782 = vmatpush1.msra.mxu0 0.0
  %783 = vmatprep.mubr.f32.mxu0 0.0
  %v784 = vand.u32 %v594, 4294901760
  %785 = vmatmul.mubr.f32.gmra.mrb[0].mxu0 %v784
  %v786 = vpop.f32.mrb[0].mxu0
  %v787 = vadd.f32 %v676, %v786
  %v788 = vpop.f32.mrb[0].mxu0
  %789 = vdwg.mxu0
  %790 = vmatprep.subr.mxu0 0.0
  %v791 = vand.u32 %v36, 4294901760
  %v792 = vsub.f32 %v36, %v791
  %793 = vmatpush1.msra.mxu0 %v792
  %794 = vmatprep.subr.mxu0 0.0
  %v795 = vand.u32 %v37, 4294901760
  %v796 = vsub.f32 %v37, %v795
  %797 = vmatpush1.msra.mxu0 %v796
  %798 = vmatprep.subr.mxu0 0.0
  %v799 = vand.u32 %v38, 4294901760
  %v800 = vsub.f32 %v38, %v799
  %801 = vmatpush1.msra.mxu0 %v800
  %802 = vmatprep.subr.mxu0 0.0
  %v803 = vand.u32 %v39, 4294901760
  %v804 = vsub.f32 %v39, %v803
  %805 = vmatpush1.msra.mxu0 %v804
  %806 = vmatprep.subr.mxu0 0.0
  %v807 = vand.u32 %v40, 4294901760
  %v808 = vsub.f32 %v40, %v807
  %809 = vmatpush1.msra.mxu0 %v808
  %810 = vmatprep.subr.mxu0 0.0
  %v811 = vand.u32 %v41, 4294901760
  %v812 = vsub.f32 %v41, %v811
  %813 = vmatpush1.msra.mxu0 %v812
  %814 = vmatprep.subr.mxu0 0.0
  %v815 = vand.u32 %v42, 4294901760
  %v816 = vsub.f32 %v42, %v815
  %817 = vmatpush1.msra.mxu0 %v816
  %818 = vmatprep.subr.mxu0 0.0
  %v819 = vand.u32 %v43, 4294901760
  %v820 = vsub.f32 %v43, %v819
  %821 = vmatpush1.msra.mxu0 %v820
  %822 = vmatprep.subr.mxu0 0.0
  %823 = vmatpush1.msra.mxu0 0.0
  %824 = vmatprep.subr.mxu0 0.0
  %825 = vmatpush1.msra.mxu0 0.0
  %826 = vmatprep.subr.mxu0 0.0
  %827 = vmatpush1.msra.mxu0 0.0
  %828 = vmatprep.subr.mxu0 0.0
  %829 = vmatpush1.msra.mxu0 0.0
  %830 = vmatprep.subr.mxu0 0.0
  %831 = vmatpush1.msra.mxu0 0.0
  %832 = vmatprep.subr.mxu0 0.0
  %833 = vmatpush1.msra.mxu0 0.0
  %834 = vmatprep.subr.mxu0 0.0
  %835 = vmatpush1.msra.mxu0 0.0
  %836 = vmatprep.subr.mxu0 0.0
  %837 = vmatpush1.msra.mxu0 0.0
  %838 = vmatprep.subr.mxu0 0.0
  %839 = vmatpush1.msra.mxu0 0.0
  %840 = vmatprep.subr.mxu0 0.0
  %841 = vmatpush1.msra.mxu0 0.0
  %842 = vmatprep.subr.mxu0 0.0
  %843 = vmatpush1.msra.mxu0 0.0
  %844 = vmatprep.subr.mxu0 0.0
  %845 = vmatpush1.msra.mxu0 0.0
  %846 = vmatprep.subr.mxu0 0.0
  %847 = vmatpush1.msra.mxu0 0.0
  %848 = vmatprep.subr.mxu0 0.0
  %849 = vmatpush1.msra.mxu0 0.0
  %850 = vmatprep.subr.mxu0 0.0
  %851 = vmatpush1.msra.mxu0 0.0
  %852 = vmatprep.subr.mxu0 0.0
  %853 = vmatpush1.msra.mxu0 0.0
  %854 = vmatprep.subr.mxu0 0.0
  %855 = vmatpush1.msra.mxu0 0.0
  %856 = vmatprep.subr.mxu0 0.0
  %857 = vmatpush1.msra.mxu0 0.0
  %858 = vmatprep.subr.mxu0 0.0
  %859 = vmatpush1.msra.mxu0 0.0
  %860 = vmatprep.subr.mxu0 0.0
  %861 = vmatpush1.msra.mxu0 0.0
  %862 = vmatprep.subr.mxu0 0.0
  %863 = vmatpush1.msra.mxu0 0.0
  %864 = vmatprep.subr.mxu0 0.0
  %865 = vmatpush1.msra.mxu0 0.0
  %866 = vmatprep.subr.mxu0 0.0
  %867 = vmatpush1.msra.mxu0 0.0
  %868 = vmatprep.subr.mxu0 0.0
  %869 = vmatpush1.msra.mxu0 0.0
  %870 = vmatprep.mubr.f32.mxu0 0.0
  %v871 = vand.u32 %v594, 4294901760
  %v872 = vsub.f32 %v594, %v871
  %873 = vmatmul.mubr.f32.gmra.mrb[0].mxu0 %v872
  %v874 = vpop.f32.mrb[0].mxu0
  %v875 = vadd.f32 %v787, %v874
  %v876 = vpop.f32.mrb[0].mxu0
  %877 = vdwg.mxu0
  %878 = vmatprep.subr.mxu0 0.0
  %v879 = vand.u32 %v36, 4294901760
  %880 = vmatpush1.msra.mxu0 %v879
  %881 = vmatprep.subr.mxu0 0.0
  %v882 = vand.u32 %v37, 4294901760
  %883 = vmatpush1.msra.mxu0 %v882
  %884 = vmatprep.subr.mxu0 0.0
  %v885 = vand.u32 %v38, 4294901760
  %886 = vmatpush1.msra.mxu0 %v885
  %887 = vmatprep.subr.mxu0 0.0
  %v888 = vand.u32 %v39, 4294901760
  %889 = vmatpush1.msra.mxu0 %v888
  %890 = vmatprep.subr.mxu0 0.0
  %v891 = vand.u32 %v40, 4294901760
  %892 = vmatpush1.msra.mxu0 %v891
  %893 = vmatprep.subr.mxu0 0.0
  %v894 = vand.u32 %v41, 4294901760
  %895 = vmatpush1.msra.mxu0 %v894
  %896 = vmatprep.subr.mxu0 0.0
  %v897 = vand.u32 %v42, 4294901760
  %898 = vmatpush1.msra.mxu0 %v897
  %899 = vmatprep.subr.mxu0 0.0
  %v900 = vand.u32 %v43, 4294901760
  %901 = vmatpush1.msra.mxu0 %v900
  %902 = vmatprep.subr.mxu0 0.0
  %903 = vmatpush1.msra.mxu0 0.0
  %904 = vmatprep.subr.mxu0 0.0
  %905 = vmatpush1.msra.mxu0 0.0
  %906 = vmatprep.subr.mxu0 0.0
  %907 = vmatpush1.msra.mxu0 0.0
  %908 = vmatprep.subr.mxu0 0.0
  %909 = vmatpush1.msra.mxu0 0.0
  %910 = vmatprep.subr.mxu0 0.0
  %911 = vmatpush1.msra.mxu0 0.0
  %912 = vmatprep.subr.mxu0 0.0
  %913 = vmatpush1.msra.mxu0 0.0
  %914 = vmatprep.subr.mxu0 0.0
  %915 = vmatpush1.msra.mxu0 0.0
  %916 = vmatprep.subr.mxu0 0.0
  %917 = vmatpush1.msra.mxu0 0.0
  %918 = vmatprep.subr.mxu0 0.0
  %919 = vmatpush1.msra.mxu0 0.0
  %920 = vmatprep.subr.mxu0 0.0
  %921 = vmatpush1.msra.mxu0 0.0
  %922 = vmatprep.subr.mxu0 0.0
  %923 = vmatpush1.msra.mxu0 0.0
  %924 = vmatprep.subr.mxu0 0.0
  %925 = vmatpush1.msra.mxu0 0.0
  %926 = vmatprep.subr.mxu0 0.0
  %927 = vmatpush1.msra.mxu0 0.0
  %928 = vmatprep.subr.mxu0 0.0
  %929 = vmatpush1.msra.mxu0 0.0
  %930 = vmatprep.subr.mxu0 0.0
  %931 = vmatpush1.msra.mxu0 0.0
  %932 = vmatprep.subr.mxu0 0.0
  %933 = vmatpush1.msra.mxu0 0.0
  %934 = vmatprep.subr.mxu0 0.0
  %935 = vmatpush1.msra.mxu0 0.0
  %936 = vmatprep.subr.mxu0 0.0
  %937 = vmatpush1.msra.mxu0 0.0
  %938 = vmatprep.subr.mxu0 0.0
  %939 = vmatpush1.msra.mxu0 0.0
  %940 = vmatprep.subr.mxu0 0.0
  %941 = vmatpush1.msra.mxu0 0.0
  %942 = vmatprep.subr.mxu0 0.0
  %943 = vmatpush1.msra.mxu0 0.0
  %944 = vmatprep.subr.mxu0 0.0
  %945 = vmatpush1.msra.mxu0 0.0
  %946 = vmatprep.subr.mxu0 0.0
  %947 = vmatpush1.msra.mxu0 0.0
  %948 = vmatprep.subr.mxu0 0.0
  %949 = vmatpush1.msra.mxu0 0.0
  %950 = vmatprep.mubr.f32.mxu0 0.0
  %v951 = vand.u32 %v594, 4294901760
  %v952 = vsub.f32 %v594, %v951
  %v953 = vand.u32 %v952, 4294901760
  %954 = vmatmul.mubr.f32.gmra.mrb[0].mxu0 %v953
  %v955 = vpop.f32.mrb[0].mxu0
  %v956 = vadd.f32 %v875, %v955
  %v957 = vpop.f32.mrb[0].mxu0
  %958 = vdwg.mxu0
  %959 = vmatprep.subr.mxu0 0.0
  %v960 = vand.u32 %v36, 4294901760
  %v961 = vsub.f32 %v36, %v960
  %v962 = vand.u32 %v961, 4294901760
  %963 = vmatpush1.msra.mxu0 %v962
  %964 = vmatprep.subr.mxu0 0.0
  %v965 = vand.u32 %v37, 4294901760
  %v966 = vsub.f32 %v37, %v965
  %v967 = vand.u32 %v966, 4294901760
  %968 = vmatpush1.msra.mxu0 %v967
  %969 = vmatprep.subr.mxu0 0.0
  %v970 = vand.u32 %v38, 4294901760
  %v971 = vsub.f32 %v38, %v970
  %v972 = vand.u32 %v971, 4294901760
  %973 = vmatpush1.msra.mxu0 %v972
  %974 = vmatprep.subr.mxu0 0.0
  %v975 = vand.u32 %v39, 4294901760
  %v976 = vsub.f32 %v39, %v975
  %v977 = vand.u32 %v976, 4294901760
  %978 = vmatpush1.msra.mxu0 %v977
  %979 = vmatprep.subr.mxu0 0.0
  %v980 = vand.u32 %v40, 4294901760
  %v981 = vsub.f32 %v40, %v980
  %v982 = vand.u32 %v981, 4294901760
  %983 = vmatpush1.msra.mxu0 %v982
  %984 = vmatprep.subr.mxu0 0.0
  %v985 = vand.u32 %v41, 4294901760
  %v986 = vsub.f32 %v41, %v985
  %v987 = vand.u32 %v986, 4294901760
  %988 = vmatpush1.msra.mxu0 %v987
  %989 = vmatprep.subr.mxu0 0.0
  %v990 = vand.u32 %v42, 4294901760
  %v991 = vsub.f32 %v42, %v990
  %v992 = vand.u32 %v991, 4294901760
  %993 = vmatpush1.msra.mxu0 %v992
  %994 = vmatprep.subr.mxu0 0.0
  %v995 = vand.u32 %v43, 4294901760
  %v996 = vsub.f32 %v43, %v995
  %v997 = vand.u32 %v996, 4294901760
  %998 = vmatpush1.msra.mxu0 %v997
  %999 = vmatprep.subr.mxu0 0.0
  %1000 = vmatpush1.msra.mxu0 0.0
  %1001 = vmatprep.subr.mxu0 0.0
  %1002 = vmatpush1.msra.mxu0 0.0
  %1003 = vmatprep.subr.mxu0 0.0
  %1004 = vmatpush1.msra.mxu0 0.0
  %1005 = vmatprep.subr.mxu0 0.0
  %1006 = vmatpush1.msra.mxu0 0.0
  %1007 = vmatprep.subr.mxu0 0.0
  %1008 = vmatpush1.msra.mxu0 0.0
  %1009 = vmatprep.subr.mxu0 0.0
  %1010 = vmatpush1.msra.mxu0 0.0
  %1011 = vmatprep.subr.mxu0 0.0
  %1012 = vmatpush1.msra.mxu0 0.0
  %1013 = vmatprep.subr.mxu0 0.0
  %1014 = vmatpush1.msra.mxu0 0.0
  %1015 = vmatprep.subr.mxu0 0.0
  %1016 = vmatpush1.msra.mxu0 0.0
  %1017 = vmatprep.subr.mxu0 0.0
  %1018 = vmatpush1.msra.mxu0 0.0
  %1019 = vmatprep.subr.mxu0 0.0
  %1020 = vmatpush1.msra.mxu0 0.0
  %1021 = vmatprep.subr.mxu0 0.0
  %1022 = vmatpush1.msra.mxu0 0.0
  %1023 = vmatprep.subr.mxu0 0.0
  %1024 = vmatpush1.msra.mxu0 0.0
  %1025 = vmatprep.subr.mxu0 0.0
  %1026 = vmatpush1.msra.mxu0 0.0
  %1027 = vmatprep.subr.mxu0 0.0
  %1028 = vmatpush1.msra.mxu0 0.0
  %1029 = vmatprep.subr.mxu0 0.0
  %1030 = vmatpush1.msra.mxu0 0.0
  %1031 = vmatprep.subr.mxu0 0.0
  %1032 = vmatpush1.msra.mxu0 0.0
  %1033 = vmatprep.subr.mxu0 0.0
  %1034 = vmatpush1.msra.mxu0 0.0
  %1035 = vmatprep.subr.mxu0 0.0
  %1036 = vmatpush1.msra.mxu0 0.0
  %1037 = vmatprep.subr.mxu0 0.0
  %1038 = vmatpush1.msra.mxu0 0.0
  %1039 = vmatprep.subr.mxu0 0.0
  %1040 = vmatpush1.msra.mxu0 0.0
  %1041 = vmatprep.subr.mxu0 0.0
  %1042 = vmatpush1.msra.mxu0 0.0
  %1043 = vmatprep.subr.mxu0 0.0
  %1044 = vmatpush1.msra.mxu0 0.0
  %1045 = vmatprep.subr.mxu0 0.0
  %1046 = vmatpush1.msra.mxu0 0.0
  %1047 = vmatprep.mubr.f32.mxu0 0.0
  %v1048 = vand.u32 %v594, 4294901760
  %1049 = vmatmul.mubr.f32.gmra.mrb[0].mxu0 %v1048
  %v1050 = vpop.f32.mrb[0].mxu0
  %v1051 = vadd.f32 %v956, %v1050
  %v1052 = vpop.f32.mrb[0].mxu0
  %1053 = vdwg.mxu0
  %1054 = vmatprep.subr.mxu0 0.0
  %v1055 = vand.u32 %v36, 4294901760
  %1056 = vmatpush1.msra.mxu0 %v1055
  %1057 = vmatprep.subr.mxu0 0.0
  %v1058 = vand.u32 %v37, 4294901760
  %1059 = vmatpush1.msra.mxu0 %v1058
  %1060 = vmatprep.subr.mxu0 0.0
  %v1061 = vand.u32 %v38, 4294901760
  %1062 = vmatpush1.msra.mxu0 %v1061
  %1063 = vmatprep.subr.mxu0 0.0
  %v1064 = vand.u32 %v39, 4294901760
  %1065 = vmatpush1.msra.mxu0 %v1064
  %1066 = vmatprep.subr.mxu0 0.0
  %v1067 = vand.u32 %v40, 4294901760
  %1068 = vmatpush1.msra.mxu0 %v1067
  %1069 = vmatprep.subr.mxu0 0.0
  %v1070 = vand.u32 %v41, 4294901760
  %1071 = vmatpush1.msra.mxu0 %v1070
  %1072 = vmatprep.subr.mxu0 0.0
  %v1073 = vand.u32 %v42, 4294901760
  %1074 = vmatpush1.msra.mxu0 %v1073
  %1075 = vmatprep.subr.mxu0 0.0
  %v1076 = vand.u32 %v43, 4294901760
  %1077 = vmatpush1.msra.mxu0 %v1076
  %1078 = vmatprep.subr.mxu0 0.0
  %1079 = vmatpush1.msra.mxu0 0.0
  %1080 = vmatprep.subr.mxu0 0.0
  %1081 = vmatpush1.msra.mxu0 0.0
  %1082 = vmatprep.subr.mxu0 0.0
  %1083 = vmatpush1.msra.mxu0 0.0
  %1084 = vmatprep.subr.mxu0 0.0
  %1085 = vmatpush1.msra.mxu0 0.0
  %1086 = vmatprep.subr.mxu0 0.0
  %1087 = vmatpush1.msra.mxu0 0.0
  %1088 = vmatprep.subr.mxu0 0.0
  %1089 = vmatpush1.msra.mxu0 0.0
  %1090 = vmatprep.subr.mxu0 0.0
  %1091 = vmatpush1.msra.mxu0 0.0
  %1092 = vmatprep.subr.mxu0 0.0
  %1093 = vmatpush1.msra.mxu0 0.0
  %1094 = vmatprep.subr.mxu0 0.0
  %1095 = vmatpush1.msra.mxu0 0.0
  %1096 = vmatprep.subr.mxu0 0.0
  %1097 = vmatpush1.msra.mxu0 0.0
  %1098 = vmatprep.subr.mxu0 0.0
  %1099 = vmatpush1.msra.mxu0 0.0
  %1100 = vmatprep.subr.mxu0 0.0
  %1101 = vmatpush1.msra.mxu0 0.0
  %1102 = vmatprep.subr.mxu0 0.0
  %1103 = vmatpush1.msra.mxu0 0.0
  %1104 = vmatprep.subr.mxu0 0.0
  %1105 = vmatpush1.msra.mxu0 0.0
  %1106 = vmatprep.subr.mxu0 0.0
  %1107 = vmatpush1.msra.mxu0 0.0
  %1108 = vmatprep.subr.mxu0 0.0
  %1109 = vmatpush1.msra.mxu0 0.0
  %1110 = vmatprep.subr.mxu0 0.0
  %1111 = vmatpush1.msra.mxu0 0.0
  %1112 = vmatprep.subr.mxu0 0.0
  %1113 = vmatpush1.msra.mxu0 0.0
  %1114 = vmatprep.subr.mxu0 0.0
  %1115 = vmatpush1.msra.mxu0 0.0
  %1116 = vmatprep.subr.mxu0 0.0
  %1117 = vmatpush1.msra.mxu0 0.0
  %1118 = vmatprep.subr.mxu0 0.0
  %1119 = vmatpush1.msra.mxu0 0.0
  %1120 = vmatprep.subr.mxu0 0.0
  %1121 = vmatpush1.msra.mxu0 0.0
  %1122 = vmatprep.subr.mxu0 0.0
  %1123 = vmatpush1.msra.mxu0 0.0
  %1124 = vmatprep.subr.mxu0 0.0
  %1125 = vmatpush1.msra.mxu0 0.0
  %1126 = vmatprep.mubr.f32.mxu0 0.0
  %v1127 = vand.u32 %v594, 4294901760
  %1128 = vmatmul.mubr.f32.gmra.mrb[0].mxu0 %v1127
  %v1129 = vpop.f32.mrb[0].mxu0
  %v1130 = vadd.f32 %v1051, %v1129
  %v1131 = vpop.f32.mrb[0].mxu0
  %1132 = vdwg.mxu0
  %v1133 = vld [vmem:[#allocation2 + $0x2] sm:$0xff]
  %s1134 = scalar_lea.vmem %s1, 128
  %v1135 = vld [vmem:[%s1134] sm:$0xff]
  %v1136 = vld [vmem:[%s1134 + $0x8] sm:$0xff]
  %v1137 = vld [vmem:[%s1134 + $0x10] sm:$0xff]
  %v1138 = vld [vmem:[%s1134 + $0x18] sm:$0xff]
  %v1139 = vld [vmem:[%s1134 + $0x20] sm:$0xff]
  %v1140 = vld [vmem:[%s1134 + $0x28] sm:$0xff]
  %v1141 = vld [vmem:[%s1134 + $0x30] sm:$0xff]
  %v1142 = vld [vmem:[%s1134 + $0x38] sm:$0xff]
  %v1144 = vsel %vm33, %v1133, 0
  %1146 = vmatprep.subr.mxu0 0.0
  %v1147 = vand.u32 %v1135, 4294901760
  %1148 = vmatpush1.msra.mxu0 %v1147
  %1149 = vmatprep.subr.mxu0 0.0
  %v1150 = vand.u32 %v1136, 4294901760
  %1151 = vmatpush1.msra.mxu0 %v1150
  %1152 = vmatprep.subr.mxu0 0.0
  %v1153 = vand.u32 %v1137, 4294901760
  %1154 = vmatpush1.msra.mxu0 %v1153
  %1155 = vmatprep.subr.mxu0 0.0
  %v1156 = vand.u32 %v1138, 4294901760
  %1157 = vmatpush1.msra.mxu0 %v1156
  %1158 = vmatprep.subr.mxu0 0.0
  %v1159 = vand.u32 %v1139, 4294901760
  %1160 = vmatpush1.msra.mxu0 %v1159
  %1161 = vmatprep.subr.mxu0 0.0
  %v1162 = vand.u32 %v1140, 4294901760
  %1163 = vmatpush1.msra.mxu0 %v1162
  %1164 = vmatprep.subr.mxu0 0.0
  %v1165 = vand.u32 %v1141, 4294901760
  %1166 = vmatpush1.msra.mxu0 %v1165
  %1167 = vmatprep.subr.mxu0 0.0
  %v1168 = vand.u32 %v1142, 4294901760
  %1169 = vmatpush1.msra.mxu0 %v1168
  %1170 = vmatprep.subr.mxu0 0.0
  %1171 = vmatpush1.msra.mxu0 0.0
  %1172 = vmatprep.subr.mxu0 0.0
  %1173 = vmatpush1.msra.mxu0 0.0
  %1174 = vmatprep.subr.mxu0 0.0
  %1175 = vmatpush1.msra.mxu0 0.0
  %1176 = vmatprep.subr.mxu0 0.0
  %1177 = vmatpush1.msra.mxu0 0.0
  %1178 = vmatprep.subr.mxu0 0.0
  %1179 = vmatpush1.msra.mxu0 0.0
  %1180 = vmatprep.subr.mxu0 0.0
  %1181 = vmatpush1.msra.mxu0 0.0
  %1182 = vmatprep.subr.mxu0 0.0
  %1183 = vmatpush1.msra.mxu0 0.0
  %1184 = vmatprep.subr.mxu0 0.0
  %1185 = vmatpush1.msra.mxu0 0.0
  %1186 = vmatprep.subr.mxu0 0.0
  %1187 = vmatpush1.msra.mxu0 0.0
  %1188 = vmatprep.subr.mxu0 0.0
  %1189 = vmatpush1.msra.mxu0 0.0
  %1190 = vmatprep.subr.mxu0 0.0
  %1191 = vmatpush1.msra.mxu0 0.0
  %1192 = vmatprep.subr.mxu0 0.0
  %1193 = vmatpush1.msra.mxu0 0.0
  %1194 = vmatprep.subr.mxu0 0.0
  %1195 = vmatpush1.msra.mxu0 0.0
  %1196 = vmatprep.subr.mxu0 0.0
  %1197 = vmatpush1.msra.mxu0 0.0
  %1198 = vmatprep.subr.mxu0 0.0
  %1199 = vmatpush1.msra.mxu0 0.0
  %1200 = vmatprep.subr.mxu0 0.0
  %1201 = vmatpush1.msra.mxu0 0.0
  %1202 = vmatprep.subr.mxu0 0.0
  %1203 = vmatpush1.msra.mxu0 0.0
  %1204 = vmatprep.subr.mxu0 0.0
  %1205 = vmatpush1.msra.mxu0 0.0
  %1206 = vmatprep.subr.mxu0 0.0
  %1207 = vmatpush1.msra.mxu0 0.0
  %1208 = vmatprep.subr.mxu0 0.0
  %1209 = vmatpush1.msra.mxu0 0.0
  %1210 = vmatprep.subr.mxu0 0.0
  %1211 = vmatpush1.msra.mxu0 0.0
  %1212 = vmatprep.subr.mxu0 0.0
  %1213 = vmatpush1.msra.mxu0 0.0
  %1214 = vmatprep.subr.mxu0 0.0
  %1215 = vmatpush1.msra.mxu0 0.0
  %1216 = vmatprep.subr.mxu0 0.0
  %1217 = vmatpush1.msra.mxu0 0.0
  %1218 = vmatprep.mubr.f32.mxu0 0.0
  %v1219 = vand.u32 %v1144, 4294901760
  %v1220 = vsub.f32 %v1144, %v1219
  %v1221 = vand.u32 %v1220, 4294901760
  %v1222 = vsub.f32 %v1220, %v1221
  %v1223 = vand.u32 %v1222, 4294901760
  %1224 = vmatmul.mubr.f32.gmra.mrb[0].mxu0 %v1223
  %v1225 = vpop.f32.mrb[0].mxu0
  %v1226 = vadd.f32 0.0, %v1225
  %v1227 = vpop.f32.mrb[0].mxu0
  %1228 = vdwg.mxu0
  %1229 = vmatprep.subr.mxu0 0.0
  %v1230 = vand.u32 %v1135, 4294901760
  %v1231 = vsub.f32 %v1135, %v1230
  %v1232 = vand.u32 %v1231, 4294901760
  %v1233 = vsub.f32 %v1231, %v1232
  %v1234 = vand.u32 %v1233, 4294901760
  %1235 = vmatpush1.msra.mxu0 %v1234
  %1236 = vmatprep.subr.mxu0 0.0
  %v1237 = vand.u32 %v1136, 4294901760
  %v1238 = vsub.f32 %v1136, %v1237
  %v1239 = vand.u32 %v1238, 4294901760
  %v1240 = vsub.f32 %v1238, %v1239
  %v1241 = vand.u32 %v1240, 4294901760
  %1242 = vmatpush1.msra.mxu0 %v1241
  %1243 = vmatprep.subr.mxu0 0.0
  %v1244 = vand.u32 %v1137, 4294901760
  %v1245 = vsub.f32 %v1137, %v1244
  %v1246 = vand.u32 %v1245, 4294901760
  %v1247 = vsub.f32 %v1245, %v1246
  %v1248 = vand.u32 %v1247, 4294901760
  %1249 = vmatpush1.msra.mxu0 %v1248
  %1250 = vmatprep.subr.mxu0 0.0
  %v1251 = vand.u32 %v1138, 4294901760
  %v1252 = vsub.f32 %v1138, %v1251
  %v1253 = vand.u32 %v1252, 4294901760
  %v1254 = vsub.f32 %v1252, %v1253
  %v1255 = vand.u32 %v1254, 4294901760
  %1256 = vmatpush1.msra.mxu0 %v1255
  %1257 = vmatprep.subr.mxu0 0.0
  %v1258 = vand.u32 %v1139, 4294901760
  %v1259 = vsub.f32 %v1139, %v1258
  %v1260 = vand.u32 %v1259, 4294901760
  %v1261 = vsub.f32 %v1259, %v1260
  %v1262 = vand.u32 %v1261, 4294901760
  %1263 = vmatpush1.msra.mxu0 %v1262
  %1264 = vmatprep.subr.mxu0 0.0
  %v1265 = vand.u32 %v1140, 4294901760
  %v1266 = vsub.f32 %v1140, %v1265
  %v1267 = vand.u32 %v1266, 4294901760
  %v1268 = vsub.f32 %v1266, %v1267
  %v1269 = vand.u32 %v1268, 4294901760
  %1270 = vmatpush1.msra.mxu0 %v1269
  %1271 = vmatprep.subr.mxu0 0.0
  %v1272 = vand.u32 %v1141, 4294901760
  %v1273 = vsub.f32 %v1141, %v1272
  %v1274 = vand.u32 %v1273, 4294901760
  %v1275 = vsub.f32 %v1273, %v1274
  %v1276 = vand.u32 %v1275, 4294901760
  %1277 = vmatpush1.msra.mxu0 %v1276
  %1278 = vmatprep.subr.mxu0 0.0
  %v1279 = vand.u32 %v1142, 4294901760
  %v1280 = vsub.f32 %v1142, %v1279
  %v1281 = vand.u32 %v1280, 4294901760
  %v1282 = vsub.f32 %v1280, %v1281
  %v1283 = vand.u32 %v1282, 4294901760
  %1284 = vmatpush1.msra.mxu0 %v1283
  %1285 = vmatprep.subr.mxu0 0.0
  %1286 = vmatpush1.msra.mxu0 0.0
  %1287 = vmatprep.subr.mxu0 0.0
  %1288 = vmatpush1.msra.mxu0 0.0
  %1289 = vmatprep.subr.mxu0 0.0
  %1290 = vmatpush1.msra.mxu0 0.0
  %1291 = vmatprep.subr.mxu0 0.0
  %1292 = vmatpush1.msra.mxu0 0.0
  %1293 = vmatprep.subr.mxu0 0.0
  %1294 = vmatpush1.msra.mxu0 0.0
  %1295 = vmatprep.subr.mxu0 0.0
  %1296 = vmatpush1.msra.mxu0 0.0
  %1297 = vmatprep.subr.mxu0 0.0
  %1298 = vmatpush1.msra.mxu0 0.0
  %1299 = vmatprep.subr.mxu0 0.0
  %1300 = vmatpush1.msra.mxu0 0.0
  %1301 = vmatprep.subr.mxu0 0.0
  %1302 = vmatpush1.msra.mxu0 0.0
  %1303 = vmatprep.subr.mxu0 0.0
  %1304 = vmatpush1.msra.mxu0 0.0
  %1305 = vmatprep.subr.mxu0 0.0
  %1306 = vmatpush1.msra.mxu0 0.0
  %1307 = vmatprep.subr.mxu0 0.0
  %1308 = vmatpush1.msra.mxu0 0.0
  %1309 = vmatprep.subr.mxu0 0.0
  %1310 = vmatpush1.msra.mxu0 0.0
  %1311 = vmatprep.subr.mxu0 0.0
  %1312 = vmatpush1.msra.mxu0 0.0
  %1313 = vmatprep.subr.mxu0 0.0
  %1314 = vmatpush1.msra.mxu0 0.0
  %1315 = vmatprep.subr.mxu0 0.0
  %1316 = vmatpush1.msra.mxu0 0.0
  %1317 = vmatprep.subr.mxu0 0.0
  %1318 = vmatpush1.msra.mxu0 0.0
  %1319 = vmatprep.subr.mxu0 0.0
  %1320 = vmatpush1.msra.mxu0 0.0
  %1321 = vmatprep.subr.mxu0 0.0
  %1322 = vmatpush1.msra.mxu0 0.0
  %1323 = vmatprep.subr.mxu0 0.0
  %1324 = vmatpush1.msra.mxu0 0.0
  %1325 = vmatprep.subr.mxu0 0.0
  %1326 = vmatpush1.msra.mxu0 0.0
  %1327 = vmatprep.subr.mxu0 0.0
  %1328 = vmatpush1.msra.mxu0 0.0
  %1329 = vmatprep.subr.mxu0 0.0
  %1330 = vmatpush1.msra.mxu0 0.0
  %1331 = vmatprep.subr.mxu0 0.0
  %1332 = vmatpush1.msra.mxu0 0.0
  %1333 = vmatprep.mubr.f32.mxu0 0.0
  %v1334 = vand.u32 %v1144, 4294901760
  %1335 = vmatmul.mubr.f32.gmra.mrb[0].mxu0 %v1334
  %v1336 = vpop.f32.mrb[0].mxu0
  %v1337 = vadd.f32 %v1226, %v1336
  %v1338 = vpop.f32.mrb[0].mxu0
  %1339 = vdwg.mxu0
  %1340 = vmatprep.subr.mxu0 0.0
  %v1341 = vand.u32 %v1135, 4294901760
  %v1342 = vsub.f32 %v1135, %v1341
  %1343 = vmatpush1.msra.mxu0 %v1342
  %1344 = vmatprep.subr.mxu0 0.0
  %v1345 = vand.u32 %v1136, 4294901760
  %v1346 = vsub.f32 %v1136, %v1345
  %1347 = vmatpush1.msra.mxu0 %v1346
  %1348 = vmatprep.subr.mxu0 0.0
  %v1349 = vand.u32 %v1137, 4294901760
  %v1350 = vsub.f32 %v1137, %v1349
  %1351 = vmatpush1.msra.mxu0 %v1350
  %1352 = vmatprep.subr.mxu0 0.0
  %v1353 = vand.u32 %v1138, 4294901760
  %v1354 = vsub.f32 %v1138, %v1353
  %1355 = vmatpush1.msra.mxu0 %v1354
  %1356 = vmatprep.subr.mxu0 0.0
  %v1357 = vand.u32 %v1139, 4294901760
  %v1358 = vsub.f32 %v1139, %v1357
  %1359 = vmatpush1.msra.mxu0 %v1358
  %1360 = vmatprep.subr.mxu0 0.0
  %v1361 = vand.u32 %v1140, 4294901760
  %v1362 = vsub.f32 %v1140, %v1361
  %1363 = vmatpush1.msra.mxu0 %v1362
  %1364 = vmatprep.subr.mxu0 0.0
  %v1365 = vand.u32 %v1141, 4294901760
  %v1366 = vsub.f32 %v1141, %v1365
  %1367 = vmatpush1.msra.mxu0 %v1366
  %1368 = vmatprep.subr.mxu0 0.0
  %v1369 = vand.u32 %v1142, 4294901760
  %v1370 = vsub.f32 %v1142, %v1369
  %1371 = vmatpush1.msra.mxu0 %v1370
  %1372 = vmatprep.subr.mxu0 0.0
  %1373 = vmatpush1.msra.mxu0 0.0
  %1374 = vmatprep.subr.mxu0 0.0
  %1375 = vmatpush1.msra.mxu0 0.0
  %1376 = vmatprep.subr.mxu0 0.0
  %1377 = vmatpush1.msra.mxu0 0.0
  %1378 = vmatprep.subr.mxu0 0.0
  %1379 = vmatpush1.msra.mxu0 0.0
  %1380 = vmatprep.subr.mxu0 0.0
  %1381 = vmatpush1.msra.mxu0 0.0
  %1382 = vmatprep.subr.mxu0 0.0
  %1383 = vmatpush1.msra.mxu0 0.0
  %1384 = vmatprep.subr.mxu0 0.0
  %1385 = vmatpush1.msra.mxu0 0.0
  %1386 = vmatprep.subr.mxu0 0.0
  %1387 = vmatpush1.msra.mxu0 0.0
  %1388 = vmatprep.subr.mxu0 0.0
  %1389 = vmatpush1.msra.mxu0 0.0
  %1390 = vmatprep.subr.mxu0 0.0
  %1391 = vmatpush1.msra.mxu0 0.0
  %1392 = vmatprep.subr.mxu0 0.0
  %1393 = vmatpush1.msra.mxu0 0.0
  %1394 = vmatprep.subr.mxu0 0.0
  %1395 = vmatpush1.msra.mxu0 0.0
  %1396 = vmatprep.subr.mxu0 0.0
  %1397 = vmatpush1.msra.mxu0 0.0
  %1398 = vmatprep.subr.mxu0 0.0
  %1399 = vmatpush1.msra.mxu0 0.0
  %1400 = vmatprep.subr.mxu0 0.0
  %1401 = vmatpush1.msra.mxu0 0.0
  %1402 = vmatprep.subr.mxu0 0.0
  %1403 = vmatpush1.msra.mxu0 0.0
  %1404 = vmatprep.subr.mxu0 0.0
  %1405 = vmatpush1.msra.mxu0 0.0
  %1406 = vmatprep.subr.mxu0 0.0
  %1407 = vmatpush1.msra.mxu0 0.0
  %1408 = vmatprep.subr.mxu0 0.0
  %1409 = vmatpush1.msra.mxu0 0.0
  %1410 = vmatprep.subr.mxu0 0.0
  %1411 = vmatpush1.msra.mxu0 0.0
  %1412 = vmatprep.subr.mxu0 0.0
  %1413 = vmatpush1.msra.mxu0 0.0
  %1414 = vmatprep.subr.mxu0 0.0
  %1415 = vmatpush1.msra.mxu0 0.0
  %1416 = vmatprep.subr.mxu0 0.0
  %1417 = vmatpush1.msra.mxu0 0.0
  %1418 = vmatprep.subr.mxu0 0.0
  %1419 = vmatpush1.msra.mxu0 0.0
  %1420 = vmatprep.mubr.f32.mxu0 0.0
  %v1421 = vand.u32 %v1144, 4294901760
  %v1422 = vsub.f32 %v1144, %v1421
  %1423 = vmatmul.mubr.f32.gmra.mrb[0].mxu0 %v1422
  %v1424 = vpop.f32.mrb[0].mxu0
  %v1425 = vadd.f32 %v1337, %v1424
  %v1426 = vpop.f32.mrb[0].mxu0
  %1427 = vdwg.mxu0
  %1428 = vmatprep.subr.mxu0 0.0
  %v1429 = vand.u32 %v1135, 4294901760
  %1430 = vmatpush1.msra.mxu0 %v1429
  %1431 = vmatprep.subr.mxu0 0.0
  %v1432 = vand.u32 %v1136, 4294901760
  %1433 = vmatpush1.msra.mxu0 %v1432
  %1434 = vmatprep.subr.mxu0 0.0
  %v1435 = vand.u32 %v1137, 4294901760
  %1436 = vmatpush1.msra.mxu0 %v1435
  %1437 = vmatprep.subr.mxu0 0.0
  %v1438 = vand.u32 %v1138, 4294901760
  %1439 = vmatpush1.msra.mxu0 %v1438
  %1440 = vmatprep.subr.mxu0 0.0
  %v1441 = vand.u32 %v1139, 4294901760
  %1442 = vmatpush1.msra.mxu0 %v1441
  %1443 = vmatprep.subr.mxu0 0.0
  %v1444 = vand.u32 %v1140, 4294901760
  %1445 = vmatpush1.msra.mxu0 %v1444
  %1446 = vmatprep.subr.mxu0 0.0
  %v1447 = vand.u32 %v1141, 4294901760
  %1448 = vmatpush1.msra.mxu0 %v1447
  %1449 = vmatprep.subr.mxu0 0.0
  %v1450 = vand.u32 %v1142, 4294901760
  %1451 = vmatpush1.msra.mxu0 %v1450
  %1452 = vmatprep.subr.mxu0 0.0
  %1453 = vmatpush1.msra.mxu0 0.0
  %1454 = vmatprep.subr.mxu0 0.0
  %1455 = vmatpush1.msra.mxu0 0.0
  %1456 = vmatprep.subr.mxu0 0.0
  %1457 = vmatpush1.msra.mxu0 0.0
  %1458 = vmatprep.subr.mxu0 0.0
  %1459 = vmatpush1.msra.mxu0 0.0
  %1460 = vmatprep.subr.mxu0 0.0
  %1461 = vmatpush1.msra.mxu0 0.0
  %1462 = vmatprep.subr.mxu0 0.0
  %1463 = vmatpush1.msra.mxu0 0.0
  %1464 = vmatprep.subr.mxu0 0.0
  %1465 = vmatpush1.msra.mxu0 0.0
  %1466 = vmatprep.subr.mxu0 0.0
  %1467 = vmatpush1.msra.mxu0 0.0
  %1468 = vmatprep.subr.mxu0 0.0
  %1469 = vmatpush1.msra.mxu0 0.0
  %1470 = vmatprep.subr.mxu0 0.0
  %1471 = vmatpush1.msra.mxu0 0.0
  %1472 = vmatprep.subr.mxu0 0.0
  %1473 = vmatpush1.msra.mxu0 0.0
  %1474 = vmatprep.subr.mxu0 0.0
  %1475 = vmatpush1.msra.mxu0 0.0
  %1476 = vmatprep.subr.mxu0 0.0
  %1477 = vmatpush1.msra.mxu0 0.0
  %1478 = vmatprep.subr.mxu0 0.0
  %1479 = vmatpush1.msra.mxu0 0.0
  %1480 = vmatprep.subr.mxu0 0.0
  %1481 = vmatpush1.msra.mxu0 0.0
  %1482 = vmatprep.subr.mxu0 0.0
  %1483 = vmatpush1.msra.mxu0 0.0
  %1484 = vmatprep.subr.mxu0 0.0
  %1485 = vmatpush1.msra.mxu0 0.0
  %1486 = vmatprep.subr.mxu0 0.0
  %1487 = vmatpush1.msra.mxu0 0.0
  %1488 = vmatprep.subr.mxu0 0.0
  %1489 = vmatpush1.msra.mxu0 0.0
  %1490 = vmatprep.subr.mxu0 0.0
  %1491 = vmatpush1.msra.mxu0 0.0
  %1492 = vmatprep.subr.mxu0 0.0
  %1493 = vmatpush1.msra.mxu0 0.0
  %1494 = vmatprep.subr.mxu0 0.0
  %1495 = vmatpush1.msra.mxu0 0.0
  %1496 = vmatprep.subr.mxu0 0.0
  %1497 = vmatpush1.msra.mxu0 0.0
  %1498 = vmatprep.subr.mxu0 0.0
  %1499 = vmatpush1.msra.mxu0 0.0
  %1500 = vmatprep.mubr.f32.mxu0 0.0
  %v1501 = vand.u32 %v1144, 4294901760
  %v1502 = vsub.f32 %v1144, %v1501
  %v1503 = vand.u32 %v1502, 4294901760
  %1504 = vmatmul.mubr.f32.gmra.mrb[0].mxu0 %v1503
  %v1505 = vpop.f32.mrb[0].mxu0
  %v1506 = vadd.f32 %v1425, %v1505
  %v1507 = vpop.f32.mrb[0].mxu0
  %1508 = vdwg.mxu0
  %1509 = vmatprep.subr.mxu0 0.0
  %v1510 = vand.u32 %v1135, 4294901760
  %v1511 = vsub.f32 %v1135, %v1510
  %v1512 = vand.u32 %v1511, 4294901760
  %1513 = vmatpush1.msra.mxu0 %v1512
  %1514 = vmatprep.subr.mxu0 0.0
  %v1515 = vand.u32 %v1136, 4294901760
  %v1516 = vsub.f32 %v1136, %v1515
  %v1517 = vand.u32 %v1516, 4294901760
  %1518 = vmatpush1.msra.mxu0 %v1517
  %1519 = vmatprep.subr.mxu0 0.0
  %v1520 = vand.u32 %v1137, 4294901760
  %v1521 = vsub.f32 %v1137, %v1520
  %v1522 = vand.u32 %v1521, 4294901760
  %1523 = vmatpush1.msra.mxu0 %v1522
  %1524 = vmatprep.subr.mxu0 0.0
  %v1525 = vand.u32 %v1138, 4294901760
  %v1526 = vsub.f32 %v1138, %v1525
  %v1527 = vand.u32 %v1526, 4294901760
  %1528 = vmatpush1.msra.mxu0 %v1527
  %1529 = vmatprep.subr.mxu0 0.0
  %v1530 = vand.u32 %v1139, 4294901760
  %v1531 = vsub.f32 %v1139, %v1530
  %v1532 = vand.u32 %v1531, 4294901760
  %1533 = vmatpush1.msra.mxu0 %v1532
  %1534 = vmatprep.subr.mxu0 0.0
  %v1535 = vand.u32 %v1140, 4294901760
  %v1536 = vsub.f32 %v1140, %v1535
  %v1537 = vand.u32 %v1536, 4294901760
  %1538 = vmatpush1.msra.mxu0 %v1537
  %1539 = vmatprep.subr.mxu0 0.0
  %v1540 = vand.u32 %v1141, 4294901760
  %v1541 = vsub.f32 %v1141, %v1540
  %v1542 = vand.u32 %v1541, 4294901760
  %1543 = vmatpush1.msra.mxu0 %v1542
  %1544 = vmatprep.subr.mxu0 0.0
  %v1545 = vand.u32 %v1142, 4294901760
  %v1546 = vsub.f32 %v1142, %v1545
  %v1547 = vand.u32 %v1546, 4294901760
  %1548 = vmatpush1.msra.mxu0 %v1547
  %1549 = vmatprep.subr.mxu0 0.0
  %1550 = vmatpush1.msra.mxu0 0.0
  %1551 = vmatprep.subr.mxu0 0.0
  %1552 = vmatpush1.msra.mxu0 0.0
  %1553 = vmatprep.subr.mxu0 0.0
  %1554 = vmatpush1.msra.mxu0 0.0
  %1555 = vmatprep.subr.mxu0 0.0
  %1556 = vmatpush1.msra.mxu0 0.0
  %1557 = vmatprep.subr.mxu0 0.0
  %1558 = vmatpush1.msra.mxu0 0.0
  %1559 = vmatprep.subr.mxu0 0.0
  %1560 = vmatpush1.msra.mxu0 0.0
  %1561 = vmatprep.subr.mxu0 0.0
  %1562 = vmatpush1.msra.mxu0 0.0
  %1563 = vmatprep.subr.mxu0 0.0
  %1564 = vmatpush1.msra.mxu0 0.0
  %1565 = vmatprep.subr.mxu0 0.0
  %1566 = vmatpush1.msra.mxu0 0.0
  %1567 = vmatprep.subr.mxu0 0.0
  %1568 = vmatpush1.msra.mxu0 0.0
  %1569 = vmatprep.subr.mxu0 0.0
  %1570 = vmatpush1.msra.mxu0 0.0
  %1571 = vmatprep.subr.mxu0 0.0
  %1572 = vmatpush1.msra.mxu0 0.0
  %1573 = vmatprep.subr.mxu0 0.0
  %1574 = vmatpush1.msra.mxu0 0.0
  %1575 = vmatprep.subr.mxu0 0.0
  %1576 = vmatpush1.msra.mxu0 0.0
  %1577 = vmatprep.subr.mxu0 0.0
  %1578 = vmatpush1.msra.mxu0 0.0
  %1579 = vmatprep.subr.mxu0 0.0
  %1580 = vmatpush1.msra.mxu0 0.0
  %1581 = vmatprep.subr.mxu0 0.0
  %1582 = vmatpush1.msra.mxu0 0.0
  %1583 = vmatprep.subr.mxu0 0.0
  %1584 = vmatpush1.msra.mxu0 0.0
  %1585 = vmatprep.subr.mxu0 0.0
  %1586 = vmatpush1.msra.mxu0 0.0
  %1587 = vmatprep.subr.mxu0 0.0
  %1588 = vmatpush1.msra.mxu0 0.0
  %1589 = vmatprep.subr.mxu0 0.0
  %1590 = vmatpush1.msra.mxu0 0.0
  %1591 = vmatprep.subr.mxu0 0.0
  %1592 = vmatpush1.msra.mxu0 0.0
  %1593 = vmatprep.subr.mxu0 0.0
  %1594 = vmatpush1.msra.mxu0 0.0
  %1595 = vmatprep.subr.mxu0 0.0
  %1596 = vmatpush1.msra.mxu0 0.0
  %1597 = vmatprep.mubr.f32.mxu0 0.0
  %v1598 = vand.u32 %v1144, 4294901760
  %1599 = vmatmul.mubr.f32.gmra.mrb[0].mxu0 %v1598
  %v1600 = vpop.f32.mrb[0].mxu0
  %v1601 = vadd.f32 %v1506, %v1600
  %v1602 = vpop.f32.mrb[0].mxu0
  %1603 = vdwg.mxu0
  %1604 = vmatprep.subr.mxu0 0.0
  %v1605 = vand.u32 %v1135, 4294901760
  %1606 = vmatpush1.msra.mxu0 %v1605
  %1607 = vmatprep.subr.mxu0 0.0
  %v1608 = vand.u32 %v1136, 4294901760
  %1609 = vmatpush1.msra.mxu0 %v1608
  %1610 = vmatprep.subr.mxu0 0.0
  %v1611 = vand.u32 %v1137, 4294901760
  %1612 = vmatpush1.msra.mxu0 %v1611
  %1613 = vmatprep.subr.mxu0 0.0
  %v1614 = vand.u32 %v1138, 4294901760
  %1615 = vmatpush1.msra.mxu0 %v1614
  %1616 = vmatprep.subr.mxu0 0.0
  %v1617 = vand.u32 %v1139, 4294901760
  %1618 = vmatpush1.msra.mxu0 %v1617
  %1619 = vmatprep.subr.mxu0 0.0
  %v1620 = vand.u32 %v1140, 4294901760
  %1621 = vmatpush1.msra.mxu0 %v1620
  %1622 = vmatprep.subr.mxu0 0.0
  %v1623 = vand.u32 %v1141, 4294901760
  %1624 = vmatpush1.msra.mxu0 %v1623
  %1625 = vmatprep.subr.mxu0 0.0
  %v1626 = vand.u32 %v1142, 4294901760
  %1627 = vmatpush1.msra.mxu0 %v1626
  %1628 = vmatprep.subr.mxu0 0.0
  %1629 = vmatpush1.msra.mxu0 0.0
  %1630 = vmatprep.subr.mxu0 0.0
  %1631 = vmatpush1.msra.mxu0 0.0
  %1632 = vmatprep.subr.mxu0 0.0
  %1633 = vmatpush1.msra.mxu0 0.0
  %1634 = vmatprep.subr.mxu0 0.0
  %1635 = vmatpush1.msra.mxu0 0.0
  %1636 = vmatprep.subr.mxu0 0.0
  %1637 = vmatpush1.msra.mxu0 0.0
  %1638 = vmatprep.subr.mxu0 0.0
  %1639 = vmatpush1.msra.mxu0 0.0
  %1640 = vmatprep.subr.mxu0 0.0
  %1641 = vmatpush1.msra.mxu0 0.0
  %1642 = vmatprep.subr.mxu0 0.0
  %1643 = vmatpush1.msra.mxu0 0.0
  %1644 = vmatprep.subr.mxu0 0.0
  %1645 = vmatpush1.msra.mxu0 0.0
  %1646 = vmatprep.subr.mxu0 0.0
  %1647 = vmatpush1.msra.mxu0 0.0
  %1648 = vmatprep.subr.mxu0 0.0
  %1649 = vmatpush1.msra.mxu0 0.0
  %1650 = vmatprep.subr.mxu0 0.0
  %1651 = vmatpush1.msra.mxu0 0.0
  %1652 = vmatprep.subr.mxu0 0.0
  %1653 = vmatpush1.msra.mxu0 0.0
  %1654 = vmatprep.subr.mxu0 0.0
  %1655 = vmatpush1.msra.mxu0 0.0
  %1656 = vmatprep.subr.mxu0 0.0
  %1657 = vmatpush1.msra.mxu0 0.0
  %1658 = vmatprep.subr.mxu0 0.0
  %1659 = vmatpush1.msra.mxu0 0.0
  %1660 = vmatprep.subr.mxu0 0.0
  %1661 = vmatpush1.msra.mxu0 0.0
  %1662 = vmatprep.subr.mxu0 0.0
  %1663 = vmatpush1.msra.mxu0 0.0
  %1664 = vmatprep.subr.mxu0 0.0
  %1665 = vmatpush1.msra.mxu0 0.0
  %1666 = vmatprep.subr.mxu0 0.0
  %1667 = vmatpush1.msra.mxu0 0.0
  %1668 = vmatprep.subr.mxu0 0.0
  %1669 = vmatpush1.msra.mxu0 0.0
  %1670 = vmatprep.subr.mxu0 0.0
  %1671 = vmatpush1.msra.mxu0 0.0
  %1672 = vmatprep.subr.mxu0 0.0
  %1673 = vmatpush1.msra.mxu0 0.0
  %1674 = vmatprep.subr.mxu0 0.0
  %1675 = vmatpush1.msra.mxu0 0.0
  %1676 = vmatprep.mubr.f32.mxu0 0.0
  %v1677 = vand.u32 %v1144, 4294901760
  %1678 = vmatmul.mubr.f32.gmra.mrb[0].mxu0 %v1677
  %v1679 = vpop.f32.mrb[0].mxu0
  %v1680 = vadd.f32 %v1601, %v1679
  %v1681 = vpop.f32.mrb[0].mxu0
  %1682 = vdwg.mxu0
  %v1683 = vadd.f32 %v1130, %v1680
  %v1684 = vmul.f32 %v1683, %v1683
  %v1685 = vld [vmem:[%s3] sm:$0xff]
  %v1686 = vld [vmem:[%s3 + $0x8] sm:$0xff]
  %v1687 = vld [vmem:[%s3 + $0x10] sm:$0xff]
  %v1688 = vld [vmem:[%s3 + $0x18] sm:$0xff]
  %v1689 = vld [vmem:[%s3 + $0x20] sm:$0xff]
  %v1690 = vld [vmem:[%s3 + $0x28] sm:$0xff]
  %v1691 = vld [vmem:[%s3 + $0x30] sm:$0xff]
  %v1692 = vld [vmem:[%s3 + $0x38] sm:$0xff]
  %v1693 = vld [vmem:[%s3 + $0x40] sm:$0xff]
  %v1694 = vld [vmem:[%s3 + $0x48] sm:$0xff]
  %v1695 = vld [vmem:[%s3 + $0x50] sm:$0xff]
  %v1696 = vld [vmem:[%s3 + $0x58] sm:$0xff]
  %v1697 = vld [vmem:[%s3 + $0x60] sm:$0xff]
  %v1698 = vld [vmem:[%s3 + $0x68] sm:$0xff]
  %v1699 = vld [vmem:[%s3 + $0x70] sm:$0xff]
  %v1700 = vld [vmem:[%s3 + $0x78] sm:$0xff]
  %1701 = vmatprep.subr.mxu0 0.0
  %v1702 = vand.u32 %v1685, 4294901760
  %1703 = vmatpush1.msra.mxu0 %v1702
  %1704 = vmatprep.subr.mxu0 0.0
  %v1705 = vand.u32 %v1686, 4294901760
  %1706 = vmatpush1.msra.mxu0 %v1705
  %1707 = vmatprep.subr.mxu0 0.0
  %v1708 = vand.u32 %v1687, 4294901760
  %1709 = vmatpush1.msra.mxu0 %v1708
  %1710 = vmatprep.subr.mxu0 0.0
  %v1711 = vand.u32 %v1688, 4294901760
  %1712 = vmatpush1.msra.mxu0 %v1711
  %1713 = vmatprep.subr.mxu0 0.0
  %v1714 = vand.u32 %v1689, 4294901760
  %1715 = vmatpush1.msra.mxu0 %v1714
  %1716 = vmatprep.subr.mxu0 0.0
  %v1717 = vand.u32 %v1690, 4294901760
  %1718 = vmatpush1.msra.mxu0 %v1717
  %1719 = vmatprep.subr.mxu0 0.0
  %v1720 = vand.u32 %v1691, 4294901760
  %1721 = vmatpush1.msra.mxu0 %v1720
  %1722 = vmatprep.subr.mxu0 0.0
  %v1723 = vand.u32 %v1692, 4294901760
  %1724 = vmatpush1.msra.mxu0 %v1723
  %1725 = vmatprep.subr.mxu0 0.0
  %v1726 = vand.u32 %v1693, 4294901760
  %1727 = vmatpush1.msra.mxu0 %v1726
  %1728 = vmatprep.subr.mxu0 0.0
  %v1729 = vand.u32 %v1694, 4294901760
  %1730 = vmatpush1.msra.mxu0 %v1729
  %1731 = vmatprep.subr.mxu0 0.0
  %v1732 = vand.u32 %v1695, 4294901760
  %1733 = vmatpush1.msra.mxu0 %v1732
  %1734 = vmatprep.subr.mxu0 0.0
  %v1735 = vand.u32 %v1696, 4294901760
  %1736 = vmatpush1.msra.mxu0 %v1735
  %1737 = vmatprep.subr.mxu0 0.0
  %v1738 = vand.u32 %v1697, 4294901760
  %1739 = vmatpush1.msra.mxu0 %v1738
  %1740 = vmatprep.subr.mxu0 0.0
  %v1741 = vand.u32 %v1698, 4294901760
  %1742 = vmatpush1.msra.mxu0 %v1741
  %1743 = vmatprep.subr.mxu0 0.0
  %v1744 = vand.u32 %v1699, 4294901760
  %1745 = vmatpush1.msra.mxu0 %v1744
  %1746 = vmatprep.subr.mxu0 0.0
  %v1747 = vand.u32 %v1700, 4294901760
  %1748 = vmatpush1.msra.mxu0 %v1747
  %1749 = vmatprep.subr.mxu0 0.0
  %1750 = vmatpush1.msra.mxu0 0.0
  %1751 = vmatprep.subr.mxu0 0.0
  %1752 = vmatpush1.msra.mxu0 0.0
  %1753 = vmatprep.subr.mxu0 0.0
  %1754 = vmatpush1.msra.mxu0 0.0
  %1755 = vmatprep.subr.mxu0 0.0
  %1756 = vmatpush1.msra.mxu0 0.0
  %1757 = vmatprep.subr.mxu0 0.0
  %1758 = vmatpush1.msra.mxu0 0.0
  %1759 = vmatprep.subr.mxu0 0.0
  %1760 = vmatpush1.msra.mxu0 0.0
  %1761 = vmatprep.subr.mxu0 0.0
  %1762 = vmatpush1.msra.mxu0 0.0
  %1763 = vmatprep.subr.mxu0 0.0
  %1764 = vmatpush1.msra.mxu0 0.0
  %1765 = vmatprep.subr.mxu0 0.0
  %1766 = vmatpush1.msra.mxu0 0.0
  %1767 = vmatprep.subr.mxu0 0.0
  %1768 = vmatpush1.msra.mxu0 0.0
  %1769 = vmatprep.subr.mxu0 0.0
  %1770 = vmatpush1.msra.mxu0 0.0
  %1771 = vmatprep.subr.mxu0 0.0
  %1772 = vmatpush1.msra.mxu0 0.0
  %1773 = vmatprep.subr.mxu0 0.0
  %1774 = vmatpush1.msra.mxu0 0.0
  %1775 = vmatprep.subr.mxu0 0.0
  %1776 = vmatpush1.msra.mxu0 0.0
  %1777 = vmatprep.subr.mxu0 0.0
  %1778 = vmatpush1.msra.mxu0 0.0
  %1779 = vmatprep.subr.mxu0 0.0
  %1780 = vmatpush1.msra.mxu0 0.0
  %1781 = vmatprep.mubr.f32.mxu0 0.0
  %v1782 = vand.u32 %v1683, 4294901760
  %v1783 = vsub.f32 %v1683, %v1782
  %v1784 = vand.u32 %v1783, 4294901760
  %v1785 = vsub.f32 %v1783, %v1784
  %v1786 = vand.u32 %v1785, 4294901760
  %1787 = vmatmul.mubr.f32.gmra.mrb[0].mxu0 %v1786
  %v1788 = vpop.f32.mrb[0].mxu0
  %v1789 = vadd.f32 0.0, %v1788
  %v1790 = vpop.f32.mrb[0].mxu0
  %1791 = vmatprep.mubr.f32.mxu0 0.0
  %v1792 = vand.u32 %v1684, 4294901760
  %v1793 = vsub.f32 %v1684, %v1792
  %v1794 = vand.u32 %v1793, 4294901760
  %v1795 = vsub.f32 %v1793, %v1794
  %v1796 = vand.u32 %v1795, 4294901760
  %1797 = vmatmul.mubr.f32.gmra.mrb[0].mxu0 %v1796
  %v1798 = vpop.f32.mrb[0].mxu0
  %v1799 = vadd.f32 0.0, %v1798
  %v1800 = vpop.f32.mrb[0].mxu0
  %1801 = vdwg.mxu0
  %1802 = vmatprep.subr.mxu0 0.0
  %v1803 = vand.u32 %v1685, 4294901760
  %v1804 = vsub.f32 %v1685, %v1803
  %v1805 = vand.u32 %v1804, 4294901760
  %v1806 = vsub.f32 %v1804, %v1805
  %v1807 = vand.u32 %v1806, 4294901760
  %1808 = vmatpush1.msra.mxu0 %v1807
  %1809 = vmatprep.subr.mxu0 0.0
  %v1810 = vand.u32 %v1686, 4294901760
  %v1811 = vsub.f32 %v1686, %v1810
  %v1812 = vand.u32 %v1811, 4294901760
  %v1813 = vsub.f32 %v1811, %v1812
  %v1814 = vand.u32 %v1813, 4294901760
  %1815 = vmatpush1.msra.mxu0 %v1814
  %1816 = vmatprep.subr.mxu0 0.0
  %v1817 = vand.u32 %v1687, 4294901760
  %v1818 = vsub.f32 %v1687, %v1817
  %v1819 = vand.u32 %v1818, 4294901760
  %v1820 = vsub.f32 %v1818, %v1819
  %v1821 = vand.u32 %v1820, 4294901760
  %1822 = vmatpush1.msra.mxu0 %v1821
  %1823 = vmatprep.subr.mxu0 0.0
  %v1824 = vand.u32 %v1688, 4294901760
  %v1825 = vsub.f32 %v1688, %v1824
  %v1826 = vand.u32 %v1825, 4294901760
  %v1827 = vsub.f32 %v1825, %v1826
  %v1828 = vand.u32 %v1827, 4294901760
  %1829 = vmatpush1.msra.mxu0 %v1828
  %1830 = vmatprep.subr.mxu0 0.0
  %v1831 = vand.u32 %v1689, 4294901760
  %v1832 = vsub.f32 %v1689, %v1831
  %v1833 = vand.u32 %v1832, 4294901760
  %v1834 = vsub.f32 %v1832, %v1833
  %v1835 = vand.u32 %v1834, 4294901760
  %1836 = vmatpush1.msra.mxu0 %v1835
  %1837 = vmatprep.subr.mxu0 0.0
  %v1838 = vand.u32 %v1690, 4294901760
  %v1839 = vsub.f32 %v1690, %v1838
  %v1840 = vand.u32 %v1839, 4294901760
  %v1841 = vsub.f32 %v1839, %v1840
  %v1842 = vand.u32 %v1841, 4294901760
  %1843 = vmatpush1.msra.mxu0 %v1842
  %1844 = vmatprep.subr.mxu0 0.0
  %v1845 = vand.u32 %v1691, 4294901760
  %v1846 = vsub.f32 %v1691, %v1845
  %v1847 = vand.u32 %v1846, 4294901760
  %v1848 = vsub.f32 %v1846, %v1847
  %v1849 = vand.u32 %v1848, 4294901760
  %1850 = vmatpush1.msra.mxu0 %v1849
  %1851 = vmatprep.subr.mxu0 0.0
  %v1852 = vand.u32 %v1692, 4294901760
  %v1853 = vsub.f32 %v1692, %v1852
  %v1854 = vand.u32 %v1853, 4294901760
  %v1855 = vsub.f32 %v1853, %v1854
  %v1856 = vand.u32 %v1855, 4294901760
  %1857 = vmatpush1.msra.mxu0 %v1856
  %1858 = vmatprep.subr.mxu0 0.0
  %v1859 = vand.u32 %v1693, 4294901760
  %v1860 = vsub.f32 %v1693, %v1859
  %v1861 = vand.u32 %v1860, 4294901760
  %v1862 = vsub.f32 %v1860, %v1861
  %v1863 = vand.u32 %v1862, 4294901760
  %1864 = vmatpush1.msra.mxu0 %v1863
  %1865 = vmatprep.subr.mxu0 0.0
  %v1866 = vand.u32 %v1694, 4294901760
  %v1867 = vsub.f32 %v1694, %v1866
  %v1868 = vand.u32 %v1867, 4294901760
  %v1869 = vsub.f32 %v1867, %v1868
  %v1870 = vand.u32 %v1869, 4294901760
  %1871 = vmatpush1.msra.mxu0 %v1870
  %1872 = vmatprep.subr.mxu0 0.0
  %v1873 = vand.u32 %v1695, 4294901760
  %v1874 = vsub.f32 %v1695, %v1873
  %v1875 = vand.u32 %v1874, 4294901760
  %v1876 = vsub.f32 %v1874, %v1875
  %v1877 = vand.u32 %v1876, 4294901760
  %1878 = vmatpush1.msra.mxu0 %v1877
  %1879 = vmatprep.subr.mxu0 0.0
  %v1880 = vand.u32 %v1696, 4294901760
  %v1881 = vsub.f32 %v1696, %v1880
  %v1882 = vand.u32 %v1881, 4294901760
  %v1883 = vsub.f32 %v1881, %v1882
  %v1884 = vand.u32 %v1883, 4294901760
  %1885 = vmatpush1.msra.mxu0 %v1884
  %1886 = vmatprep.subr.mxu0 0.0
  %v1887 = vand.u32 %v1697, 4294901760
  %v1888 = vsub.f32 %v1697, %v1887
  %v1889 = vand.u32 %v1888, 4294901760
  %v1890 = vsub.f32 %v1888, %v1889
  %v1891 = vand.u32 %v1890, 4294901760
  %1892 = vmatpush1.msra.mxu0 %v1891
  %1893 = vmatprep.subr.mxu0 0.0
  %v1894 = vand.u32 %v1698, 4294901760
  %v1895 = vsub.f32 %v1698, %v1894
  %v1896 = vand.u32 %v1895, 4294901760
  %v1897 = vsub.f32 %v1895, %v1896
  %v1898 = vand.u32 %v1897, 4294901760
  %1899 = vmatpush1.msra.mxu0 %v1898
  %1900 = vmatprep.subr.mxu0 0.0
  %v1901 = vand.u32 %v1699, 4294901760
  %v1902 = vsub.f32 %v1699, %v1901
  %v1903 = vand.u32 %v1902, 4294901760
  %v1904 = vsub.f32 %v1902, %v1903
  %v1905 = vand.u32 %v1904, 4294901760
  %1906 = vmatpush1.msra.mxu0 %v1905
  %1907 = vmatprep.subr.mxu0 0.0
  %v1908 = vand.u32 %v1700, 4294901760
  %v1909 = vsub.f32 %v1700, %v1908
  %v1910 = vand.u32 %v1909, 4294901760
  %v1911 = vsub.f32 %v1909, %v1910
  %v1912 = vand.u32 %v1911, 4294901760
  %1913 = vmatpush1.msra.mxu0 %v1912
  %1914 = vmatprep.subr.mxu0 0.0
  %1915 = vmatpush1.msra.mxu0 0.0
  %1916 = vmatprep.subr.mxu0 0.0
  %1917 = vmatpush1.msra.mxu0 0.0
  %1918 = vmatprep.subr.mxu0 0.0
  %1919 = vmatpush1.msra.mxu0 0.0
  %1920 = vmatprep.subr.mxu0 0.0
  %1921 = vmatpush1.msra.mxu0 0.0
  %1922 = vmatprep.subr.mxu0 0.0
  %1923 = vmatpush1.msra.mxu0 0.0
  %1924 = vmatprep.subr.mxu0 0.0
  %1925 = vmatpush1.msra.mxu0 0.0
  %1926 = vmatprep.subr.mxu0 0.0
  %1927 = vmatpush1.msra.mxu0 0.0
  %1928 = vmatprep.subr.mxu0 0.0
  %1929 = vmatpush1.msra.mxu0 0.0
  %1930 = vmatprep.subr.mxu0 0.0
  %1931 = vmatpush1.msra.mxu0 0.0
  %1932 = vmatprep.subr.mxu0 0.0
  %1933 = vmatpush1.msra.mxu0 0.0
  %1934 = vmatprep.subr.mxu0 0.0
  %1935 = vmatpush1.msra.mxu0 0.0
  %1936 = vmatprep.subr.mxu0 0.0
  %1937 = vmatpush1.msra.mxu0 0.0
  %1938 = vmatprep.subr.mxu0 0.0
  %1939 = vmatpush1.msra.mxu0 0.0
  %1940 = vmatprep.subr.mxu0 0.0
  %1941 = vmatpush1.msra.mxu0 0.0
  %1942 = vmatprep.subr.mxu0 0.0
  %1943 = vmatpush1.msra.mxu0 0.0
  %1944 = vmatprep.subr.mxu0 0.0
  %1945 = vmatpush1.msra.mxu0 0.0
  %1946 = vmatprep.mubr.f32.mxu0 0.0
  %v1947 = vand.u32 %v1683, 4294901760
  %1948 = vmatmul.mubr.f32.gmra.mrb[0].mxu0 %v1947
  %v1949 = vpop.f32.mrb[0].mxu0
  %v1950 = vadd.f32 %v1789, %v1949
  %v1951 = vpop.f32.mrb[0].mxu0
  %1952 = vmatprep.mubr.f32.mxu0 0.0
  %v1953 = vand.u32 %v1684, 4294901760
  %1954 = vmatmul.mubr.f32.gmra.mrb[0].mxu0 %v1953
  %v1955 = vpop.f32.mrb[0].mxu0
  %v1956 = vadd.f32 %v1799, %v1955
  %v1957 = vpop.f32.mrb[0].mxu0
  %1958 = vdwg.mxu0
  %1959 = vmatprep.subr.mxu0 0.0
  %v1960 = vand.u32 %v1685, 4294901760
  %v1961 = vsub.f32 %v1685, %v1960
  %1962 = vmatpush1.msra.mxu0 %v1961
  %1963 = vmatprep.subr.mxu0 0.0
  %v1964 = vand.u32 %v1686, 4294901760
  %v1965 = vsub.f32 %v1686, %v1964
  %1966 = vmatpush1.msra.mxu0 %v1965
  %1967 = vmatprep.subr.mxu0 0.0
  %v1968 = vand.u32 %v1687, 4294901760
  %v1969 = vsub.f32 %v1687, %v1968
  %1970 = vmatpush1.msra.mxu0 %v1969
  %1971 = vmatprep.subr.mxu0 0.0
  %v1972 = vand.u32 %v1688, 4294901760
  %v1973 = vsub.f32 %v1688, %v1972
  %1974 = vmatpush1.msra.mxu0 %v1973
  %1975 = vmatprep.subr.mxu0 0.0
  %v1976 = vand.u32 %v1689, 4294901760
  %v1977 = vsub.f32 %v1689, %v1976
  %1978 = vmatpush1.msra.mxu0 %v1977
  %1979 = vmatprep.subr.mxu0 0.0
  %v1980 = vand.u32 %v1690, 4294901760
  %v1981 = vsub.f32 %v1690, %v1980
  %1982 = vmatpush1.msra.mxu0 %v1981
  %1983 = vmatprep.subr.mxu0 0.0
  %v1984 = vand.u32 %v1691, 4294901760
  %v1985 = vsub.f32 %v1691, %v1984
  %1986 = vmatpush1.msra.mxu0 %v1985
  %1987 = vmatprep.subr.mxu0 0.0
  %v1988 = vand.u32 %v1692, 4294901760
  %v1989 = vsub.f32 %v1692, %v1988
  %1990 = vmatpush1.msra.mxu0 %v1989
  %1991 = vmatprep.subr.mxu0 0.0
  %v1992 = vand.u32 %v1693, 4294901760
  %v1993 = vsub.f32 %v1693, %v1992
  %1994 = vmatpush1.msra.mxu0 %v1993
  %1995 = vmatprep.subr.mxu0 0.0
  %v1996 = vand.u32 %v1694, 4294901760
  %v1997 = vsub.f32 %v1694, %v1996
  %1998 = vmatpush1.msra.mxu0 %v1997
  %1999 = vmatprep.subr.mxu0 0.0
  %v2000 = vand.u32 %v1695, 4294901760
  %v2001 = vsub.f32 %v1695, %v2000
  %2002 = vmatpush1.msra.mxu0 %v2001
  %2003 = vmatprep.subr.mxu0 0.0
  %v2004 = vand.u32 %v1696, 4294901760
  %v2005 = vsub.f32 %v1696, %v2004
  %2006 = vmatpush1.msra.mxu0 %v2005
  %2007 = vmatprep.subr.mxu0 0.0
  %v2008 = vand.u32 %v1697, 4294901760
  %v2009 = vsub.f32 %v1697, %v2008
  %2010 = vmatpush1.msra.mxu0 %v2009
  %2011 = vmatprep.subr.mxu0 0.0
  %v2012 = vand.u32 %v1698, 4294901760
  %v2013 = vsub.f32 %v1698, %v2012
  %2014 = vmatpush1.msra.mxu0 %v2013
  %2015 = vmatprep.subr.mxu0 0.0
  %v2016 = vand.u32 %v1699, 4294901760
  %v2017 = vsub.f32 %v1699, %v2016
  %2018 = vmatpush1.msra.mxu0 %v2017
  %2019 = vmatprep.subr.mxu0 0.0
  %v2020 = vand.u32 %v1700, 4294901760
  %v2021 = vsub.f32 %v1700, %v2020
  %2022 = vmatpush1.msra.mxu0 %v2021
  %2023 = vmatprep.subr.mxu0 0.0
  %2024 = vmatpush1.msra.mxu0 0.0
  %2025 = vmatprep.subr.mxu0 0.0
  %2026 = vmatpush1.msra.mxu0 0.0
  %2027 = vmatprep.subr.mxu0 0.0
  %2028 = vmatpush1.msra.mxu0 0.0
  %2029 = vmatprep.subr.mxu0 0.0
  %2030 = vmatpush1.msra.mxu0 0.0
  %2031 = vmatprep.subr.mxu0 0.0
  %2032 = vmatpush1.msra.mxu0 0.0
  %2033 = vmatprep.subr.mxu0 0.0
  %2034 = vmatpush1.msra.mxu0 0.0
  %2035 = vmatprep.subr.mxu0 0.0
  %2036 = vmatpush1.msra.mxu0 0.0
  %2037 = vmatprep.subr.mxu0 0.0
  %2038 = vmatpush1.msra.mxu0 0.0
  %2039 = vmatprep.subr.mxu0 0.0
  %2040 = vmatpush1.msra.mxu0 0.0
  %2041 = vmatprep.subr.mxu0 0.0
  %2042 = vmatpush1.msra.mxu0 0.0
  %2043 = vmatprep.subr.mxu0 0.0
  %2044 = vmatpush1.msra.mxu0 0.0
  %2045 = vmatprep.subr.mxu0 0.0
  %2046 = vmatpush1.msra.mxu0 0.0
  %2047 = vmatprep.subr.mxu0 0.0
  %2048 = vmatpush1.msra.mxu0 0.0
  %2049 = vmatprep.subr.mxu0 0.0
  %2050 = vmatpush1.msra.mxu0 0.0
  %2051 = vmatprep.subr.mxu0 0.0
  %2052 = vmatpush1.msra.mxu0 0.0
  %2053 = vmatprep.subr.mxu0 0.0
  %2054 = vmatpush1.msra.mxu0 0.0
  %2055 = vmatprep.mubr.f32.mxu0 0.0
  %v2056 = vand.u32 %v1683, 4294901760
  %v2057 = vsub.f32 %v1683, %v2056
  %2058 = vmatmul.mubr.f32.gmra.mrb[0].mxu0 %v2057
  %v2059 = vpop.f32.mrb[0].mxu0
  %v2060 = vadd.f32 %v1950, %v2059
  %v2061 = vpop.f32.mrb[0].mxu0
  %2062 = vmatprep.mubr.f32.mxu0 0.0
  %v2063 = vand.u32 %v1684, 4294901760
  %v2064 = vsub.f32 %v1684, %v2063
  %2065 = vmatmul.mubr.f32.gmra.mrb[0].mxu0 %v2064
  %v2066 = vpop.f32.mrb[0].mxu0
  %v2067 = vadd.f32 %v1956, %v2066
  %v2068 = vpop.f32.mrb[0].mxu0
  %2069 = vdwg.mxu0
  %2070 = vmatprep.subr.mxu0 0.0
  %v2071 = vand.u32 %v1685, 4294901760
  %2072 = vmatpush1.msra.mxu0 %v2071
  %2073 = vmatprep.subr.mxu0 0.0
  %v2074 = vand.u32 %v1686, 4294901760
  %2075 = vmatpush1.msra.mxu0 %v2074
  %2076 = vmatprep.subr.mxu0 0.0
  %v2077 = vand.u32 %v1687, 4294901760
  %2078 = vmatpush1.msra.mxu0 %v2077
  %2079 = vmatprep.subr.mxu0 0.0
  %v2080 = vand.u32 %v1688, 4294901760
  %2081 = vmatpush1.msra.mxu0 %v2080
  %2082 = vmatprep.subr.mxu0 0.0
  %v2083 = vand.u32 %v1689, 4294901760
  %2084 = vmatpush1.msra.mxu0 %v2083
  %2085 = vmatprep.subr.mxu0 0.0
  %v2086 = vand.u32 %v1690, 4294901760
  %2087 = vmatpush1.msra.mxu0 %v2086
  %2088 = vmatprep.subr.mxu0 0.0
  %v2089 = vand.u32 %v1691, 4294901760
  %2090 = vmatpush1.msra.mxu0 %v2089
  %2091 = vmatprep.subr.mxu0 0.0
  %v2092 = vand.u32 %v1692, 4294901760
  %2093 = vmatpush1.msra.mxu0 %v2092
  %2094 = vmatprep.subr.mxu0 0.0
  %v2095 = vand.u32 %v1693, 4294901760
  %2096 = vmatpush1.msra.mxu0 %v2095
  %2097 = vmatprep.subr.mxu0 0.0
  %v2098 = vand.u32 %v1694, 4294901760
  %2099 = vmatpush1.msra.mxu0 %v2098
  %2100 = vmatprep.subr.mxu0 0.0
  %v2101 = vand.u32 %v1695, 4294901760
  %2102 = vmatpush1.msra.mxu0 %v2101
  %2103 = vmatprep.subr.mxu0 0.0
  %v2104 = vand.u32 %v1696, 4294901760
  %2105 = vmatpush1.msra.mxu0 %v2104
  %2106 = vmatprep.subr.mxu0 0.0
  %v2107 = vand.u32 %v1697, 4294901760
  %2108 = vmatpush1.msra.mxu0 %v2107
  %2109 = vmatprep.subr.mxu0 0.0
  %v2110 = vand.u32 %v1698, 4294901760
  %2111 = vmatpush1.msra.mxu0 %v2110
  %2112 = vmatprep.subr.mxu0 0.0
  %v2113 = vand.u32 %v1699, 4294901760
  %2114 = vmatpush1.msra.mxu0 %v2113
  %2115 = vmatprep.subr.mxu0 0.0
  %v2116 = vand.u32 %v1700, 4294901760
  %2117 = vmatpush1.msra.mxu0 %v2116
  %2118 = vmatprep.subr.mxu0 0.0
  %2119 = vmatpush1.msra.mxu0 0.0
  %2120 = vmatprep.subr.mxu0 0.0
  %2121 = vmatpush1.msra.mxu0 0.0
  %2122 = vmatprep.subr.mxu0 0.0
  %2123 = vmatpush1.msra.mxu0 0.0
  %2124 = vmatprep.subr.mxu0 0.0
  %2125 = vmatpush1.msra.mxu0 0.0
  %2126 = vmatprep.subr.mxu0 0.0
  %2127 = vmatpush1.msra.mxu0 0.0
  %2128 = vmatprep.subr.mxu0 0.0
  %2129 = vmatpush1.msra.mxu0 0.0
  %2130 = vmatprep.subr.mxu0 0.0
  %2131 = vmatpush1.msra.mxu0 0.0
  %2132 = vmatprep.subr.mxu0 0.0
  %2133 = vmatpush1.msra.mxu0 0.0
  %2134 = vmatprep.subr.mxu0 0.0
  %2135 = vmatpush1.msra.mxu0 0.0
  %2136 = vmatprep.subr.mxu0 0.0
  %2137 = vmatpush1.msra.mxu0 0.0
  %2138 = vmatprep.subr.mxu0 0.0
  %2139 = vmatpush1.msra.mxu0 0.0
  %2140 = vmatprep.subr.mxu0 0.0
  %2141 = vmatpush1.msra.mxu0 0.0
  %2142 = vmatprep.subr.mxu0 0.0
  %2143 = vmatpush1.msra.mxu0 0.0
  %2144 = vmatprep.subr.mxu0 0.0
  %2145 = vmatpush1.msra.mxu0 0.0
  %2146 = vmatprep.subr.mxu0 0.0
  %2147 = vmatpush1.msra.mxu0 0.0
  %2148 = vmatprep.subr.mxu0 0.0
  %2149 = vmatpush1.msra.mxu0 0.0
  %2150 = vmatprep.mubr.f32.mxu0 0.0
  %v2151 = vand.u32 %v1683, 4294901760
  %v2152 = vsub.f32 %v1683, %v2151
  %v2153 = vand.u32 %v2152, 4294901760
  %2154 = vmatmul.mubr.f32.gmra.mrb[0].mxu0 %v2153
  %v2155 = vpop.f32.mrb[0].mxu0
  %v2156 = vadd.f32 %v2060, %v2155
  %v2157 = vpop.f32.mrb[0].mxu0
  %2158 = vmatprep.mubr.f32.mxu0 0.0
  %v2159 = vand.u32 %v1684, 4294901760
  %v2160 = vsub.f32 %v1684, %v2159
  %v2161 = vand.u32 %v2160, 4294901760
  %2162 = vmatmul.mubr.f32.gmra.mrb[0].mxu0 %v2161
  %v2163 = vpop.f32.mrb[0].mxu0
  %v2164 = vadd.f32 %v2067, %v2163
  %v2165 = vpop.f32.mrb[0].mxu0
  %2166 = vdwg.mxu0
  %2167 = vmatprep.subr.mxu0 0.0
  %v2168 = vand.u32 %v1685, 4294901760
  %v2169 = vsub.f32 %v1685, %v2168
  %v2170 = vand.u32 %v2169, 4294901760
  %2171 = vmatpush1.msra.mxu0 %v2170
  %2172 = vmatprep.subr.mxu0 0.0
  %v2173 = vand.u32 %v1686, 4294901760
  %v2174 = vsub.f32 %v1686, %v2173
  %v2175 = vand.u32 %v2174, 4294901760
  %2176 = vmatpush1.msra.mxu0 %v2175
  %2177 = vmatprep.subr.mxu0 0.0
  %v2178 = vand.u32 %v1687, 4294901760
  %v2179 = vsub.f32 %v1687, %v2178
  %v2180 = vand.u32 %v2179, 4294901760
  %2181 = vmatpush1.msra.mxu0 %v2180
  %2182 = vmatprep.subr.mxu0 0.0
  %v2183 = vand.u32 %v1688, 4294901760
  %v2184 = vsub.f32 %v1688, %v2183
  %v2185 = vand.u32 %v2184, 4294901760
  %2186 = vmatpush1.msra.mxu0 %v2185
  %2187 = vmatprep.subr.mxu0 0.0
  %v2188 = vand.u32 %v1689, 4294901760
  %v2189 = vsub.f32 %v1689, %v2188
  %v2190 = vand.u32 %v2189, 4294901760
  %2191 = vmatpush1.msra.mxu0 %v2190
  %2192 = vmatprep.subr.mxu0 0.0
  %v2193 = vand.u32 %v1690, 4294901760
  %v2194 = vsub.f32 %v1690, %v2193
  %v2195 = vand.u32 %v2194, 4294901760
  %2196 = vmatpush1.msra.mxu0 %v2195
  %2197 = vmatprep.subr.mxu0 0.0
  %v2198 = vand.u32 %v1691, 4294901760
  %v2199 = vsub.f32 %v1691, %v2198
  %v2200 = vand.u32 %v2199, 4294901760
  %2201 = vmatpush1.msra.mxu0 %v2200
  %2202 = vmatprep.subr.mxu0 0.0
  %v2203 = vand.u32 %v1692, 4294901760
  %v2204 = vsub.f32 %v1692, %v2203
  %v2205 = vand.u32 %v2204, 4294901760
  %2206 = vmatpush1.msra.mxu0 %v2205
  %2207 = vmatprep.subr.mxu0 0.0
  %v2208 = vand.u32 %v1693, 4294901760
  %v2209 = vsub.f32 %v1693, %v2208
  %v2210 = vand.u32 %v2209, 4294901760
  %2211 = vmatpush1.msra.mxu0 %v2210
  %2212 = vmatprep.subr.mxu0 0.0
  %v2213 = vand.u32 %v1694, 4294901760
  %v2214 = vsub.f32 %v1694, %v2213
  %v2215 = vand.u32 %v2214, 4294901760
  %2216 = vmatpush1.msra.mxu0 %v2215
  %2217 = vmatprep.subr.mxu0 0.0
  %v2218 = vand.u32 %v1695, 4294901760
  %v2219 = vsub.f32 %v1695, %v2218
  %v2220 = vand.u32 %v2219, 4294901760
  %2221 = vmatpush1.msra.mxu0 %v2220
  %2222 = vmatprep.subr.mxu0 0.0
  %v2223 = vand.u32 %v1696, 4294901760
  %v2224 = vsub.f32 %v1696, %v2223
  %v2225 = vand.u32 %v2224, 4294901760
  %2226 = vmatpush1.msra.mxu0 %v2225
  %2227 = vmatprep.subr.mxu0 0.0
  %v2228 = vand.u32 %v1697, 4294901760
  %v2229 = vsub.f32 %v1697, %v2228
  %v2230 = vand.u32 %v2229, 4294901760
  %2231 = vmatpush1.msra.mxu0 %v2230
  %2232 = vmatprep.subr.mxu0 0.0
  %v2233 = vand.u32 %v1698, 4294901760
  %v2234 = vsub.f32 %v1698, %v2233
  %v2235 = vand.u32 %v2234, 4294901760
  %2236 = vmatpush1.msra.mxu0 %v2235
  %2237 = vmatprep.subr.mxu0 0.0
  %v2238 = vand.u32 %v1699, 4294901760
  %v2239 = vsub.f32 %v1699, %v2238
  %v2240 = vand.u32 %v2239, 4294901760
  %2241 = vmatpush1.msra.mxu0 %v2240
  %2242 = vmatprep.subr.mxu0 0.0
  %v2243 = vand.u32 %v1700, 4294901760
  %v2244 = vsub.f32 %v1700, %v2243
  %v2245 = vand.u32 %v2244, 4294901760
  %2246 = vmatpush1.msra.mxu0 %v2245
  %2247 = vmatprep.subr.mxu0 0.0
  %2248 = vmatpush1.msra.mxu0 0.0
  %2249 = vmatprep.subr.mxu0 0.0
  %2250 = vmatpush1.msra.mxu0 0.0
  %2251 = vmatprep.subr.mxu0 0.0
  %2252 = vmatpush1.msra.mxu0 0.0
  %2253 = vmatprep.subr.mxu0 0.0
  %2254 = vmatpush1.msra.mxu0 0.0
  %2255 = vmatprep.subr.mxu0 0.0
  %2256 = vmatpush1.msra.mxu0 0.0
  %2257 = vmatprep.subr.mxu0 0.0
  %2258 = vmatpush1.msra.mxu0 0.0
  %2259 = vmatprep.subr.mxu0 0.0
  %2260 = vmatpush1.msra.mxu0 0.0
  %2261 = vmatprep.subr.mxu0 0.0
  %2262 = vmatpush1.msra.mxu0 0.0
  %2263 = vmatprep.subr.mxu0 0.0
  %2264 = vmatpush1.msra.mxu0 0.0
  %2265 = vmatprep.subr.mxu0 0.0
  %2266 = vmatpush1.msra.mxu0 0.0
  %2267 = vmatprep.subr.mxu0 0.0
  %2268 = vmatpush1.msra.mxu0 0.0
  %2269 = vmatprep.subr.mxu0 0.0
  %2270 = vmatpush1.msra.mxu0 0.0
  %2271 = vmatprep.subr.mxu0 0.0
  %2272 = vmatpush1.msra.mxu0 0.0
  %2273 = vmatprep.subr.mxu0 0.0
  %2274 = vmatpush1.msra.mxu0 0.0
  %2275 = vmatprep.subr.mxu0 0.0
  %2276 = vmatpush1.msra.mxu0 0.0
  %2277 = vmatprep.subr.mxu0 0.0
  %2278 = vmatpush1.msra.mxu0 0.0
  %2279 = vmatprep.mubr.f32.mxu0 0.0
  %v2280 = vand.u32 %v1683, 4294901760
  %2281 = vmatmul.mubr.f32.gmra.mrb[0].mxu0 %v2280
  %v2282 = vpop.f32.mrb[0].mxu0
  %v2283 = vadd.f32 %v2156, %v2282
  %v2284 = vpop.f32.mrb[0].mxu0
  %2285 = vmatprep.mubr.f32.mxu0 0.0
  %v2286 = vand.u32 %v1684, 4294901760
  %2287 = vmatmul.mubr.f32.gmra.mrb[0].mxu0 %v2286
  %v2288 = vpop.f32.mrb[0].mxu0
  %v2289 = vadd.f32 %v2164, %v2288
  %v2290 = vpop.f32.mrb[0].mxu0
  %2291 = vdwg.mxu0
  %2292 = vmatprep.subr.mxu0 0.0
  %v2293 = vand.u32 %v1685, 4294901760
  %2294 = vmatpush1.msra.mxu0 %v2293
  %2295 = vmatprep.subr.mxu0 0.0
  %v2296 = vand.u32 %v1686, 4294901760
  %2297 = vmatpush1.msra.mxu0 %v2296
  %2298 = vmatprep.subr.mxu0 0.0
  %v2299 = vand.u32 %v1687, 4294901760
  %2300 = vmatpush1.msra.mxu0 %v2299
  %2301 = vmatprep.subr.mxu0 0.0
  %v2302 = vand.u32 %v1688, 4294901760
  %2303 = vmatpush1.msra.mxu0 %v2302
  %2304 = vmatprep.subr.mxu0 0.0
  %v2305 = vand.u32 %v1689, 4294901760
  %2306 = vmatpush1.msra.mxu0 %v2305
  %2307 = vmatprep.subr.mxu0 0.0
  %v2308 = vand.u32 %v1690, 4294901760
  %2309 = vmatpush1.msra.mxu0 %v2308
  %2310 = vmatprep.subr.mxu0 0.0
  %v2311 = vand.u32 %v1691, 4294901760
  %2312 = vmatpush1.msra.mxu0 %v2311
  %2313 = vmatprep.subr.mxu0 0.0
  %v2314 = vand.u32 %v1692, 4294901760
  %2315 = vmatpush1.msra.mxu0 %v2314
  %2316 = vmatprep.subr.mxu0 0.0
  %v2317 = vand.u32 %v1693, 4294901760
  %2318 = vmatpush1.msra.mxu0 %v2317
  %2319 = vmatprep.subr.mxu0 0.0
  %v2320 = vand.u32 %v1694, 4294901760
  %2321 = vmatpush1.msra.mxu0 %v2320
  %2322 = vmatprep.subr.mxu0 0.0
  %v2323 = vand.u32 %v1695, 4294901760
  %2324 = vmatpush1.msra.mxu0 %v2323
  %2325 = vmatprep.subr.mxu0 0.0
  %v2326 = vand.u32 %v1696, 4294901760
  %2327 = vmatpush1.msra.mxu0 %v2326
  %2328 = vmatprep.subr.mxu0 0.0
  %v2329 = vand.u32 %v1697, 4294901760
  %2330 = vmatpush1.msra.mxu0 %v2329
  %2331 = vmatprep.subr.mxu0 0.0
  %v2332 = vand.u32 %v1698, 4294901760
  %2333 = vmatpush1.msra.mxu0 %v2332
  %2334 = vmatprep.subr.mxu0 0.0
  %v2335 = vand.u32 %v1699, 4294901760
  %2336 = vmatpush1.msra.mxu0 %v2335
  %2337 = vmatprep.subr.mxu0 0.0
  %v2338 = vand.u32 %v1700, 4294901760
  %2339 = vmatpush1.msra.mxu0 %v2338
  %2340 = vmatprep.subr.mxu0 0.0
  %2341 = vmatpush1.msra.mxu0 0.0
  %2342 = vmatprep.subr.mxu0 0.0
  %2343 = vmatpush1.msra.mxu0 0.0
  %2344 = vmatprep.subr.mxu0 0.0
  %2345 = vmatpush1.msra.mxu0 0.0
  %2346 = vmatprep.subr.mxu0 0.0
  %2347 = vmatpush1.msra.mxu0 0.0
  %2348 = vmatprep.subr.mxu0 0.0
  %2349 = vmatpush1.msra.mxu0 0.0
  %2350 = vmatprep.subr.mxu0 0.0
  %2351 = vmatpush1.msra.mxu0 0.0
  %2352 = vmatprep.subr.mxu0 0.0
  %2353 = vmatpush1.msra.mxu0 0.0
  %2354 = vmatprep.subr.mxu0 0.0
  %2355 = vmatpush1.msra.mxu0 0.0
  %2356 = vmatprep.subr.mxu0 0.0
  %2357 = vmatpush1.msra.mxu0 0.0
  %2358 = vmatprep.subr.mxu0 0.0
  %2359 = vmatpush1.msra.mxu0 0.0
  %2360 = vmatprep.subr.mxu0 0.0
  %2361 = vmatpush1.msra.mxu0 0.0
  %2362 = vmatprep.subr.mxu0 0.0
  %2363 = vmatpush1.msra.mxu0 0.0
  %2364 = vmatprep.subr.mxu0 0.0
  %2365 = vmatpush1.msra.mxu0 0.0
  %2366 = vmatprep.subr.mxu0 0.0
  %2367 = vmatpush1.msra.mxu0 0.0
  %2368 = vmatprep.subr.mxu0 0.0
  %2369 = vmatpush1.msra.mxu0 0.0
  %2370 = vmatprep.subr.mxu0 0.0
  %2371 = vmatpush1.msra.mxu0 0.0
  %2372 = vmatprep.mubr.f32.mxu0 0.0
  %v2373 = vand.u32 %v1683, 4294901760
  %2374 = vmatmul.mubr.f32.gmra.mrb[0].mxu0 %v2373
  %v2375 = vpop.f32.mrb[0].mxu0
  %v2376 = vadd.f32 %v2283, %v2375
  %v2377 = vpop.f32.mrb[0].mxu0
  %2378 = vmatprep.mubr.f32.mxu0 0.0
  %v2379 = vand.u32 %v1684, 4294901760
  %2380 = vmatmul.mubr.f32.gmra.mrb[0].mxu0 %v2379
  %v2381 = vpop.f32.mrb[0].mxu0
  %v2382 = vadd.f32 %v2289, %v2381
  %v2383 = vpop.f32.mrb[0].mxu0
  %2384 = vdwg.mxu0
  %vm2385 = vcmask 130048
  %v2386 = vsel %vm2385, %v2376, 0.0
  %v2387 = vrot.slane %v2386, 4
  %v2388 = vadd.f32 %v2386, %v2387
  %v2389 = vrot.slane %v2388, 2
  %v2390 = vadd.f32 %v2388, %v2389
  %v2391 = vrot.slane %v2390, 1
  %v2392 = vadd.f32 %v2390, %v2391
  %v2393 = vsel %vm2385, %v2382, 0.0
  %v2394 = vrot.slane %v2393, 4
  %v2395 = vadd.f32 %v2393, %v2394
  %v2396 = vrot.slane %v2395, 2
  %v2397 = vadd.f32 %v2395, %v2396
  %v2398 = vrot.slane %v2397, 1
  %v2399 = vadd.f32 %v2397, %v2398
  %v2400 = vmul.f32 %v2392, 0.015625
  %v2401 = vmul.f32 %v2399, 0.015625
  %v2402 = vmul.f32 %v2400, %v2400
  %v2403 = vsub.f32 %v2401, %v2402
  %v2404 = vmax.f32 %v2403, 0.0
  %v2405 = vadd.f32 %v2404, 1e-05
  %v2406 = vrsqrt.pop %v2405
  %v2407 = vld [vmem:[%s4] sm:$0xff]
  %v2408 = vld [vmem:[%s4 + $0x8] sm:$0xff]
  %v2410 = vsel %vm2385, %v2406, 0
  %2412 = vmatprep.subr.mxu0 0.0
  %v2413 = vand.u32 %v2407, 4294901760
  %2414 = vmatpush1.msra.mxu0 %v2413
  %2415 = vmatprep.subr.mxu0 0.0
  %v2416 = vand.u32 %v2408, 4294901760
  %2417 = vmatpush1.msra.mxu0 %v2416
  %2418 = vmatprep.subr.mxu0 0.0
  %2419 = vmatpush1.msra.mxu0 0.0
  %2420 = vmatprep.subr.mxu0 0.0
  %2421 = vmatpush1.msra.mxu0 0.0
  %2422 = vmatprep.subr.mxu0 0.0
  %2423 = vmatpush1.msra.mxu0 0.0
  %2424 = vmatprep.subr.mxu0 0.0
  %2425 = vmatpush1.msra.mxu0 0.0
  %2426 = vmatprep.subr.mxu0 0.0
  %2427 = vmatpush1.msra.mxu0 0.0
  %2428 = vmatprep.subr.mxu0 0.0
  %2429 = vmatpush1.msra.mxu0 0.0
  %2430 = vmatprep.subr.mxu0 0.0
  %2431 = vmatpush1.msra.mxu0 0.0
  %2432 = vmatprep.subr.mxu0 0.0
  %2433 = vmatpush1.msra.mxu0 0.0
  %2434 = vmatprep.subr.mxu0 0.0
  %2435 = vmatpush1.msra.mxu0 0.0
  %2436 = vmatprep.subr.mxu0 0.0
  %2437 = vmatpush1.msra.mxu0 0.0
  %2438 = vmatprep.subr.mxu0 0.0
  %2439 = vmatpush1.msra.mxu0 0.0
  %2440 = vmatprep.subr.mxu0 0.0
  %2441 = vmatpush1.msra.mxu0 0.0
  %2442 = vmatprep.subr.mxu0 0.0
  %2443 = vmatpush1.msra.mxu0 0.0
  %2444 = vmatprep.subr.mxu0 0.0
  %2445 = vmatpush1.msra.mxu0 0.0
  %2446 = vmatprep.subr.mxu0 0.0
  %2447 = vmatpush1.msra.mxu0 0.0
  %2448 = vmatprep.subr.mxu0 0.0
  %2449 = vmatpush1.msra.mxu0 0.0
  %2450 = vmatprep.subr.mxu0 0.0
  %2451 = vmatpush1.msra.mxu0 0.0
  %2452 = vmatprep.subr.mxu0 0.0
  %2453 = vmatpush1.msra.mxu0 0.0
  %2454 = vmatprep.subr.mxu0 0.0
  %2455 = vmatpush1.msra.mxu0 0.0
  %2456 = vmatprep.subr.mxu0 0.0
  %2457 = vmatpush1.msra.mxu0 0.0
  %2458 = vmatprep.subr.mxu0 0.0
  %2459 = vmatpush1.msra.mxu0 0.0
  %2460 = vmatprep.subr.mxu0 0.0
  %2461 = vmatpush1.msra.mxu0 0.0
  %2462 = vmatprep.subr.mxu0 0.0
  %2463 = vmatpush1.msra.mxu0 0.0
  %2464 = vmatprep.subr.mxu0 0.0
  %2465 = vmatpush1.msra.mxu0 0.0
  %2466 = vmatprep.subr.mxu0 0.0
  %2467 = vmatpush1.msra.mxu0 0.0
  %2468 = vmatprep.subr.mxu0 0.0
  %2469 = vmatpush1.msra.mxu0 0.0
  %2470 = vmatprep.subr.mxu0 0.0
  %2471 = vmatpush1.msra.mxu0 0.0
  %2472 = vmatprep.subr.mxu0 0.0
  %2473 = vmatpush1.msra.mxu0 0.0
  %2474 = vmatprep.subr.mxu0 0.0
  %2475 = vmatpush1.msra.mxu0 0.0
  %2476 = vmatprep.subr.mxu0 0.0
  %2477 = vmatpush1.msra.mxu0 0.0
  %2478 = vmatprep.mubr.f32.mxu0 0.0
  %v2479 = vand.u32 %v2410, 4294901760
  %v2480 = vsub.f32 %v2410, %v2479
  %v2481 = vand.u32 %v2480, 4294901760
  %v2482 = vsub.f32 %v2480, %v2481
  %v2483 = vand.u32 %v2482, 4294901760
  %2484 = vmatmul.mubr.f32.gmra.mrb[0].mxu0 %v2483
  %v2485 = vpop.f32.mrb[0].mxu0
  %v2486 = vadd.f32 0.0, %v2485
  %v2487 = vpop.f32.mrb[0].mxu0
  %2488 = vdwg.mxu0
  %2489 = vmatprep.subr.mxu0 0.0
  %v2490 = vand.u32 %v2407, 4294901760
  %v2491 = vsub.f32 %v2407, %v2490
  %v2492 = vand.u32 %v2491, 4294901760
  %v2493 = vsub.f32 %v2491, %v2492
  %v2494 = vand.u32 %v2493, 4294901760
  %2495 = vmatpush1.msra.mxu0 %v2494
  %2496 = vmatprep.subr.mxu0 0.0
  %v2497 = vand.u32 %v2408, 4294901760
  %v2498 = vsub.f32 %v2408, %v2497
  %v2499 = vand.u32 %v2498, 4294901760
  %v2500 = vsub.f32 %v2498, %v2499
  %v2501 = vand.u32 %v2500, 4294901760
  %2502 = vmatpush1.msra.mxu0 %v2501
  %2503 = vmatprep.subr.mxu0 0.0
  %2504 = vmatpush1.msra.mxu0 0.0
  %2505 = vmatprep.subr.mxu0 0.0
  %2506 = vmatpush1.msra.mxu0 0.0
  %2507 = vmatprep.subr.mxu0 0.0
  %2508 = vmatpush1.msra.mxu0 0.0
  %2509 = vmatprep.subr.mxu0 0.0
  %2510 = vmatpush1.msra.mxu0 0.0
  %2511 = vmatprep.subr.mxu0 0.0
  %2512 = vmatpush1.msra.mxu0 0.0
  %2513 = vmatprep.subr.mxu0 0.0
  %2514 = vmatpush1.msra.mxu0 0.0
  %2515 = vmatprep.subr.mxu0 0.0
  %2516 = vmatpush1.msra.mxu0 0.0
  %2517 = vmatprep.subr.mxu0 0.0
  %2518 = vmatpush1.msra.mxu0 0.0
  %2519 = vmatprep.subr.mxu0 0.0
  %2520 = vmatpush1.msra.mxu0 0.0
  %2521 = vmatprep.subr.mxu0 0.0
  %2522 = vmatpush1.msra.mxu0 0.0
  %2523 = vmatprep.subr.mxu0 0.0
  %2524 = vmatpush1.msra.mxu0 0.0
  %2525 = vmatprep.subr.mxu0 0.0
  %2526 = vmatpush1.msra.mxu0 0.0
  %2527 = vmatprep.subr.mxu0 0.0
  %2528 = vmatpush1.msra.mxu0 0.0
  %2529 = vmatprep.subr.mxu0 0.0
  %2530 = vmatpush1.msra.mxu0 0.0
  %2531 = vmatprep.subr.mxu0 0.0
  %2532 = vmatpush1.msra.mxu0 0.0
  %2533 = vmatprep.subr.mxu0 0.0
  %2534 = vmatpush1.msra.mxu0 0.0
  %2535 = vmatprep.subr.mxu0 0.0
  %2536 = vmatpush1.msra.mxu0 0.0
  %2537 = vmatprep.subr.mxu0 0.0
  %2538 = vmatpush1.msra.mxu0 0.0
  %2539 = vmatprep.subr.mxu0 0.0
  %2540 = vmatpush1.msra.mxu0 0.0
  %2541 = vmatprep.subr.mxu0 0.0
  %2542 = vmatpush1.msra.mxu0 0.0
  %2543 = vmatprep.subr.mxu0 0.0
  %2544 = vmatpush1.msra.mxu0 0.0
  %2545 = vmatprep.subr.mxu0 0.0
  %2546 = vmatpush1.msra.mxu0 0.0
  %2547 = vmatprep.subr.mxu0 0.0
  %2548 = vmatpush1.msra.mxu0 0.0
  %2549 = vmatprep.subr.mxu0 0.0
  %2550 = vmatpush1.msra.mxu0 0.0
  %2551 = vmatprep.subr.mxu0 0.0
  %2552 = vmatpush1.msra.mxu0 0.0
  %2553 = vmatprep.subr.mxu0 0.0
  %2554 = vmatpush1.msra.mxu0 0.0
  %2555 = vmatprep.subr.mxu0 0.0
  %2556 = vmatpush1.msra.mxu0 0.0
  %2557 = vmatprep.subr.mxu0 0.0
  %2558 = vmatpush1.msra.mxu0 0.0
  %2559 = vmatprep.subr.mxu0 0.0
  %2560 = vmatpush1.msra.mxu0 0.0
  %2561 = vmatprep.subr.mxu0 0.0
  %2562 = vmatpush1.msra.mxu0 0.0
  %2563 = vmatprep.mubr.f32.mxu0 0.0
  %v2564 = vand.u32 %v2410, 4294901760
  %2565 = vmatmul.mubr.f32.gmra.mrb[0].mxu0 %v2564
  %v2566 = vpop.f32.mrb[0].mxu0
  %v2567 = vadd.f32 %v2486, %v2566
  %v2568 = vpop.f32.mrb[0].mxu0
  %2569 = vdwg.mxu0
  %2570 = vmatprep.subr.mxu0 0.0
  %v2571 = vand.u32 %v2407, 4294901760
  %v2572 = vsub.f32 %v2407, %v2571
  %2573 = vmatpush1.msra.mxu0 %v2572
  %2574 = vmatprep.subr.mxu0 0.0
  %v2575 = vand.u32 %v2408, 4294901760
  %v2576 = vsub.f32 %v2408, %v2575
  %2577 = vmatpush1.msra.mxu0 %v2576
  %2578 = vmatprep.subr.mxu0 0.0
  %2579 = vmatpush1.msra.mxu0 0.0
  %2580 = vmatprep.subr.mxu0 0.0
  %2581 = vmatpush1.msra.mxu0 0.0
  %2582 = vmatprep.subr.mxu0 0.0
  %2583 = vmatpush1.msra.mxu0 0.0
  %2584 = vmatprep.subr.mxu0 0.0
  %2585 = vmatpush1.msra.mxu0 0.0
  %2586 = vmatprep.subr.mxu0 0.0
  %2587 = vmatpush1.msra.mxu0 0.0
  %2588 = vmatprep.subr.mxu0 0.0
  %2589 = vmatpush1.msra.mxu0 0.0
  %2590 = vmatprep.subr.mxu0 0.0
  %2591 = vmatpush1.msra.mxu0 0.0
  %2592 = vmatprep.subr.mxu0 0.0
  %2593 = vmatpush1.msra.mxu0 0.0
  %2594 = vmatprep.subr.mxu0 0.0
  %2595 = vmatpush1.msra.mxu0 0.0
  %2596 = vmatprep.subr.mxu0 0.0
  %2597 = vmatpush1.msra.mxu0 0.0
  %2598 = vmatprep.subr.mxu0 0.0
  %2599 = vmatpush1.msra.mxu0 0.0
  %2600 = vmatprep.subr.mxu0 0.0
  %2601 = vmatpush1.msra.mxu0 0.0
  %2602 = vmatprep.subr.mxu0 0.0
  %2603 = vmatpush1.msra.mxu0 0.0
  %2604 = vmatprep.subr.mxu0 0.0
  %2605 = vmatpush1.msra.mxu0 0.0
  %2606 = vmatprep.subr.mxu0 0.0
  %2607 = vmatpush1.msra.mxu0 0.0
  %2608 = vmatprep.subr.mxu0 0.0
  %2609 = vmatpush1.msra.mxu0 0.0
  %2610 = vmatprep.subr.mxu0 0.0
  %2611 = vmatpush1.msra.mxu0 0.0
  %2612 = vmatprep.subr.mxu0 0.0
  %2613 = vmatpush1.msra.mxu0 0.0
  %2614 = vmatprep.subr.mxu0 0.0
  %2615 = vmatpush1.msra.mxu0 0.0
  %2616 = vmatprep.subr.mxu0 0.0
  %2617 = vmatpush1.msra.mxu0 0.0
  %2618 = vmatprep.subr.mxu0 0.0
  %2619 = vmatpush1.msra.mxu0 0.0
  %2620 = vmatprep.subr.mxu0 0.0
  %2621 = vmatpush1.msra.mxu0 0.0
  %2622 = vmatprep.subr.mxu0 0.0
  %2623 = vmatpush1.msra.mxu0 0.0
  %2624 = vmatprep.subr.mxu0 0.0
  %2625 = vmatpush1.msra.mxu0 0.0
  %2626 = vmatprep.subr.mxu0 0.0
  %2627 = vmatpush1.msra.mxu0 0.0
  %2628 = vmatprep.subr.mxu0 0.0
  %2629 = vmatpush1.msra.mxu0 0.0
  %2630 = vmatprep.subr.mxu0 0.0
  %2631 = vmatpush1.msra.mxu0 0.0
  %2632 = vmatprep.subr.mxu0 0.0
  %2633 = vmatpush1.msra.mxu0 0.0
  %2634 = vmatprep.subr.mxu0 0.0
  %2635 = vmatpush1.msra.mxu0 0.0
  %2636 = vmatprep.subr.mxu0 0.0
  %2637 = vmatpush1.msra.mxu0 0.0
  %2638 = vmatprep.mubr.f32.mxu0 0.0
  %v2639 = vand.u32 %v2410, 4294901760
  %v2640 = vsub.f32 %v2410, %v2639
  %2641 = vmatmul.mubr.f32.gmra.mrb[0].mxu0 %v2640
  %v2642 = vpop.f32.mrb[0].mxu0
  %v2643 = vadd.f32 %v2567, %v2642
  %v2644 = vpop.f32.mrb[0].mxu0
  %2645 = vdwg.mxu0
  %2646 = vmatprep.subr.mxu0 0.0
  %v2647 = vand.u32 %v2407, 4294901760
  %2648 = vmatpush1.msra.mxu0 %v2647
  %2649 = vmatprep.subr.mxu0 0.0
  %v2650 = vand.u32 %v2408, 4294901760
  %2651 = vmatpush1.msra.mxu0 %v2650
  %2652 = vmatprep.subr.mxu0 0.0
  %2653 = vmatpush1.msra.mxu0 0.0
  %2654 = vmatprep.subr.mxu0 0.0
  %2655 = vmatpush1.msra.mxu0 0.0
  %2656 = vmatprep.subr.mxu0 0.0
  %2657 = vmatpush1.msra.mxu0 0.0
  %2658 = vmatprep.subr.mxu0 0.0
  %2659 = vmatpush1.msra.mxu0 0.0
  %2660 = vmatprep.subr.mxu0 0.0
  %2661 = vmatpush1.msra.mxu0 0.0
  %2662 = vmatprep.subr.mxu0 0.0
  %2663 = vmatpush1.msra.mxu0 0.0
  %2664 = vmatprep.subr.mxu0 0.0
  %2665 = vmatpush1.msra.mxu0 0.0
  %2666 = vmatprep.subr.mxu0 0.0
  %2667 = vmatpush1.msra.mxu0 0.0
  %2668 = vmatprep.subr.mxu0 0.0
  %2669 = vmatpush1.msra.mxu0 0.0
  %2670 = vmatprep.subr.mxu0 0.0
  %2671 = vmatpush1.msra.mxu0 0.0
  %2672 = vmatprep.subr.mxu0 0.0
  %2673 = vmatpush1.msra.mxu0 0.0
  %2674 = vmatprep.subr.mxu0 0.0
  %2675 = vmatpush1.msra.mxu0 0.0
  %2676 = vmatprep.subr.mxu0 0.0
  %2677 = vmatpush1.msra.mxu0 0.0
  %2678 = vmatprep.subr.mxu0 0.0
  %2679 = vmatpush1.msra.mxu0 0.0
  %2680 = vmatprep.subr.mxu0 0.0
  %2681 = vmatpush1.msra.mxu0 0.0
  %2682 = vmatprep.subr.mxu0 0.0
  %2683 = vmatpush1.msra.mxu0 0.0
  %2684 = vmatprep.subr.mxu0 0.0
  %2685 = vmatpush1.msra.mxu0 0.0
  %2686 = vmatprep.subr.mxu0 0.0
  %2687 = vmatpush1.msra.mxu0 0.0
  %2688 = vmatprep.subr.mxu0 0.0
  %2689 = vmatpush1.msra.mxu0 0.0
  %2690 = vmatprep.subr.mxu0 0.0
  %2691 = vmatpush1.msra.mxu0 0.0
  %2692 = vmatprep.subr.mxu0 0.0
  %2693 = vmatpush1.msra.mxu0 0.0
  %2694 = vmatprep.subr.mxu0 0.0
  %2695 = vmatpush1.msra.mxu0 0.0
  %2696 = vmatprep.subr.mxu0 0.0
  %2697 = vmatpush1.msra.mxu0 0.0
  %2698 = vmatprep.subr.mxu0 0.0
  %2699 = vmatpush1.msra.mxu0 0.0
  %2700 = vmatprep.subr.mxu0 0.0
  %2701 = vmatpush1.msra.mxu0 0.0
  %2702 = vmatprep.subr.mxu0 0.0
  %2703 = vmatpush1.msra.mxu0 0.0
  %2704 = vmatprep.subr.mxu0 0.0
  %2705 = vmatpush1.msra.mxu0 0.0
  %2706 = vmatprep.subr.mxu0 0.0
  %2707 = vmatpush1.msra.mxu0 0.0
  %2708 = vmatprep.subr.mxu0 0.0
  %2709 = vmatpush1.msra.mxu0 0.0
  %2710 = vmatprep.subr.mxu0 0.0
  %2711 = vmatpush1.msra.mxu0 0.0
  %2712 = vmatprep.mubr.f32.mxu0 0.0
  %v2713 = vand.u32 %v2410, 4294901760
  %v2714 = vsub.f32 %v2410, %v2713
  %v2715 = vand.u32 %v2714, 4294901760
  %2716 = vmatmul.mubr.f32.gmra.mrb[0].mxu0 %v2715
  %v2717 = vpop.f32.mrb[0].mxu0
  %v2718 = vadd.f32 %v2643, %v2717
  %v2719 = vpop.f32.mrb[0].mxu0
  %2720 = vdwg.mxu0
  %2721 = vmatprep.subr.mxu0 0.0
  %v2722 = vand.u32 %v2407, 4294901760
  %v2723 = vsub.f32 %v2407, %v2722
  %v2724 = vand.u32 %v2723, 4294901760
  %2725 = vmatpush1.msra.mxu0 %v2724
  %2726 = vmatprep.subr.mxu0 0.0
  %v2727 = vand.u32 %v2408, 4294901760
  %v2728 = vsub.f32 %v2408, %v2727
  %v2729 = vand.u32 %v2728, 4294901760
  %2730 = vmatpush1.msra.mxu0 %v2729
  %2731 = vmatprep.subr.mxu0 0.0
  %2732 = vmatpush1.msra.mxu0 0.0
  %2733 = vmatprep.subr.mxu0 0.0
  %2734 = vmatpush1.msra.mxu0 0.0
  %2735 = vmatprep.subr.mxu0 0.0
  %2736 = vmatpush1.msra.mxu0 0.0
  %2737 = vmatprep.subr.mxu0 0.0
  %2738 = vmatpush1.msra.mxu0 0.0
  %2739 = vmatprep.subr.mxu0 0.0
  %2740 = vmatpush1.msra.mxu0 0.0
  %2741 = vmatprep.subr.mxu0 0.0
  %2742 = vmatpush1.msra.mxu0 0.0
  %2743 = vmatprep.subr.mxu0 0.0
  %2744 = vmatpush1.msra.mxu0 0.0
  %2745 = vmatprep.subr.mxu0 0.0
  %2746 = vmatpush1.msra.mxu0 0.0
  %2747 = vmatprep.subr.mxu0 0.0
  %2748 = vmatpush1.msra.mxu0 0.0
  %2749 = vmatprep.subr.mxu0 0.0
  %2750 = vmatpush1.msra.mxu0 0.0
  %2751 = vmatprep.subr.mxu0 0.0
  %2752 = vmatpush1.msra.mxu0 0.0
  %2753 = vmatprep.subr.mxu0 0.0
  %2754 = vmatpush1.msra.mxu0 0.0
  %2755 = vmatprep.subr.mxu0 0.0
  %2756 = vmatpush1.msra.mxu0 0.0
  %2757 = vmatprep.subr.mxu0 0.0
  %2758 = vmatpush1.msra.mxu0 0.0
  %2759 = vmatprep.subr.mxu0 0.0
  %2760 = vmatpush1.msra.mxu0 0.0
  %2761 = vmatprep.subr.mxu0 0.0
  %2762 = vmatpush1.msra.mxu0 0.0
  %2763 = vmatprep.subr.mxu0 0.0
  %2764 = vmatpush1.msra.mxu0 0.0
  %2765 = vmatprep.subr.mxu0 0.0
  %2766 = vmatpush1.msra.mxu0 0.0
  %2767 = vmatprep.subr.mxu0 0.0
  %2768 = vmatpush1.msra.mxu0 0.0
  %2769 = vmatprep.subr.mxu0 0.0
  %2770 = vmatpush1.msra.mxu0 0.0
  %2771 = vmatprep.subr.mxu0 0.0
  %2772 = vmatpush1.msra.mxu0 0.0
  %2773 = vmatprep.subr.mxu0 0.0
  %2774 = vmatpush1.msra.mxu0 0.0
  %2775 = vmatprep.subr.mxu0 0.0
  %2776 = vmatpush1.msra.mxu0 0.0
  %2777 = vmatprep.subr.mxu0 0.0
  %2778 = vmatpush1.msra.mxu0 0.0
  %2779 = vmatprep.subr.mxu0 0.0
  %2780 = vmatpush1.msra.mxu0 0.0
  %2781 = vmatprep.subr.mxu0 0.0
  %2782 = vmatpush1.msra.mxu0 0.0
  %2783 = vmatprep.subr.mxu0 0.0
  %2784 = vmatpush1.msra.mxu0 0.0
  %2785 = vmatprep.subr.mxu0 0.0
  %2786 = vmatpush1.msra.mxu0 0.0
  %2787 = vmatprep.subr.mxu0 0.0
  %2788 = vmatpush1.msra.mxu0 0.0
  %2789 = vmatprep.subr.mxu0 0.0
  %2790 = vmatpush1.msra.mxu0 0.0
  %2791 = vmatprep.mubr.f32.mxu0 0.0
  %v2792 = vand.u32 %v2410, 4294901760
  %2793 = vmatmul.mubr.f32.gmra.mrb[0].mxu0 %v2792
  %v2794 = vpop.f32.mrb[0].mxu0
  %v2795 = vadd.f32 %v2718, %v2794
  %v2796 = vpop.f32.mrb[0].mxu0
  %2797 = vdwg.mxu0
  %2798 = vmatprep.subr.mxu0 0.0
  %v2799 = vand.u32 %v2407, 4294901760
  %2800 = vmatpush1.msra.mxu0 %v2799
  %2801 = vmatprep.subr.mxu0 0.0
  %v2802 = vand.u32 %v2408, 4294901760
  %2803 = vmatpush1.msra.mxu0 %v2802
  %2804 = vmatprep.subr.mxu0 0.0
  %2805 = vmatpush1.msra.mxu0 0.0
  %2806 = vmatprep.subr.mxu0 0.0
  %2807 = vmatpush1.msra.mxu0 0.0
  %2808 = vmatprep.subr.mxu0 0.0
  %2809 = vmatpush1.msra.mxu0 0.0
  %2810 = vmatprep.subr.mxu0 0.0
  %2811 = vmatpush1.msra.mxu0 0.0
  %2812 = vmatprep.subr.mxu0 0.0
  %2813 = vmatpush1.msra.mxu0 0.0
  %2814 = vmatprep.subr.mxu0 0.0
  %2815 = vmatpush1.msra.mxu0 0.0
  %2816 = vmatprep.subr.mxu0 0.0
  %2817 = vmatpush1.msra.mxu0 0.0
  %2818 = vmatprep.subr.mxu0 0.0
  %2819 = vmatpush1.msra.mxu0 0.0
  %2820 = vmatprep.subr.mxu0 0.0
  %2821 = vmatpush1.msra.mxu0 0.0
  %2822 = vmatprep.subr.mxu0 0.0
  %2823 = vmatpush1.msra.mxu0 0.0
  %2824 = vmatprep.subr.mxu0 0.0
  %2825 = vmatpush1.msra.mxu0 0.0
  %2826 = vmatprep.subr.mxu0 0.0
  %2827 = vmatpush1.msra.mxu0 0.0
  %2828 = vmatprep.subr.mxu0 0.0
  %2829 = vmatpush1.msra.mxu0 0.0
  %2830 = vmatprep.subr.mxu0 0.0
  %2831 = vmatpush1.msra.mxu0 0.0
  %2832 = vmatprep.subr.mxu0 0.0
  %2833 = vmatpush1.msra.mxu0 0.0
  %2834 = vmatprep.subr.mxu0 0.0
  %2835 = vmatpush1.msra.mxu0 0.0
  %2836 = vmatprep.subr.mxu0 0.0
  %2837 = vmatpush1.msra.mxu0 0.0
  %2838 = vmatprep.subr.mxu0 0.0
  %2839 = vmatpush1.msra.mxu0 0.0
  %2840 = vmatprep.subr.mxu0 0.0
  %2841 = vmatpush1.msra.mxu0 0.0
  %2842 = vmatprep.subr.mxu0 0.0
  %2843 = vmatpush1.msra.mxu0 0.0
  %2844 = vmatprep.subr.mxu0 0.0
  %2845 = vmatpush1.msra.mxu0 0.0
  %2846 = vmatprep.subr.mxu0 0.0
  %2847 = vmatpush1.msra.mxu0 0.0
  %2848 = vmatprep.subr.mxu0 0.0
  %2849 = vmatpush1.msra.mxu0 0.0
  %2850 = vmatprep.subr.mxu0 0.0
  %2851 = vmatpush1.msra.mxu0 0.0
  %2852 = vmatprep.subr.mxu0 0.0
  %2853 = vmatpush1.msra.mxu0 0.0
  %2854 = vmatprep.subr.mxu0 0.0
  %2855 = vmatpush1.msra.mxu0 0.0
  %2856 = vmatprep.subr.mxu0 0.0
  %2857 = vmatpush1.msra.mxu0 0.0
  %2858 = vmatprep.subr.mxu0 0.0
  %2859 = vmatpush1.msra.mxu0 0.0
  %2860 = vmatprep.subr.mxu0 0.0
  %2861 = vmatpush1.msra.mxu0 0.0
  %2862 = vmatprep.subr.mxu0 0.0
  %2863 = vmatpush1.msra.mxu0 0.0
  %2864 = vmatprep.mubr.f32.mxu0 0.0
  %v2865 = vand.u32 %v2410, 4294901760
  %2866 = vmatmul.mubr.f32.gmra.mrb[0].mxu0 %v2865
  %v2867 = vpop.f32.mrb[0].mxu0
  %v2868 = vadd.f32 %v2795, %v2867
  %v2869 = vpop.f32.mrb[0].mxu0
  %2870 = vdwg.mxu0
  %v2871 = vsub.f32 0.0, %v2400
  %v2872 = vmul.f32 %v2871, %v2406
  %v2874 = vsel %vm2385, %v2872, 0
  %2876 = vmatprep.subr.mxu0 0.0
  %v2877 = vand.u32 %v2407, 4294901760
  %2878 = vmatpush1.msra.mxu0 %v2877
  %2879 = vmatprep.subr.mxu0 0.0
  %v2880 = vand.u32 %v2408, 4294901760
  %2881 = vmatpush1.msra.mxu0 %v2880
  %2882 = vmatprep.subr.mxu0 0.0
  %2883 = vmatpush1.msra.mxu0 0.0
  %2884 = vmatprep.subr.mxu0 0.0
  %2885 = vmatpush1.msra.mxu0 0.0
  %2886 = vmatprep.subr.mxu0 0.0
  %2887 = vmatpush1.msra.mxu0 0.0
  %2888 = vmatprep.subr.mxu0 0.0
  %2889 = vmatpush1.msra.mxu0 0.0
  %2890 = vmatprep.subr.mxu0 0.0
  %2891 = vmatpush1.msra.mxu0 0.0
  %2892 = vmatprep.subr.mxu0 0.0
  %2893 = vmatpush1.msra.mxu0 0.0
  %2894 = vmatprep.subr.mxu0 0.0
  %2895 = vmatpush1.msra.mxu0 0.0
  %2896 = vmatprep.subr.mxu0 0.0
  %2897 = vmatpush1.msra.mxu0 0.0
  %2898 = vmatprep.subr.mxu0 0.0
  %2899 = vmatpush1.msra.mxu0 0.0
  %2900 = vmatprep.subr.mxu0 0.0
  %2901 = vmatpush1.msra.mxu0 0.0
  %2902 = vmatprep.subr.mxu0 0.0
  %2903 = vmatpush1.msra.mxu0 0.0
  %2904 = vmatprep.subr.mxu0 0.0
  %2905 = vmatpush1.msra.mxu0 0.0
  %2906 = vmatprep.subr.mxu0 0.0
  %2907 = vmatpush1.msra.mxu0 0.0
  %2908 = vmatprep.subr.mxu0 0.0
  %2909 = vmatpush1.msra.mxu0 0.0
  %2910 = vmatprep.subr.mxu0 0.0
  %2911 = vmatpush1.msra.mxu0 0.0
  %2912 = vmatprep.subr.mxu0 0.0
  %2913 = vmatpush1.msra.mxu0 0.0
  %2914 = vmatprep.subr.mxu0 0.0
  %2915 = vmatpush1.msra.mxu0 0.0
  %2916 = vmatprep.subr.mxu0 0.0
  %2917 = vmatpush1.msra.mxu0 0.0
  %2918 = vmatprep.subr.mxu0 0.0
  %2919 = vmatpush1.msra.mxu0 0.0
  %2920 = vmatprep.subr.mxu0 0.0
  %2921 = vmatpush1.msra.mxu0 0.0
  %2922 = vmatprep.subr.mxu0 0.0
  %2923 = vmatpush1.msra.mxu0 0.0
  %2924 = vmatprep.subr.mxu0 0.0
  %2925 = vmatpush1.msra.mxu0 0.0
  %2926 = vmatprep.subr.mxu0 0.0
  %2927 = vmatpush1.msra.mxu0 0.0
  %2928 = vmatprep.subr.mxu0 0.0
  %2929 = vmatpush1.msra.mxu0 0.0
  %2930 = vmatprep.subr.mxu0 0.0
  %2931 = vmatpush1.msra.mxu0 0.0
  %2932 = vmatprep.subr.mxu0 0.0
  %2933 = vmatpush1.msra.mxu0 0.0
  %2934 = vmatprep.subr.mxu0 0.0
  %2935 = vmatpush1.msra.mxu0 0.0
  %2936 = vmatprep.subr.mxu0 0.0
  %2937 = vmatpush1.msra.mxu0 0.0
  %2938 = vmatprep.subr.mxu0 0.0
  %2939 = vmatpush1.msra.mxu0 0.0
  %2940 = vmatprep.subr.mxu0 0.0
  %2941 = vmatpush1.msra.mxu0 0.0
  %2942 = vmatprep.mubr.f32.mxu0 0.0
  %v2943 = vand.u32 %v2874, 4294901760
  %v2944 = vsub.f32 %v2874, %v2943
  %v2945 = vand.u32 %v2944, 4294901760
  %v2946 = vsub.f32 %v2944, %v2945
  %v2947 = vand.u32 %v2946, 4294901760
  %2948 = vmatmul.mubr.f32.gmra.mrb[0].mxu0 %v2947
  %v2949 = vpop.f32.mrb[0].mxu0
  %v2950 = vadd.f32 0.0, %v2949
  %v2951 = vpop.f32.mrb[0].mxu0
  %2952 = vdwg.mxu0
  %2953 = vmatprep.subr.mxu0 0.0
  %v2954 = vand.u32 %v2407, 4294901760
  %v2955 = vsub.f32 %v2407, %v2954
  %v2956 = vand.u32 %v2955, 4294901760
  %v2957 = vsub.f32 %v2955, %v2956
  %v2958 = vand.u32 %v2957, 4294901760
  %2959 = vmatpush1.msra.mxu0 %v2958
  %2960 = vmatprep.subr.mxu0 0.0
  %v2961 = vand.u32 %v2408, 4294901760
  %v2962 = vsub.f32 %v2408, %v2961
  %v2963 = vand.u32 %v2962, 4294901760
  %v2964 = vsub.f32 %v2962, %v2963
  %v2965 = vand.u32 %v2964, 4294901760
  %2966 = vmatpush1.msra.mxu0 %v2965
  %2967 = vmatprep.subr.mxu0 0.0
  %2968 = vmatpush1.msra.mxu0 0.0
  %2969 = vmatprep.subr.mxu0 0.0
  %2970 = vmatpush1.msra.mxu0 0.0
  %2971 = vmatprep.subr.mxu0 0.0
  %2972 = vmatpush1.msra.mxu0 0.0
  %2973 = vmatprep.subr.mxu0 0.0
  %2974 = vmatpush1.msra.mxu0 0.0
  %2975 = vmatprep.subr.mxu0 0.0
  %2976 = vmatpush1.msra.mxu0 0.0
  %2977 = vmatprep.subr.mxu0 0.0
  %2978 = vmatpush1.msra.mxu0 0.0
  %2979 = vmatprep.subr.mxu0 0.0
  %2980 = vmatpush1.msra.mxu0 0.0
  %2981 = vmatprep.subr.mxu0 0.0
  %2982 = vmatpush1.msra.mxu0 0.0
  %2983 = vmatprep.subr.mxu0 0.0
  %2984 = vmatpush1.msra.mxu0 0.0
  %2985 = vmatprep.subr.mxu0 0.0
  %2986 = vmatpush1.msra.mxu0 0.0
  %2987 = vmatprep.subr.mxu0 0.0
  %2988 = vmatpush1.msra.mxu0 0.0
  %2989 = vmatprep.subr.mxu0 0.0
  %2990 = vmatpush1.msra.mxu0 0.0
  %2991 = vmatprep.subr.mxu0 0.0
  %2992 = vmatpush1.msra.mxu0 0.0
  %2993 = vmatprep.subr.mxu0 0.0
  %2994 = vmatpush1.msra.mxu0 0.0
  %2995 = vmatprep.subr.mxu0 0.0
  %2996 = vmatpush1.msra.mxu0 0.0
  %2997 = vmatprep.subr.mxu0 0.0
  %2998 = vmatpush1.msra.mxu0 0.0
  %2999 = vmatprep.subr.mxu0 0.0
  %3000 = vmatpush1.msra.mxu0 0.0
  %3001 = vmatprep.subr.mxu0 0.0
  %3002 = vmatpush1.msra.mxu0 0.0
  %3003 = vmatprep.subr.mxu0 0.0
  %3004 = vmatpush1.msra.mxu0 0.0
  %3005 = vmatprep.subr.mxu0 0.0
  %3006 = vmatpush1.msra.mxu0 0.0
  %3007 = vmatprep.subr.mxu0 0.0
  %3008 = vmatpush1.msra.mxu0 0.0
  %3009 = vmatprep.subr.mxu0 0.0
  %3010 = vmatpush1.msra.mxu0 0.0
  %3011 = vmatprep.subr.mxu0 0.0
  %3012 = vmatpush1.msra.mxu0 0.0
  %3013 = vmatprep.subr.mxu0 0.0
  %3014 = vmatpush1.msra.mxu0 0.0
  %3015 = vmatprep.subr.mxu0 0.0
  %3016 = vmatpush1.msra.mxu0 0.0
  %3017 = vmatprep.subr.mxu0 0.0
  %3018 = vmatpush1.msra.mxu0 0.0
  %3019 = vmatprep.subr.mxu0 0.0
  %3020 = vmatpush1.msra.mxu0 0.0
  %3021 = vmatprep.subr.mxu0 0.0
  %3022 = vmatpush1.msra.mxu0 0.0
  %3023 = vmatprep.subr.mxu0 0.0
  %3024 = vmatpush1.msra.mxu0 0.0
  %3025 = vmatprep.subr.mxu0 0.0
  %3026 = vmatpush1.msra.mxu0 0.0
  %3027 = vmatprep.mubr.f32.mxu0 0.0
  %v3028 = vand.u32 %v2874, 4294901760
  %3029 = vmatmul.mubr.f32.gmra.mrb[0].mxu0 %v3028
  %v3030 = vpop.f32.mrb[0].mxu0
  %v3031 = vadd.f32 %v2950, %v3030
  %v3032 = vpop.f32.mrb[0].mxu0
  %3033 = vdwg.mxu0
  %3034 = vmatprep.subr.mxu0 0.0
  %v3035 = vand.u32 %v2407, 4294901760
  %v3036 = vsub.f32 %v2407, %v3035
  %3037 = vmatpush1.msra.mxu0 %v3036
  %3038 = vmatprep.subr.mxu0 0.0
  %v3039 = vand.u32 %v2408, 4294901760
  %v3040 = vsub.f32 %v2408, %v3039
  %3041 = vmatpush1.msra.mxu0 %v3040
  %3042 = vmatprep.subr.mxu0 0.0
  %3043 = vmatpush1.msra.mxu0 0.0
  %3044 = vmatprep.subr.mxu0 0.0
  %3045 = vmatpush1.msra.mxu0 0.0
  %3046 = vmatprep.subr.mxu0 0.0
  %3047 = vmatpush1.msra.mxu0 0.0
  %3048 = vmatprep.subr.mxu0 0.0
  %3049 = vmatpush1.msra.mxu0 0.0
  %3050 = vmatprep.subr.mxu0 0.0
  %3051 = vmatpush1.msra.mxu0 0.0
  %3052 = vmatprep.subr.mxu0 0.0
  %3053 = vmatpush1.msra.mxu0 0.0
  %3054 = vmatprep.subr.mxu0 0.0
  %3055 = vmatpush1.msra.mxu0 0.0
  %3056 = vmatprep.subr.mxu0 0.0
  %3057 = vmatpush1.msra.mxu0 0.0
  %3058 = vmatprep.subr.mxu0 0.0
  %3059 = vmatpush1.msra.mxu0 0.0
  %3060 = vmatprep.subr.mxu0 0.0
  %3061 = vmatpush1.msra.mxu0 0.0
  %3062 = vmatprep.subr.mxu0 0.0
  %3063 = vmatpush1.msra.mxu0 0.0
  %3064 = vmatprep.subr.mxu0 0.0
  %3065 = vmatpush1.msra.mxu0 0.0
  %3066 = vmatprep.subr.mxu0 0.0
  %3067 = vmatpush1.msra.mxu0 0.0
  %3068 = vmatprep.subr.mxu0 0.0
  %3069 = vmatpush1.msra.mxu0 0.0
  %3070 = vmatprep.subr.mxu0 0.0
  %3071 = vmatpush1.msra.mxu0 0.0
  %3072 = vmatprep.subr.mxu0 0.0
  %3073 = vmatpush1.msra.mxu0 0.0
  %3074 = vmatprep.subr.mxu0 0.0
  %3075 = vmatpush1.msra.mxu0 0.0
  %3076 = vmatprep.subr.mxu0 0.0
  %3077 = vmatpush1.msra.mxu0 0.0
  %3078 = vmatprep.subr.mxu0 0.0
  %3079 = vmatpush1.msra.mxu0 0.0
  %3080 = vmatprep.subr.mxu0 0.0
  %3081 = vmatpush1.msra.mxu0 0.0
  %3082 = vmatprep.subr.mxu0 0.0
  %3083 = vmatpush1.msra.mxu0 0.0
  %3084 = vmatprep.subr.mxu0 0.0
  %3085 = vmatpush1.msra.mxu0 0.0
  %3086 = vmatprep.subr.mxu0 0.0
  %3087 = vmatpush1.msra.mxu0 0.0
  %3088 = vmatprep.subr.mxu0 0.0
  %3089 = vmatpush1.msra.mxu0 0.0
  %3090 = vmatprep.subr.mxu0 0.0
  %3091 = vmatpush1.msra.mxu0 0.0
  %3092 = vmatprep.subr.mxu0 0.0
  %3093 = vmatpush1.msra.mxu0 0.0
  %3094 = vmatprep.subr.mxu0 0.0
  %3095 = vmatpush1.msra.mxu0 0.0
  %3096 = vmatprep.subr.mxu0 0.0
  %3097 = vmatpush1.msra.mxu0 0.0
  %3098 = vmatprep.subr.mxu0 0.0
  %3099 = vmatpush1.msra.mxu0 0.0
  %3100 = vmatprep.subr.mxu0 0.0
  %3101 = vmatpush1.msra.mxu0 0.0
  %3102 = vmatprep.mubr.f32.mxu0 0.0
  %v3103 = vand.u32 %v2874, 4294901760
  %v3104 = vsub.f32 %v2874, %v3103
  %3105 = vmatmul.mubr.f32.gmra.mrb[0].mxu0 %v3104
  %v3106 = vpop.f32.mrb[0].mxu0
  %v3107 = vadd.f32 %v3031, %v3106
  %v3108 = vpop.f32.mrb[0].mxu0
  %3109 = vdwg.mxu0
  %3110 = vmatprep.subr.mxu0 0.0
  %v3111 = vand.u32 %v2407, 4294901760
  %3112 = vmatpush1.msra.mxu0 %v3111
  %3113 = vmatprep.subr.mxu0 0.0
  %v3114 = vand.u32 %v2408, 4294901760
  %3115 = vmatpush1.msra.mxu0 %v3114
  %3116 = vmatprep.subr.mxu0 0.0
  %3117 = vmatpush1.msra.mxu0 0.0
  %3118 = vmatprep.subr.mxu0 0.0
  %3119 = vmatpush1.msra.mxu0 0.0
  %3120 = vmatprep.subr.mxu0 0.0
  %3121 = vmatpush1.msra.mxu0 0.0
  %3122 = vmatprep.subr.mxu0 0.0
  %3123 = vmatpush1.msra.mxu0 0.0
  %3124 = vmatprep.subr.mxu0 0.0
  %3125 = vmatpush1.msra.mxu0 0.0
  %3126 = vmatprep.subr.mxu0 0.0
  %3127 = vmatpush1.msra.mxu0 0.0
  %3128 = vmatprep.subr.mxu0 0.0
  %3129 = vmatpush1.msra.mxu0 0.0
  %3130 = vmatprep.subr.mxu0 0.0
  %3131 = vmatpush1.msra.mxu0 0.0
  %3132 = vmatprep.subr.mxu0 0.0
  %3133 = vmatpush1.msra.mxu0 0.0
  %3134 = vmatprep.subr.mxu0 0.0
  %3135 = vmatpush1.msra.mxu0 0.0
  %3136 = vmatprep.subr.mxu0 0.0
  %3137 = vmatpush1.msra.mxu0 0.0
  %3138 = vmatprep.subr.mxu0 0.0
  %3139 = vmatpush1.msra.mxu0 0.0
  %3140 = vmatprep.subr.mxu0 0.0
  %3141 = vmatpush1.msra.mxu0 0.0
  %3142 = vmatprep.subr.mxu0 0.0
  %3143 = vmatpush1.msra.mxu0 0.0
  %3144 = vmatprep.subr.mxu0 0.0
  %3145 = vmatpush1.msra.mxu0 0.0
  %3146 = vmatprep.subr.mxu0 0.0
  %3147 = vmatpush1.msra.mxu0 0.0
  %3148 = vmatprep.subr.mxu0 0.0
  %3149 = vmatpush1.msra.mxu0 0.0
  %3150 = vmatprep.subr.mxu0 0.0
  %3151 = vmatpush1.msra.mxu0 0.0
  %3152 = vmatprep.subr.mxu0 0.0
  %3153 = vmatpush1.msra.mxu0 0.0
  %3154 = vmatprep.subr.mxu0 0.0
  %3155 = vmatpush1.msra.mxu0 0.0
  %3156 = vmatprep.subr.mxu0 0.0
  %3157 = vmatpush1.msra.mxu0 0.0
  %3158 = vmatprep.subr.mxu0 0.0
  %3159 = vmatpush1.msra.mxu0 0.0
  %3160 = vmatprep.subr.mxu0 0.0
  %3161 = vmatpush1.msra.mxu0 0.0
  %3162 = vmatprep.subr.mxu0 0.0
  %3163 = vmatpush1.msra.mxu0 0.0
  %3164 = vmatprep.subr.mxu0 0.0
  %3165 = vmatpush1.msra.mxu0 0.0
  %3166 = vmatprep.subr.mxu0 0.0
  %3167 = vmatpush1.msra.mxu0 0.0
  %3168 = vmatprep.subr.mxu0 0.0
  %3169 = vmatpush1.msra.mxu0 0.0
  %3170 = vmatprep.subr.mxu0 0.0
  %3171 = vmatpush1.msra.mxu0 0.0
  %3172 = vmatprep.subr.mxu0 0.0
  %3173 = vmatpush1.msra.mxu0 0.0
  %3174 = vmatprep.subr.mxu0 0.0
  %3175 = vmatpush1.msra.mxu0 0.0
  %3176 = vmatprep.mubr.f32.mxu0 0.0
  %v3177 = vand.u32 %v2874, 4294901760
  %v3178 = vsub.f32 %v2874, %v3177
  %v3179 = vand.u32 %v3178, 4294901760
  %3180 = vmatmul.mubr.f32.gmra.mrb[0].mxu0 %v3179
  %v3181 = vpop.f32.mrb[0].mxu0
  %v3182 = vadd.f32 %v3107, %v3181
  %v3183 = vpop.f32.mrb[0].mxu0
  %3184 = vdwg.mxu0
  %3185 = vmatprep.subr.mxu0 0.0
  %v3186 = vand.u32 %v2407, 4294901760
  %v3187 = vsub.f32 %v2407, %v3186
  %v3188 = vand.u32 %v3187, 4294901760
  %3189 = vmatpush1.msra.mxu0 %v3188
  %3190 = vmatprep.subr.mxu0 0.0
  %v3191 = vand.u32 %v2408, 4294901760
  %v3192 = vsub.f32 %v2408, %v3191
  %v3193 = vand.u32 %v3192, 4294901760
  %3194 = vmatpush1.msra.mxu0 %v3193
  %3195 = vmatprep.subr.mxu0 0.0
  %3196 = vmatpush1.msra.mxu0 0.0
  %3197 = vmatprep.subr.mxu0 0.0
  %3198 = vmatpush1.msra.mxu0 0.0
  %3199 = vmatprep.subr.mxu0 0.0
  %3200 = vmatpush1.msra.mxu0 0.0
  %3201 = vmatprep.subr.mxu0 0.0
  %3202 = vmatpush1.msra.mxu0 0.0
  %3203 = vmatprep.subr.mxu0 0.0
  %3204 = vmatpush1.msra.mxu0 0.0
  %3205 = vmatprep.subr.mxu0 0.0
  %3206 = vmatpush1.msra.mxu0 0.0
  %3207 = vmatprep.subr.mxu0 0.0
  %3208 = vmatpush1.msra.mxu0 0.0
  %3209 = vmatprep.subr.mxu0 0.0
  %3210 = vmatpush1.msra.mxu0 0.0
  %3211 = vmatprep.subr.mxu0 0.0
  %3212 = vmatpush1.msra.mxu0 0.0
  %3213 = vmatprep.subr.mxu0 0.0
  %3214 = vmatpush1.msra.mxu0 0.0
  %3215 = vmatprep.subr.mxu0 0.0
  %3216 = vmatpush1.msra.mxu0 0.0
  %3217 = vmatprep.subr.mxu0 0.0
  %3218 = vmatpush1.msra.mxu0 0.0
  %3219 = vmatprep.subr.mxu0 0.0
  %3220 = vmatpush1.msra.mxu0 0.0
  %3221 = vmatprep.subr.mxu0 0.0
  %3222 = vmatpush1.msra.mxu0 0.0
  %3223 = vmatprep.subr.mxu0 0.0
  %3224 = vmatpush1.msra.mxu0 0.0
  %3225 = vmatprep.subr.mxu0 0.0
  %3226 = vmatpush1.msra.mxu0 0.0
  %3227 = vmatprep.subr.mxu0 0.0
  %3228 = vmatpush1.msra.mxu0 0.0
  %3229 = vmatprep.subr.mxu0 0.0
  %3230 = vmatpush1.msra.mxu0 0.0
  %3231 = vmatprep.subr.mxu0 0.0
  %3232 = vmatpush1.msra.mxu0 0.0
  %3233 = vmatprep.subr.mxu0 0.0
  %3234 = vmatpush1.msra.mxu0 0.0
  %3235 = vmatprep.subr.mxu0 0.0
  %3236 = vmatpush1.msra.mxu0 0.0
  %3237 = vmatprep.subr.mxu0 0.0
  %3238 = vmatpush1.msra.mxu0 0.0
  %3239 = vmatprep.subr.mxu0 0.0
  %3240 = vmatpush1.msra.mxu0 0.0
  %3241 = vmatprep.subr.mxu0 0.0
  %3242 = vmatpush1.msra.mxu0 0.0
  %3243 = vmatprep.subr.mxu0 0.0
  %3244 = vmatpush1.msra.mxu0 0.0
  %3245 = vmatprep.subr.mxu0 0.0
  %3246 = vmatpush1.msra.mxu0 0.0
  %3247 = vmatprep.subr.mxu0 0.0
  %3248 = vmatpush1.msra.mxu0 0.0
  %3249 = vmatprep.subr.mxu0 0.0
  %3250 = vmatpush1.msra.mxu0 0.0
  %3251 = vmatprep.subr.mxu0 0.0
  %3252 = vmatpush1.msra.mxu0 0.0
  %3253 = vmatprep.subr.mxu0 0.0
  %3254 = vmatpush1.msra.mxu0 0.0
  %3255 = vmatprep.mubr.f32.mxu0 0.0
  %v3256 = vand.u32 %v2874, 4294901760
  %3257 = vmatmul.mubr.f32.gmra.mrb[0].mxu0 %v3256
  %v3258 = vpop.f32.mrb[0].mxu0
  %v3259 = vadd.f32 %v3182, %v3258
  %v3260 = vpop.f32.mrb[0].mxu0
  %3261 = vdwg.mxu0
  %3262 = vmatprep.subr.mxu0 0.0
  %v3263 = vand.u32 %v2407, 4294901760
  %3264 = vmatpush1.msra.mxu0 %v3263
  %3265 = vmatprep.subr.mxu0 0.0
  %v3266 = vand.u32 %v2408, 4294901760
  %3267 = vmatpush1.msra.mxu0 %v3266
  %3268 = vmatprep.subr.mxu0 0.0
  %3269 = vmatpush1.msra.mxu0 0.0
  %3270 = vmatprep.subr.mxu0 0.0
  %3271 = vmatpush1.msra.mxu0 0.0
  %3272 = vmatprep.subr.mxu0 0.0
  %3273 = vmatpush1.msra.mxu0 0.0
  %3274 = vmatprep.subr.mxu0 0.0
  %3275 = vmatpush1.msra.mxu0 0.0
  %3276 = vmatprep.subr.mxu0 0.0
  %3277 = vmatpush1.msra.mxu0 0.0
  %3278 = vmatprep.subr.mxu0 0.0
  %3279 = vmatpush1.msra.mxu0 0.0
  %3280 = vmatprep.subr.mxu0 0.0
  %3281 = vmatpush1.msra.mxu0 0.0
  %3282 = vmatprep.subr.mxu0 0.0
  %3283 = vmatpush1.msra.mxu0 0.0
  %3284 = vmatprep.subr.mxu0 0.0
  %3285 = vmatpush1.msra.mxu0 0.0
  %3286 = vmatprep.subr.mxu0 0.0
  %3287 = vmatpush1.msra.mxu0 0.0
  %3288 = vmatprep.subr.mxu0 0.0
  %3289 = vmatpush1.msra.mxu0 0.0
  %3290 = vmatprep.subr.mxu0 0.0
  %3291 = vmatpush1.msra.mxu0 0.0
  %3292 = vmatprep.subr.mxu0 0.0
  %3293 = vmatpush1.msra.mxu0 0.0
  %3294 = vmatprep.subr.mxu0 0.0
  %3295 = vmatpush1.msra.mxu0 0.0
  %3296 = vmatprep.subr.mxu0 0.0
  %3297 = vmatpush1.msra.mxu0 0.0
  %3298 = vmatprep.subr.mxu0 0.0
  %3299 = vmatpush1.msra.mxu0 0.0
  %3300 = vmatprep.subr.mxu0 0.0
  %3301 = vmatpush1.msra.mxu0 0.0
  %3302 = vmatprep.subr.mxu0 0.0
  %3303 = vmatpush1.msra.mxu0 0.0
  %3304 = vmatprep.subr.mxu0 0.0
  %3305 = vmatpush1.msra.mxu0 0.0
  %3306 = vmatprep.subr.mxu0 0.0
  %3307 = vmatpush1.msra.mxu0 0.0
  %3308 = vmatprep.subr.mxu0 0.0
  %3309 = vmatpush1.msra.mxu0 0.0
  %3310 = vmatprep.subr.mxu0 0.0
  %3311 = vmatpush1.msra.mxu0 0.0
  %3312 = vmatprep.subr.mxu0 0.0
  %3313 = vmatpush1.msra.mxu0 0.0
  %3314 = vmatprep.subr.mxu0 0.0
  %3315 = vmatpush1.msra.mxu0 0.0
  %3316 = vmatprep.subr.mxu0 0.0
  %3317 = vmatpush1.msra.mxu0 0.0
  %3318 = vmatprep.subr.mxu0 0.0
  %3319 = vmatpush1.msra.mxu0 0.0
  %3320 = vmatprep.subr.mxu0 0.0
  %3321 = vmatpush1.msra.mxu0 0.0
  %3322 = vmatprep.subr.mxu0 0.0
  %3323 = vmatpush1.msra.mxu0 0.0
  %3324 = vmatprep.subr.mxu0 0.0
  %3325 = vmatpush1.msra.mxu0 0.0
  %3326 = vmatprep.subr.mxu0 0.0
  %3327 = vmatpush1.msra.mxu0 0.0
  %3328 = vmatprep.mubr.f32.mxu0 0.0
  %v3329 = vand.u32 %v2874, 4294901760
  %3330 = vmatmul.mubr.f32.gmra.mrb[0].mxu0 %v3329
  %v3331 = vpop.f32.mrb[0].mxu0
  %v3332 = vadd.f32 %v3259, %v3331
  %v3333 = vpop.f32.mrb[0].mxu0
  %3334 = vdwg.mxu0
  %v3335 = vlaneseq
  %v3336 = vshrl.u32 %v3335, 7
  %v3337 = vsub.s32 0, %v3336
  %v3338 = vrot.slane %v2868, %v3337
  %v3339 = vmul.f32 %v1683, %v3338
  %v3340 = vlaneseq
  %v3341 = vshrl.u32 %v3340, 7
  %v3342 = vsub.s32 0, %v3341
  %v3343 = vrot.slane %v3332, %v3342
  %v3344 = vadd.f32 %v3339, %v3343
  %v3345 = vmax.f32 %v3344, 0.0
  %3346 = vst [vmem:[#allocation3] sm:$0x1] 0.0
  %3347 = vst [vmem:[#allocation3 + $0x9] sm:$0x1] 0.0
  %3348 = vst [vmem:[#allocation3 + $0x1] sm:$0xff] %v3345
  %s3349 = scalar_lea.vmem %s2, 128
  %v3350 = vld [vmem:[%s3349] sm:$0xff]
  %v3351 = vld [vmem:[%s3349 + $0x8] sm:$0xff]
  %v3352 = vld [vmem:[%s3349 + $0x10] sm:$0xff]
  %v3353 = vld [vmem:[%s3349 + $0x18] sm:$0xff]
  %v3354 = vld [vmem:[%s3349 + $0x20] sm:$0xff]
  %v3355 = vld [vmem:[%s3349 + $0x28] sm:$0xff]
  %v3356 = vld [vmem:[%s3349 + $0x30] sm:$0xff]
  %v3357 = vld [vmem:[%s3349 + $0x38] sm:$0xff]
  %v3358 = vld [vmem:[%s3349 + $0x40] sm:$0xff]
  %v3359 = vld [vmem:[%s3349 + $0x48] sm:$0xff]
  %v3360 = vld [vmem:[%s3349 + $0x50] sm:$0xff]
  %v3361 = vld [vmem:[%s3349 + $0x58] sm:$0xff]
  %v3362 = vld [vmem:[%s3349 + $0x60] sm:$0xff]
  %v3363 = vld [vmem:[%s3349 + $0x68] sm:$0xff]
  %v3364 = vld [vmem:[%s3349 + $0x70] sm:$0xff]
  %v3365 = vld [vmem:[%s3349 + $0x78] sm:$0xff]
  %v3366 = vld [vmem:[#allocation3] sm:$0xff]
  %v3367 = vld [vmem:[%s2] sm:$0xff]
  %v3368 = vld [vmem:[%s2 + $0x8] sm:$0xff]
  %v3369 = vld [vmem:[%s2 + $0x10] sm:$0xff]
  %v3370 = vld [vmem:[%s2 + $0x18] sm:$0xff]
  %v3371 = vld [vmem:[%s2 + $0x20] sm:$0xff]
  %v3372 = vld [vmem:[%s2 + $0x28] sm:$0xff]
  %v3373 = vld [vmem:[%s2 + $0x30] sm:$0xff]
  %v3374 = vld [vmem:[%s2 + $0x38] sm:$0xff]
  %v3375 = vld [vmem:[%s2 + $0x40] sm:$0xff]
  %v3376 = vld [vmem:[%s2 + $0x48] sm:$0xff]
  %v3377 = vld [vmem:[%s2 + $0x50] sm:$0xff]
  %v3378 = vld [vmem:[%s2 + $0x58] sm:$0xff]
  %v3379 = vld [vmem:[%s2 + $0x60] sm:$0xff]
  %v3380 = vld [vmem:[%s2 + $0x68] sm:$0xff]
  %v3381 = vld [vmem:[%s2 + $0x70] sm:$0xff]
  %v3382 = vld [vmem:[%s2 + $0x78] sm:$0xff]
  %3383 = vmatprep.subr.mxu0 0.0
  %v3384 = vand.u32 %v3367, 4294901760
  %3385 = vmatpush1.msra.mxu0 %v3384
  %3386 = vmatprep.subr.mxu0 0.0
  %v3387 = vand.u32 %v3368, 4294901760
  %3388 = vmatpush1.msra.mxu0 %v3387
  %3389 = vmatprep.subr.mxu0 0.0
  %v3390 = vand.u32 %v3369, 4294901760
  %3391 = vmatpush1.msra.mxu0 %v3390
  %3392 = vmatprep.subr.mxu0 0.0
  %v3393 = vand.u32 %v3370, 4294901760
  %3394 = vmatpush1.msra.mxu0 %v3393
  %3395 = vmatprep.subr.mxu0 0.0
  %v3396 = vand.u32 %v3371, 4294901760
  %3397 = vmatpush1.msra.mxu0 %v3396
  %3398 = vmatprep.subr.mxu0 0.0
  %v3399 = vand.u32 %v3372, 4294901760
  %3400 = vmatpush1.msra.mxu0 %v3399
  %3401 = vmatprep.subr.mxu0 0.0
  %v3402 = vand.u32 %v3373, 4294901760
  %3403 = vmatpush1.msra.mxu0 %v3402
  %3404 = vmatprep.subr.mxu0 0.0
  %v3405 = vand.u32 %v3374, 4294901760
  %3406 = vmatpush1.msra.mxu0 %v3405
  %3407 = vmatprep.subr.mxu0 0.0
  %v3408 = vand.u32 %v3375, 4294901760
  %3409 = vmatpush1.msra.mxu0 %v3408
  %3410 = vmatprep.subr.mxu0 0.0
  %v3411 = vand.u32 %v3376, 4294901760
  %3412 = vmatpush1.msra.mxu0 %v3411
  %3413 = vmatprep.subr.mxu0 0.0
  %v3414 = vand.u32 %v3377, 4294901760
  %3415 = vmatpush1.msra.mxu0 %v3414
  %3416 = vmatprep.subr.mxu0 0.0
  %v3417 = vand.u32 %v3378, 4294901760
  %3418 = vmatpush1.msra.mxu0 %v3417
  %3419 = vmatprep.subr.mxu0 0.0
  %v3420 = vand.u32 %v3379, 4294901760
  %3421 = vmatpush1.msra.mxu0 %v3420
  %3422 = vmatprep.subr.mxu0 0.0
  %v3423 = vand.u32 %v3380, 4294901760
  %3424 = vmatpush1.msra.mxu0 %v3423
  %3425 = vmatprep.subr.mxu0 0.0
  %v3426 = vand.u32 %v3381, 4294901760
  %3427 = vmatpush1.msra.mxu0 %v3426
  %3428 = vmatprep.subr.mxu0 0.0
  %v3429 = vand.u32 %v3382, 4294901760
  %3430 = vmatpush1.msra.mxu0 %v3429
  %3431 = vmatprep.subr.mxu0 0.0
  %3432 = vmatpush1.msra.mxu0 0.0
  %3433 = vmatprep.subr.mxu0 0.0
  %3434 = vmatpush1.msra.mxu0 0.0
  %3435 = vmatprep.subr.mxu0 0.0
  %3436 = vmatpush1.msra.mxu0 0.0
  %3437 = vmatprep.subr.mxu0 0.0
  %3438 = vmatpush1.msra.mxu0 0.0
  %3439 = vmatprep.subr.mxu0 0.0
  %3440 = vmatpush1.msra.mxu0 0.0
  %3441 = vmatprep.subr.mxu0 0.0
  %3442 = vmatpush1.msra.mxu0 0.0
  %3443 = vmatprep.subr.mxu0 0.0
  %3444 = vmatpush1.msra.mxu0 0.0
  %3445 = vmatprep.subr.mxu0 0.0
  %3446 = vmatpush1.msra.mxu0 0.0
  %3447 = vmatprep.subr.mxu0 0.0
  %3448 = vmatpush1.msra.mxu0 0.0
  %3449 = vmatprep.subr.mxu0 0.0
  %3450 = vmatpush1.msra.mxu0 0.0
  %3451 = vmatprep.subr.mxu0 0.0
  %3452 = vmatpush1.msra.mxu0 0.0
  %3453 = vmatprep.subr.mxu0 0.0
  %3454 = vmatpush1.msra.mxu0 0.0
  %3455 = vmatprep.subr.mxu0 0.0
  %3456 = vmatpush1.msra.mxu0 0.0
  %3457 = vmatprep.subr.mxu0 0.0
  %3458 = vmatpush1.msra.mxu0 0.0
  %3459 = vmatprep.subr.mxu0 0.0
  %3460 = vmatpush1.msra.mxu0 0.0
  %3461 = vmatprep.subr.mxu0 0.0
  %3462 = vmatpush1.msra.mxu0 0.0
  %3463 = vmatprep.mubr.f32.mxu0 0.0
  %v3464 = vand.u32 %v3366, 4294901760
  %v3465 = vsub.f32 %v3366, %v3464
  %v3466 = vand.u32 %v3465, 4294901760
  %v3467 = vsub.f32 %v3465, %v3466
  %v3468 = vand.u32 %v3467, 4294901760
  %3469 = vmatmul.mubr.f32.gmra.mrb[0].mxu0 %v3468
  %v3470 = vpop.f32.mrb[0].mxu0
  %v3471 = vadd.f32 0.0, %v3470
  %v3472 = vpop.f32.mrb[0].mxu0
  %3473 = vdwg.mxu0
  %3474 = vmatprep.subr.mxu0 0.0
  %v3475 = vand.u32 %v3367, 4294901760
  %v3476 = vsub.f32 %v3367, %v3475
  %v3477 = vand.u32 %v3476, 4294901760
  %v3478 = vsub.f32 %v3476, %v3477
  %v3479 = vand.u32 %v3478, 4294901760
  %3480 = vmatpush1.msra.mxu0 %v3479
  %3481 = vmatprep.subr.mxu0 0.0
  %v3482 = vand.u32 %v3368, 4294901760
  %v3483 = vsub.f32 %v3368, %v3482
  %v3484 = vand.u32 %v3483, 4294901760
  %v3485 = vsub.f32 %v3483, %v3484
  %v3486 = vand.u32 %v3485, 4294901760
  %3487 = vmatpush1.msra.mxu0 %v3486
  %3488 = vmatprep.subr.mxu0 0.0
  %v3489 = vand.u32 %v3369, 4294901760
  %v3490 = vsub.f32 %v3369, %v3489
  %v3491 = vand.u32 %v3490, 4294901760
  %v3492 = vsub.f32 %v3490, %v3491
  %v3493 = vand.u32 %v3492, 4294901760
  %3494 = vmatpush1.msra.mxu0 %v3493
  %3495 = vmatprep.subr.mxu0 0.0
  %v3496 = vand.u32 %v3370, 4294901760
  %v3497 = vsub.f32 %v3370, %v3496
  %v3498 = vand.u32 %v3497, 4294901760
  %v3499 = vsub.f32 %v3497, %v3498
  %v3500 = vand.u32 %v3499, 4294901760
  %3501 = vmatpush1.msra.mxu0 %v3500
  %3502 = vmatprep.subr.mxu0 0.0
  %v3503 = vand.u32 %v3371, 4294901760
  %v3504 = vsub.f32 %v3371, %v3503
  %v3505 = vand.u32 %v3504, 4294901760
  %v3506 = vsub.f32 %v3504, %v3505
  %v3507 = vand.u32 %v3506, 4294901760
  %3508 = vmatpush1.msra.mxu0 %v3507
  %3509 = vmatprep.subr.mxu0 0.0
  %v3510 = vand.u32 %v3372, 4294901760
  %v3511 = vsub.f32 %v3372, %v3510
  %v3512 = vand.u32 %v3511, 4294901760
  %v3513 = vsub.f32 %v3511, %v3512
  %v3514 = vand.u32 %v3513, 4294901760
  %3515 = vmatpush1.msra.mxu0 %v3514
  %3516 = vmatprep.subr.mxu0 0.0
  %v3517 = vand.u32 %v3373, 4294901760
  %v3518 = vsub.f32 %v3373, %v3517
  %v3519 = vand.u32 %v3518, 4294901760
  %v3520 = vsub.f32 %v3518, %v3519
  %v3521 = vand.u32 %v3520, 4294901760
  %3522 = vmatpush1.msra.mxu0 %v3521
  %3523 = vmatprep.subr.mxu0 0.0
  %v3524 = vand.u32 %v3374, 4294901760
  %v3525 = vsub.f32 %v3374, %v3524
  %v3526 = vand.u32 %v3525, 4294901760
  %v3527 = vsub.f32 %v3525, %v3526
  %v3528 = vand.u32 %v3527, 4294901760
  %3529 = vmatpush1.msra.mxu0 %v3528
  %3530 = vmatprep.subr.mxu0 0.0
  %v3531 = vand.u32 %v3375, 4294901760
  %v3532 = vsub.f32 %v3375, %v3531
  %v3533 = vand.u32 %v3532, 4294901760
  %v3534 = vsub.f32 %v3532, %v3533
  %v3535 = vand.u32 %v3534, 4294901760
  %3536 = vmatpush1.msra.mxu0 %v3535
  %3537 = vmatprep.subr.mxu0 0.0
  %v3538 = vand.u32 %v3376, 4294901760
  %v3539 = vsub.f32 %v3376, %v3538
  %v3540 = vand.u32 %v3539, 4294901760
  %v3541 = vsub.f32 %v3539, %v3540
  %v3542 = vand.u32 %v3541, 4294901760
  %3543 = vmatpush1.msra.mxu0 %v3542
  %3544 = vmatprep.subr.mxu0 0.0
  %v3545 = vand.u32 %v3377, 4294901760
  %v3546 = vsub.f32 %v3377, %v3545
  %v3547 = vand.u32 %v3546, 4294901760
  %v3548 = vsub.f32 %v3546, %v3547
  %v3549 = vand.u32 %v3548, 4294901760
  %3550 = vmatpush1.msra.mxu0 %v3549
  %3551 = vmatprep.subr.mxu0 0.0
  %v3552 = vand.u32 %v3378, 4294901760
  %v3553 = vsub.f32 %v3378, %v3552
  %v3554 = vand.u32 %v3553, 4294901760
  %v3555 = vsub.f32 %v3553, %v3554
  %v3556 = vand.u32 %v3555, 4294901760
  %3557 = vmatpush1.msra.mxu0 %v3556
  %3558 = vmatprep.subr.mxu0 0.0
  %v3559 = vand.u32 %v3379, 4294901760
  %v3560 = vsub.f32 %v3379, %v3559
  %v3561 = vand.u32 %v3560, 4294901760
  %v3562 = vsub.f32 %v3560, %v3561
  %v3563 = vand.u32 %v3562, 4294901760
  %3564 = vmatpush1.msra.mxu0 %v3563
  %3565 = vmatprep.subr.mxu0 0.0
  %v3566 = vand.u32 %v3380, 4294901760
  %v3567 = vsub.f32 %v3380, %v3566
  %v3568 = vand.u32 %v3567, 4294901760
  %v3569 = vsub.f32 %v3567, %v3568
  %v3570 = vand.u32 %v3569, 4294901760
  %3571 = vmatpush1.msra.mxu0 %v3570
  %3572 = vmatprep.subr.mxu0 0.0
  %v3573 = vand.u32 %v3381, 4294901760
  %v3574 = vsub.f32 %v3381, %v3573
  %v3575 = vand.u32 %v3574, 4294901760
  %v3576 = vsub.f32 %v3574, %v3575
  %v3577 = vand.u32 %v3576, 4294901760
  %3578 = vmatpush1.msra.mxu0 %v3577
  %3579 = vmatprep.subr.mxu0 0.0
  %v3580 = vand.u32 %v3382, 4294901760
  %v3581 = vsub.f32 %v3382, %v3580
  %v3582 = vand.u32 %v3581, 4294901760
  %v3583 = vsub.f32 %v3581, %v3582
  %v3584 = vand.u32 %v3583, 4294901760
  %3585 = vmatpush1.msra.mxu0 %v3584
  %3586 = vmatprep.subr.mxu0 0.0
  %3587 = vmatpush1.msra.mxu0 0.0
  %3588 = vmatprep.subr.mxu0 0.0
  %3589 = vmatpush1.msra.mxu0 0.0
  %3590 = vmatprep.subr.mxu0 0.0
  %3591 = vmatpush1.msra.mxu0 0.0
  %3592 = vmatprep.subr.mxu0 0.0
  %3593 = vmatpush1.msra.mxu0 0.0
  %3594 = vmatprep.subr.mxu0 0.0
  %3595 = vmatpush1.msra.mxu0 0.0
  %3596 = vmatprep.subr.mxu0 0.0
  %3597 = vmatpush1.msra.mxu0 0.0
  %3598 = vmatprep.subr.mxu0 0.0
  %3599 = vmatpush1.msra.mxu0 0.0
  %3600 = vmatprep.subr.mxu0 0.0
  %3601 = vmatpush1.msra.mxu0 0.0
  %3602 = vmatprep.subr.mxu0 0.0
  %3603 = vmatpush1.msra.mxu0 0.0
  %3604 = vmatprep.subr.mxu0 0.0
  %3605 = vmatpush1.msra.mxu0 0.0
  %3606 = vmatprep.subr.mxu0 0.0
  %3607 = vmatpush1.msra.mxu0 0.0
  %3608 = vmatprep.subr.mxu0 0.0
  %3609 = vmatpush1.msra.mxu0 0.0
  %3610 = vmatprep.subr.mxu0 0.0
  %3611 = vmatpush1.msra.mxu0 0.0
  %3612 = vmatprep.subr.mxu0 0.0
  %3613 = vmatpush1.msra.mxu0 0.0
  %3614 = vmatprep.subr.mxu0 0.0
  %3615 = vmatpush1.msra.mxu0 0.0
  %3616 = vmatprep.subr.mxu0 0.0
  %3617 = vmatpush1.msra.mxu0 0.0
  %3618 = vmatprep.mubr.f32.mxu0 0.0
  %v3619 = vand.u32 %v3366, 4294901760
  %3620 = vmatmul.mubr.f32.gmra.mrb[0].mxu0 %v3619
  %v3621 = vpop.f32.mrb[0].mxu0
  %v3622 = vadd.f32 %v3471, %v3621
  %v3623 = vpop.f32.mrb[0].mxu0
  %3624 = vdwg.mxu0
  %3625 = vmatprep.subr.mxu0 0.0
  %v3626 = vand.u32 %v3367, 4294901760
  %v3627 = vsub.f32 %v3367, %v3626
  %3628 = vmatpush1.msra.mxu0 %v3627
  %3629 = vmatprep.subr.mxu0 0.0
  %v3630 = vand.u32 %v3368, 4294901760
  %v3631 = vsub.f32 %v3368, %v3630
  %3632 = vmatpush1.msra.mxu0 %v3631
  %3633 = vmatprep.subr.mxu0 0.0
  %v3634 = vand.u32 %v3369, 4294901760
  %v3635 = vsub.f32 %v3369, %v3634
  %3636 = vmatpush1.msra.mxu0 %v3635
  %3637 = vmatprep.subr.mxu0 0.0
  %v3638 = vand.u32 %v3370, 4294901760
  %v3639 = vsub.f32 %v3370, %v3638
  %3640 = vmatpush1.msra.mxu0 %v3639
  %3641 = vmatprep.subr.mxu0 0.0
  %v3642 = vand.u32 %v3371, 4294901760
  %v3643 = vsub.f32 %v3371, %v3642
  %3644 = vmatpush1.msra.mxu0 %v3643
  %3645 = vmatprep.subr.mxu0 0.0
  %v3646 = vand.u32 %v3372, 4294901760
  %v3647 = vsub.f32 %v3372, %v3646
  %3648 = vmatpush1.msra.mxu0 %v3647
  %3649 = vmatprep.subr.mxu0 0.0
  %v3650 = vand.u32 %v3373, 4294901760
  %v3651 = vsub.f32 %v3373, %v3650
  %3652 = vmatpush1.msra.mxu0 %v3651
  %3653 = vmatprep.subr.mxu0 0.0
  %v3654 = vand.u32 %v3374, 4294901760
  %v3655 = vsub.f32 %v3374, %v3654
  %3656 = vmatpush1.msra.mxu0 %v3655
  %3657 = vmatprep.subr.mxu0 0.0
  %v3658 = vand.u32 %v3375, 4294901760
  %v3659 = vsub.f32 %v3375, %v3658
  %3660 = vmatpush1.msra.mxu0 %v3659
  %3661 = vmatprep.subr.mxu0 0.0
  %v3662 = vand.u32 %v3376, 4294901760
  %v3663 = vsub.f32 %v3376, %v3662
  %3664 = vmatpush1.msra.mxu0 %v3663
  %3665 = vmatprep.subr.mxu0 0.0
  %v3666 = vand.u32 %v3377, 4294901760
  %v3667 = vsub.f32 %v3377, %v3666
  %3668 = vmatpush1.msra.mxu0 %v3667
  %3669 = vmatprep.subr.mxu0 0.0
  %v3670 = vand.u32 %v3378, 4294901760
  %v3671 = vsub.f32 %v3378, %v3670
  %3672 = vmatpush1.msra.mxu0 %v3671
  %3673 = vmatprep.subr.mxu0 0.0
  %v3674 = vand.u32 %v3379, 4294901760
  %v3675 = vsub.f32 %v3379, %v3674
  %3676 = vmatpush1.msra.mxu0 %v3675
  %3677 = vmatprep.subr.mxu0 0.0
  %v3678 = vand.u32 %v3380, 4294901760
  %v3679 = vsub.f32 %v3380, %v3678
  %3680 = vmatpush1.msra.mxu0 %v3679
  %3681 = vmatprep.subr.mxu0 0.0
  %v3682 = vand.u32 %v3381, 4294901760
  %v3683 = vsub.f32 %v3381, %v3682
  %3684 = vmatpush1.msra.mxu0 %v3683
  %3685 = vmatprep.subr.mxu0 0.0
  %v3686 = vand.u32 %v3382, 4294901760
  %v3687 = vsub.f32 %v3382, %v3686
  %3688 = vmatpush1.msra.mxu0 %v3687
  %3689 = vmatprep.subr.mxu0 0.0
  %3690 = vmatpush1.msra.mxu0 0.0
  %3691 = vmatprep.subr.mxu0 0.0
  %3692 = vmatpush1.msra.mxu0 0.0
  %3693 = vmatprep.subr.mxu0 0.0
  %3694 = vmatpush1.msra.mxu0 0.0
  %3695 = vmatprep.subr.mxu0 0.0
  %3696 = vmatpush1.msra.mxu0 0.0
  %3697 = vmatprep.subr.mxu0 0.0
  %3698 = vmatpush1.msra.mxu0 0.0
  %3699 = vmatprep.subr.mxu0 0.0
  %3700 = vmatpush1.msra.mxu0 0.0
  %3701 = vmatprep.subr.mxu0 0.0
  %3702 = vmatpush1.msra.mxu0 0.0
  %3703 = vmatprep.subr.mxu0 0.0
  %3704 = vmatpush1.msra.mxu0 0.0
  %3705 = vmatprep.subr.mxu0 0.0
  %3706 = vmatpush1.msra.mxu0 0.0
  %3707 = vmatprep.subr.mxu0 0.0
  %3708 = vmatpush1.msra.mxu0 0.0
  %3709 = vmatprep.subr.mxu0 0.0
  %3710 = vmatpush1.msra.mxu0 0.0
  %3711 = vmatprep.subr.mxu0 0.0
  %3712 = vmatpush1.msra.mxu0 0.0
  %3713 = vmatprep.subr.mxu0 0.0
  %3714 = vmatpush1.msra.mxu0 0.0
  %3715 = vmatprep.subr.mxu0 0.0
  %3716 = vmatpush1.msra.mxu0 0.0
  %3717 = vmatprep.subr.mxu0 0.0
  %3718 = vmatpush1.msra.mxu0 0.0
  %3719 = vmatprep.subr.mxu0 0.0
  %3720 = vmatpush1.msra.mxu0 0.0
  %3721 = vmatprep.mubr.f32.mxu0 0.0
  %v3722 = vand.u32 %v3366, 4294901760
  %v3723 = vsub.f32 %v3366, %v3722
  %3724 = vmatmul.mubr.f32.gmra.mrb[0].mxu0 %v3723
  %v3725 = vpop.f32.mrb[0].mxu0
  %v3726 = vadd.f32 %v3622, %v3725
  %v3727 = vpop.f32.mrb[0].mxu0
  %3728 = vdwg.mxu0
  %3729 = vmatprep.subr.mxu0 0.0
  %v3730 = vand.u32 %v3367, 4294901760
  %3731 = vmatpush1.msra.mxu0 %v3730
  %3732 = vmatprep.subr.mxu0 0.0
  %v3733 = vand.u32 %v3368, 4294901760
  %3734 = vmatpush1.msra.mxu0 %v3733
  %3735 = vmatprep.subr.mxu0 0.0
  %v3736 = vand.u32 %v3369, 4294901760
  %3737 = vmatpush1.msra.mxu0 %v3736
  %3738 = vmatprep.subr.mxu0 0.0
  %v3739 = vand.u32 %v3370, 4294901760
  %3740 = vmatpush1.msra.mxu0 %v3739
  %3741 = vmatprep.subr.mxu0 0.0
  %v3742 = vand.u32 %v3371, 4294901760
  %3743 = vmatpush1.msra.mxu0 %v3742
  %3744 = vmatprep.subr.mxu0 0.0
  %v3745 = vand.u32 %v3372, 4294901760
  %3746 = vmatpush1.msra.mxu0 %v3745
  %3747 = vmatprep.subr.mxu0 0.0
  %v3748 = vand.u32 %v3373, 4294901760
  %3749 = vmatpush1.msra.mxu0 %v3748
  %3750 = vmatprep.subr.mxu0 0.0
  %v3751 = vand.u32 %v3374, 4294901760
  %3752 = vmatpush1.msra.mxu0 %v3751
  %3753 = vmatprep.subr.mxu0 0.0
  %v3754 = vand.u32 %v3375, 4294901760
  %3755 = vmatpush1.msra.mxu0 %v3754
  %3756 = vmatprep.subr.mxu0 0.0
  %v3757 = vand.u32 %v3376, 4294901760
  %3758 = vmatpush1.msra.mxu0 %v3757
  %3759 = vmatprep.subr.mxu0 0.0
  %v3760 = vand.u32 %v3377, 4294901760
  %3761 = vmatpush1.msra.mxu0 %v3760
  %3762 = vmatprep.subr.mxu0 0.0
  %v3763 = vand.u32 %v3378, 4294901760
  %3764 = vmatpush1.msra.mxu0 %v3763
  %3765 = vmatprep.subr.mxu0 0.0
  %v3766 = vand.u32 %v3379, 4294901760
  %3767 = vmatpush1.msra.mxu0 %v3766
  %3768 = vmatprep.subr.mxu0 0.0
  %v3769 = vand.u32 %v3380, 4294901760
  %3770 = vmatpush1.msra.mxu0 %v3769
  %3771 = vmatprep.subr.mxu0 0.0
  %v3772 = vand.u32 %v3381, 4294901760
  %3773 = vmatpush1.msra.mxu0 %v3772
  %3774 = vmatprep.subr.mxu0 0.0
  %v3775 = vand.u32 %v3382, 4294901760
  %3776 = vmatpush1.msra.mxu0 %v3775
  %3777 = vmatprep.subr.mxu0 0.0
  %3778 = vmatpush1.msra.mxu0 0.0
  %3779 = vmatprep.subr.mxu0 0.0
  %3780 = vmatpush1.msra.mxu0 0.0
  %3781 = vmatprep.subr.mxu0 0.0
  %3782 = vmatpush1.msra.mxu0 0.0
  %3783 = vmatprep.subr.mxu0 0.0
  %3784 = vmatpush1.msra.mxu0 0.0
  %3785 = vmatprep.subr.mxu0 0.0
  %3786 = vmatpush1.msra.mxu0 0.0
  %3787 = vmatprep.subr.mxu0 0.0
  %3788 = vmatpush1.msra.mxu0 0.0
  %3789 = vmatprep.subr.mxu0 0.0
  %3790 = vmatpush1.msra.mxu0 0.0
  %3791 = vmatprep.subr.mxu0 0.0
  %3792 = vmatpush1.msra.mxu0 0.0
  %3793 = vmatprep.subr.mxu0 0.0
  %3794 = vmatpush1.msra.mxu0 0.0
  %3795 = vmatprep.subr.mxu0 0.0
  %3796 = vmatpush1.msra.mxu0 0.0
  %3797 = vmatprep.subr.mxu0 0.0
  %3798 = vmatpush1.msra.mxu0 0.0
  %3799 = vmatprep.subr.mxu0 0.0
  %3800 = vmatpush1.msra.mxu0 0.0
  %3801 = vmatprep.subr.mxu0 0.0
  %3802 = vmatpush1.msra.mxu0 0.0
  %3803 = vmatprep.subr.mxu0 0.0
  %3804 = vmatpush1.msra.mxu0 0.0
  %3805 = vmatprep.subr.mxu0 0.0
  %3806 = vmatpush1.msra.mxu0 0.0
  %3807 = vmatprep.subr.mxu0 0.0
  %3808 = vmatpush1.msra.mxu0 0.0
  %3809 = vmatprep.mubr.f32.mxu0 0.0
  %v3810 = vand.u32 %v3366, 4294901760
  %v3811 = vsub.f32 %v3366, %v3810
  %v3812 = vand.u32 %v3811, 4294901760
  %3813 = vmatmul.mubr.f32.gmra.mrb[0].mxu0 %v3812
  %v3814 = vpop.f32.mrb[0].mxu0
  %v3815 = vadd.f32 %v3726, %v3814
  %v3816 = vpop.f32.mrb[0].mxu0
  %3817 = vdwg.mxu0
  %3818 = vmatprep.subr.mxu0 0.0
  %v3819 = vand.u32 %v3367, 4294901760
  %v3820 = vsub.f32 %v3367, %v3819
  %v3821 = vand.u32 %v3820, 4294901760
  %3822 = vmatpush1.msra.mxu0 %v3821
  %3823 = vmatprep.subr.mxu0 0.0
  %v3824 = vand.u32 %v3368, 4294901760
  %v3825 = vsub.f32 %v3368, %v3824
  %v3826 = vand.u32 %v3825, 4294901760
  %3827 = vmatpush1.msra.mxu0 %v3826
  %3828 = vmatprep.subr.mxu0 0.0
  %v3829 = vand.u32 %v3369, 4294901760
  %v3830 = vsub.f32 %v3369, %v3829
  %v3831 = vand.u32 %v3830, 4294901760
  %3832 = vmatpush1.msra.mxu0 %v3831
  %3833 = vmatprep.subr.mxu0 0.0
  %v3834 = vand.u32 %v3370, 4294901760
  %v3835 = vsub.f32 %v3370, %v3834
  %v3836 = vand.u32 %v3835, 4294901760
  %3837 = vmatpush1.msra.mxu0 %v3836
  %3838 = vmatprep.subr.mxu0 0.0
  %v3839 = vand.u32 %v3371, 4294901760
  %v3840 = vsub.f32 %v3371, %v3839
  %v3841 = vand.u32 %v3840, 4294901760
  %3842 = vmatpush1.msra.mxu0 %v3841
  %3843 = vmatprep.subr.mxu0 0.0
  %v3844 = vand.u32 %v3372, 4294901760
  %v3845 = vsub.f32 %v3372, %v3844
  %v3846 = vand.u32 %v3845, 4294901760
  %3847 = vmatpush1.msra.mxu0 %v3846
  %3848 = vmatprep.subr.mxu0 0.0
  %v3849 = vand.u32 %v3373, 4294901760
  %v3850 = vsub.f32 %v3373, %v3849
  %v3851 = vand.u32 %v3850, 4294901760
  %3852 = vmatpush1.msra.mxu0 %v3851
  %3853 = vmatprep.subr.mxu0 0.0
  %v3854 = vand.u32 %v3374, 4294901760
  %v3855 = vsub.f32 %v3374, %v3854
  %v3856 = vand.u32 %v3855, 4294901760
  %3857 = vmatpush1.msra.mxu0 %v3856
  %3858 = vmatprep.subr.mxu0 0.0
  %v3859 = vand.u32 %v3375, 4294901760
  %v3860 = vsub.f32 %v3375, %v3859
  %v3861 = vand.u32 %v3860, 4294901760
  %3862 = vmatpush1.msra.mxu0 %v3861
  %3863 = vmatprep.subr.mxu0 0.0
  %v3864 = vand.u32 %v3376, 4294901760
  %v3865 = vsub.f32 %v3376, %v3864
  %v3866 = vand.u32 %v3865, 4294901760
  %3867 = vmatpush1.msra.mxu0 %v3866
  %3868 = vmatprep.subr.mxu0 0.0
  %v3869 = vand.u32 %v3377, 4294901760
  %v3870 = vsub.f32 %v3377, %v3869
  %v3871 = vand.u32 %v3870, 4294901760
  %3872 = vmatpush1.msra.mxu0 %v3871
  %3873 = vmatprep.subr.mxu0 0.0
  %v3874 = vand.u32 %v3378, 4294901760
  %v3875 = vsub.f32 %v3378, %v3874
  %v3876 = vand.u32 %v3875, 4294901760
  %3877 = vmatpush1.msra.mxu0 %v3876
  %3878 = vmatprep.subr.mxu0 0.0
  %v3879 = vand.u32 %v3379, 4294901760
  %v3880 = vsub.f32 %v3379, %v3879
  %v3881 = vand.u32 %v3880, 4294901760
  %3882 = vmatpush1.msra.mxu0 %v3881
  %3883 = vmatprep.subr.mxu0 0.0
  %v3884 = vand.u32 %v3380, 4294901760
  %v3885 = vsub.f32 %v3380, %v3884
  %v3886 = vand.u32 %v3885, 4294901760
  %3887 = vmatpush1.msra.mxu0 %v3886
  %3888 = vmatprep.subr.mxu0 0.0
  %v3889 = vand.u32 %v3381, 4294901760
  %v3890 = vsub.f32 %v3381, %v3889
  %v3891 = vand.u32 %v3890, 4294901760
  %3892 = vmatpush1.msra.mxu0 %v3891
  %3893 = vmatprep.subr.mxu0 0.0
  %v3894 = vand.u32 %v3382, 4294901760
  %v3895 = vsub.f32 %v3382, %v3894
  %v3896 = vand.u32 %v3895, 4294901760
  %3897 = vmatpush1.msra.mxu0 %v3896
  %3898 = vmatprep.subr.mxu0 0.0
  %3899 = vmatpush1.msra.mxu0 0.0
  %3900 = vmatprep.subr.mxu0 0.0
  %3901 = vmatpush1.msra.mxu0 0.0
  %3902 = vmatprep.subr.mxu0 0.0
  %3903 = vmatpush1.msra.mxu0 0.0
  %3904 = vmatprep.subr.mxu0 0.0
  %3905 = vmatpush1.msra.mxu0 0.0
  %3906 = vmatprep.subr.mxu0 0.0
  %3907 = vmatpush1.msra.mxu0 0.0
  %3908 = vmatprep.subr.mxu0 0.0
  %3909 = vmatpush1.msra.mxu0 0.0
  %3910 = vmatprep.subr.mxu0 0.0
  %3911 = vmatpush1.msra.mxu0 0.0
  %3912 = vmatprep.subr.mxu0 0.0
  %3913 = vmatpush1.msra.mxu0 0.0
  %3914 = vmatprep.subr.mxu0 0.0
  %3915 = vmatpush1.msra.mxu0 0.0
  %3916 = vmatprep.subr.mxu0 0.0
  %3917 = vmatpush1.msra.mxu0 0.0
  %3918 = vmatprep.subr.mxu0 0.0
  %3919 = vmatpush1.msra.mxu0 0.0
  %3920 = vmatprep.subr.mxu0 0.0
  %3921 = vmatpush1.msra.mxu0 0.0
  %3922 = vmatprep.subr.mxu0 0.0
  %3923 = vmatpush1.msra.mxu0 0.0
  %3924 = vmatprep.subr.mxu0 0.0
  %3925 = vmatpush1.msra.mxu0 0.0
  %3926 = vmatprep.subr.mxu0 0.0
  %3927 = vmatpush1.msra.mxu0 0.0
  %3928 = vmatprep.subr.mxu0 0.0
  %3929 = vmatpush1.msra.mxu0 0.0
  %3930 = vmatprep.mubr.f32.mxu0 0.0
  %v3931 = vand.u32 %v3366, 4294901760
  %3932 = vmatmul.mubr.f32.gmra.mrb[0].mxu0 %v3931
  %v3933 = vpop.f32.mrb[0].mxu0
  %v3934 = vadd.f32 %v3815, %v3933
  %v3935 = vpop.f32.mrb[0].mxu0
  %3936 = vdwg.mxu0
  %3937 = vmatprep.subr.mxu0 0.0
  %v3938 = vand.u32 %v3367, 4294901760
  %3939 = vmatpush1.msra.mxu0 %v3938
  %3940 = vmatprep.subr.mxu0 0.0
  %v3941 = vand.u32 %v3368, 4294901760
  %3942 = vmatpush1.msra.mxu0 %v3941
  %3943 = vmatprep.subr.mxu0 0.0
  %v3944 = vand.u32 %v3369, 4294901760
  %3945 = vmatpush1.msra.mxu0 %v3944
  %3946 = vmatprep.subr.mxu0 0.0
  %v3947 = vand.u32 %v3370, 4294901760
  %3948 = vmatpush1.msra.mxu0 %v3947
  %3949 = vmatprep.subr.mxu0 0.0
  %v3950 = vand.u32 %v3371, 4294901760
  %3951 = vmatpush1.msra.mxu0 %v3950
  %3952 = vmatprep.subr.mxu0 0.0
  %v3953 = vand.u32 %v3372, 4294901760
  %3954 = vmatpush1.msra.mxu0 %v3953
  %3955 = vmatprep.subr.mxu0 0.0
  %v3956 = vand.u32 %v3373, 4294901760
  %3957 = vmatpush1.msra.mxu0 %v3956
  %3958 = vmatprep.subr.mxu0 0.0
  %v3959 = vand.u32 %v3374, 4294901760
  %3960 = vmatpush1.msra.mxu0 %v3959
  %3961 = vmatprep.subr.mxu0 0.0
  %v3962 = vand.u32 %v3375, 4294901760
  %3963 = vmatpush1.msra.mxu0 %v3962
  %3964 = vmatprep.subr.mxu0 0.0
  %v3965 = vand.u32 %v3376, 4294901760
  %3966 = vmatpush1.msra.mxu0 %v3965
  %3967 = vmatprep.subr.mxu0 0.0
  %v3968 = vand.u32 %v3377, 4294901760
  %3969 = vmatpush1.msra.mxu0 %v3968
  %3970 = vmatprep.subr.mxu0 0.0
  %v3971 = vand.u32 %v3378, 4294901760
  %3972 = vmatpush1.msra.mxu0 %v3971
  %3973 = vmatprep.subr.mxu0 0.0
  %v3974 = vand.u32 %v3379, 4294901760
  %3975 = vmatpush1.msra.mxu0 %v3974
  %3976 = vmatprep.subr.mxu0 0.0
  %v3977 = vand.u32 %v3380, 4294901760
  %3978 = vmatpush1.msra.mxu0 %v3977
  %3979 = vmatprep.subr.mxu0 0.0
  %v3980 = vand.u32 %v3381, 4294901760
  %3981 = vmatpush1.msra.mxu0 %v3980
  %3982 = vmatprep.subr.mxu0 0.0
  %v3983 = vand.u32 %v3382, 4294901760
  %3984 = vmatpush1.msra.mxu0 %v3983
  %3985 = vmatprep.subr.mxu0 0.0
  %3986 = vmatpush1.msra.mxu0 0.0
  %3987 = vmatprep.subr.mxu0 0.0
  %3988 = vmatpush1.msra.mxu0 0.0
  %3989 = vmatprep.subr.mxu0 0.0
  %3990 = vmatpush1.msra.mxu0 0.0
  %3991 = vmatprep.subr.mxu0 0.0
  %3992 = vmatpush1.msra.mxu0 0.0
  %3993 = vmatprep.subr.mxu0 0.0
  %3994 = vmatpush1.msra.mxu0 0.0
  %3995 = vmatprep.subr.mxu0 0.0
  %3996 = vmatpush1.msra.mxu0 0.0
  %3997 = vmatprep.subr.mxu0 0.0
  %3998 = vmatpush1.msra.mxu0 0.0
  %3999 = vmatprep.subr.mxu0 0.0
  %4000 = vmatpush1.msra.mxu0 0.0
  %4001 = vmatprep.subr.mxu0 0.0
  %4002 = vmatpush1.msra.mxu0 0.0
  %4003 = vmatprep.subr.mxu0 0.0
  %4004 = vmatpush1.msra.mxu0 0.0
  %4005 = vmatprep.subr.mxu0 0.0
  %4006 = vmatpush1.msra.mxu0 0.0
  %4007 = vmatprep.subr.mxu0 0.0
  %4008 = vmatpush1.msra.mxu0 0.0
  %4009 = vmatprep.subr.mxu0 0.0
  %4010 = vmatpush1.msra.mxu0 0.0
  %4011 = vmatprep.subr.mxu0 0.0
  %4012 = vmatpush1.msra.mxu0 0.0
  %4013 = vmatprep.subr.mxu0 0.0
  %4014 = vmatpush1.msra.mxu0 0.0
  %4015 = vmatprep.subr.mxu0 0.0
  %4016 = vmatpush1.msra.mxu0 0.0
  %4017 = vmatprep.mubr.f32.mxu0 0.0
  %v4018 = vand.u32 %v3366, 4294901760
  %4019 = vmatmul.mubr.f32.gmra.mrb[0].mxu0 %v4018
  %v4020 = vpop.f32.mrb[0].mxu0
  %v4021 = vadd.f32 %v3934, %v4020
  %v4022 = vpop.f32.mrb[0].mxu0
  %4023 = vdwg.mxu0
  %4024 = vmatprep.subr.mxu0 0.0
  %v4025 = vand.u32 %v3350, 4294901760
  %4026 = vmatpush1.msra.mxu0 %v4025
  %4027 = vmatprep.subr.mxu0 0.0
  %v4028 = vand.u32 %v3351, 4294901760
  %4029 = vmatpush1.msra.mxu0 %v4028
  %4030 = vmatprep.subr.mxu0 0.0
  %v4031 = vand.u32 %v3352, 4294901760
  %4032 = vmatpush1.msra.mxu0 %v4031
  %4033 = vmatprep.subr.mxu0 0.0
  %v4034 = vand.u32 %v3353, 4294901760
  %4035 = vmatpush1.msra.mxu0 %v4034
  %4036 = vmatprep.subr.mxu0 0.0
  %v4037 = vand.u32 %v3354, 4294901760
  %4038 = vmatpush1.msra.mxu0 %v4037
  %4039 = vmatprep.subr.mxu0 0.0
  %v4040 = vand.u32 %v3355, 4294901760
  %4041 = vmatpush1.msra.mxu0 %v4040
  %4042 = vmatprep.subr.mxu0 0.0
  %v4043 = vand.u32 %v3356, 4294901760
  %4044 = vmatpush1.msra.mxu0 %v4043
  %4045 = vmatprep.subr.mxu0 0.0
  %v4046 = vand.u32 %v3357, 4294901760
  %4047 = vmatpush1.msra.mxu0 %v4046
  %4048 = vmatprep.subr.mxu0 0.0
  %v4049 = vand.u32 %v3358, 4294901760
  %4050 = vmatpush1.msra.mxu0 %v4049
  %4051 = vmatprep.subr.mxu0 0.0
  %v4052 = vand.u32 %v3359, 4294901760
  %4053 = vmatpush1.msra.mxu0 %v4052
  %4054 = vmatprep.subr.mxu0 0.0
  %v4055 = vand.u32 %v3360, 4294901760
  %4056 = vmatpush1.msra.mxu0 %v4055
  %4057 = vmatprep.subr.mxu0 0.0
  %v4058 = vand.u32 %v3361, 4294901760
  %4059 = vmatpush1.msra.mxu0 %v4058
  %4060 = vmatprep.subr.mxu0 0.0
  %v4061 = vand.u32 %v3362, 4294901760
  %4062 = vmatpush1.msra.mxu0 %v4061
  %4063 = vmatprep.subr.mxu0 0.0
  %v4064 = vand.u32 %v3363, 4294901760
  %4065 = vmatpush1.msra.mxu0 %v4064
  %4066 = vmatprep.subr.mxu0 0.0
  %v4067 = vand.u32 %v3364, 4294901760
  %4068 = vmatpush1.msra.mxu0 %v4067
  %4069 = vmatprep.subr.mxu0 0.0
  %v4070 = vand.u32 %v3365, 4294901760
  %4071 = vmatpush1.msra.mxu0 %v4070
  %4072 = vmatprep.subr.mxu0 0.0
  %4073 = vmatpush1.msra.mxu0 0.0
  %4074 = vmatprep.subr.mxu0 0.0
  %4075 = vmatpush1.msra.mxu0 0.0
  %4076 = vmatprep.subr.mxu0 0.0
  %4077 = vmatpush1.msra.mxu0 0.0
  %4078 = vmatprep.subr.mxu0 0.0
  %4079 = vmatpush1.msra.mxu0 0.0
  %4080 = vmatprep.subr.mxu0 0.0
  %4081 = vmatpush1.msra.mxu0 0.0
  %4082 = vmatprep.subr.mxu0 0.0
  %4083 = vmatpush1.msra.mxu0 0.0
  %4084 = vmatprep.subr.mxu0 0.0
  %4085 = vmatpush1.msra.mxu0 0.0
  %4086 = vmatprep.subr.mxu0 0.0
  %4087 = vmatpush1.msra.mxu0 0.0
  %4088 = vmatprep.subr.mxu0 0.0
  %4089 = vmatpush1.msra.mxu0 0.0
  %4090 = vmatprep.subr.mxu0 0.0
  %4091 = vmatpush1.msra.mxu0 0.0
  %4092 = vmatprep.subr.mxu0 0.0
  %4093 = vmatpush1.msra.mxu0 0.0
  %4094 = vmatprep.subr.mxu0 0.0
  %4095 = vmatpush1.msra.mxu0 0.0
  %4096 = vmatprep.subr.mxu0 0.0
  %4097 = vmatpush1.msra.mxu0 0.0
  %4098 = vmatprep.subr.mxu0 0.0
  %4099 = vmatpush1.msra.mxu0 0.0
  %4100 = vmatprep.subr.mxu0 0.0
  %4101 = vmatpush1.msra.mxu0 0.0
  %4102 = vmatprep.subr.mxu0 0.0
  %4103 = vmatpush1.msra.mxu0 0.0
  %4104 = vmatprep.mubr.f32.mxu0 0.0
  %v4105 = vand.u32 %v3345, 4294901760
  %v4106 = vsub.f32 %v3345, %v4105
  %v4107 = vand.u32 %v4106, 4294901760
  %v4108 = vsub.f32 %v4106, %v4107
  %v4109 = vand.u32 %v4108, 4294901760
  %4110 = vmatmul.mubr.f32.gmra.mrb[0].mxu0 %v4109
  %v4111 = vpop.f32.mrb[0].mxu0
  %v4112 = vadd.f32 %v4021, %v4111
  %v4113 = vpop.f32.mrb[0].mxu0
  %4114 = vdwg.mxu0
  %4115 = vmatprep.subr.mxu0 0.0
  %v4116 = vand.u32 %v3350, 4294901760
  %v4117 = vsub.f32 %v3350, %v4116
  %v4118 = vand.u32 %v4117, 4294901760
  %v4119 = vsub.f32 %v4117, %v4118
  %v4120 = vand.u32 %v4119, 4294901760
  %4121 = vmatpush1.msra.mxu0 %v4120
  %4122 = vmatprep.subr.mxu0 0.0
  %v4123 = vand.u32 %v3351, 4294901760
  %v4124 = vsub.f32 %v3351, %v4123
  %v4125 = vand.u32 %v4124, 4294901760
  %v4126 = vsub.f32 %v4124, %v4125
  %v4127 = vand.u32 %v4126, 4294901760
  %4128 = vmatpush1.msra.mxu0 %v4127
  %4129 = vmatprep.subr.mxu0 0.0
  %v4130 = vand.u32 %v3352, 4294901760
  %v4131 = vsub.f32 %v3352, %v4130
  %v4132 = vand.u32 %v4131, 4294901760
  %v4133 = vsub.f32 %v4131, %v4132
  %v4134 = vand.u32 %v4133, 4294901760
  %4135 = vmatpush1.msra.mxu0 %v4134
  %4136 = vmatprep.subr.mxu0 0.0
  %v4137 = vand.u32 %v3353, 4294901760
  %v4138 = vsub.f32 %v3353, %v4137
  %v4139 = vand.u32 %v4138, 4294901760
  %v4140 = vsub.f32 %v4138, %v4139
  %v4141 = vand.u32 %v4140, 4294901760
  %4142 = vmatpush1.msra.mxu0 %v4141
  %4143 = vmatprep.subr.mxu0 0.0
  %v4144 = vand.u32 %v3354, 4294901760
  %v4145 = vsub.f32 %v3354, %v4144
  %v4146 = vand.u32 %v4145, 4294901760
  %v4147 = vsub.f32 %v4145, %v4146
  %v4148 = vand.u32 %v4147, 4294901760
  %4149 = vmatpush1.msra.mxu0 %v4148
  %4150 = vmatprep.subr.mxu0 0.0
  %v4151 = vand.u32 %v3355, 4294901760
  %v4152 = vsub.f32 %v3355, %v4151
  %v4153 = vand.u32 %v4152, 4294901760
  %v4154 = vsub.f32 %v4152, %v4153
  %v4155 = vand.u32 %v4154, 4294901760
  %4156 = vmatpush1.msra.mxu0 %v4155
  %4157 = vmatprep.subr.mxu0 0.0
  %v4158 = vand.u32 %v3356, 4294901760
  %v4159 = vsub.f32 %v3356, %v4158
  %v4160 = vand.u32 %v4159, 4294901760
  %v4161 = vsub.f32 %v4159, %v4160
  %v4162 = vand.u32 %v4161, 4294901760
  %4163 = vmatpush1.msra.mxu0 %v4162
  %4164 = vmatprep.subr.mxu0 0.0
  %v4165 = vand.u32 %v3357, 4294901760
  %v4166 = vsub.f32 %v3357, %v4165
  %v4167 = vand.u32 %v4166, 4294901760
  %v4168 = vsub.f32 %v4166, %v4167
  %v4169 = vand.u32 %v4168, 4294901760
  %4170 = vmatpush1.msra.mxu0 %v4169
  %4171 = vmatprep.subr.mxu0 0.0
  %v4172 = vand.u32 %v3358, 4294901760
  %v4173 = vsub.f32 %v3358, %v4172
  %v4174 = vand.u32 %v4173, 4294901760
  %v4175 = vsub.f32 %v4173, %v4174
  %v4176 = vand.u32 %v4175, 4294901760
  %4177 = vmatpush1.msra.mxu0 %v4176
  %4178 = vmatprep.subr.mxu0 0.0
  %v4179 = vand.u32 %v3359, 4294901760
  %v4180 = vsub.f32 %v3359, %v4179
  %v4181 = vand.u32 %v4180, 4294901760
  %v4182 = vsub.f32 %v4180, %v4181
  %v4183 = vand.u32 %v4182, 4294901760
  %4184 = vmatpush1.msra.mxu0 %v4183
  %4185 = vmatprep.subr.mxu0 0.0
  %v4186 = vand.u32 %v3360, 4294901760
  %v4187 = vsub.f32 %v3360, %v4186
  %v4188 = vand.u32 %v4187, 4294901760
  %v4189 = vsub.f32 %v4187, %v4188
  %v4190 = vand.u32 %v4189, 4294901760
  %4191 = vmatpush1.msra.mxu0 %v4190
  %4192 = vmatprep.subr.mxu0 0.0
  %v4193 = vand.u32 %v3361, 4294901760
  %v4194 = vsub.f32 %v3361, %v4193
  %v4195 = vand.u32 %v4194, 4294901760
  %v4196 = vsub.f32 %v4194, %v4195
  %v4197 = vand.u32 %v4196, 4294901760
  %4198 = vmatpush1.msra.mxu0 %v4197
  %4199 = vmatprep.subr.mxu0 0.0
  %v4200 = vand.u32 %v3362, 4294901760
  %v4201 = vsub.f32 %v3362, %v4200
  %v4202 = vand.u32 %v4201, 4294901760
  %v4203 = vsub.f32 %v4201, %v4202
  %v4204 = vand.u32 %v4203, 4294901760
  %4205 = vmatpush1.msra.mxu0 %v4204
  %4206 = vmatprep.subr.mxu0 0.0
  %v4207 = vand.u32 %v3363, 4294901760
  %v4208 = vsub.f32 %v3363, %v4207
  %v4209 = vand.u32 %v4208, 4294901760
  %v4210 = vsub.f32 %v4208, %v4209
  %v4211 = vand.u32 %v4210, 4294901760
  %4212 = vmatpush1.msra.mxu0 %v4211
  %4213 = vmatprep.subr.mxu0 0.0
  %v4214 = vand.u32 %v3364, 4294901760
  %v4215 = vsub.f32 %v3364, %v4214
  %v4216 = vand.u32 %v4215, 4294901760
  %v4217 = vsub.f32 %v4215, %v4216
  %v4218 = vand.u32 %v4217, 4294901760
  %4219 = vmatpush1.msra.mxu0 %v4218
  %4220 = vmatprep.subr.mxu0 0.0
  %v4221 = vand.u32 %v3365, 4294901760
  %v4222 = vsub.f32 %v3365, %v4221
  %v4223 = vand.u32 %v4222, 4294901760
  %v4224 = vsub.f32 %v4222, %v4223
  %v4225 = vand.u32 %v4224, 4294901760
  %4226 = vmatpush1.msra.mxu0 %v4225
  %4227 = vmatprep.subr.mxu0 0.0
  %4228 = vmatpush1.msra.mxu0 0.0
  %4229 = vmatprep.subr.mxu0 0.0
  %4230 = vmatpush1.msra.mxu0 0.0
  %4231 = vmatprep.subr.mxu0 0.0
  %4232 = vmatpush1.msra.mxu0 0.0
  %4233 = vmatprep.subr.mxu0 0.0
  %4234 = vmatpush1.msra.mxu0 0.0
  %4235 = vmatprep.subr.mxu0 0.0
  %4236 = vmatpush1.msra.mxu0 0.0
  %4237 = vmatprep.subr.mxu0 0.0
  %4238 = vmatpush1.msra.mxu0 0.0
  %4239 = vmatprep.subr.mxu0 0.0
  %4240 = vmatpush1.msra.mxu0 0.0
  %4241 = vmatprep.subr.mxu0 0.0
  %4242 = vmatpush1.msra.mxu0 0.0
  %4243 = vmatprep.subr.mxu0 0.0
  %4244 = vmatpush1.msra.mxu0 0.0
  %4245 = vmatprep.subr.mxu0 0.0
  %4246 = vmatpush1.msra.mxu0 0.0
  %4247 = vmatprep.subr.mxu0 0.0
  %4248 = vmatpush1.msra.mxu0 0.0
  %4249 = vmatprep.subr.mxu0 0.0
  %4250 = vmatpush1.msra.mxu0 0.0
  %4251 = vmatprep.subr.mxu0 0.0
  %4252 = vmatpush1.msra.mxu0 0.0
  %4253 = vmatprep.subr.mxu0 0.0
  %4254 = vmatpush1.msra.mxu0 0.0
  %4255 = vmatprep.subr.mxu0 0.0
  %4256 = vmatpush1.msra.mxu0 0.0
  %4257 = vmatprep.subr.mxu0 0.0
  %4258 = vmatpush1.msra.mxu0 0.0
  %4259 = vmatprep.mubr.f32.mxu0 0.0
  %v4260 = vand.u32 %v3345, 4294901760
  %4261 = vmatmul.mubr.f32.gmra.mrb[0].mxu0 %v4260
  %v4262 = vpop.f32.mrb[0].mxu0
  %v4263 = vadd.f32 %v4112, %v4262
  %v4264 = vpop.f32.mrb[0].mxu0
  %4265 = vdwg.mxu0
  %4266 = vmatprep.subr.mxu0 0.0
  %v4267 = vand.u32 %v3350, 4294901760
  %v4268 = vsub.f32 %v3350, %v4267
  %4269 = vmatpush1.msra.mxu0 %v4268
  %4270 = vmatprep.subr.mxu0 0.0
  %v4271 = vand.u32 %v3351, 4294901760
  %v4272 = vsub.f32 %v3351, %v4271
  %4273 = vmatpush1.msra.mxu0 %v4272
  %4274 = vmatprep.subr.mxu0 0.0
  %v4275 = vand.u32 %v3352, 4294901760
  %v4276 = vsub.f32 %v3352, %v4275
  %4277 = vmatpush1.msra.mxu0 %v4276
  %4278 = vmatprep.subr.mxu0 0.0
  %v4279 = vand.u32 %v3353, 4294901760
  %v4280 = vsub.f32 %v3353, %v4279
  %4281 = vmatpush1.msra.mxu0 %v4280
  %4282 = vmatprep.subr.mxu0 0.0
  %v4283 = vand.u32 %v3354, 4294901760
  %v4284 = vsub.f32 %v3354, %v4283
  %4285 = vmatpush1.msra.mxu0 %v4284
  %4286 = vmatprep.subr.mxu0 0.0
  %v4287 = vand.u32 %v3355, 4294901760
  %v4288 = vsub.f32 %v3355, %v4287
  %4289 = vmatpush1.msra.mxu0 %v4288
  %4290 = vmatprep.subr.mxu0 0.0
  %v4291 = vand.u32 %v3356, 4294901760
  %v4292 = vsub.f32 %v3356, %v4291
  %4293 = vmatpush1.msra.mxu0 %v4292
  %4294 = vmatprep.subr.mxu0 0.0
  %v4295 = vand.u32 %v3357, 4294901760
  %v4296 = vsub.f32 %v3357, %v4295
  %4297 = vmatpush1.msra.mxu0 %v4296
  %4298 = vmatprep.subr.mxu0 0.0
  %v4299 = vand.u32 %v3358, 4294901760
  %v4300 = vsub.f32 %v3358, %v4299
  %4301 = vmatpush1.msra.mxu0 %v4300
  %4302 = vmatprep.subr.mxu0 0.0
  %v4303 = vand.u32 %v3359, 4294901760
  %v4304 = vsub.f32 %v3359, %v4303
  %4305 = vmatpush1.msra.mxu0 %v4304
  %4306 = vmatprep.subr.mxu0 0.0
  %v4307 = vand.u32 %v3360, 4294901760
  %v4308 = vsub.f32 %v3360, %v4307
  %4309 = vmatpush1.msra.mxu0 %v4308
  %4310 = vmatprep.subr.mxu0 0.0
  %v4311 = vand.u32 %v3361, 4294901760
  %v4312 = vsub.f32 %v3361, %v4311
  %4313 = vmatpush1.msra.mxu0 %v4312
  %4314 = vmatprep.subr.mxu0 0.0
  %v4315 = vand.u32 %v3362, 4294901760
  %v4316 = vsub.f32 %v3362, %v4315
  %4317 = vmatpush1.msra.mxu0 %v4316
  %4318 = vmatprep.subr.mxu0 0.0
  %v4319 = vand.u32 %v3363, 4294901760
  %v4320 = vsub.f32 %v3363, %v4319
  %4321 = vmatpush1.msra.mxu0 %v4320
  %4322 = vmatprep.subr.mxu0 0.0
  %v4323 = vand.u32 %v3364, 4294901760
  %v4324 = vsub.f32 %v3364, %v4323
  %4325 = vmatpush1.msra.mxu0 %v4324
  %4326 = vmatprep.subr.mxu0 0.0
  %v4327 = vand.u32 %v3365, 4294901760
  %v4328 = vsub.f32 %v3365, %v4327
  %4329 = vmatpush1.msra.mxu0 %v4328
  %4330 = vmatprep.subr.mxu0 0.0
  %4331 = vmatpush1.msra.mxu0 0.0
  %4332 = vmatprep.subr.mxu0 0.0
  %4333 = vmatpush1.msra.mxu0 0.0
  %4334 = vmatprep.subr.mxu0 0.0
  %4335 = vmatpush1.msra.mxu0 0.0
  %4336 = vmatprep.subr.mxu0 0.0
  %4337 = vmatpush1.msra.mxu0 0.0
  %4338 = vmatprep.subr.mxu0 0.0
  %4339 = vmatpush1.msra.mxu0 0.0
  %4340 = vmatprep.subr.mxu0 0.0
  %4341 = vmatpush1.msra.mxu0 0.0
  %4342 = vmatprep.subr.mxu0 0.0
  %4343 = vmatpush1.msra.mxu0 0.0
  %4344 = vmatprep.subr.mxu0 0.0
  %4345 = vmatpush1.msra.mxu0 0.0
  %4346 = vmatprep.subr.mxu0 0.0
  %4347 = vmatpush1.msra.mxu0 0.0
  %4348 = vmatprep.subr.mxu0 0.0
  %4349 = vmatpush1.msra.mxu0 0.0
  %4350 = vmatprep.subr.mxu0 0.0
  %4351 = vmatpush1.msra.mxu0 0.0
  %4352 = vmatprep.subr.mxu0 0.0
  %4353 = vmatpush1.msra.mxu0 0.0
  %4354 = vmatprep.subr.mxu0 0.0
  %4355 = vmatpush1.msra.mxu0 0.0
  %4356 = vmatprep.subr.mxu0 0.0
  %4357 = vmatpush1.msra.mxu0 0.0
  %4358 = vmatprep.subr.mxu0 0.0
  %4359 = vmatpush1.msra.mxu0 0.0
  %4360 = vmatprep.subr.mxu0 0.0
  %4361 = vmatpush1.msra.mxu0 0.0
  %4362 = vmatprep.mubr.f32.mxu0 0.0
  %v4363 = vand.u32 %v3345, 4294901760
  %v4364 = vsub.f32 %v3345, %v4363
  %4365 = vmatmul.mubr.f32.gmra.mrb[0].mxu0 %v4364
  %v4366 = vpop.f32.mrb[0].mxu0
  %v4367 = vadd.f32 %v4263, %v4366
  %v4368 = vpop.f32.mrb[0].mxu0
  %4369 = vdwg.mxu0
  %4370 = vmatprep.subr.mxu0 0.0
  %v4371 = vand.u32 %v3350, 4294901760
  %4372 = vmatpush1.msra.mxu0 %v4371
  %4373 = vmatprep.subr.mxu0 0.0
  %v4374 = vand.u32 %v3351, 4294901760
  %4375 = vmatpush1.msra.mxu0 %v4374
  %4376 = vmatprep.subr.mxu0 0.0
  %v4377 = vand.u32 %v3352, 4294901760
  %4378 = vmatpush1.msra.mxu0 %v4377
  %4379 = vmatprep.subr.mxu0 0.0
  %v4380 = vand.u32 %v3353, 4294901760
  %4381 = vmatpush1.msra.mxu0 %v4380
  %4382 = vmatprep.subr.mxu0 0.0
  %v4383 = vand.u32 %v3354, 4294901760
  %4384 = vmatpush1.msra.mxu0 %v4383
  %4385 = vmatprep.subr.mxu0 0.0
  %v4386 = vand.u32 %v3355, 4294901760
  %4387 = vmatpush1.msra.mxu0 %v4386
  %4388 = vmatprep.subr.mxu0 0.0
  %v4389 = vand.u32 %v3356, 4294901760
  %4390 = vmatpush1.msra.mxu0 %v4389
  %4391 = vmatprep.subr.mxu0 0.0
  %v4392 = vand.u32 %v3357, 4294901760
  %4393 = vmatpush1.msra.mxu0 %v4392
  %4394 = vmatprep.subr.mxu0 0.0
  %v4395 = vand.u32 %v3358, 4294901760
  %4396 = vmatpush1.msra.mxu0 %v4395
  %4397 = vmatprep.subr.mxu0 0.0
  %v4398 = vand.u32 %v3359, 4294901760
  %4399 = vmatpush1.msra.mxu0 %v4398
  %4400 = vmatprep.subr.mxu0 0.0
  %v4401 = vand.u32 %v3360, 4294901760
  %4402 = vmatpush1.msra.mxu0 %v4401
  %4403 = vmatprep.subr.mxu0 0.0
  %v4404 = vand.u32 %v3361, 4294901760
  %4405 = vmatpush1.msra.mxu0 %v4404
  %4406 = vmatprep.subr.mxu0 0.0
  %v4407 = vand.u32 %v3362, 4294901760
  %4408 = vmatpush1.msra.mxu0 %v4407
  %4409 = vmatprep.subr.mxu0 0.0
  %v4410 = vand.u32 %v3363, 4294901760
  %4411 = vmatpush1.msra.mxu0 %v4410
  %4412 = vmatprep.subr.mxu0 0.0
  %v4413 = vand.u32 %v3364, 4294901760
  %4414 = vmatpush1.msra.mxu0 %v4413
  %4415 = vmatprep.subr.mxu0 0.0
  %v4416 = vand.u32 %v3365, 4294901760
  %4417 = vmatpush1.msra.mxu0 %v4416
  %4418 = vmatprep.subr.mxu0 0.0
  %4419 = vmatpush1.msra.mxu0 0.0
  %4420 = vmatprep.subr.mxu0 0.0
  %4421 = vmatpush1.msra.mxu0 0.0
  %4422 = vmatprep.subr.mxu0 0.0
  %4423 = vmatpush1.msra.mxu0 0.0
  %4424 = vmatprep.subr.mxu0 0.0
  %4425 = vmatpush1.msra.mxu0 0.0
  %4426 = vmatprep.subr.mxu0 0.0
  %4427 = vmatpush1.msra.mxu0 0.0
  %4428 = vmatprep.subr.mxu0 0.0
  %4429 = vmatpush1.msra.mxu0 0.0
  %4430 = vmatprep.subr.mxu0 0.0
  %4431 = vmatpush1.msra.mxu0 0.0
  %4432 = vmatprep.subr.mxu0 0.0
  %4433 = vmatpush1.msra.mxu0 0.0
  %4434 = vmatprep.subr.mxu0 0.0
  %4435 = vmatpush1.msra.mxu0 0.0
  %4436 = vmatprep.subr.mxu0 0.0
  %4437 = vmatpush1.msra.mxu0 0.0
  %4438 = vmatprep.subr.mxu0 0.0
  %4439 = vmatpush1.msra.mxu0 0.0
  %4440 = vmatprep.subr.mxu0 0.0
  %4441 = vmatpush1.msra.mxu0 0.0
  %4442 = vmatprep.subr.mxu0 0.0
  %4443 = vmatpush1.msra.mxu0 0.0
  %4444 = vmatprep.subr.mxu0 0.0
  %4445 = vmatpush1.msra.mxu0 0.0
  %4446 = vmatprep.subr.mxu0 0.0
  %4447 = vmatpush1.msra.mxu0 0.0
  %4448 = vmatprep.subr.mxu0 0.0
  %4449 = vmatpush1.msra.mxu0 0.0
  %4450 = vmatprep.mubr.f32.mxu0 0.0
  %v4451 = vand.u32 %v3345, 4294901760
  %v4452 = vsub.f32 %v3345, %v4451
  %v4453 = vand.u32 %v4452, 4294901760
  %4454 = vmatmul.mubr.f32.gmra.mrb[0].mxu0 %v4453
  %v4455 = vpop.f32.mrb[0].mxu0
  %v4456 = vadd.f32 %v4367, %v4455
  %v4457 = vpop.f32.mrb[0].mxu0
  %4458 = vdwg.mxu0
  %4459 = vmatprep.subr.mxu0 0.0
  %v4460 = vand.u32 %v3350, 4294901760
  %v4461 = vsub.f32 %v3350, %v4460
  %v4462 = vand.u32 %v4461, 4294901760
  %4463 = vmatpush1.msra.mxu0 %v4462
  %4464 = vmatprep.subr.mxu0 0.0
  %v4465 = vand.u32 %v3351, 4294901760
  %v4466 = vsub.f32 %v3351, %v4465
  %v4467 = vand.u32 %v4466, 4294901760
  %4468 = vmatpush1.msra.mxu0 %v4467
  %4469 = vmatprep.subr.mxu0 0.0
  %v4470 = vand.u32 %v3352, 4294901760
  %v4471 = vsub.f32 %v3352, %v4470
  %v4472 = vand.u32 %v4471, 4294901760
  %4473 = vmatpush1.msra.mxu0 %v4472
  %4474 = vmatprep.subr.mxu0 0.0
  %v4475 = vand.u32 %v3353, 4294901760
  %v4476 = vsub.f32 %v3353, %v4475
  %v4477 = vand.u32 %v4476, 4294901760
  %4478 = vmatpush1.msra.mxu0 %v4477
  %4479 = vmatprep.subr.mxu0 0.0
  %v4480 = vand.u32 %v3354, 4294901760
  %v4481 = vsub.f32 %v3354, %v4480
  %v4482 = vand.u32 %v4481, 4294901760
  %4483 = vmatpush1.msra.mxu0 %v4482
  %4484 = vmatprep.subr.mxu0 0.0
  %v4485 = vand.u32 %v3355, 4294901760
  %v4486 = vsub.f32 %v3355, %v4485
  %v4487 = vand.u32 %v4486, 4294901760
  %4488 = vmatpush1.msra.mxu0 %v4487
  %4489 = vmatprep.subr.mxu0 0.0
  %v4490 = vand.u32 %v3356, 4294901760
  %v4491 = vsub.f32 %v3356, %v4490
  %v4492 = vand.u32 %v4491, 4294901760
  %4493 = vmatpush1.msra.mxu0 %v4492
  %4494 = vmatprep.subr.mxu0 0.0
  %v4495 = vand.u32 %v3357, 4294901760
  %v4496 = vsub.f32 %v3357, %v4495
  %v4497 = vand.u32 %v4496, 4294901760
  %4498 = vmatpush1.msra.mxu0 %v4497
  %4499 = vmatprep.subr.mxu0 0.0
  %v4500 = vand.u32 %v3358, 4294901760
  %v4501 = vsub.f32 %v3358, %v4500
  %v4502 = vand.u32 %v4501, 4294901760
  %4503 = vmatpush1.msra.mxu0 %v4502
  %4504 = vmatprep.subr.mxu0 0.0
  %v4505 = vand.u32 %v3359, 4294901760
  %v4506 = vsub.f32 %v3359, %v4505
  %v4507 = vand.u32 %v4506, 4294901760
  %4508 = vmatpush1.msra.mxu0 %v4507
  %4509 = vmatprep.subr.mxu0 0.0
  %v4510 = vand.u32 %v3360, 4294901760
  %v4511 = vsub.f32 %v3360, %v4510
  %v4512 = vand.u32 %v4511, 4294901760
  %4513 = vmatpush1.msra.mxu0 %v4512
  %4514 = vmatprep.subr.mxu0 0.0
  %v4515 = vand.u32 %v3361, 4294901760
  %v4516 = vsub.f32 %v3361, %v4515
  %v4517 = vand.u32 %v4516, 4294901760
  %4518 = vmatpush1.msra.mxu0 %v4517
  %4519 = vmatprep.subr.mxu0 0.0
  %v4520 = vand.u32 %v3362, 4294901760
  %v4521 = vsub.f32 %v3362, %v4520
  %v4522 = vand.u32 %v4521, 4294901760
  %4523 = vmatpush1.msra.mxu0 %v4522
  %4524 = vmatprep.subr.mxu0 0.0
  %v4525 = vand.u32 %v3363, 4294901760
  %v4526 = vsub.f32 %v3363, %v4525
  %v4527 = vand.u32 %v4526, 4294901760
  %4528 = vmatpush1.msra.mxu0 %v4527
  %4529 = vmatprep.subr.mxu0 0.0
  %v4530 = vand.u32 %v3364, 4294901760
  %v4531 = vsub.f32 %v3364, %v4530
  %v4532 = vand.u32 %v4531, 4294901760
  %4533 = vmatpush1.msra.mxu0 %v4532
  %4534 = vmatprep.subr.mxu0 0.0
  %v4535 = vand.u32 %v3365, 4294901760
  %v4536 = vsub.f32 %v3365, %v4535
  %v4537 = vand.u32 %v4536, 4294901760
  %4538 = vmatpush1.msra.mxu0 %v4537
  %4539 = vmatprep.subr.mxu0 0.0
  %4540 = vmatpush1.msra.mxu0 0.0
  %4541 = vmatprep.subr.mxu0 0.0
  %4542 = vmatpush1.msra.mxu0 0.0
  %4543 = vmatprep.subr.mxu0 0.0
  %4544 = vmatpush1.msra.mxu0 0.0
  %4545 = vmatprep.subr.mxu0 0.0
  %4546 = vmatpush1.msra.mxu0 0.0
  %4547 = vmatprep.subr.mxu0 0.0
  %4548 = vmatpush1.msra.mxu0 0.0
  %4549 = vmatprep.subr.mxu0 0.0
  %4550 = vmatpush1.msra.mxu0 0.0
  %4551 = vmatprep.subr.mxu0 0.0
  %4552 = vmatpush1.msra.mxu0 0.0
  %4553 = vmatprep.subr.mxu0 0.0
  %4554 = vmatpush1.msra.mxu0 0.0
  %4555 = vmatprep.subr.mxu0 0.0
  %4556 = vmatpush1.msra.mxu0 0.0
  %4557 = vmatprep.subr.mxu0 0.0
  %4558 = vmatpush1.msra.mxu0 0.0
  %4559 = vmatprep.subr.mxu0 0.0
  %4560 = vmatpush1.msra.mxu0 0.0
  %4561 = vmatprep.subr.mxu0 0.0
  %4562 = vmatpush1.msra.mxu0 0.0
  %4563 = vmatprep.subr.mxu0 0.0
  %4564 = vmatpush1.msra.mxu0 0.0
  %4565 = vmatprep.subr.mxu0 0.0
  %4566 = vmatpush1.msra.mxu0 0.0
  %4567 = vmatprep.subr.mxu0 0.0
  %4568 = vmatpush1.msra.mxu0 0.0
  %4569 = vmatprep.subr.mxu0 0.0
  %4570 = vmatpush1.msra.mxu0 0.0
  %4571 = vmatprep.mubr.f32.mxu0 0.0
  %v4572 = vand.u32 %v3345, 4294901760
  %4573 = vmatmul.mubr.f32.gmra.mrb[0].mxu0 %v4572
  %v4574 = vpop.f32.mrb[0].mxu0
  %v4575 = vadd.f32 %v4456, %v4574
  %v4576 = vpop.f32.mrb[0].mxu0
  %4577 = vdwg.mxu0
  %4578 = vmatprep.subr.mxu0 0.0
  %v4579 = vand.u32 %v3350, 4294901760
  %4580 = vmatpush1.msra.mxu0 %v4579
  %4581 = vmatprep.subr.mxu0 0.0
  %v4582 = vand.u32 %v3351, 4294901760
  %4583 = vmatpush1.msra.mxu0 %v4582
  %4584 = vmatprep.subr.mxu0 0.0
  %v4585 = vand.u32 %v3352, 4294901760
  %4586 = vmatpush1.msra.mxu0 %v4585
  %4587 = vmatprep.subr.mxu0 0.0
  %v4588 = vand.u32 %v3353, 4294901760
  %4589 = vmatpush1.msra.mxu0 %v4588
  %4590 = vmatprep.subr.mxu0 0.0
  %v4591 = vand.u32 %v3354, 4294901760
  %4592 = vmatpush1.msra.mxu0 %v4591
  %4593 = vmatprep.subr.mxu0 0.0
  %v4594 = vand.u32 %v3355, 4294901760
  %4595 = vmatpush1.msra.mxu0 %v4594
  %4596 = vmatprep.subr.mxu0 0.0
  %v4597 = vand.u32 %v3356, 4294901760
  %4598 = vmatpush1.msra.mxu0 %v4597
  %4599 = vmatprep.subr.mxu0 0.0
  %v4600 = vand.u32 %v3357, 4294901760
  %4601 = vmatpush1.msra.mxu0 %v4600
  %4602 = vmatprep.subr.mxu0 0.0
  %v4603 = vand.u32 %v3358, 4294901760
  %4604 = vmatpush1.msra.mxu0 %v4603
  %4605 = vmatprep.subr.mxu0 0.0
  %v4606 = vand.u32 %v3359, 4294901760
  %4607 = vmatpush1.msra.mxu0 %v4606
  %4608 = vmatprep.subr.mxu0 0.0
  %v4609 = vand.u32 %v3360, 4294901760
  %4610 = vmatpush1.msra.mxu0 %v4609
  %4611 = vmatprep.subr.mxu0 0.0
  %v4612 = vand.u32 %v3361, 4294901760
  %4613 = vmatpush1.msra.mxu0 %v4612
  %4614 = vmatprep.subr.mxu0 0.0
  %v4615 = vand.u32 %v3362, 4294901760
  %4616 = vmatpush1.msra.mxu0 %v4615
  %4617 = vmatprep.subr.mxu0 0.0
  %v4618 = vand.u32 %v3363, 4294901760
  %4619 = vmatpush1.msra.mxu0 %v4618
  %4620 = vmatprep.subr.mxu0 0.0
  %v4621 = vand.u32 %v3364, 4294901760
  %4622 = vmatpush1.msra.mxu0 %v4621
  %4623 = vmatprep.subr.mxu0 0.0
  %v4624 = vand.u32 %v3365, 4294901760
  %4625 = vmatpush1.msra.mxu0 %v4624
  %4626 = vmatprep.subr.mxu0 0.0
  %4627 = vmatpush1.msra.mxu0 0.0
  %4628 = vmatprep.subr.mxu0 0.0
  %4629 = vmatpush1.msra.mxu0 0.0
  %4630 = vmatprep.subr.mxu0 0.0
  %4631 = vmatpush1.msra.mxu0 0.0
  %4632 = vmatprep.subr.mxu0 0.0
  %4633 = vmatpush1.msra.mxu0 0.0
  %4634 = vmatprep.subr.mxu0 0.0
  %4635 = vmatpush1.msra.mxu0 0.0
  %4636 = vmatprep.subr.mxu0 0.0
  %4637 = vmatpush1.msra.mxu0 0.0
  %4638 = vmatprep.subr.mxu0 0.0
  %4639 = vmatpush1.msra.mxu0 0.0
  %4640 = vmatprep.subr.mxu0 0.0
  %4641 = vmatpush1.msra.mxu0 0.0
  %4642 = vmatprep.subr.mxu0 0.0
  %4643 = vmatpush1.msra.mxu0 0.0
  %4644 = vmatprep.subr.mxu0 0.0
  %4645 = vmatpush1.msra.mxu0 0.0
  %4646 = vmatprep.subr.mxu0 0.0
  %4647 = vmatpush1.msra.mxu0 0.0
  %4648 = vmatprep.subr.mxu0 0.0
  %4649 = vmatpush1.msra.mxu0 0.0
  %4650 = vmatprep.subr.mxu0 0.0
  %4651 = vmatpush1.msra.mxu0 0.0
  %4652 = vmatprep.subr.mxu0 0.0
  %4653 = vmatpush1.msra.mxu0 0.0
  %4654 = vmatprep.subr.mxu0 0.0
  %4655 = vmatpush1.msra.mxu0 0.0
  %4656 = vmatprep.subr.mxu0 0.0
  %4657 = vmatpush1.msra.mxu0 0.0
  %4658 = vmatprep.mubr.f32.mxu0 0.0
  %v4659 = vand.u32 %v3345, 4294901760
  %4660 = vmatmul.mubr.f32.gmra.mrb[0].mxu0 %v4659
  %v4661 = vpop.f32.mrb[0].mxu0
  %v4662 = vadd.f32 %v4575, %v4661
  %v4663 = vpop.f32.mrb[0].mxu0
  %4664 = vdwg.mxu0
  %v4665 = vld [vmem:[#allocation3 + $0x2] sm:$0xff]
  %s4666 = scalar_lea.vmem %s2, 256
  %v4667 = vld [vmem:[%s4666] sm:$0xff]
  %v4668 = vld [vmem:[%s4666 + $0x8] sm:$0xff]
  %v4669 = vld [vmem:[%s4666 + $0x10] sm:$0xff]
  %v4670 = vld [vmem:[%s4666 + $0x18] sm:$0xff]
  %v4671 = vld [vmem:[%s4666 + $0x20] sm:$0xff]
  %v4672 = vld [vmem:[%s4666 + $0x28] sm:$0xff]
  %v4673 = vld [vmem:[%s4666 + $0x30] sm:$0xff]
  %v4674 = vld [vmem:[%s4666 + $0x38] sm:$0xff]
  %v4675 = vld [vmem:[%s4666 + $0x40] sm:$0xff]
  %v4676 = vld [vmem:[%s4666 + $0x48] sm:$0xff]
  %v4677 = vld [vmem:[%s4666 + $0x50] sm:$0xff]
  %v4678 = vld [vmem:[%s4666 + $0x58] sm:$0xff]
  %v4679 = vld [vmem:[%s4666 + $0x60] sm:$0xff]
  %v4680 = vld [vmem:[%s4666 + $0x68] sm:$0xff]
  %v4681 = vld [vmem:[%s4666 + $0x70] sm:$0xff]
  %v4682 = vld [vmem:[%s4666 + $0x78] sm:$0xff]
  %4683 = vmatprep.subr.mxu0 0.0
  %v4684 = vand.u32 %v4667, 4294901760
  %4685 = vmatpush1.msra.mxu0 %v4684
  %4686 = vmatprep.subr.mxu0 0.0
  %v4687 = vand.u32 %v4668, 4294901760
  %4688 = vmatpush1.msra.mxu0 %v4687
  %4689 = vmatprep.subr.mxu0 0.0
  %v4690 = vand.u32 %v4669, 4294901760
  %4691 = vmatpush1.msra.mxu0 %v4690
  %4692 = vmatprep.subr.mxu0 0.0
  %v4693 = vand.u32 %v4670, 4294901760
  %4694 = vmatpush1.msra.mxu0 %v4693
  %4695 = vmatprep.subr.mxu0 0.0
  %v4696 = vand.u32 %v4671, 4294901760
  %4697 = vmatpush1.msra.mxu0 %v4696
  %4698 = vmatprep.subr.mxu0 0.0
  %v4699 = vand.u32 %v4672, 4294901760
  %4700 = vmatpush1.msra.mxu0 %v4699
  %4701 = vmatprep.subr.mxu0 0.0
  %v4702 = vand.u32 %v4673, 4294901760
  %4703 = vmatpush1.msra.mxu0 %v4702
  %4704 = vmatprep.subr.mxu0 0.0
  %v4705 = vand.u32 %v4674, 4294901760
  %4706 = vmatpush1.msra.mxu0 %v4705
  %4707 = vmatprep.subr.mxu0 0.0
  %v4708 = vand.u32 %v4675, 4294901760
  %4709 = vmatpush1.msra.mxu0 %v4708
  %4710 = vmatprep.subr.mxu0 0.0
  %v4711 = vand.u32 %v4676, 4294901760
  %4712 = vmatpush1.msra.mxu0 %v4711
  %4713 = vmatprep.subr.mxu0 0.0
  %v4714 = vand.u32 %v4677, 4294901760
  %4715 = vmatpush1.msra.mxu0 %v4714
  %4716 = vmatprep.subr.mxu0 0.0
  %v4717 = vand.u32 %v4678, 4294901760
  %4718 = vmatpush1.msra.mxu0 %v4717
  %4719 = vmatprep.subr.mxu0 0.0
  %v4720 = vand.u32 %v4679, 4294901760
  %4721 = vmatpush1.msra.mxu0 %v4720
  %4722 = vmatprep.subr.mxu0 0.0
  %v4723 = vand.u32 %v4680, 4294901760
  %4724 = vmatpush1.msra.mxu0 %v4723
  %4725 = vmatprep.subr.mxu0 0.0
  %v4726 = vand.u32 %v4681, 4294901760
  %4727 = vmatpush1.msra.mxu0 %v4726
  %4728 = vmatprep.subr.mxu0 0.0
  %v4729 = vand.u32 %v4682, 4294901760
  %4730 = vmatpush1.msra.mxu0 %v4729
  %4731 = vmatprep.subr.mxu0 0.0
  %4732 = vmatpush1.msra.mxu0 0.0
  %4733 = vmatprep.subr.mxu0 0.0
  %4734 = vmatpush1.msra.mxu0 0.0
  %4735 = vmatprep.subr.mxu0 0.0
  %4736 = vmatpush1.msra.mxu0 0.0
  %4737 = vmatprep.subr.mxu0 0.0
  %4738 = vmatpush1.msra.mxu0 0.0
  %4739 = vmatprep.subr.mxu0 0.0
  %4740 = vmatpush1.msra.mxu0 0.0
  %4741 = vmatprep.subr.mxu0 0.0
  %4742 = vmatpush1.msra.mxu0 0.0
  %4743 = vmatprep.subr.mxu0 0.0
  %4744 = vmatpush1.msra.mxu0 0.0
  %4745 = vmatprep.subr.mxu0 0.0
  %4746 = vmatpush1.msra.mxu0 0.0
  %4747 = vmatprep.subr.mxu0 0.0
  %4748 = vmatpush1.msra.mxu0 0.0
  %4749 = vmatprep.subr.mxu0 0.0
  %4750 = vmatpush1.msra.mxu0 0.0
  %4751 = vmatprep.subr.mxu0 0.0
  %4752 = vmatpush1.msra.mxu0 0.0
  %4753 = vmatprep.subr.mxu0 0.0
  %4754 = vmatpush1.msra.mxu0 0.0
  %4755 = vmatprep.subr.mxu0 0.0
  %4756 = vmatpush1.msra.mxu0 0.0
  %4757 = vmatprep.subr.mxu0 0.0
  %4758 = vmatpush1.msra.mxu0 0.0
  %4759 = vmatprep.subr.mxu0 0.0
  %4760 = vmatpush1.msra.mxu0 0.0
  %4761 = vmatprep.subr.mxu0 0.0
  %4762 = vmatpush1.msra.mxu0 0.0
  %4763 = vmatprep.mubr.f32.mxu0 0.0
  %v4764 = vand.u32 %v4665, 4294901760
  %v4765 = vsub.f32 %v4665, %v4764
  %v4766 = vand.u32 %v4765, 4294901760
  %v4767 = vsub.f32 %v4765, %v4766
  %v4768 = vand.u32 %v4767, 4294901760
  %4769 = vmatmul.mubr.f32.gmra.mrb[0].mxu0 %v4768
  %v4770 = vpop.f32.mrb[0].mxu0
  %v4771 = vadd.f32 0.0, %v4770
  %v4772 = vpop.f32.mrb[0].mxu0
  %4773 = vdwg.mxu0
  %4774 = vmatprep.subr.mxu0 0.0
  %v4775 = vand.u32 %v4667, 4294901760
  %v4776 = vsub.f32 %v4667, %v4775
  %v4777 = vand.u32 %v4776, 4294901760
  %v4778 = vsub.f32 %v4776, %v4777
  %v4779 = vand.u32 %v4778, 4294901760
  %4780 = vmatpush1.msra.mxu0 %v4779
  %4781 = vmatprep.subr.mxu0 0.0
  %v4782 = vand.u32 %v4668, 4294901760
  %v4783 = vsub.f32 %v4668, %v4782
  %v4784 = vand.u32 %v4783, 4294901760
  %v4785 = vsub.f32 %v4783, %v4784
  %v4786 = vand.u32 %v4785, 4294901760
  %4787 = vmatpush1.msra.mxu0 %v4786
  %4788 = vmatprep.subr.mxu0 0.0
  %v4789 = vand.u32 %v4669, 4294901760
  %v4790 = vsub.f32 %v4669, %v4789
  %v4791 = vand.u32 %v4790, 4294901760
  %v4792 = vsub.f32 %v4790, %v4791
  %v4793 = vand.u32 %v4792, 4294901760
  %4794 = vmatpush1.msra.mxu0 %v4793
  %4795 = vmatprep.subr.mxu0 0.0
  %v4796 = vand.u32 %v4670, 4294901760
  %v4797 = vsub.f32 %v4670, %v4796
  %v4798 = vand.u32 %v4797, 4294901760
  %v4799 = vsub.f32 %v4797, %v4798
  %v4800 = vand.u32 %v4799, 4294901760
  %4801 = vmatpush1.msra.mxu0 %v4800
  %4802 = vmatprep.subr.mxu0 0.0
  %v4803 = vand.u32 %v4671, 4294901760
  %v4804 = vsub.f32 %v4671, %v4803
  %v4805 = vand.u32 %v4804, 4294901760
  %v4806 = vsub.f32 %v4804, %v4805
  %v4807 = vand.u32 %v4806, 4294901760
  %4808 = vmatpush1.msra.mxu0 %v4807
  %4809 = vmatprep.subr.mxu0 0.0
  %v4810 = vand.u32 %v4672, 4294901760
  %v4811 = vsub.f32 %v4672, %v4810
  %v4812 = vand.u32 %v4811, 4294901760
  %v4813 = vsub.f32 %v4811, %v4812
  %v4814 = vand.u32 %v4813, 4294901760
  %4815 = vmatpush1.msra.mxu0 %v4814
  %4816 = vmatprep.subr.mxu0 0.0
  %v4817 = vand.u32 %v4673, 4294901760
  %v4818 = vsub.f32 %v4673, %v4817
  %v4819 = vand.u32 %v4818, 4294901760
  %v4820 = vsub.f32 %v4818, %v4819
  %v4821 = vand.u32 %v4820, 4294901760
  %4822 = vmatpush1.msra.mxu0 %v4821
  %4823 = vmatprep.subr.mxu0 0.0
  %v4824 = vand.u32 %v4674, 4294901760
  %v4825 = vsub.f32 %v4674, %v4824
  %v4826 = vand.u32 %v4825, 4294901760
  %v4827 = vsub.f32 %v4825, %v4826
  %v4828 = vand.u32 %v4827, 4294901760
  %4829 = vmatpush1.msra.mxu0 %v4828
  %4830 = vmatprep.subr.mxu0 0.0
  %v4831 = vand.u32 %v4675, 4294901760
  %v4832 = vsub.f32 %v4675, %v4831
  %v4833 = vand.u32 %v4832, 4294901760
  %v4834 = vsub.f32 %v4832, %v4833
  %v4835 = vand.u32 %v4834, 4294901760
  %4836 = vmatpush1.msra.mxu0 %v4835
  %4837 = vmatprep.subr.mxu0 0.0
  %v4838 = vand.u32 %v4676, 4294901760
  %v4839 = vsub.f32 %v4676, %v4838
  %v4840 = vand.u32 %v4839, 4294901760
  %v4841 = vsub.f32 %v4839, %v4840
  %v4842 = vand.u32 %v4841, 4294901760
  %4843 = vmatpush1.msra.mxu0 %v4842
  %4844 = vmatprep.subr.mxu0 0.0
  %v4845 = vand.u32 %v4677, 4294901760
  %v4846 = vsub.f32 %v4677, %v4845
  %v4847 = vand.u32 %v4846, 4294901760
  %v4848 = vsub.f32 %v4846, %v4847
  %v4849 = vand.u32 %v4848, 4294901760
  %4850 = vmatpush1.msra.mxu0 %v4849
  %4851 = vmatprep.subr.mxu0 0.0
  %v4852 = vand.u32 %v4678, 4294901760
  %v4853 = vsub.f32 %v4678, %v4852
  %v4854 = vand.u32 %v4853, 4294901760
  %v4855 = vsub.f32 %v4853, %v4854
  %v4856 = vand.u32 %v4855, 4294901760
  %4857 = vmatpush1.msra.mxu0 %v4856
  %4858 = vmatprep.subr.mxu0 0.0
  %v4859 = vand.u32 %v4679, 4294901760
  %v4860 = vsub.f32 %v4679, %v4859
  %v4861 = vand.u32 %v4860, 4294901760
  %v4862 = vsub.f32 %v4860, %v4861
  %v4863 = vand.u32 %v4862, 4294901760
  %4864 = vmatpush1.msra.mxu0 %v4863
  %4865 = vmatprep.subr.mxu0 0.0
  %v4866 = vand.u32 %v4680, 4294901760
  %v4867 = vsub.f32 %v4680, %v4866
  %v4868 = vand.u32 %v4867, 4294901760
  %v4869 = vsub.f32 %v4867, %v4868
  %v4870 = vand.u32 %v4869, 4294901760
  %4871 = vmatpush1.msra.mxu0 %v4870
  %4872 = vmatprep.subr.mxu0 0.0
  %v4873 = vand.u32 %v4681, 4294901760
  %v4874 = vsub.f32 %v4681, %v4873
  %v4875 = vand.u32 %v4874, 4294901760
  %v4876 = vsub.f32 %v4874, %v4875
  %v4877 = vand.u32 %v4876, 4294901760
  %4878 = vmatpush1.msra.mxu0 %v4877
  %4879 = vmatprep.subr.mxu0 0.0
  %v4880 = vand.u32 %v4682, 4294901760
  %v4881 = vsub.f32 %v4682, %v4880
  %v4882 = vand.u32 %v4881, 4294901760
  %v4883 = vsub.f32 %v4881, %v4882
  %v4884 = vand.u32 %v4883, 4294901760
  %4885 = vmatpush1.msra.mxu0 %v4884
  %4886 = vmatprep.subr.mxu0 0.0
  %4887 = vmatpush1.msra.mxu0 0.0
  %4888 = vmatprep.subr.mxu0 0.0
  %4889 = vmatpush1.msra.mxu0 0.0
  %4890 = vmatprep.subr.mxu0 0.0
  %4891 = vmatpush1.msra.mxu0 0.0
  %4892 = vmatprep.subr.mxu0 0.0
  %4893 = vmatpush1.msra.mxu0 0.0
  %4894 = vmatprep.subr.mxu0 0.0
  %4895 = vmatpush1.msra.mxu0 0.0
  %4896 = vmatprep.subr.mxu0 0.0
  %4897 = vmatpush1.msra.mxu0 0.0
  %4898 = vmatprep.subr.mxu0 0.0
  %4899 = vmatpush1.msra.mxu0 0.0
  %4900 = vmatprep.subr.mxu0 0.0
  %4901 = vmatpush1.msra.mxu0 0.0
  %4902 = vmatprep.subr.mxu0 0.0
  %4903 = vmatpush1.msra.mxu0 0.0
  %4904 = vmatprep.subr.mxu0 0.0
  %4905 = vmatpush1.msra.mxu0 0.0
  %4906 = vmatprep.subr.mxu0 0.0
  %4907 = vmatpush1.msra.mxu0 0.0
  %4908 = vmatprep.subr.mxu0 0.0
  %4909 = vmatpush1.msra.mxu0 0.0
  %4910 = vmatprep.subr.mxu0 0.0
  %4911 = vmatpush1.msra.mxu0 0.0
  %4912 = vmatprep.subr.mxu0 0.0
  %4913 = vmatpush1.msra.mxu0 0.0
  %4914 = vmatprep.subr.mxu0 0.0
  %4915 = vmatpush1.msra.mxu0 0.0
  %4916 = vmatprep.subr.mxu0 0.0
  %4917 = vmatpush1.msra.mxu0 0.0
  %4918 = vmatprep.mubr.f32.mxu0 0.0
  %v4919 = vand.u32 %v4665, 4294901760
  %4920 = vmatmul.mubr.f32.gmra.mrb[0].mxu0 %v4919
  %v4921 = vpop.f32.mrb[0].mxu0
  %v4922 = vadd.f32 %v4771, %v4921
  %v4923 = vpop.f32.mrb[0].mxu0
  %4924 = vdwg.mxu0
  %4925 = vmatprep.subr.mxu0 0.0
  %v4926 = vand.u32 %v4667, 4294901760
  %v4927 = vsub.f32 %v4667, %v4926
  %4928 = vmatpush1.msra.mxu0 %v4927
  %4929 = vmatprep.subr.mxu0 0.0
  %v4930 = vand.u32 %v4668, 4294901760
  %v4931 = vsub.f32 %v4668, %v4930
  %4932 = vmatpush1.msra.mxu0 %v4931
  %4933 = vmatprep.subr.mxu0 0.0
  %v4934 = vand.u32 %v4669, 4294901760
  %v4935 = vsub.f32 %v4669, %v4934
  %4936 = vmatpush1.msra.mxu0 %v4935
  %4937 = vmatprep.subr.mxu0 0.0
  %v4938 = vand.u32 %v4670, 4294901760
  %v4939 = vsub.f32 %v4670, %v4938
  %4940 = vmatpush1.msra.mxu0 %v4939
  %4941 = vmatprep.subr.mxu0 0.0
  %v4942 = vand.u32 %v4671, 4294901760
  %v4943 = vsub.f32 %v4671, %v4942
  %4944 = vmatpush1.msra.mxu0 %v4943
  %4945 = vmatprep.subr.mxu0 0.0
  %v4946 = vand.u32 %v4672, 4294901760
  %v4947 = vsub.f32 %v4672, %v4946
  %4948 = vmatpush1.msra.mxu0 %v4947
  %4949 = vmatprep.subr.mxu0 0.0
  %v4950 = vand.u32 %v4673, 4294901760
  %v4951 = vsub.f32 %v4673, %v4950
  %4952 = vmatpush1.msra.mxu0 %v4951
  %4953 = vmatprep.subr.mxu0 0.0
  %v4954 = vand.u32 %v4674, 4294901760
  %v4955 = vsub.f32 %v4674, %v4954
  %4956 = vmatpush1.msra.mxu0 %v4955
  %4957 = vmatprep.subr.mxu0 0.0
  %v4958 = vand.u32 %v4675, 4294901760
  %v4959 = vsub.f32 %v4675, %v4958
  %4960 = vmatpush1.msra.mxu0 %v4959
  %4961 = vmatprep.subr.mxu0 0.0
  %v4962 = vand.u32 %v4676, 4294901760
  %v4963 = vsub.f32 %v4676, %v4962
  %4964 = vmatpush1.msra.mxu0 %v4963
  %4965 = vmatprep.subr.mxu0 0.0
  %v4966 = vand.u32 %v4677, 4294901760
  %v4967 = vsub.f32 %v4677, %v4966
  %4968 = vmatpush1.msra.mxu0 %v4967
  %4969 = vmatprep.subr.mxu0 0.0
  %v4970 = vand.u32 %v4678, 4294901760
  %v4971 = vsub.f32 %v4678, %v4970
  %4972 = vmatpush1.msra.mxu0 %v4971
  %4973 = vmatprep.subr.mxu0 0.0
  %v4974 = vand.u32 %v4679, 4294901760
  %v4975 = vsub.f32 %v4679, %v4974
  %4976 = vmatpush1.msra.mxu0 %v4975
  %4977 = vmatprep.subr.mxu0 0.0
  %v4978 = vand.u32 %v4680, 4294901760
  %v4979 = vsub.f32 %v4680, %v4978
  %4980 = vmatpush1.msra.mxu0 %v4979
  %4981 = vmatprep.subr.mxu0 0.0
  %v4982 = vand.u32 %v4681, 4294901760
  %v4983 = vsub.f32 %v4681, %v4982
  %4984 = vmatpush1.msra.mxu0 %v4983
  %4985 = vmatprep.subr.mxu0 0.0
  %v4986 = vand.u32 %v4682, 4294901760
  %v4987 = vsub.f32 %v4682, %v4986
  %4988 = vmatpush1.msra.mxu0 %v4987
  %4989 = vmatprep.subr.mxu0 0.0
  %4990 = vmatpush1.msra.mxu0 0.0
  %4991 = vmatprep.subr.mxu0 0.0
  %4992 = vmatpush1.msra.mxu0 0.0
  %4993 = vmatprep.subr.mxu0 0.0
  %4994 = vmatpush1.msra.mxu0 0.0
  %4995 = vmatprep.subr.mxu0 0.0
  %4996 = vmatpush1.msra.mxu0 0.0
  %4997 = vmatprep.subr.mxu0 0.0
  %4998 = vmatpush1.msra.mxu0 0.0
  %4999 = vmatprep.subr.mxu0 0.0
  %5000 = vmatpush1.msra.mxu0 0.0
  %5001 = vmatprep.subr.mxu0 0.0
  %5002 = vmatpush1.msra.mxu0 0.0
  %5003 = vmatprep.subr.mxu0 0.0
  %5004 = vmatpush1.msra.mxu0 0.0
  %5005 = vmatprep.subr.mxu0 0.0
  %5006 = vmatpush1.msra.mxu0 0.0
  %5007 = vmatprep.subr.mxu0 0.0
  %5008 = vmatpush1.msra.mxu0 0.0
  %5009 = vmatprep.subr.mxu0 0.0
  %5010 = vmatpush1.msra.mxu0 0.0
  %5011 = vmatprep.subr.mxu0 0.0
  %5012 = vmatpush1.msra.mxu0 0.0
  %5013 = vmatprep.subr.mxu0 0.0
  %5014 = vmatpush1.msra.mxu0 0.0
  %5015 = vmatprep.subr.mxu0 0.0
  %5016 = vmatpush1.msra.mxu0 0.0
  %5017 = vmatprep.subr.mxu0 0.0
  %5018 = vmatpush1.msra.mxu0 0.0
  %5019 = vmatprep.subr.mxu0 0.0
  %5020 = vmatpush1.msra.mxu0 0.0
  %5021 = vmatprep.mubr.f32.mxu0 0.0
  %v5022 = vand.u32 %v4665, 4294901760
  %v5023 = vsub.f32 %v4665, %v5022
  %5024 = vmatmul.mubr.f32.gmra.mrb[0].mxu0 %v5023
  %v5025 = vpop.f32.mrb[0].mxu0
  %v5026 = vadd.f32 %v4922, %v5025
  %v5027 = vpop.f32.mrb[0].mxu0
  %5028 = vdwg.mxu0
  %5029 = vmatprep.subr.mxu0 0.0
  %v5030 = vand.u32 %v4667, 4294901760
  %5031 = vmatpush1.msra.mxu0 %v5030
  %5032 = vmatprep.subr.mxu0 0.0
  %v5033 = vand.u32 %v4668, 4294901760
  %5034 = vmatpush1.msra.mxu0 %v5033
  %5035 = vmatprep.subr.mxu0 0.0
  %v5036 = vand.u32 %v4669, 4294901760
  %5037 = vmatpush1.msra.mxu0 %v5036
  %5038 = vmatprep.subr.mxu0 0.0
  %v5039 = vand.u32 %v4670, 4294901760
  %5040 = vmatpush1.msra.mxu0 %v5039
  %5041 = vmatprep.subr.mxu0 0.0
  %v5042 = vand.u32 %v4671, 4294901760
  %5043 = vmatpush1.msra.mxu0 %v5042
  %5044 = vmatprep.subr.mxu0 0.0
  %v5045 = vand.u32 %v4672, 4294901760
  %5046 = vmatpush1.msra.mxu0 %v5045
  %5047 = vmatprep.subr.mxu0 0.0
  %v5048 = vand.u32 %v4673, 4294901760
  %5049 = vmatpush1.msra.mxu0 %v5048
  %5050 = vmatprep.subr.mxu0 0.0
  %v5051 = vand.u32 %v4674, 4294901760
  %5052 = vmatpush1.msra.mxu0 %v5051
  %5053 = vmatprep.subr.mxu0 0.0
  %v5054 = vand.u32 %v4675, 4294901760
  %5055 = vmatpush1.msra.mxu0 %v5054
  %5056 = vmatprep.subr.mxu0 0.0
  %v5057 = vand.u32 %v4676, 4294901760
  %5058 = vmatpush1.msra.mxu0 %v5057
  %5059 = vmatprep.subr.mxu0 0.0
  %v5060 = vand.u32 %v4677, 4294901760
  %5061 = vmatpush1.msra.mxu0 %v5060
  %5062 = vmatprep.subr.mxu0 0.0
  %v5063 = vand.u32 %v4678, 4294901760
  %5064 = vmatpush1.msra.mxu0 %v5063
  %5065 = vmatprep.subr.mxu0 0.0
  %v5066 = vand.u32 %v4679, 4294901760
  %5067 = vmatpush1.msra.mxu0 %v5066
  %5068 = vmatprep.subr.mxu0 0.0
  %v5069 = vand.u32 %v4680, 4294901760
  %5070 = vmatpush1.msra.mxu0 %v5069
  %5071 = vmatprep.subr.mxu0 0.0
  %v5072 = vand.u32 %v4681, 4294901760
  %5073 = vmatpush1.msra.mxu0 %v5072
  %5074 = vmatprep.subr.mxu0 0.0
  %v5075 = vand.u32 %v4682, 4294901760
  %5076 = vmatpush1.msra.mxu0 %v5075
  %5077 = vmatprep.subr.mxu0 0.0
  %5078 = vmatpush1.msra.mxu0 0.0
  %5079 = vmatprep.subr.mxu0 0.0
  %5080 = vmatpush1.msra.mxu0 0.0
  %5081 = vmatprep.subr.mxu0 0.0
  %5082 = vmatpush1.msra.mxu0 0.0
  %5083 = vmatprep.subr.mxu0 0.0
  %5084 = vmatpush1.msra.mxu0 0.0
  %5085 = vmatprep.subr.mxu0 0.0
  %5086 = vmatpush1.msra.mxu0 0.0
  %5087 = vmatprep.subr.mxu0 0.0
  %5088 = vmatpush1.msra.mxu0 0.0
  %5089 = vmatprep.subr.mxu0 0.0
  %5090 = vmatpush1.msra.mxu0 0.0
  %5091 = vmatprep.subr.mxu0 0.0
  %5092 = vmatpush1.msra.mxu0 0.0
  %5093 = vmatprep.subr.mxu0 0.0
  %5094 = vmatpush1.msra.mxu0 0.0
  %5095 = vmatprep.subr.mxu0 0.0
  %5096 = vmatpush1.msra.mxu0 0.0
  %5097 = vmatprep.subr.mxu0 0.0
  %5098 = vmatpush1.msra.mxu0 0.0
  %5099 = vmatprep.subr.mxu0 0.0
  %5100 = vmatpush1.msra.mxu0 0.0
  %5101 = vmatprep.subr.mxu0 0.0
  %5102 = vmatpush1.msra.mxu0 0.0
  %5103 = vmatprep.subr.mxu0 0.0
  %5104 = vmatpush1.msra.mxu0 0.0
  %5105 = vmatprep.subr.mxu0 0.0
  %5106 = vmatpush1.msra.mxu0 0.0
  %5107 = vmatprep.subr.mxu0 0.0
  %5108 = vmatpush1.msra.mxu0 0.0
  %5109 = vmatprep.mubr.f32.mxu0 0.0
  %v5110 = vand.u32 %v4665, 4294901760
  %v5111 = vsub.f32 %v4665, %v5110
  %v5112 = vand.u32 %v5111, 4294901760
  %5113 = vmatmul.mubr.f32.gmra.mrb[0].mxu0 %v5112
  %v5114 = vpop.f32.mrb[0].mxu0
  %v5115 = vadd.f32 %v5026, %v5114
  %v5116 = vpop.f32.mrb[0].mxu0
  %5117 = vdwg.mxu0
  %5118 = vmatprep.subr.mxu0 0.0
  %v5119 = vand.u32 %v4667, 4294901760
  %v5120 = vsub.f32 %v4667, %v5119
  %v5121 = vand.u32 %v5120, 4294901760
  %5122 = vmatpush1.msra.mxu0 %v5121
  %5123 = vmatprep.subr.mxu0 0.0
  %v5124 = vand.u32 %v4668, 4294901760
  %v5125 = vsub.f32 %v4668, %v5124
  %v5126 = vand.u32 %v5125, 4294901760
  %5127 = vmatpush1.msra.mxu0 %v5126
  %5128 = vmatprep.subr.mxu0 0.0
  %v5129 = vand.u32 %v4669, 4294901760
  %v5130 = vsub.f32 %v4669, %v5129
  %v5131 = vand.u32 %v5130, 4294901760
  %5132 = vmatpush1.msra.mxu0 %v5131
  %5133 = vmatprep.subr.mxu0 0.0
  %v5134 = vand.u32 %v4670, 4294901760
  %v5135 = vsub.f32 %v4670, %v5134
  %v5136 = vand.u32 %v5135, 4294901760
  %5137 = vmatpush1.msra.mxu0 %v5136
  %5138 = vmatprep.subr.mxu0 0.0
  %v5139 = vand.u32 %v4671, 4294901760
  %v5140 = vsub.f32 %v4671, %v5139
  %v5141 = vand.u32 %v5140, 4294901760
  %5142 = vmatpush1.msra.mxu0 %v5141
  %5143 = vmatprep.subr.mxu0 0.0
  %v5144 = vand.u32 %v4672, 4294901760
  %v5145 = vsub.f32 %v4672, %v5144
  %v5146 = vand.u32 %v5145, 4294901760
  %5147 = vmatpush1.msra.mxu0 %v5146
  %5148 = vmatprep.subr.mxu0 0.0
  %v5149 = vand.u32 %v4673, 4294901760
  %v5150 = vsub.f32 %v4673, %v5149
  %v5151 = vand.u32 %v5150, 4294901760
  %5152 = vmatpush1.msra.mxu0 %v5151
  %5153 = vmatprep.subr.mxu0 0.0
  %v5154 = vand.u32 %v4674, 4294901760
  %v5155 = vsub.f32 %v4674, %v5154
  %v5156 = vand.u32 %v5155, 4294901760
  %5157 = vmatpush1.msra.mxu0 %v5156
  %5158 = vmatprep.subr.mxu0 0.0
  %v5159 = vand.u32 %v4675, 4294901760
  %v5160 = vsub.f32 %v4675, %v5159
  %v5161 = vand.u32 %v5160, 4294901760
  %5162 = vmatpush1.msra.mxu0 %v5161
  %5163 = vmatprep.subr.mxu0 0.0
  %v5164 = vand.u32 %v4676, 4294901760
  %v5165 = vsub.f32 %v4676, %v5164
  %v5166 = vand.u32 %v5165, 4294901760
  %5167 = vmatpush1.msra.mxu0 %v5166
  %5168 = vmatprep.subr.mxu0 0.0
  %v5169 = vand.u32 %v4677, 4294901760
  %v5170 = vsub.f32 %v4677, %v5169
  %v5171 = vand.u32 %v5170, 4294901760
  %5172 = vmatpush1.msra.mxu0 %v5171
  %5173 = vmatprep.subr.mxu0 0.0
  %v5174 = vand.u32 %v4678, 4294901760
  %v5175 = vsub.f32 %v4678, %v5174
  %v5176 = vand.u32 %v5175, 4294901760
  %5177 = vmatpush1.msra.mxu0 %v5176
  %5178 = vmatprep.subr.mxu0 0.0
  %v5179 = vand.u32 %v4679, 4294901760
  %v5180 = vsub.f32 %v4679, %v5179
  %v5181 = vand.u32 %v5180, 4294901760
  %5182 = vmatpush1.msra.mxu0 %v5181
  %5183 = vmatprep.subr.mxu0 0.0
  %v5184 = vand.u32 %v4680, 4294901760
  %v5185 = vsub.f32 %v4680, %v5184
  %v5186 = vand.u32 %v5185, 4294901760
  %5187 = vmatpush1.msra.mxu0 %v5186
  %5188 = vmatprep.subr.mxu0 0.0
  %v5189 = vand.u32 %v4681, 4294901760
  %v5190 = vsub.f32 %v4681, %v5189
  %v5191 = vand.u32 %v5190, 4294901760
  %5192 = vmatpush1.msra.mxu0 %v5191
  %5193 = vmatprep.subr.mxu0 0.0
  %v5194 = vand.u32 %v4682, 4294901760
  %v5195 = vsub.f32 %v4682, %v5194
  %v5196 = vand.u32 %v5195, 4294901760
  %5197 = vmatpush1.msra.mxu0 %v5196
  %5198 = vmatprep.subr.mxu0 0.0
  %5199 = vmatpush1.msra.mxu0 0.0
  %5200 = vmatprep.subr.mxu0 0.0
  %5201 = vmatpush1.msra.mxu0 0.0
  %5202 = vmatprep.subr.mxu0 0.0
  %5203 = vmatpush1.msra.mxu0 0.0
  %5204 = vmatprep.subr.mxu0 0.0
  %5205 = vmatpush1.msra.mxu0 0.0
  %5206 = vmatprep.subr.mxu0 0.0
  %5207 = vmatpush1.msra.mxu0 0.0
  %5208 = vmatprep.subr.mxu0 0.0
  %5209 = vmatpush1.msra.mxu0 0.0
  %5210 = vmatprep.subr.mxu0 0.0
  %5211 = vmatpush1.msra.mxu0 0.0
  %5212 = vmatprep.subr.mxu0 0.0
  %5213 = vmatpush1.msra.mxu0 0.0
  %5214 = vmatprep.subr.mxu0 0.0
  %5215 = vmatpush1.msra.mxu0 0.0
  %5216 = vmatprep.subr.mxu0 0.0
  %5217 = vmatpush1.msra.mxu0 0.0
  %5218 = vmatprep.subr.mxu0 0.0
  %5219 = vmatpush1.msra.mxu0 0.0
  %5220 = vmatprep.subr.mxu0 0.0
  %5221 = vmatpush1.msra.mxu0 0.0
  %5222 = vmatprep.subr.mxu0 0.0
  %5223 = vmatpush1.msra.mxu0 0.0
  %5224 = vmatprep.subr.mxu0 0.0
  %5225 = vmatpush1.msra.mxu0 0.0
  %5226 = vmatprep.subr.mxu0 0.0
  %5227 = vmatpush1.msra.mxu0 0.0
  %5228 = vmatprep.subr.mxu0 0.0
  %5229 = vmatpush1.msra.mxu0 0.0
  %5230 = vmatprep.mubr.f32.mxu0 0.0
  %v5231 = vand.u32 %v4665, 4294901760
  %5232 = vmatmul.mubr.f32.gmra.mrb[0].mxu0 %v5231
  %v5233 = vpop.f32.mrb[0].mxu0
  %v5234 = vadd.f32 %v5115, %v5233
  %v5235 = vpop.f32.mrb[0].mxu0
  %5236 = vdwg.mxu0
  %5237 = vmatprep.subr.mxu0 0.0
  %v5238 = vand.u32 %v4667, 4294901760
  %5239 = vmatpush1.msra.mxu0 %v5238
  %5240 = vmatprep.subr.mxu0 0.0
  %v5241 = vand.u32 %v4668, 4294901760
  %5242 = vmatpush1.msra.mxu0 %v5241
  %5243 = vmatprep.subr.mxu0 0.0
  %v5244 = vand.u32 %v4669, 4294901760
  %5245 = vmatpush1.msra.mxu0 %v5244
  %5246 = vmatprep.subr.mxu0 0.0
  %v5247 = vand.u32 %v4670, 4294901760
  %5248 = vmatpush1.msra.mxu0 %v5247
  %5249 = vmatprep.subr.mxu0 0.0
  %v5250 = vand.u32 %v4671, 4294901760
  %5251 = vmatpush1.msra.mxu0 %v5250
  %5252 = vmatprep.subr.mxu0 0.0
  %v5253 = vand.u32 %v4672, 4294901760
  %5254 = vmatpush1.msra.mxu0 %v5253
  %5255 = vmatprep.subr.mxu0 0.0
  %v5256 = vand.u32 %v4673, 4294901760
  %5257 = vmatpush1.msra.mxu0 %v5256
  %5258 = vmatprep.subr.mxu0 0.0
  %v5259 = vand.u32 %v4674, 4294901760
  %5260 = vmatpush1.msra.mxu0 %v5259
  %5261 = vmatprep.subr.mxu0 0.0
  %v5262 = vand.u32 %v4675, 4294901760
  %5263 = vmatpush1.msra.mxu0 %v5262
  %5264 = vmatprep.subr.mxu0 0.0
  %v5265 = vand.u32 %v4676, 4294901760
  %5266 = vmatpush1.msra.mxu0 %v5265
  %5267 = vmatprep.subr.mxu0 0.0
  %v5268 = vand.u32 %v4677, 4294901760
  %5269 = vmatpush1.msra.mxu0 %v5268
  %5270 = vmatprep.subr.mxu0 0.0
  %v5271 = vand.u32 %v4678, 4294901760
  %5272 = vmatpush1.msra.mxu0 %v5271
  %5273 = vmatprep.subr.mxu0 0.0
  %v5274 = vand.u32 %v4679, 4294901760
  %5275 = vmatpush1.msra.mxu0 %v5274
  %5276 = vmatprep.subr.mxu0 0.0
  %v5277 = vand.u32 %v4680, 4294901760
  %5278 = vmatpush1.msra.mxu0 %v5277
  %5279 = vmatprep.subr.mxu0 0.0
  %v5280 = vand.u32 %v4681, 4294901760
  %5281 = vmatpush1.msra.mxu0 %v5280
  %5282 = vmatprep.subr.mxu0 0.0
  %v5283 = vand.u32 %v4682, 4294901760
  %5284 = vmatpush1.msra.mxu0 %v5283
  %5285 = vmatprep.subr.mxu0 0.0
  %5286 = vmatpush1.msra.mxu0 0.0
  %5287 = vmatprep.subr.mxu0 0.0
  %5288 = vmatpush1.msra.mxu0 0.0
  %5289 = vmatprep.subr.mxu0 0.0
  %5290 = vmatpush1.msra.mxu0 0.0
  %5291 = vmatprep.subr.mxu0 0.0
  %5292 = vmatpush1.msra.mxu0 0.0
  %5293 = vmatprep.subr.mxu0 0.0
  %5294 = vmatpush1.msra.mxu0 0.0
  %5295 = vmatprep.subr.mxu0 0.0
  %5296 = vmatpush1.msra.mxu0 0.0
  %5297 = vmatprep.subr.mxu0 0.0
  %5298 = vmatpush1.msra.mxu0 0.0
  %5299 = vmatprep.subr.mxu0 0.0
  %5300 = vmatpush1.msra.mxu0 0.0
  %5301 = vmatprep.subr.mxu0 0.0
  %5302 = vmatpush1.msra.mxu0 0.0
  %5303 = vmatprep.subr.mxu0 0.0
  %5304 = vmatpush1.msra.mxu0 0.0
  %5305 = vmatprep.subr.mxu0 0.0
  %5306 = vmatpush1.msra.mxu0 0.0
  %5307 = vmatprep.subr.mxu0 0.0
  %5308 = vmatpush1.msra.mxu0 0.0
  %5309 = vmatprep.subr.mxu0 0.0
  %5310 = vmatpush1.msra.mxu0 0.0
  %5311 = vmatprep.subr.mxu0 0.0
  %5312 = vmatpush1.msra.mxu0 0.0
  %5313 = vmatprep.subr.mxu0 0.0
  %5314 = vmatpush1.msra.mxu0 0.0
  %5315 = vmatprep.subr.mxu0 0.0
  %5316 = vmatpush1.msra.mxu0 0.0
  %5317 = vmatprep.mubr.f32.mxu0 0.0
  %v5318 = vand.u32 %v4665, 4294901760
  %5319 = vmatmul.mubr.f32.gmra.mrb[0].mxu0 %v5318
  %v5320 = vpop.f32.mrb[0].mxu0
  %v5321 = vadd.f32 %v5234, %v5320
  %v5322 = vpop.f32.mrb[0].mxu0
  %5323 = vdwg.mxu0
  %v5324 = vadd.f32 %v4662, %v5321
  %v5325 = vmul.f32 %v5324, %v5324
  %v5326 = vld [vmem:[%s3] sm:$0xff]
  %v5327 = vld [vmem:[%s3 + $0x8] sm:$0xff]
  %v5328 = vld [vmem:[%s3 + $0x10] sm:$0xff]
  %v5329 = vld [vmem:[%s3 + $0x18] sm:$0xff]
  %v5330 = vld [vmem:[%s3 + $0x20] sm:$0xff]
  %v5331 = vld [vmem:[%s3 + $0x28] sm:$0xff]
  %v5332 = vld [vmem:[%s3 + $0x30] sm:$0xff]
  %v5333 = vld [vmem:[%s3 + $0x38] sm:$0xff]
  %v5334 = vld [vmem:[%s3 + $0x40] sm:$0xff]
  %v5335 = vld [vmem:[%s3 + $0x48] sm:$0xff]
  %v5336 = vld [vmem:[%s3 + $0x50] sm:$0xff]
  %v5337 = vld [vmem:[%s3 + $0x58] sm:$0xff]
  %v5338 = vld [vmem:[%s3 + $0x60] sm:$0xff]
  %v5339 = vld [vmem:[%s3 + $0x68] sm:$0xff]
  %v5340 = vld [vmem:[%s3 + $0x70] sm:$0xff]
  %v5341 = vld [vmem:[%s3 + $0x78] sm:$0xff]
  %5342 = vmatprep.subr.mxu0 0.0
  %v5343 = vand.u32 %v5326, 4294901760
  %5344 = vmatpush1.msra.mxu0 %v5343
  %5345 = vmatprep.subr.mxu0 0.0
  %v5346 = vand.u32 %v5327, 4294901760
  %5347 = vmatpush1.msra.mxu0 %v5346
  %5348 = vmatprep.subr.mxu0 0.0
  %v5349 = vand.u32 %v5328, 4294901760
  %5350 = vmatpush1.msra.mxu0 %v5349
  %5351 = vmatprep.subr.mxu0 0.0
  %v5352 = vand.u32 %v5329, 4294901760
  %5353 = vmatpush1.msra.mxu0 %v5352
  %5354 = vmatprep.subr.mxu0 0.0
  %v5355 = vand.u32 %v5330, 4294901760
  %5356 = vmatpush1.msra.mxu0 %v5355
  %5357 = vmatprep.subr.mxu0 0.0
  %v5358 = vand.u32 %v5331, 4294901760
  %5359 = vmatpush1.msra.mxu0 %v5358
  %5360 = vmatprep.subr.mxu0 0.0
  %v5361 = vand.u32 %v5332, 4294901760
  %5362 = vmatpush1.msra.mxu0 %v5361
  %5363 = vmatprep.subr.mxu0 0.0
  %v5364 = vand.u32 %v5333, 4294901760
  %5365 = vmatpush1.msra.mxu0 %v5364
  %5366 = vmatprep.subr.mxu0 0.0
  %v5367 = vand.u32 %v5334, 4294901760
  %5368 = vmatpush1.msra.mxu0 %v5367
  %5369 = vmatprep.subr.mxu0 0.0
  %v5370 = vand.u32 %v5335, 4294901760
  %5371 = vmatpush1.msra.mxu0 %v5370
  %5372 = vmatprep.subr.mxu0 0.0
  %v5373 = vand.u32 %v5336, 4294901760
  %5374 = vmatpush1.msra.mxu0 %v5373
  %5375 = vmatprep.subr.mxu0 0.0
  %v5376 = vand.u32 %v5337, 4294901760
  %5377 = vmatpush1.msra.mxu0 %v5376
  %5378 = vmatprep.subr.mxu0 0.0
  %v5379 = vand.u32 %v5338, 4294901760
  %5380 = vmatpush1.msra.mxu0 %v5379
  %5381 = vmatprep.subr.mxu0 0.0
  %v5382 = vand.u32 %v5339, 4294901760
  %5383 = vmatpush1.msra.mxu0 %v5382
  %5384 = vmatprep.subr.mxu0 0.0
  %v5385 = vand.u32 %v5340, 4294901760
  %5386 = vmatpush1.msra.mxu0 %v5385
  %5387 = vmatprep.subr.mxu0 0.0
  %v5388 = vand.u32 %v5341, 4294901760
  %5389 = vmatpush1.msra.mxu0 %v5388
  %5390 = vmatprep.subr.mxu0 0.0
  %5391 = vmatpush1.msra.mxu0 0.0
  %5392 = vmatprep.subr.mxu0 0.0
  %5393 = vmatpush1.msra.mxu0 0.0
  %5394 = vmatprep.subr.mxu0 0.0
  %5395 = vmatpush1.msra.mxu0 0.0
  %5396 = vmatprep.subr.mxu0 0.0
  %5397 = vmatpush1.msra.mxu0 0.0
  %5398 = vmatprep.subr.mxu0 0.0
  %5399 = vmatpush1.msra.mxu0 0.0
  %5400 = vmatprep.subr.mxu0 0.0
  %5401 = vmatpush1.msra.mxu0 0.0
  %5402 = vmatprep.subr.mxu0 0.0
  %5403 = vmatpush1.msra.mxu0 0.0
  %5404 = vmatprep.subr.mxu0 0.0
  %5405 = vmatpush1.msra.mxu0 0.0
  %5406 = vmatprep.subr.mxu0 0.0
  %5407 = vmatpush1.msra.mxu0 0.0
  %5408 = vmatprep.subr.mxu0 0.0
  %5409 = vmatpush1.msra.mxu0 0.0
  %5410 = vmatprep.subr.mxu0 0.0
  %5411 = vmatpush1.msra.mxu0 0.0
  %5412 = vmatprep.subr.mxu0 0.0
  %5413 = vmatpush1.msra.mxu0 0.0
  %5414 = vmatprep.subr.mxu0 0.0
  %5415 = vmatpush1.msra.mxu0 0.0
  %5416 = vmatprep.subr.mxu0 0.0
  %5417 = vmatpush1.msra.mxu0 0.0
  %5418 = vmatprep.subr.mxu0 0.0
  %5419 = vmatpush1.msra.mxu0 0.0
  %5420 = vmatprep.subr.mxu0 0.0
  %5421 = vmatpush1.msra.mxu0 0.0
  %5422 = vmatprep.mubr.f32.mxu0 0.0
  %v5423 = vand.u32 %v5324, 4294901760
  %v5424 = vsub.f32 %v5324, %v5423
  %v5425 = vand.u32 %v5424, 4294901760
  %v5426 = vsub.f32 %v5424, %v5425
  %v5427 = vand.u32 %v5426, 4294901760
  %5428 = vmatmul.mubr.f32.gmra.mrb[0].mxu0 %v5427
  %v5429 = vpop.f32.mrb[0].mxu0
  %v5430 = vadd.f32 0.0, %v5429
  %v5431 = vpop.f32.mrb[0].mxu0
  %5432 = vmatprep.mubr.f32.mxu0 0.0
  %v5433 = vand.u32 %v5325, 4294901760
  %v5434 = vsub.f32 %v5325, %v5433
  %v5435 = vand.u32 %v5434, 4294901760
  %v5436 = vsub.f32 %v5434, %v5435
  %v5437 = vand.u32 %v5436, 4294901760
  %5438 = vmatmul.mubr.f32.gmra.mrb[0].mxu0 %v5437
  %v5439 = vpop.f32.mrb[0].mxu0
  %v5440 = vadd.f32 0.0, %v5439
  %v5441 = vpop.f32.mrb[0].mxu0
  %5442 = vdwg.mxu0
  %5443 = vmatprep.subr.mxu0 0.0
  %v5444 = vand.u32 %v5326, 4294901760
  %v5445 = vsub.f32 %v5326, %v5444
  %v5446 = vand.u32 %v5445, 4294901760
  %v5447 = vsub.f32 %v5445, %v5446
  %v5448 = vand.u32 %v5447, 4294901760
  %5449 = vmatpush1.msra.mxu0 %v5448
  %5450 = vmatprep.subr.mxu0 0.0
  %v5451 = vand.u32 %v5327, 4294901760
  %v5452 = vsub.f32 %v5327, %v5451
  %v5453 = vand.u32 %v5452, 4294901760
  %v5454 = vsub.f32 %v5452, %v5453
  %v5455 = vand.u32 %v5454, 4294901760
  %5456 = vmatpush1.msra.mxu0 %v5455
  %5457 = vmatprep.subr.mxu0 0.0
  %v5458 = vand.u32 %v5328, 4294901760
  %v5459 = vsub.f32 %v5328, %v5458
  %v5460 = vand.u32 %v5459, 4294901760
  %v5461 = vsub.f32 %v5459, %v5460
  %v5462 = vand.u32 %v5461, 4294901760
  %5463 = vmatpush1.msra.mxu0 %v5462
  %5464 = vmatprep.subr.mxu0 0.0
  %v5465 = vand.u32 %v5329, 4294901760
  %v5466 = vsub.f32 %v5329, %v5465
  %v5467 = vand.u32 %v5466, 4294901760
  %v5468 = vsub.f32 %v5466, %v5467
  %v5469 = vand.u32 %v5468, 4294901760
  %5470 = vmatpush1.msra.mxu0 %v5469
  %5471 = vmatprep.subr.mxu0 0.0
  %v5472 = vand.u32 %v5330, 4294901760
  %v5473 = vsub.f32 %v5330, %v5472
  %v5474 = vand.u32 %v5473, 4294901760
  %v5475 = vsub.f32 %v5473, %v5474
  %v5476 = vand.u32 %v5475, 4294901760
  %5477 = vmatpush1.msra.mxu0 %v5476
  %5478 = vmatprep.subr.mxu0 0.0
  %v5479 = vand.u32 %v5331, 4294901760
  %v5480 = vsub.f32 %v5331, %v5479
  %v5481 = vand.u32 %v5480, 4294901760
  %v5482 = vsub.f32 %v5480, %v5481
  %v5483 = vand.u32 %v5482, 4294901760
  %5484 = vmatpush1.msra.mxu0 %v5483
  %5485 = vmatprep.subr.mxu0 0.0
  %v5486 = vand.u32 %v5332, 4294901760
  %v5487 = vsub.f32 %v5332, %v5486
  %v5488 = vand.u32 %v5487, 4294901760
  %v5489 = vsub.f32 %v5487, %v5488
  %v5490 = vand.u32 %v5489, 4294901760
  %5491 = vmatpush1.msra.mxu0 %v5490
  %5492 = vmatprep.subr.mxu0 0.0
  %v5493 = vand.u32 %v5333, 4294901760
  %v5494 = vsub.f32 %v5333, %v5493
  %v5495 = vand.u32 %v5494, 4294901760
  %v5496 = vsub.f32 %v5494, %v5495
  %v5497 = vand.u32 %v5496, 4294901760
  %5498 = vmatpush1.msra.mxu0 %v5497
  %5499 = vmatprep.subr.mxu0 0.0
  %v5500 = vand.u32 %v5334, 4294901760
  %v5501 = vsub.f32 %v5334, %v5500
  %v5502 = vand.u32 %v5501, 4294901760
  %v5503 = vsub.f32 %v5501, %v5502
  %v5504 = vand.u32 %v5503, 4294901760
  %5505 = vmatpush1.msra.mxu0 %v5504
  %5506 = vmatprep.subr.mxu0 0.0
  %v5507 = vand.u32 %v5335, 4294901760
  %v5508 = vsub.f32 %v5335, %v5507
  %v5509 = vand.u32 %v5508, 4294901760
  %v5510 = vsub.f32 %v5508, %v5509
  %v5511 = vand.u32 %v5510, 4294901760
  %5512 = vmatpush1.msra.mxu0 %v5511
  %5513 = vmatprep.subr.mxu0 0.0
  %v5514 = vand.u32 %v5336, 4294901760
  %v5515 = vsub.f32 %v5336, %v5514
  %v5516 = vand.u32 %v5515, 4294901760
  %v5517 = vsub.f32 %v5515, %v5516
  %v5518 = vand.u32 %v5517, 4294901760
  %5519 = vmatpush1.msra.mxu0 %v5518
  %5520 = vmatprep.subr.mxu0 0.0
  %v5521 = vand.u32 %v5337, 4294901760
  %v5522 = vsub.f32 %v5337, %v5521
  %v5523 = vand.u32 %v5522, 4294901760
  %v5524 = vsub.f32 %v5522, %v5523
  %v5525 = vand.u32 %v5524, 4294901760
  %5526 = vmatpush1.msra.mxu0 %v5525
  %5527 = vmatprep.subr.mxu0 0.0
  %v5528 = vand.u32 %v5338, 4294901760
  %v5529 = vsub.f32 %v5338, %v5528
  %v5530 = vand.u32 %v5529, 4294901760
  %v5531 = vsub.f32 %v5529, %v5530
  %v5532 = vand.u32 %v5531, 4294901760
  %5533 = vmatpush1.msra.mxu0 %v5532
  %5534 = vmatprep.subr.mxu0 0.0
  %v5535 = vand.u32 %v5339, 4294901760
  %v5536 = vsub.f32 %v5339, %v5535
  %v5537 = vand.u32 %v5536, 4294901760
  %v5538 = vsub.f32 %v5536, %v5537
  %v5539 = vand.u32 %v5538, 4294901760
  %5540 = vmatpush1.msra.mxu0 %v5539
  %5541 = vmatprep.subr.mxu0 0.0
  %v5542 = vand.u32 %v5340, 4294901760
  %v5543 = vsub.f32 %v5340, %v5542
  %v5544 = vand.u32 %v5543, 4294901760
  %v5545 = vsub.f32 %v5543, %v5544
  %v5546 = vand.u32 %v5545, 4294901760
  %5547 = vmatpush1.msra.mxu0 %v5546
  %5548 = vmatprep.subr.mxu0 0.0
  %v5549 = vand.u32 %v5341, 4294901760
  %v5550 = vsub.f32 %v5341, %v5549
  %v5551 = vand.u32 %v5550, 4294901760
  %v5552 = vsub.f32 %v5550, %v5551
  %v5553 = vand.u32 %v5552, 4294901760
  %5554 = vmatpush1.msra.mxu0 %v5553
  %5555 = vmatprep.subr.mxu0 0.0
  %5556 = vmatpush1.msra.mxu0 0.0
  %5557 = vmatprep.subr.mxu0 0.0
  %5558 = vmatpush1.msra.mxu0 0.0
  %5559 = vmatprep.subr.mxu0 0.0
  %5560 = vmatpush1.msra.mxu0 0.0
  %5561 = vmatprep.subr.mxu0 0.0
  %5562 = vmatpush1.msra.mxu0 0.0
  %5563 = vmatprep.subr.mxu0 0.0
  %5564 = vmatpush1.msra.mxu0 0.0
  %5565 = vmatprep.subr.mxu0 0.0
  %5566 = vmatpush1.msra.mxu0 0.0
  %5567 = vmatprep.subr.mxu0 0.0
  %5568 = vmatpush1.msra.mxu0 0.0
  %5569 = vmatprep.subr.mxu0 0.0
  %5570 = vmatpush1.msra.mxu0 0.0
  %5571 = vmatprep.subr.mxu0 0.0
  %5572 = vmatpush1.msra.mxu0 0.0
  %5573 = vmatprep.subr.mxu0 0.0
  %5574 = vmatpush1.msra.mxu0 0.0
  %5575 = vmatprep.subr.mxu0 0.0
  %5576 = vmatpush1.msra.mxu0 0.0
  %5577 = vmatprep.subr.mxu0 0.0
  %5578 = vmatpush1.msra.mxu0 0.0
  %5579 = vmatprep.subr.mxu0 0.0
  %5580 = vmatpush1.msra.mxu0 0.0
  %5581 = vmatprep.subr.mxu0 0.0
  %5582 = vmatpush1.msra.mxu0 0.0
  %5583 = vmatprep.subr.mxu0 0.0
  %5584 = vmatpush1.msra.mxu0 0.0
  %5585 = vmatprep.subr.mxu0 0.0
  %5586 = vmatpush1.msra.mxu0 0.0
  %5587 = vmatprep.mubr.f32.mxu0 0.0
  %v5588 = vand.u32 %v5324, 4294901760
  %5589 = vmatmul.mubr.f32.gmra.mrb[0].mxu0 %v5588
  %v5590 = vpop.f32.mrb[0].mxu0
  %v5591 = vadd.f32 %v5430, %v5590
  %v5592 = vpop.f32.mrb[0].mxu0
  %5593 = vmatprep.mubr.f32.mxu0 0.0
  %v5594 = vand.u32 %v5325, 4294901760
  %5595 = vmatmul.mubr.f32.gmra.mrb[0].mxu0 %v5594
  %v5596 = vpop.f32.mrb[0].mxu0
  %v5597 = vadd.f32 %v5440, %v5596
  %v5598 = vpop.f32.mrb[0].mxu0
  %5599 = vdwg.mxu0
  %5600 = vmatprep.subr.mxu0 0.0
  %v5601 = vand.u32 %v5326, 4294901760
  %v5602 = vsub.f32 %v5326, %v5601
  %5603 = vmatpush1.msra.mxu0 %v5602
  %5604 = vmatprep.subr.mxu0 0.0
  %v5605 = vand.u32 %v5327, 4294901760
  %v5606 = vsub.f32 %v5327, %v5605
  %5607 = vmatpush1.msra.mxu0 %v5606
  %5608 = vmatprep.subr.mxu0 0.0
  %v5609 = vand.u32 %v5328, 4294901760
  %v5610 = vsub.f32 %v5328, %v5609
  %5611 = vmatpush1.msra.mxu0 %v5610
  %5612 = vmatprep.subr.mxu0 0.0
  %v5613 = vand.u32 %v5329, 4294901760
  %v5614 = vsub.f32 %v5329, %v5613
  %5615 = vmatpush1.msra.mxu0 %v5614
  %5616 = vmatprep.subr.mxu0 0.0
  %v5617 = vand.u32 %v5330, 4294901760
  %v5618 = vsub.f32 %v5330, %v5617
  %5619 = vmatpush1.msra.mxu0 %v5618
  %5620 = vmatprep.subr.mxu0 0.0
  %v5621 = vand.u32 %v5331, 4294901760
  %v5622 = vsub.f32 %v5331, %v5621
  %5623 = vmatpush1.msra.mxu0 %v5622
  %5624 = vmatprep.subr.mxu0 0.0
  %v5625 = vand.u32 %v5332, 4294901760
  %v5626 = vsub.f32 %v5332, %v5625
  %5627 = vmatpush1.msra.mxu0 %v5626
  %5628 = vmatprep.subr.mxu0 0.0
  %v5629 = vand.u32 %v5333, 4294901760
  %v5630 = vsub.f32 %v5333, %v5629
  %5631 = vmatpush1.msra.mxu0 %v5630
  %5632 = vmatprep.subr.mxu0 0.0
  %v5633 = vand.u32 %v5334, 4294901760
  %v5634 = vsub.f32 %v5334, %v5633
  %5635 = vmatpush1.msra.mxu0 %v5634
  %5636 = vmatprep.subr.mxu0 0.0
  %v5637 = vand.u32 %v5335, 4294901760
  %v5638 = vsub.f32 %v5335, %v5637
  %5639 = vmatpush1.msra.mxu0 %v5638
  %5640 = vmatprep.subr.mxu0 0.0
  %v5641 = vand.u32 %v5336, 4294901760
  %v5642 = vsub.f32 %v5336, %v5641
  %5643 = vmatpush1.msra.mxu0 %v5642
  %5644 = vmatprep.subr.mxu0 0.0
  %v5645 = vand.u32 %v5337, 4294901760
  %v5646 = vsub.f32 %v5337, %v5645
  %5647 = vmatpush1.msra.mxu0 %v5646
  %5648 = vmatprep.subr.mxu0 0.0
  %v5649 = vand.u32 %v5338, 4294901760
  %v5650 = vsub.f32 %v5338, %v5649
  %5651 = vmatpush1.msra.mxu0 %v5650
  %5652 = vmatprep.subr.mxu0 0.0
  %v5653 = vand.u32 %v5339, 4294901760
  %v5654 = vsub.f32 %v5339, %v5653
  %5655 = vmatpush1.msra.mxu0 %v5654
  %5656 = vmatprep.subr.mxu0 0.0
  %v5657 = vand.u32 %v5340, 4294901760
  %v5658 = vsub.f32 %v5340, %v5657
  %5659 = vmatpush1.msra.mxu0 %v5658
  %5660 = vmatprep.subr.mxu0 0.0
  %v5661 = vand.u32 %v5341, 4294901760
  %v5662 = vsub.f32 %v5341, %v5661
  %5663 = vmatpush1.msra.mxu0 %v5662
  %5664 = vmatprep.subr.mxu0 0.0
  %5665 = vmatpush1.msra.mxu0 0.0
  %5666 = vmatprep.subr.mxu0 0.0
  %5667 = vmatpush1.msra.mxu0 0.0
  %5668 = vmatprep.subr.mxu0 0.0
  %5669 = vmatpush1.msra.mxu0 0.0
  %5670 = vmatprep.subr.mxu0 0.0
  %5671 = vmatpush1.msra.mxu0 0.0
  %5672 = vmatprep.subr.mxu0 0.0
  %5673 = vmatpush1.msra.mxu0 0.0
  %5674 = vmatprep.subr.mxu0 0.0
  %5675 = vmatpush1.msra.mxu0 0.0
  %5676 = vmatprep.subr.mxu0 0.0
  %5677 = vmatpush1.msra.mxu0 0.0
  %5678 = vmatprep.subr.mxu0 0.0
  %5679 = vmatpush1.msra.mxu0 0.0
  %5680 = vmatprep.subr.mxu0 0.0
  %5681 = vmatpush1.msra.mxu0 0.0
  %5682 = vmatprep.subr.mxu0 0.0
  %5683 = vmatpush1.msra.mxu0 0.0
  %5684 = vmatprep.subr.mxu0 0.0
  %5685 = vmatpush1.msra.mxu0 0.0
  %5686 = vmatprep.subr.mxu0 0.0
  %5687 = vmatpush1.msra.mxu0 0.0
  %5688 = vmatprep.subr.mxu0 0.0
  %5689 = vmatpush1.msra.mxu0 0.0
  %5690 = vmatprep.subr.mxu0 0.0
  %5691 = vmatpush1.msra.mxu0 0.0
  %5692 = vmatprep.subr.mxu0 0.0
  %5693 = vmatpush1.msra.mxu0 0.0
  %5694 = vmatprep.subr.mxu0 0.0
  %5695 = vmatpush1.msra.mxu0 0.0
  %5696 = vmatprep.mubr.f32.mxu0 0.0
  %v5697 = vand.u32 %v5324, 4294901760
  %v5698 = vsub.f32 %v5324, %v5697
  %5699 = vmatmul.mubr.f32.gmra.mrb[0].mxu0 %v5698
  %v5700 = vpop.f32.mrb[0].mxu0
  %v5701 = vadd.f32 %v5591, %v5700
  %v5702 = vpop.f32.mrb[0].mxu0
  %5703 = vmatprep.mubr.f32.mxu0 0.0
  %v5704 = vand.u32 %v5325, 4294901760
  %v5705 = vsub.f32 %v5325, %v5704
  %5706 = vmatmul.mubr.f32.gmra.mrb[0].mxu0 %v5705
  %v5707 = vpop.f32.mrb[0].mxu0
  %v5708 = vadd.f32 %v5597, %v5707
  %v5709 = vpop.f32.mrb[0].mxu0
  %5710 = vdwg.mxu0
  %5711 = vmatprep.subr.mxu0 0.0
  %v5712 = vand.u32 %v5326, 4294901760
  %5713 = vmatpush1.msra.mxu0 %v5712
  %5714 = vmatprep.subr.mxu0 0.0
  %v5715 = vand.u32 %v5327, 4294901760
  %5716 = vmatpush1.msra.mxu0 %v5715
  %5717 = vmatprep.subr.mxu0 0.0
  %v5718 = vand.u32 %v5328, 4294901760
  %5719 = vmatpush1.msra.mxu0 %v5718
  %5720 = vmatprep.subr.mxu0 0.0
  %v5721 = vand.u32 %v5329, 4294901760
  %5722 = vmatpush1.msra.mxu0 %v5721
  %5723 = vmatprep.subr.mxu0 0.0
  %v5724 = vand.u32 %v5330, 4294901760
  %5725 = vmatpush1.msra.mxu0 %v5724
  %5726 = vmatprep.subr.mxu0 0.0
  %v5727 = vand.u32 %v5331, 4294901760
  %5728 = vmatpush1.msra.mxu0 %v5727
  %5729 = vmatprep.subr.mxu0 0.0
  %v5730 = vand.u32 %v5332, 4294901760
  %5731 = vmatpush1.msra.mxu0 %v5730
  %5732 = vmatprep.subr.mxu0 0.0
  %v5733 = vand.u32 %v5333, 4294901760
  %5734 = vmatpush1.msra.mxu0 %v5733
  %5735 = vmatprep.subr.mxu0 0.0
  %v5736 = vand.u32 %v5334, 4294901760
  %5737 = vmatpush1.msra.mxu0 %v5736
  %5738 = vmatprep.subr.mxu0 0.0
  %v5739 = vand.u32 %v5335, 4294901760
  %5740 = vmatpush1.msra.mxu0 %v5739
  %5741 = vmatprep.subr.mxu0 0.0
  %v5742 = vand.u32 %v5336, 4294901760
  %5743 = vmatpush1.msra.mxu0 %v5742
  %5744 = vmatprep.subr.mxu0 0.0
  %v5745 = vand.u32 %v5337, 4294901760
  %5746 = vmatpush1.msra.mxu0 %v5745
  %5747 = vmatprep.subr.mxu0 0.0
  %v5748 = vand.u32 %v5338, 4294901760
  %5749 = vmatpush1.msra.mxu0 %v5748
  %5750 = vmatprep.subr.mxu0 0.0
  %v5751 = vand.u32 %v5339, 4294901760
  %5752 = vmatpush1.msra.mxu0 %v5751
  %5753 = vmatprep.subr.mxu0 0.0
  %v5754 = vand.u32 %v5340, 4294901760
  %5755 = vmatpush1.msra.mxu0 %v5754
  %5756 = vmatprep.subr.mxu0 0.0
  %v5757 = vand.u32 %v5341, 4294901760
  %5758 = vmatpush1.msra.mxu0 %v5757
  %5759 = vmatprep.subr.mxu0 0.0
  %5760 = vmatpush1.msra.mxu0 0.0
  %5761 = vmatprep.subr.mxu0 0.0
  %5762 = vmatpush1.msra.mxu0 0.0
  %5763 = vmatprep.subr.mxu0 0.0
  %5764 = vmatpush1.msra.mxu0 0.0
  %5765 = vmatprep.subr.mxu0 0.0
  %5766 = vmatpush1.msra.mxu0 0.0
  %5767 = vmatprep.subr.mxu0 0.0
  %5768 = vmatpush1.msra.mxu0 0.0
  %5769 = vmatprep.subr.mxu0 0.0
  %5770 = vmatpush1.msra.mxu0 0.0
  %5771 = vmatprep.subr.mxu0 0.0
  %5772 = vmatpush1.msra.mxu0 0.0
  %5773 = vmatprep.subr.mxu0 0.0
  %5774 = vmatpush1.msra.mxu0 0.0
  %5775 = vmatprep.subr.mxu0 0.0
  %5776 = vmatpush1.msra.mxu0 0.0
  %5777 = vmatprep.subr.mxu0 0.0
  %5778 = vmatpush1.msra.mxu0 0.0
  %5779 = vmatprep.subr.mxu0 0.0
  %5780 = vmatpush1.msra.mxu0 0.0
  %5781 = vmatprep.subr.mxu0 0.0
  %5782 = vmatpush1.msra.mxu0 0.0
  %5783 = vmatprep.subr.mxu0 0.0
  %5784 = vmatpush1.msra.mxu0 0.0
  %5785 = vmatprep.subr.mxu0 0.0
  %5786 = vmatpush1.msra.mxu0 0.0
  %5787 = vmatprep.subr.mxu0 0.0
  %5788 = vmatpush1.msra.mxu0 0.0
  %5789 = vmatprep.subr.mxu0 0.0
  %5790 = vmatpush1.msra.mxu0 0.0
  %5791 = vmatprep.mubr.f32.mxu0 0.0
  %v5792 = vand.u32 %v5324, 4294901760
  %v5793 = vsub.f32 %v5324, %v5792
  %v5794 = vand.u32 %v5793, 4294901760
  %5795 = vmatmul.mubr.f32.gmra.mrb[0].mxu0 %v5794
  %v5796 = vpop.f32.mrb[0].mxu0
  %v5797 = vadd.f32 %v5701, %v5796
  %v5798 = vpop.f32.mrb[0].mxu0
  %5799 = vmatprep.mubr.f32.mxu0 0.0
  %v5800 = vand.u32 %v5325, 4294901760
  %v5801 = vsub.f32 %v5325, %v5800
  %v5802 = vand.u32 %v5801, 4294901760
  %5803 = vmatmul.mubr.f32.gmra.mrb[0].mxu0 %v5802
  %v5804 = vpop.f32.mrb[0].mxu0
  %v5805 = vadd.f32 %v5708, %v5804
  %v5806 = vpop.f32.mrb[0].mxu0
  %5807 = vdwg.mxu0
  %5808 = vmatprep.subr.mxu0 0.0
  %v5809 = vand.u32 %v5326, 4294901760
  %v5810 = vsub.f32 %v5326, %v5809
  %v5811 = vand.u32 %v5810, 4294901760
  %5812 = vmatpush1.msra.mxu0 %v5811
  %5813 = vmatprep.subr.mxu0 0.0
  %v5814 = vand.u32 %v5327, 4294901760
  %v5815 = vsub.f32 %v5327, %v5814
  %v5816 = vand.u32 %v5815, 4294901760
  %5817 = vmatpush1.msra.mxu0 %v5816
  %5818 = vmatprep.subr.mxu0 0.0
  %v5819 = vand.u32 %v5328, 4294901760
  %v5820 = vsub.f32 %v5328, %v5819
  %v5821 = vand.u32 %v5820, 4294901760
  %5822 = vmatpush1.msra.mxu0 %v5821
  %5823 = vmatprep.subr.mxu0 0.0
  %v5824 = vand.u32 %v5329, 4294901760
  %v5825 = vsub.f32 %v5329, %v5824
  %v5826 = vand.u32 %v5825, 4294901760
  %5827 = vmatpush1.msra.mxu0 %v5826
  %5828 = vmatprep.subr.mxu0 0.0
  %v5829 = vand.u32 %v5330, 4294901760
  %v5830 = vsub.f32 %v5330, %v5829
  %v5831 = vand.u32 %v5830, 4294901760
  %5832 = vmatpush1.msra.mxu0 %v5831
  %5833 = vmatprep.subr.mxu0 0.0
  %v5834 = vand.u32 %v5331, 4294901760
  %v5835 = vsub.f32 %v5331, %v5834
  %v5836 = vand.u32 %v5835, 4294901760
  %5837 = vmatpush1.msra.mxu0 %v5836
  %5838 = vmatprep.subr.mxu0 0.0
  %v5839 = vand.u32 %v5332, 4294901760
  %v5840 = vsub.f32 %v5332, %v5839
  %v5841 = vand.u32 %v5840, 4294901760
  %5842 = vmatpush1.msra.mxu0 %v5841
  %5843 = vmatprep.subr.mxu0 0.0
  %v5844 = vand.u32 %v5333, 4294901760
  %v5845 = vsub.f32 %v5333, %v5844
  %v5846 = vand.u32 %v5845, 4294901760
  %5847 = vmatpush1.msra.mxu0 %v5846
  %5848 = vmatprep.subr.mxu0 0.0
  %v5849 = vand.u32 %v5334, 4294901760
  %v5850 = vsub.f32 %v5334, %v5849
  %v5851 = vand.u32 %v5850, 4294901760
  %5852 = vmatpush1.msra.mxu0 %v5851
  %5853 = vmatprep.subr.mxu0 0.0
  %v5854 = vand.u32 %v5335, 4294901760
  %v5855 = vsub.f32 %v5335, %v5854
  %v5856 = vand.u32 %v5855, 4294901760
  %5857 = vmatpush1.msra.mxu0 %v5856
  %5858 = vmatprep.subr.mxu0 0.0
  %v5859 = vand.u32 %v5336, 4294901760
  %v5860 = vsub.f32 %v5336, %v5859
  %v5861 = vand.u32 %v5860, 4294901760
  %5862 = vmatpush1.msra.mxu0 %v5861
  %5863 = vmatprep.subr.mxu0 0.0
  %v5864 = vand.u32 %v5337, 4294901760
  %v5865 = vsub.f32 %v5337, %v5864
  %v5866 = vand.u32 %v5865, 4294901760
  %5867 = vmatpush1.msra.mxu0 %v5866
  %5868 = vmatprep.subr.mxu0 0.0
  %v5869 = vand.u32 %v5338, 4294901760
  %v5870 = vsub.f32 %v5338, %v5869
  %v5871 = vand.u32 %v5870, 4294901760
  %5872 = vmatpush1.msra.mxu0 %v5871
  %5873 = vmatprep.subr.mxu0 0.0
  %v5874 = vand.u32 %v5339, 4294901760
  %v5875 = vsub.f32 %v5339, %v5874
  %v5876 = vand.u32 %v5875, 4294901760
  %5877 = vmatpush1.msra.mxu0 %v5876
  %5878 = vmatprep.subr.mxu0 0.0
  %v5879 = vand.u32 %v5340, 4294901760
  %v5880 = vsub.f32 %v5340, %v5879
  %v5881 = vand.u32 %v5880, 4294901760
  %5882 = vmatpush1.msra.mxu0 %v5881
  %5883 = vmatprep.subr.mxu0 0.0
  %v5884 = vand.u32 %v5341, 4294901760
  %v5885 = vsub.f32 %v5341, %v5884
  %v5886 = vand.u32 %v5885, 4294901760
  %5887 = vmatpush1.msra.mxu0 %v5886
  %5888 = vmatprep.subr.mxu0 0.0
  %5889 = vmatpush1.msra.mxu0 0.0
  %5890 = vmatprep.subr.mxu0 0.0
  %5891 = vmatpush1.msra.mxu0 0.0
  %5892 = vmatprep.subr.mxu0 0.0
  %5893 = vmatpush1.msra.mxu0 0.0
  %5894 = vmatprep.subr.mxu0 0.0
  %5895 = vmatpush1.msra.mxu0 0.0
  %5896 = vmatprep.subr.mxu0 0.0
  %5897 = vmatpush1.msra.mxu0 0.0
  %5898 = vmatprep.subr.mxu0 0.0
  %5899 = vmatpush1.msra.mxu0 0.0
  %5900 = vmatprep.subr.mxu0 0.0
  %5901 = vmatpush1.msra.mxu0 0.0
  %5902 = vmatprep.subr.mxu0 0.0
  %5903 = vmatpush1.msra.mxu0 0.0
  %5904 = vmatprep.subr.mxu0 0.0
  %5905 = vmatpush1.msra.mxu0 0.0
  %5906 = vmatprep.subr.mxu0 0.0
  %5907 = vmatpush1.msra.mxu0 0.0
  %5908 = vmatprep.subr.mxu0 0.0
  %5909 = vmatpush1.msra.mxu0 0.0
  %5910 = vmatprep.subr.mxu0 0.0
  %5911 = vmatpush1.msra.mxu0 0.0
  %5912 = vmatprep.subr.mxu0 0.0
  %5913 = vmatpush1.msra.mxu0 0.0
  %5914 = vmatprep.subr.mxu0 0.0
  %5915 = vmatpush1.msra.mxu0 0.0
  %5916 = vmatprep.subr.mxu0 0.0
  %5917 = vmatpush1.msra.mxu0 0.0
  %5918 = vmatprep.subr.mxu0 0.0
  %5919 = vmatpush1.msra.mxu0 0.0
  %5920 = vmatprep.mubr.f32.mxu0 0.0
  %v5921 = vand.u32 %v5324, 4294901760
  %5922 = vmatmul.mubr.f32.gmra.mrb[0].mxu0 %v5921
  %v5923 = vpop.f32.mrb[0].mxu0
  %v5924 = vadd.f32 %v5797, %v5923
  %v5925 = vpop.f32.mrb[0].mxu0
  %5926 = vmatprep.mubr.f32.mxu0 0.0
  %v5927 = vand.u32 %v5325, 4294901760
  %5928 = vmatmul.mubr.f32.gmra.mrb[0].mxu0 %v5927
  %v5929 = vpop.f32.mrb[0].mxu0
  %v5930 = vadd.f32 %v5805, %v5929
  %v5931 = vpop.f32.mrb[0].mxu0
  %5932 = vdwg.mxu0
  %5933 = vmatprep.subr.mxu0 0.0
  %v5934 = vand.u32 %v5326, 4294901760
  %5935 = vmatpush1.msra.mxu0 %v5934
  %5936 = vmatprep.subr.mxu0 0.0
  %v5937 = vand.u32 %v5327, 4294901760
  %5938 = vmatpush1.msra.mxu0 %v5937
  %5939 = vmatprep.subr.mxu0 0.0
  %v5940 = vand.u32 %v5328, 4294901760
  %5941 = vmatpush1.msra.mxu0 %v5940
  %5942 = vmatprep.subr.mxu0 0.0
  %v5943 = vand.u32 %v5329, 4294901760
  %5944 = vmatpush1.msra.mxu0 %v5943
  %5945 = vmatprep.subr.mxu0 0.0
  %v5946 = vand.u32 %v5330, 4294901760
  %5947 = vmatpush1.msra.mxu0 %v5946
  %5948 = vmatprep.subr.mxu0 0.0
  %v5949 = vand.u32 %v5331, 4294901760
  %5950 = vmatpush1.msra.mxu0 %v5949
  %5951 = vmatprep.subr.mxu0 0.0
  %v5952 = vand.u32 %v5332, 4294901760
  %5953 = vmatpush1.msra.mxu0 %v5952
  %5954 = vmatprep.subr.mxu0 0.0
  %v5955 = vand.u32 %v5333, 4294901760
  %5956 = vmatpush1.msra.mxu0 %v5955
  %5957 = vmatprep.subr.mxu0 0.0
  %v5958 = vand.u32 %v5334, 4294901760
  %5959 = vmatpush1.msra.mxu0 %v5958
  %5960 = vmatprep.subr.mxu0 0.0
  %v5961 = vand.u32 %v5335, 4294901760
  %5962 = vmatpush1.msra.mxu0 %v5961
  %5963 = vmatprep.subr.mxu0 0.0
  %v5964 = vand.u32 %v5336, 4294901760
  %5965 = vmatpush1.msra.mxu0 %v5964
  %5966 = vmatprep.subr.mxu0 0.0
  %v5967 = vand.u32 %v5337, 4294901760
  %5968 = vmatpush1.msra.mxu0 %v5967
  %5969 = vmatprep.subr.mxu0 0.0
  %v5970 = vand.u32 %v5338, 4294901760
  %5971 = vmatpush1.msra.mxu0 %v5970
  %5972 = vmatprep.subr.mxu0 0.0
  %v5973 = vand.u32 %v5339, 4294901760
  %5974 = vmatpush1.msra.mxu0 %v5973
  %5975 = vmatprep.subr.mxu0 0.0
  %v5976 = vand.u32 %v5340, 4294901760
  %5977 = vmatpush1.msra.mxu0 %v5976
  %5978 = vmatprep.subr.mxu0 0.0
  %v5979 = vand.u32 %v5341, 4294901760
  %5980 = vmatpush1.msra.mxu0 %v5979
  %5981 = vmatprep.subr.mxu0 0.0
  %5982 = vmatpush1.msra.mxu0 0.0
  %5983 = vmatprep.subr.mxu0 0.0
  %5984 = vmatpush1.msra.mxu0 0.0
  %5985 = vmatprep.subr.mxu0 0.0
  %5986 = vmatpush1.msra.mxu0 0.0
  %5987 = vmatprep.subr.mxu0 0.0
  %5988 = vmatpush1.msra.mxu0 0.0
  %5989 = vmatprep.subr.mxu0 0.0
  %5990 = vmatpush1.msra.mxu0 0.0
  %5991 = vmatprep.subr.mxu0 0.0
  %5992 = vmatpush1.msra.mxu0 0.0
  %5993 = vmatprep.subr.mxu0 0.0
  %5994 = vmatpush1.msra.mxu0 0.0
  %5995 = vmatprep.subr.mxu0 0.0
  %5996 = vmatpush1.msra.mxu0 0.0
  %5997 = vmatprep.subr.mxu0 0.0
  %5998 = vmatpush1.msra.mxu0 0.0
  %5999 = vmatprep.subr.mxu0 0.0
  %6000 = vmatpush1.msra.mxu0 0.0
  %6001 = vmatprep.subr.mxu0 0.0
  %6002 = vmatpush1.msra.mxu0 0.0
  %6003 = vmatprep.subr.mxu0 0.0
  %6004 = vmatpush1.msra.mxu0 0.0
  %6005 = vmatprep.subr.mxu0 0.0
  %6006 = vmatpush1.msra.mxu0 0.0
  %6007 = vmatprep.subr.mxu0 0.0
  %6008 = vmatpush1.msra.mxu0 0.0
  %6009 = vmatprep.subr.mxu0 0.0
  %6010 = vmatpush1.msra.mxu0 0.0
  %6011 = vmatprep.subr.mxu0 0.0
  %6012 = vmatpush1.msra.mxu0 0.0
  %6013 = vmatprep.mubr.f32.mxu0 0.0
  %v6014 = vand.u32 %v5324, 4294901760
  %6015 = vmatmul.mubr.f32.gmra.mrb[0].mxu0 %v6014
  %v6016 = vpop.f32.mrb[0].mxu0
  %v6017 = vadd.f32 %v5924, %v6016
  %v6018 = vpop.f32.mrb[0].mxu0
  %6019 = vmatprep.mubr.f32.mxu0 0.0
  %v6020 = vand.u32 %v5325, 4294901760
  %6021 = vmatmul.mubr.f32.gmra.mrb[0].mxu0 %v6020
  %v6022 = vpop.f32.mrb[0].mxu0
  %v6023 = vadd.f32 %v5930, %v6022
  %v6024 = vpop.f32.mrb[0].mxu0
  %6025 = vdwg.mxu0
  %v6026 = vsel %vm2385, %v6017, 0.0
  %v6027 = vrot.slane %v6026, 4
  %v6028 = vadd.f32 %v6026, %v6027
  %v6029 = vrot.slane %v6028, 2
  %v6030 = vadd.f32 %v6028, %v6029
  %v6031 = vrot.slane %v6030, 1
  %v6032 = vadd.f32 %v6030, %v6031
  %v6033 = vsel %vm2385, %v6023, 0.0
  %v6034 = vrot.slane %v6033, 4
  %v6035 = vadd.f32 %v6033, %v6034
  %v6036 = vrot.slane %v6035, 2
  %v6037 = vadd.f32 %v6035, %v6036
  %v6038 = vrot.slane %v6037, 1
  %v6039 = vadd.f32 %v6037, %v6038
  %v6040 = vmul.f32 %v6032, 0.015625
  %v6041 = vmul.f32 %v6039, 0.015625
  %v6042 = vmul.f32 %v6040, %v6040
  %v6043 = vsub.f32 %v6041, %v6042
  %v6044 = vmax.f32 %v6043, 0.0
  %v6045 = vadd.f32 %v6044, 1e-05
  %v6046 = vrsqrt.pop %v6045
  %v6047 = vld [vmem:[%s4] sm:$0xff]
  %v6048 = vld [vmem:[%s4 + $0x8] sm:$0xff]
  %v6050 = vsel %vm2385, %v6046, 0
  %6052 = vmatprep.subr.mxu0 0.0
  %v6053 = vand.u32 %v6047, 4294901760
  %6054 = vmatpush1.msra.mxu0 %v6053
  %6055 = vmatprep.subr.mxu0 0.0
  %v6056 = vand.u32 %v6048, 4294901760
  %6057 = vmatpush1.msra.mxu0 %v6056
  %6058 = vmatprep.subr.mxu0 0.0
  %6059 = vmatpush1.msra.mxu0 0.0
  %6060 = vmatprep.subr.mxu0 0.0
  %6061 = vmatpush1.msra.mxu0 0.0
  %6062 = vmatprep.subr.mxu0 0.0
  %6063 = vmatpush1.msra.mxu0 0.0
  %6064 = vmatprep.subr.mxu0 0.0
  %6065 = vmatpush1.msra.mxu0 0.0
  %6066 = vmatprep.subr.mxu0 0.0
  %6067 = vmatpush1.msra.mxu0 0.0
  %6068 = vmatprep.subr.mxu0 0.0
  %6069 = vmatpush1.msra.mxu0 0.0
  %6070 = vmatprep.subr.mxu0 0.0
  %6071 = vmatpush1.msra.mxu0 0.0
  %6072 = vmatprep.subr.mxu0 0.0
  %6073 = vmatpush1.msra.mxu0 0.0
  %6074 = vmatprep.subr.mxu0 0.0
  %6075 = vmatpush1.msra.mxu0 0.0
  %6076 = vmatprep.subr.mxu0 0.0
  %6077 = vmatpush1.msra.mxu0 0.0
  %6078 = vmatprep.subr.mxu0 0.0
  %6079 = vmatpush1.msra.mxu0 0.0
  %6080 = vmatprep.subr.mxu0 0.0
  %6081 = vmatpush1.msra.mxu0 0.0
  %6082 = vmatprep.subr.mxu0 0.0
  %6083 = vmatpush1.msra.mxu0 0.0
  %6084 = vmatprep.subr.mxu0 0.0
  %6085 = vmatpush1.msra.mxu0 0.0
  %6086 = vmatprep.subr.mxu0 0.0
  %6087 = vmatpush1.msra.mxu0 0.0
  %6088 = vmatprep.subr.mxu0 0.0
  %6089 = vmatpush1.msra.mxu0 0.0
  %6090 = vmatprep.subr.mxu0 0.0
  %6091 = vmatpush1.msra.mxu0 0.0
  %6092 = vmatprep.subr.mxu0 0.0
  %6093 = vmatpush1.msra.mxu0 0.0
  %6094 = vmatprep.subr.mxu0 0.0
  %6095 = vmatpush1.msra.mxu0 0.0
  %6096 = vmatprep.subr.mxu0 0.0
  %6097 = vmatpush1.msra.mxu0 0.0
  %6098 = vmatprep.subr.mxu0 0.0
  %6099 = vmatpush1.msra.mxu0 0.0
  %6100 = vmatprep.subr.mxu0 0.0
  %6101 = vmatpush1.msra.mxu0 0.0
  %6102 = vmatprep.subr.mxu0 0.0
  %6103 = vmatpush1.msra.mxu0 0.0
  %6104 = vmatprep.subr.mxu0 0.0
  %6105 = vmatpush1.msra.mxu0 0.0
  %6106 = vmatprep.subr.mxu0 0.0
  %6107 = vmatpush1.msra.mxu0 0.0
  %6108 = vmatprep.subr.mxu0 0.0
  %6109 = vmatpush1.msra.mxu0 0.0
  %6110 = vmatprep.subr.mxu0 0.0
  %6111 = vmatpush1.msra.mxu0 0.0
  %6112 = vmatprep.subr.mxu0 0.0
  %6113 = vmatpush1.msra.mxu0 0.0
  %6114 = vmatprep.subr.mxu0 0.0
  %6115 = vmatpush1.msra.mxu0 0.0
  %6116 = vmatprep.subr.mxu0 0.0
  %6117 = vmatpush1.msra.mxu0 0.0
  %6118 = vmatprep.mubr.f32.mxu0 0.0
  %v6119 = vand.u32 %v6050, 4294901760
  %v6120 = vsub.f32 %v6050, %v6119
  %v6121 = vand.u32 %v6120, 4294901760
  %v6122 = vsub.f32 %v6120, %v6121
  %v6123 = vand.u32 %v6122, 4294901760
  %6124 = vmatmul.mubr.f32.gmra.mrb[0].mxu0 %v6123
  %v6125 = vpop.f32.mrb[0].mxu0
  %v6126 = vadd.f32 0.0, %v6125
  %v6127 = vpop.f32.mrb[0].mxu0
  %6128 = vdwg.mxu0
  %6129 = vmatprep.subr.mxu0 0.0
  %v6130 = vand.u32 %v6047, 4294901760
  %v6131 = vsub.f32 %v6047, %v6130
  %v6132 = vand.u32 %v6131, 4294901760
  %v6133 = vsub.f32 %v6131, %v6132
  %v6134 = vand.u32 %v6133, 4294901760
  %6135 = vmatpush1.msra.mxu0 %v6134
  %6136 = vmatprep.subr.mxu0 0.0
  %v6137 = vand.u32 %v6048, 4294901760
  %v6138 = vsub.f32 %v6048, %v6137
  %v6139 = vand.u32 %v6138, 4294901760
  %v6140 = vsub.f32 %v6138, %v6139
  %v6141 = vand.u32 %v6140, 4294901760
  %6142 = vmatpush1.msra.mxu0 %v6141
  %6143 = vmatprep.subr.mxu0 0.0
  %6144 = vmatpush1.msra.mxu0 0.0
  %6145 = vmatprep.subr.mxu0 0.0
  %6146 = vmatpush1.msra.mxu0 0.0
  %6147 = vmatprep.subr.mxu0 0.0
  %6148 = vmatpush1.msra.mxu0 0.0
  %6149 = vmatprep.subr.mxu0 0.0
  %6150 = vmatpush1.msra.mxu0 0.0
  %6151 = vmatprep.subr.mxu0 0.0
  %6152 = vmatpush1.msra.mxu0 0.0
  %6153 = vmatprep.subr.mxu0 0.0
  %6154 = vmatpush1.msra.mxu0 0.0
  %6155 = vmatprep.subr.mxu0 0.0
  %6156 = vmatpush1.msra.mxu0 0.0
  %6157 = vmatprep.subr.mxu0 0.0
  %6158 = vmatpush1.msra.mxu0 0.0
  %6159 = vmatprep.subr.mxu0 0.0
  %6160 = vmatpush1.msra.mxu0 0.0
  %6161 = vmatprep.subr.mxu0 0.0
  %6162 = vmatpush1.msra.mxu0 0.0
  %6163 = vmatprep.subr.mxu0 0.0
  %6164 = vmatpush1.msra.mxu0 0.0
  %6165 = vmatprep.subr.mxu0 0.0
  %6166 = vmatpush1.msra.mxu0 0.0
  %6167 = vmatprep.subr.mxu0 0.0
  %6168 = vmatpush1.msra.mxu0 0.0
  %6169 = vmatprep.subr.mxu0 0.0
  %6170 = vmatpush1.msra.mxu0 0.0
  %6171 = vmatprep.subr.mxu0 0.0
  %6172 = vmatpush1.msra.mxu0 0.0
  %6173 = vmatprep.subr.mxu0 0.0
  %6174 = vmatpush1.msra.mxu0 0.0
  %6175 = vmatprep.subr.mxu0 0.0
  %6176 = vmatpush1.msra.mxu0 0.0
  %6177 = vmatprep.subr.mxu0 0.0
  %6178 = vmatpush1.msra.mxu0 0.0
  %6179 = vmatprep.subr.mxu0 0.0
  %6180 = vmatpush1.msra.mxu0 0.0
  %6181 = vmatprep.subr.mxu0 0.0
  %6182 = vmatpush1.msra.mxu0 0.0
  %6183 = vmatprep.subr.mxu0 0.0
  %6184 = vmatpush1.msra.mxu0 0.0
  %6185 = vmatprep.subr.mxu0 0.0
  %6186 = vmatpush1.msra.mxu0 0.0
  %6187 = vmatprep.subr.mxu0 0.0
  %6188 = vmatpush1.msra.mxu0 0.0
  %6189 = vmatprep.subr.mxu0 0.0
  %6190 = vmatpush1.msra.mxu0 0.0
  %6191 = vmatprep.subr.mxu0 0.0
  %6192 = vmatpush1.msra.mxu0 0.0
  %6193 = vmatprep.subr.mxu0 0.0
  %6194 = vmatpush1.msra.mxu0 0.0
  %6195 = vmatprep.subr.mxu0 0.0
  %6196 = vmatpush1.msra.mxu0 0.0
  %6197 = vmatprep.subr.mxu0 0.0
  %6198 = vmatpush1.msra.mxu0 0.0
  %6199 = vmatprep.subr.mxu0 0.0
  %6200 = vmatpush1.msra.mxu0 0.0
  %6201 = vmatprep.subr.mxu0 0.0
  %6202 = vmatpush1.msra.mxu0 0.0
  %6203 = vmatprep.mubr.f32.mxu0 0.0
  %v6204 = vand.u32 %v6050, 4294901760
  %6205 = vmatmul.mubr.f32.gmra.mrb[0].mxu0 %v6204
  %v6206 = vpop.f32.mrb[0].mxu0
  %v6207 = vadd.f32 %v6126, %v6206
  %v6208 = vpop.f32.mrb[0].mxu0
  %6209 = vdwg.mxu0
  %6210 = vmatprep.subr.mxu0 0.0
  %v6211 = vand.u32 %v6047, 4294901760
  %v6212 = vsub.f32 %v6047, %v6211
  %6213 = vmatpush1.msra.mxu0 %v6212
  %6214 = vmatprep.subr.mxu0 0.0
  %v6215 = vand.u32 %v6048, 4294901760
  %v6216 = vsub.f32 %v6048, %v6215
  %6217 = vmatpush1.msra.mxu0 %v6216
  %6218 = vmatprep.subr.mxu0 0.0
  %6219 = vmatpush1.msra.mxu0 0.0
  %6220 = vmatprep.subr.mxu0 0.0
  %6221 = vmatpush1.msra.mxu0 0.0
  %6222 = vmatprep.subr.mxu0 0.0
  %6223 = vmatpush1.msra.mxu0 0.0
  %6224 = vmatprep.subr.mxu0 0.0
  %6225 = vmatpush1.msra.mxu0 0.0
  %6226 = vmatprep.subr.mxu0 0.0
  %6227 = vmatpush1.msra.mxu0 0.0
  %6228 = vmatprep.subr.mxu0 0.0
  %6229 = vmatpush1.msra.mxu0 0.0
  %6230 = vmatprep.subr.mxu0 0.0
  %6231 = vmatpush1.msra.mxu0 0.0
  %6232 = vmatprep.subr.mxu0 0.0
  %6233 = vmatpush1.msra.mxu0 0.0
  %6234 = vmatprep.subr.mxu0 0.0
  %6235 = vmatpush1.msra.mxu0 0.0
  %6236 = vmatprep.subr.mxu0 0.0
  %6237 = vmatpush1.msra.mxu0 0.0
  %6238 = vmatprep.subr.mxu0 0.0
  %6239 = vmatpush1.msra.mxu0 0.0
  %6240 = vmatprep.subr.mxu0 0.0
  %6241 = vmatpush1.msra.mxu0 0.0
  %6242 = vmatprep.subr.mxu0 0.0
  %6243 = vmatpush1.msra.mxu0 0.0
  %6244 = vmatprep.subr.mxu0 0.0
  %6245 = vmatpush1.msra.mxu0 0.0
  %6246 = vmatprep.subr.mxu0 0.0
  %6247 = vmatpush1.msra.mxu0 0.0
  %6248 = vmatprep.subr.mxu0 0.0
  %6249 = vmatpush1.msra.mxu0 0.0
  %6250 = vmatprep.subr.mxu0 0.0
  %6251 = vmatpush1.msra.mxu0 0.0
  %6252 = vmatprep.subr.mxu0 0.0
  %6253 = vmatpush1.msra.mxu0 0.0
  %6254 = vmatprep.subr.mxu0 0.0
  %6255 = vmatpush1.msra.mxu0 0.0
  %6256 = vmatprep.subr.mxu0 0.0
  %6257 = vmatpush1.msra.mxu0 0.0
  %6258 = vmatprep.subr.mxu0 0.0
  %6259 = vmatpush1.msra.mxu0 0.0
  %6260 = vmatprep.subr.mxu0 0.0
  %6261 = vmatpush1.msra.mxu0 0.0
  %6262 = vmatprep.subr.mxu0 0.0
  %6263 = vmatpush1.msra.mxu0 0.0
  %6264 = vmatprep.subr.mxu0 0.0
  %6265 = vmatpush1.msra.mxu0 0.0
  %6266 = vmatprep.subr.mxu0 0.0
  %6267 = vmatpush1.msra.mxu0 0.0
  %6268 = vmatprep.subr.mxu0 0.0
  %6269 = vmatpush1.msra.mxu0 0.0
  %6270 = vmatprep.subr.mxu0 0.0
  %6271 = vmatpush1.msra.mxu0 0.0
  %6272 = vmatprep.subr.mxu0 0.0
  %6273 = vmatpush1.msra.mxu0 0.0
  %6274 = vmatprep.subr.mxu0 0.0
  %6275 = vmatpush1.msra.mxu0 0.0
  %6276 = vmatprep.subr.mxu0 0.0
  %6277 = vmatpush1.msra.mxu0 0.0
  %6278 = vmatprep.mubr.f32.mxu0 0.0
  %v6279 = vand.u32 %v6050, 4294901760
  %v6280 = vsub.f32 %v6050, %v6279
  %6281 = vmatmul.mubr.f32.gmra.mrb[0].mxu0 %v6280
  %v6282 = vpop.f32.mrb[0].mxu0
  %v6283 = vadd.f32 %v6207, %v6282
  %v6284 = vpop.f32.mrb[0].mxu0
  %6285 = vdwg.mxu0
  %6286 = vmatprep.subr.mxu0 0.0
  %v6287 = vand.u32 %v6047, 4294901760
  %6288 = vmatpush1.msra.mxu0 %v6287
  %6289 = vmatprep.subr.mxu0 0.0
  %v6290 = vand.u32 %v6048, 4294901760
  %6291 = vmatpush1.msra.mxu0 %v6290
  %6292 = vmatprep.subr.mxu0 0.0
  %6293 = vmatpush1.msra.mxu0 0.0
  %6294 = vmatprep.subr.mxu0 0.0
  %6295 = vmatpush1.msra.mxu0 0.0
  %6296 = vmatprep.subr.mxu0 0.0
  %6297 = vmatpush1.msra.mxu0 0.0
  %6298 = vmatprep.subr.mxu0 0.0
  %6299 = vmatpush1.msra.mxu0 0.0
  %6300 = vmatprep.subr.mxu0 0.0
  %6301 = vmatpush1.msra.mxu0 0.0
  %6302 = vmatprep.subr.mxu0 0.0
  %6303 = vmatpush1.msra.mxu0 0.0
  %6304 = vmatprep.subr.mxu0 0.0
  %6305 = vmatpush1.msra.mxu0 0.0
  %6306 = vmatprep.subr.mxu0 0.0
  %6307 = vmatpush1.msra.mxu0 0.0
  %6308 = vmatprep.subr.mxu0 0.0
  %6309 = vmatpush1.msra.mxu0 0.0
  %6310 = vmatprep.subr.mxu0 0.0
  %6311 = vmatpush1.msra.mxu0 0.0
  %6312 = vmatprep.subr.mxu0 0.0
  %6313 = vmatpush1.msra.mxu0 0.0
  %6314 = vmatprep.subr.mxu0 0.0
  %6315 = vmatpush1.msra.mxu0 0.0
  %6316 = vmatprep.subr.mxu0 0.0
  %6317 = vmatpush1.msra.mxu0 0.0
  %6318 = vmatprep.subr.mxu0 0.0
  %6319 = vmatpush1.msra.mxu0 0.0
  %6320 = vmatprep.subr.mxu0 0.0
  %6321 = vmatpush1.msra.mxu0 0.0
  %6322 = vmatprep.subr.mxu0 0.0
  %6323 = vmatpush1.msra.mxu0 0.0
  %6324 = vmatprep.subr.mxu0 0.0
  %6325 = vmatpush1.msra.mxu0 0.0
  %6326 = vmatprep.subr.mxu0 0.0
  %6327 = vmatpush1.msra.mxu0 0.0
  %6328 = vmatprep.subr.mxu0 0.0
  %6329 = vmatpush1.msra.mxu0 0.0
  %6330 = vmatprep.subr.mxu0 0.0
  %6331 = vmatpush1.msra.mxu0 0.0
  %6332 = vmatprep.subr.mxu0 0.0
  %6333 = vmatpush1.msra.mxu0 0.0
  %6334 = vmatprep.subr.mxu0 0.0
  %6335 = vmatpush1.msra.mxu0 0.0
  %6336 = vmatprep.subr.mxu0 0.0
  %6337 = vmatpush1.msra.mxu0 0.0
  %6338 = vmatprep.subr.mxu0 0.0
  %6339 = vmatpush1.msra.mxu0 0.0
  %6340 = vmatprep.subr.mxu0 0.0
  %6341 = vmatpush1.msra.mxu0 0.0
  %6342 = vmatprep.subr.mxu0 0.0
  %6343 = vmatpush1.msra.mxu0 0.0
  %6344 = vmatprep.subr.mxu0 0.0
  %6345 = vmatpush1.msra.mxu0 0.0
  %6346 = vmatprep.subr.mxu0 0.0
  %6347 = vmatpush1.msra.mxu0 0.0
  %6348 = vmatprep.subr.mxu0 0.0
  %6349 = vmatpush1.msra.mxu0 0.0
  %6350 = vmatprep.subr.mxu0 0.0
  %6351 = vmatpush1.msra.mxu0 0.0
  %6352 = vmatprep.mubr.f32.mxu0 0.0
  %v6353 = vand.u32 %v6050, 4294901760
  %v6354 = vsub.f32 %v6050, %v6353
  %v6355 = vand.u32 %v6354, 4294901760
  %6356 = vmatmul.mubr.f32.gmra.mrb[0].mxu0 %v6355
  %v6357 = vpop.f32.mrb[0].mxu0
  %v6358 = vadd.f32 %v6283, %v6357
  %v6359 = vpop.f32.mrb[0].mxu0
  %6360 = vdwg.mxu0
  %6361 = vmatprep.subr.mxu0 0.0
  %v6362 = vand.u32 %v6047, 4294901760
  %v6363 = vsub.f32 %v6047, %v6362
  %v6364 = vand.u32 %v6363, 4294901760
  %6365 = vmatpush1.msra.mxu0 %v6364
  %6366 = vmatprep.subr.mxu0 0.0
  %v6367 = vand.u32 %v6048, 4294901760
  %v6368 = vsub.f32 %v6048, %v6367
  %v6369 = vand.u32 %v6368, 4294901760
  %6370 = vmatpush1.msra.mxu0 %v6369
  %6371 = vmatprep.subr.mxu0 0.0
  %6372 = vmatpush1.msra.mxu0 0.0
  %6373 = vmatprep.subr.mxu0 0.0
  %6374 = vmatpush1.msra.mxu0 0.0
  %6375 = vmatprep.subr.mxu0 0.0
  %6376 = vmatpush1.msra.mxu0 0.0
  %6377 = vmatprep.subr.mxu0 0.0
  %6378 = vmatpush1.msra.mxu0 0.0
  %6379 = vmatprep.subr.mxu0 0.0
  %6380 = vmatpush1.msra.mxu0 0.0
  %6381 = vmatprep.subr.mxu0 0.0
  %6382 = vmatpush1.msra.mxu0 0.0
  %6383 = vmatprep.subr.mxu0 0.0
  %6384 = vmatpush1.msra.mxu0 0.0
  %6385 = vmatprep.subr.mxu0 0.0
  %6386 = vmatpush1.msra.mxu0 0.0
  %6387 = vmatprep.subr.mxu0 0.0
  %6388 = vmatpush1.msra.mxu0 0.0
  %6389 = vmatprep.subr.mxu0 0.0
  %6390 = vmatpush1.msra.mxu0 0.0
  %6391 = vmatprep.subr.mxu0 0.0
  %6392 = vmatpush1.msra.mxu0 0.0
  %6393 = vmatprep.subr.mxu0 0.0
  %6394 = vmatpush1.msra.mxu0 0.0
  %6395 = vmatprep.subr.mxu0 0.0
  %6396 = vmatpush1.msra.mxu0 0.0
  %6397 = vmatprep.subr.mxu0 0.0
  %6398 = vmatpush1.msra.mxu0 0.0
  %6399 = vmatprep.subr.mxu0 0.0
  %6400 = vmatpush1.msra.mxu0 0.0
  %6401 = vmatprep.subr.mxu0 0.0
  %6402 = vmatpush1.msra.mxu0 0.0
  %6403 = vmatprep.subr.mxu0 0.0
  %6404 = vmatpush1.msra.mxu0 0.0
  %6405 = vmatprep.subr.mxu0 0.0
  %6406 = vmatpush1.msra.mxu0 0.0
  %6407 = vmatprep.subr.mxu0 0.0
  %6408 = vmatpush1.msra.mxu0 0.0
  %6409 = vmatprep.subr.mxu0 0.0
  %6410 = vmatpush1.msra.mxu0 0.0
  %6411 = vmatprep.subr.mxu0 0.0
  %6412 = vmatpush1.msra.mxu0 0.0
  %6413 = vmatprep.subr.mxu0 0.0
  %6414 = vmatpush1.msra.mxu0 0.0
  %6415 = vmatprep.subr.mxu0 0.0
  %6416 = vmatpush1.msra.mxu0 0.0
  %6417 = vmatprep.subr.mxu0 0.0
  %6418 = vmatpush1.msra.mxu0 0.0
  %6419 = vmatprep.subr.mxu0 0.0
  %6420 = vmatpush1.msra.mxu0 0.0
  %6421 = vmatprep.subr.mxu0 0.0
  %6422 = vmatpush1.msra.mxu0 0.0
  %6423 = vmatprep.subr.mxu0 0.0
  %6424 = vmatpush1.msra.mxu0 0.0
  %6425 = vmatprep.subr.mxu0 0.0
  %6426 = vmatpush1.msra.mxu0 0.0
  %6427 = vmatprep.subr.mxu0 0.0
  %6428 = vmatpush1.msra.mxu0 0.0
  %6429 = vmatprep.subr.mxu0 0.0
  %6430 = vmatpush1.msra.mxu0 0.0
  %6431 = vmatprep.mubr.f32.mxu0 0.0
  %v6432 = vand.u32 %v6050, 4294901760
  %6433 = vmatmul.mubr.f32.gmra.mrb[0].mxu0 %v6432
  %v6434 = vpop.f32.mrb[0].mxu0
  %v6435 = vadd.f32 %v6358, %v6434
  %v6436 = vpop.f32.mrb[0].mxu0
  %6437 = vdwg.mxu0
  %6438 = vmatprep.subr.mxu0 0.0
  %v6439 = vand.u32 %v6047, 4294901760
  %6440 = vmatpush1.msra.mxu0 %v6439
  %6441 = vmatprep.subr.mxu0 0.0
  %v6442 = vand.u32 %v6048, 4294901760
  %6443 = vmatpush1.msra.mxu0 %v6442
  %6444 = vmatprep.subr.mxu0 0.0
  %6445 = vmatpush1.msra.mxu0 0.0
  %6446 = vmatprep.subr.mxu0 0.0
  %6447 = vmatpush1.msra.mxu0 0.0
  %6448 = vmatprep.subr.mxu0 0.0
  %6449 = vmatpush1.msra.mxu0 0.0
  %6450 = vmatprep.subr.mxu0 0.0
  %6451 = vmatpush1.msra.mxu0 0.0
  %6452 = vmatprep.subr.mxu0 0.0
  %6453 = vmatpush1.msra.mxu0 0.0
  %6454 = vmatprep.subr.mxu0 0.0
  %6455 = vmatpush1.msra.mxu0 0.0
  %6456 = vmatprep.subr.mxu0 0.0
  %6457 = vmatpush1.msra.mxu0 0.0
  %6458 = vmatprep.subr.mxu0 0.0
  %6459 = vmatpush1.msra.mxu0 0.0
  %6460 = vmatprep.subr.mxu0 0.0
  %6461 = vmatpush1.msra.mxu0 0.0
  %6462 = vmatprep.subr.mxu0 0.0
  %6463 = vmatpush1.msra.mxu0 0.0
  %6464 = vmatprep.subr.mxu0 0.0
  %6465 = vmatpush1.msra.mxu0 0.0
  %6466 = vmatprep.subr.mxu0 0.0
  %6467 = vmatpush1.msra.mxu0 0.0
  %6468 = vmatprep.subr.mxu0 0.0
  %6469 = vmatpush1.msra.mxu0 0.0
  %6470 = vmatprep.subr.mxu0 0.0
  %6471 = vmatpush1.msra.mxu0 0.0
  %6472 = vmatprep.subr.mxu0 0.0
  %6473 = vmatpush1.msra.mxu0 0.0
  %6474 = vmatprep.subr.mxu0 0.0
  %6475 = vmatpush1.msra.mxu0 0.0
  %6476 = vmatprep.subr.mxu0 0.0
  %6477 = vmatpush1.msra.mxu0 0.0
  %6478 = vmatprep.subr.mxu0 0.0
  %6479 = vmatpush1.msra.mxu0 0.0
  %6480 = vmatprep.subr.mxu0 0.0
  %6481 = vmatpush1.msra.mxu0 0.0
  %6482 = vmatprep.subr.mxu0 0.0
  %6483 = vmatpush1.msra.mxu0 0.0
  %6484 = vmatprep.subr.mxu0 0.0
  %6485 = vmatpush1.msra.mxu0 0.0
  %6486 = vmatprep.subr.mxu0 0.0
  %6487 = vmatpush1.msra.mxu0 0.0
  %6488 = vmatprep.subr.mxu0 0.0
  %6489 = vmatpush1.msra.mxu0 0.0
  %6490 = vmatprep.subr.mxu0 0.0
  %6491 = vmatpush1.msra.mxu0 0.0
  %6492 = vmatprep.subr.mxu0 0.0
  %6493 = vmatpush1.msra.mxu0 0.0
  %6494 = vmatprep.subr.mxu0 0.0
  %6495 = vmatpush1.msra.mxu0 0.0
  %6496 = vmatprep.subr.mxu0 0.0
  %6497 = vmatpush1.msra.mxu0 0.0
  %6498 = vmatprep.subr.mxu0 0.0
  %6499 = vmatpush1.msra.mxu0 0.0
  %6500 = vmatprep.subr.mxu0 0.0
  %6501 = vmatpush1.msra.mxu0 0.0
  %6502 = vmatprep.subr.mxu0 0.0
  %6503 = vmatpush1.msra.mxu0 0.0
  %6504 = vmatprep.mubr.f32.mxu0 0.0
  %v6505 = vand.u32 %v6050, 4294901760
  %6506 = vmatmul.mubr.f32.gmra.mrb[0].mxu0 %v6505
  %v6507 = vpop.f32.mrb[0].mxu0
  %v6508 = vadd.f32 %v6435, %v6507
  %v6509 = vpop.f32.mrb[0].mxu0
  %6510 = vdwg.mxu0
  %v6511 = vsub.f32 0.0, %v6040
  %v6512 = vmul.f32 %v6511, %v6046
  %v6514 = vsel %vm2385, %v6512, 0
  %6516 = vmatprep.subr.mxu0 0.0
  %v6517 = vand.u32 %v6047, 4294901760
  %6518 = vmatpush1.msra.mxu0 %v6517
  %6519 = vmatprep.subr.mxu0 0.0
  %v6520 = vand.u32 %v6048, 4294901760
  %6521 = vmatpush1.msra.mxu0 %v6520
  %6522 = vmatprep.subr.mxu0 0.0
  %6523 = vmatpush1.msra.mxu0 0.0
  %6524 = vmatprep.subr.mxu0 0.0
  %6525 = vmatpush1.msra.mxu0 0.0
  %6526 = vmatprep.subr.mxu0 0.0
  %6527 = vmatpush1.msra.mxu0 0.0
  %6528 = vmatprep.subr.mxu0 0.0
  %6529 = vmatpush1.msra.mxu0 0.0
  %6530 = vmatprep.subr.mxu0 0.0
  %6531 = vmatpush1.msra.mxu0 0.0
  %6532 = vmatprep.subr.mxu0 0.0
  %6533 = vmatpush1.msra.mxu0 0.0
  %6534 = vmatprep.subr.mxu0 0.0
  %6535 = vmatpush1.msra.mxu0 0.0
  %6536 = vmatprep.subr.mxu0 0.0
  %6537 = vmatpush1.msra.mxu0 0.0
  %6538 = vmatprep.subr.mxu0 0.0
  %6539 = vmatpush1.msra.mxu0 0.0
  %6540 = vmatprep.subr.mxu0 0.0
  %6541 = vmatpush1.msra.mxu0 0.0
  %6542 = vmatprep.subr.mxu0 0.0
  %6543 = vmatpush1.msra.mxu0 0.0
  %6544 = vmatprep.subr.mxu0 0.0
  %6545 = vmatpush1.msra.mxu0 0.0
  %6546 = vmatprep.subr.mxu0 0.0
  %6547 = vmatpush1.msra.mxu0 0.0
  %6548 = vmatprep.subr.mxu0 0.0
  %6549 = vmatpush1.msra.mxu0 0.0
  %6550 = vmatprep.subr.mxu0 0.0
  %6551 = vmatpush1.msra.mxu0 0.0
  %6552 = vmatprep.subr.mxu0 0.0
  %6553 = vmatpush1.msra.mxu0 0.0
  %6554 = vmatprep.subr.mxu0 0.0
  %6555 = vmatpush1.msra.mxu0 0.0
  %6556 = vmatprep.subr.mxu0 0.0
  %6557 = vmatpush1.msra.mxu0 0.0
  %6558 = vmatprep.subr.mxu0 0.0
  %6559 = vmatpush1.msra.mxu0 0.0
  %6560 = vmatprep.subr.mxu0 0.0
  %6561 = vmatpush1.msra.mxu0 0.0
  %6562 = vmatprep.subr.mxu0 0.0
  %6563 = vmatpush1.msra.mxu0 0.0
  %6564 = vmatprep.subr.mxu0 0.0
  %6565 = vmatpush1.msra.mxu0 0.0
  %6566 = vmatprep.subr.mxu0 0.0
  %6567 = vmatpush1.msra.mxu0 0.0
  %6568 = vmatprep.subr.mxu0 0.0
  %6569 = vmatpush1.msra.mxu0 0.0
  %6570 = vmatprep.subr.mxu0 0.0
  %6571 = vmatpush1.msra.mxu0 0.0
  %6572 = vmatprep.subr.mxu0 0.0
  %6573 = vmatpush1.msra.mxu0 0.0
  %6574 = vmatprep.subr.mxu0 0.0
  %6575 = vmatpush1.msra.mxu0 0.0
  %6576 = vmatprep.subr.mxu0 0.0
  %6577 = vmatpush1.msra.mxu0 0.0
  %6578 = vmatprep.subr.mxu0 0.0
  %6579 = vmatpush1.msra.mxu0 0.0
  %6580 = vmatprep.subr.mxu0 0.0
  %6581 = vmatpush1.msra.mxu0 0.0
  %6582 = vmatprep.mubr.f32.mxu0 0.0
  %v6583 = vand.u32 %v6514, 4294901760
  %v6584 = vsub.f32 %v6514, %v6583
  %v6585 = vand.u32 %v6584, 4294901760
  %v6586 = vsub.f32 %v6584, %v6585
  %v6587 = vand.u32 %v6586, 4294901760
  %6588 = vmatmul.mubr.f32.gmra.mrb[0].mxu0 %v6587
  %v6589 = vpop.f32.mrb[0].mxu0
  %v6590 = vadd.f32 0.0, %v6589
  %v6591 = vpop.f32.mrb[0].mxu0
  %6592 = vdwg.mxu0
  %6593 = vmatprep.subr.mxu0 0.0
  %v6594 = vand.u32 %v6047, 4294901760
  %v6595 = vsub.f32 %v6047, %v6594
  %v6596 = vand.u32 %v6595, 4294901760
  %v6597 = vsub.f32 %v6595, %v6596
  %v6598 = vand.u32 %v6597, 4294901760
  %6599 = vmatpush1.msra.mxu0 %v6598
  %6600 = vmatprep.subr.mxu0 0.0
  %v6601 = vand.u32 %v6048, 4294901760
  %v6602 = vsub.f32 %v6048, %v6601
  %v6603 = vand.u32 %v6602, 4294901760
  %v6604 = vsub.f32 %v6602, %v6603
  %v6605 = vand.u32 %v6604, 4294901760
  %6606 = vmatpush1.msra.mxu0 %v6605
  %6607 = vmatprep.subr.mxu0 0.0
  %6608 = vmatpush1.msra.mxu0 0.0
  %6609 = vmatprep.subr.mxu0 0.0
  %6610 = vmatpush1.msra.mxu0 0.0
  %6611 = vmatprep.subr.mxu0 0.0
  %6612 = vmatpush1.msra.mxu0 0.0
  %6613 = vmatprep.subr.mxu0 0.0
  %6614 = vmatpush1.msra.mxu0 0.0
  %6615 = vmatprep.subr.mxu0 0.0
  %6616 = vmatpush1.msra.mxu0 0.0
  %6617 = vmatprep.subr.mxu0 0.0
  %6618 = vmatpush1.msra.mxu0 0.0
  %6619 = vmatprep.subr.mxu0 0.0
  %6620 = vmatpush1.msra.mxu0 0.0
  %6621 = vmatprep.subr.mxu0 0.0
  %6622 = vmatpush1.msra.mxu0 0.0
  %6623 = vmatprep.subr.mxu0 0.0
  %6624 = vmatpush1.msra.mxu0 0.0
  %6625 = vmatprep.subr.mxu0 0.0
  %6626 = vmatpush1.msra.mxu0 0.0
  %6627 = vmatprep.subr.mxu0 0.0
  %6628 = vmatpush1.msra.mxu0 0.0
  %6629 = vmatprep.subr.mxu0 0.0
  %6630 = vmatpush1.msra.mxu0 0.0
  %6631 = vmatprep.subr.mxu0 0.0
  %6632 = vmatpush1.msra.mxu0 0.0
  %6633 = vmatprep.subr.mxu0 0.0
  %6634 = vmatpush1.msra.mxu0 0.0
  %6635 = vmatprep.subr.mxu0 0.0
  %6636 = vmatpush1.msra.mxu0 0.0
  %6637 = vmatprep.subr.mxu0 0.0
  %6638 = vmatpush1.msra.mxu0 0.0
  %6639 = vmatprep.subr.mxu0 0.0
  %6640 = vmatpush1.msra.mxu0 0.0
  %6641 = vmatprep.subr.mxu0 0.0
  %6642 = vmatpush1.msra.mxu0 0.0
  %6643 = vmatprep.subr.mxu0 0.0
  %6644 = vmatpush1.msra.mxu0 0.0
  %6645 = vmatprep.subr.mxu0 0.0
  %6646 = vmatpush1.msra.mxu0 0.0
  %6647 = vmatprep.subr.mxu0 0.0
  %6648 = vmatpush1.msra.mxu0 0.0
  %6649 = vmatprep.subr.mxu0 0.0
  %6650 = vmatpush1.msra.mxu0 0.0
  %6651 = vmatprep.subr.mxu0 0.0
  %6652 = vmatpush1.msra.mxu0 0.0
  %6653 = vmatprep.subr.mxu0 0.0
  %6654 = vmatpush1.msra.mxu0 0.0
  %6655 = vmatprep.subr.mxu0 0.0
  %6656 = vmatpush1.msra.mxu0 0.0
  %6657 = vmatprep.subr.mxu0 0.0
  %6658 = vmatpush1.msra.mxu0 0.0
  %6659 = vmatprep.subr.mxu0 0.0
  %6660 = vmatpush1.msra.mxu0 0.0
  %6661 = vmatprep.subr.mxu0 0.0
  %6662 = vmatpush1.msra.mxu0 0.0
  %6663 = vmatprep.subr.mxu0 0.0
  %6664 = vmatpush1.msra.mxu0 0.0
  %6665 = vmatprep.subr.mxu0 0.0
  %6666 = vmatpush1.msra.mxu0 0.0
  %6667 = vmatprep.mubr.f32.mxu0 0.0
  %v6668 = vand.u32 %v6514, 4294901760
  %6669 = vmatmul.mubr.f32.gmra.mrb[0].mxu0 %v6668
  %v6670 = vpop.f32.mrb[0].mxu0
  %v6671 = vadd.f32 %v6590, %v6670
  %v6672 = vpop.f32.mrb[0].mxu0
  %6673 = vdwg.mxu0
  %6674 = vmatprep.subr.mxu0 0.0
  %v6675 = vand.u32 %v6047, 4294901760
  %v6676 = vsub.f32 %v6047, %v6675
  %6677 = vmatpush1.msra.mxu0 %v6676
  %6678 = vmatprep.subr.mxu0 0.0
  %v6679 = vand.u32 %v6048, 4294901760
  %v6680 = vsub.f32 %v6048, %v6679
  %6681 = vmatpush1.msra.mxu0 %v6680
  %6682 = vmatprep.subr.mxu0 0.0
  %6683 = vmatpush1.msra.mxu0 0.0
  %6684 = vmatprep.subr.mxu0 0.0
  %6685 = vmatpush1.msra.mxu0 0.0
  %6686 = vmatprep.subr.mxu0 0.0
  %6687 = vmatpush1.msra.mxu0 0.0
  %6688 = vmatprep.subr.mxu0 0.0
  %6689 = vmatpush1.msra.mxu0 0.0
  %6690 = vmatprep.subr.mxu0 0.0
  %6691 = vmatpush1.msra.mxu0 0.0
  %6692 = vmatprep.subr.mxu0 0.0
  %6693 = vmatpush1.msra.mxu0 0.0
  %6694 = vmatprep.subr.mxu0 0.0
  %6695 = vmatpush1.msra.mxu0 0.0
  %6696 = vmatprep.subr.mxu0 0.0
  %6697 = vmatpush1.msra.mxu0 0.0
  %6698 = vmatprep.subr.mxu0 0.0
  %6699 = vmatpush1.msra.mxu0 0.0
  %6700 = vmatprep.subr.mxu0 0.0
  %6701 = vmatpush1.msra.mxu0 0.0
  %6702 = vmatprep.subr.mxu0 0.0
  %6703 = vmatpush1.msra.mxu0 0.0
  %6704 = vmatprep.subr.mxu0 0.0
  %6705 = vmatpush1.msra.mxu0 0.0
  %6706 = vmatprep.subr.mxu0 0.0
  %6707 = vmatpush1.msra.mxu0 0.0
  %6708 = vmatprep.subr.mxu0 0.0
  %6709 = vmatpush1.msra.mxu0 0.0
  %6710 = vmatprep.subr.mxu0 0.0
  %6711 = vmatpush1.msra.mxu0 0.0
  %6712 = vmatprep.subr.mxu0 0.0
  %6713 = vmatpush1.msra.mxu0 0.0
  %6714 = vmatprep.subr.mxu0 0.0
  %6715 = vmatpush1.msra.mxu0 0.0
  %6716 = vmatprep.subr.mxu0 0.0
  %6717 = vmatpush1.msra.mxu0 0.0
  %6718 = vmatprep.subr.mxu0 0.0
  %6719 = vmatpush1.msra.mxu0 0.0
  %6720 = vmatprep.subr.mxu0 0.0
  %6721 = vmatpush1.msra.mxu0 0.0
  %6722 = vmatprep.subr.mxu0 0.0
  %6723 = vmatpush1.msra.mxu0 0.0
  %6724 = vmatprep.subr.mxu0 0.0
  %6725 = vmatpush1.msra.mxu0 0.0
  %6726 = vmatprep.subr.mxu0 0.0
  %6727 = vmatpush1.msra.mxu0 0.0
  %6728 = vmatprep.subr.mxu0 0.0
  %6729 = vmatpush1.msra.mxu0 0.0
  %6730 = vmatprep.subr.mxu0 0.0
  %6731 = vmatpush1.msra.mxu0 0.0
  %6732 = vmatprep.subr.mxu0 0.0
  %6733 = vmatpush1.msra.mxu0 0.0
  %6734 = vmatprep.subr.mxu0 0.0
  %6735 = vmatpush1.msra.mxu0 0.0
  %6736 = vmatprep.subr.mxu0 0.0
  %6737 = vmatpush1.msra.mxu0 0.0
  %6738 = vmatprep.subr.mxu0 0.0
  %6739 = vmatpush1.msra.mxu0 0.0
  %6740 = vmatprep.subr.mxu0 0.0
  %6741 = vmatpush1.msra.mxu0 0.0
  %6742 = vmatprep.mubr.f32.mxu0 0.0
  %v6743 = vand.u32 %v6514, 4294901760
  %v6744 = vsub.f32 %v6514, %v6743
  %6745 = vmatmul.mubr.f32.gmra.mrb[0].mxu0 %v6744
  %v6746 = vpop.f32.mrb[0].mxu0
  %v6747 = vadd.f32 %v6671, %v6746
  %v6748 = vpop.f32.mrb[0].mxu0
  %6749 = vdwg.mxu0
  %6750 = vmatprep.subr.mxu0 0.0
  %v6751 = vand.u32 %v6047, 4294901760
  %6752 = vmatpush1.msra.mxu0 %v6751
  %6753 = vmatprep.subr.mxu0 0.0
  %v6754 = vand.u32 %v6048, 4294901760
  %6755 = vmatpush1.msra.mxu0 %v6754
  %6756 = vmatprep.subr.mxu0 0.0
  %6757 = vmatpush1.msra.mxu0 0.0
  %6758 = vmatprep.subr.mxu0 0.0
  %6759 = vmatpush1.msra.mxu0 0.0
  %6760 = vmatprep.subr.mxu0 0.0
  %6761 = vmatpush1.msra.mxu0 0.0
  %6762 = vmatprep.subr.mxu0 0.0
  %6763 = vmatpush1.msra.mxu0 0.0
  %6764 = vmatprep.subr.mxu0 0.0
  %6765 = vmatpush1.msra.mxu0 0.0
  %6766 = vmatprep.subr.mxu0 0.0
  %6767 = vmatpush1.msra.mxu0 0.0
  %6768 = vmatprep.subr.mxu0 0.0
  %6769 = vmatpush1.msra.mxu0 0.0
  %6770 = vmatprep.subr.mxu0 0.0
  %6771 = vmatpush1.msra.mxu0 0.0
  %6772 = vmatprep.subr.mxu0 0.0
  %6773 = vmatpush1.msra.mxu0 0.0
  %6774 = vmatprep.subr.mxu0 0.0
  %6775 = vmatpush1.msra.mxu0 0.0
  %6776 = vmatprep.subr.mxu0 0.0
  %6777 = vmatpush1.msra.mxu0 0.0
  %6778 = vmatprep.subr.mxu0 0.0
  %6779 = vmatpush1.msra.mxu0 0.0
  %6780 = vmatprep.subr.mxu0 0.0
  %6781 = vmatpush1.msra.mxu0 0.0
  %6782 = vmatprep.subr.mxu0 0.0
  %6783 = vmatpush1.msra.mxu0 0.0
  %6784 = vmatprep.subr.mxu0 0.0
  %6785 = vmatpush1.msra.mxu0 0.0
  %6786 = vmatprep.subr.mxu0 0.0
  %6787 = vmatpush1.msra.mxu0 0.0
  %6788 = vmatprep.subr.mxu0 0.0
  %6789 = vmatpush1.msra.mxu0 0.0
  %6790 = vmatprep.subr.mxu0 0.0
  %6791 = vmatpush1.msra.mxu0 0.0
  %6792 = vmatprep.subr.mxu0 0.0
  %6793 = vmatpush1.msra.mxu0 0.0
  %6794 = vmatprep.subr.mxu0 0.0
  %6795 = vmatpush1.msra.mxu0 0.0
  %6796 = vmatprep.subr.mxu0 0.0
  %6797 = vmatpush1.msra.mxu0 0.0
  %6798 = vmatprep.subr.mxu0 0.0
  %6799 = vmatpush1.msra.mxu0 0.0
  %6800 = vmatprep.subr.mxu0 0.0
  %6801 = vmatpush1.msra.mxu0 0.0
  %6802 = vmatprep.subr.mxu0 0.0
  %6803 = vmatpush1.msra.mxu0 0.0
  %6804 = vmatprep.subr.mxu0 0.0
  %6805 = vmatpush1.msra.mxu0 0.0
  %6806 = vmatprep.subr.mxu0 0.0
  %6807 = vmatpush1.msra.mxu0 0.0
  %6808 = vmatprep.subr.mxu0 0.0
  %6809 = vmatpush1.msra.mxu0 0.0
  %6810 = vmatprep.subr.mxu0 0.0
  %6811 = vmatpush1.msra.mxu0 0.0
  %6812 = vmatprep.subr.mxu0 0.0
  %6813 = vmatpush1.msra.mxu0 0.0
  %6814 = vmatprep.subr.mxu0 0.0
  %6815 = vmatpush1.msra.mxu0 0.0
  %6816 = vmatprep.mubr.f32.mxu0 0.0
  %v6817 = vand.u32 %v6514, 4294901760
  %v6818 = vsub.f32 %v6514, %v6817
  %v6819 = vand.u32 %v6818, 4294901760
  %6820 = vmatmul.mubr.f32.gmra.mrb[0].mxu0 %v6819
  %v6821 = vpop.f32.mrb[0].mxu0
  %v6822 = vadd.f32 %v6747, %v6821
  %v6823 = vpop.f32.mrb[0].mxu0
  %6824 = vdwg.mxu0
  %6825 = vmatprep.subr.mxu0 0.0
  %v6826 = vand.u32 %v6047, 4294901760
  %v6827 = vsub.f32 %v6047, %v6826
  %v6828 = vand.u32 %v6827, 4294901760
  %6829 = vmatpush1.msra.mxu0 %v6828
  %6830 = vmatprep.subr.mxu0 0.0
  %v6831 = vand.u32 %v6048, 4294901760
  %v6832 = vsub.f32 %v6048, %v6831
  %v6833 = vand.u32 %v6832, 4294901760
  %6834 = vmatpush1.msra.mxu0 %v6833
  %6835 = vmatprep.subr.mxu0 0.0
  %6836 = vmatpush1.msra.mxu0 0.0
  %6837 = vmatprep.subr.mxu0 0.0
  %6838 = vmatpush1.msra.mxu0 0.0
  %6839 = vmatprep.subr.mxu0 0.0
  %6840 = vmatpush1.msra.mxu0 0.0
  %6841 = vmatprep.subr.mxu0 0.0
  %6842 = vmatpush1.msra.mxu0 0.0
  %6843 = vmatprep.subr.mxu0 0.0
  %6844 = vmatpush1.msra.mxu0 0.0
  %6845 = vmatprep.subr.mxu0 0.0
  %6846 = vmatpush1.msra.mxu0 0.0
  %6847 = vmatprep.subr.mxu0 0.0
  %6848 = vmatpush1.msra.mxu0 0.0
  %6849 = vmatprep.subr.mxu0 0.0
  %6850 = vmatpush1.msra.mxu0 0.0
  %6851 = vmatprep.subr.mxu0 0.0
  %6852 = vmatpush1.msra.mxu0 0.0
  %6853 = vmatprep.subr.mxu0 0.0
  %6854 = vmatpush1.msra.mxu0 0.0
  %6855 = vmatprep.subr.mxu0 0.0
  %6856 = vmatpush1.msra.mxu0 0.0
  %6857 = vmatprep.subr.mxu0 0.0
  %6858 = vmatpush1.msra.mxu0 0.0
  %6859 = vmatprep.subr.mxu0 0.0
  %6860 = vmatpush1.msra.mxu0 0.0
  %6861 = vmatprep.subr.mxu0 0.0
  %6862 = vmatpush1.msra.mxu0 0.0
  %6863 = vmatprep.subr.mxu0 0.0
  %6864 = vmatpush1.msra.mxu0 0.0
  %6865 = vmatprep.subr.mxu0 0.0
  %6866 = vmatpush1.msra.mxu0 0.0
  %6867 = vmatprep.subr.mxu0 0.0
  %6868 = vmatpush1.msra.mxu0 0.0
  %6869 = vmatprep.subr.mxu0 0.0
  %6870 = vmatpush1.msra.mxu0 0.0
  %6871 = vmatprep.subr.mxu0 0.0
  %6872 = vmatpush1.msra.mxu0 0.0
  %6873 = vmatprep.subr.mxu0 0.0
  %6874 = vmatpush1.msra.mxu0 0.0
  %6875 = vmatprep.subr.mxu0 0.0
  %6876 = vmatpush1.msra.mxu0 0.0
  %6877 = vmatprep.subr.mxu0 0.0
  %6878 = vmatpush1.msra.mxu0 0.0
  %6879 = vmatprep.subr.mxu0 0.0
  %6880 = vmatpush1.msra.mxu0 0.0
  %6881 = vmatprep.subr.mxu0 0.0
  %6882 = vmatpush1.msra.mxu0 0.0
  %6883 = vmatprep.subr.mxu0 0.0
  %6884 = vmatpush1.msra.mxu0 0.0
  %6885 = vmatprep.subr.mxu0 0.0
  %6886 = vmatpush1.msra.mxu0 0.0
  %6887 = vmatprep.subr.mxu0 0.0
  %6888 = vmatpush1.msra.mxu0 0.0
  %6889 = vmatprep.subr.mxu0 0.0
  %6890 = vmatpush1.msra.mxu0 0.0
  %6891 = vmatprep.subr.mxu0 0.0
  %6892 = vmatpush1.msra.mxu0 0.0
  %6893 = vmatprep.subr.mxu0 0.0
  %6894 = vmatpush1.msra.mxu0 0.0
  %6895 = vmatprep.mubr.f32.mxu0 0.0
  %v6896 = vand.u32 %v6514, 4294901760
  %6897 = vmatmul.mubr.f32.gmra.mrb[0].mxu0 %v6896
  %v6898 = vpop.f32.mrb[0].mxu0
  %v6899 = vadd.f32 %v6822, %v6898
  %v6900 = vpop.f32.mrb[0].mxu0
  %6901 = vdwg.mxu0
  %6902 = vmatprep.subr.mxu0 0.0
  %v6903 = vand.u32 %v6047, 4294901760
  %6904 = vmatpush1.msra.mxu0 %v6903
  %6905 = vmatprep.subr.mxu0 0.0
  %v6906 = vand.u32 %v6048, 4294901760
  %6907 = vmatpush1.msra.mxu0 %v6906
  %6908 = vmatprep.subr.mxu0 0.0
  %6909 = vmatpush1.msra.mxu0 0.0
  %6910 = vmatprep.subr.mxu0 0.0
  %6911 = vmatpush1.msra.mxu0 0.0
  %6912 = vmatprep.subr.mxu0 0.0
  %6913 = vmatpush1.msra.mxu0 0.0
  %6914 = vmatprep.subr.mxu0 0.0
  %6915 = vmatpush1.msra.mxu0 0.0
  %6916 = vmatprep.subr.mxu0 0.0
  %6917 = vmatpush1.msra.mxu0 0.0
  %6918 = vmatprep.subr.mxu0 0.0
  %6919 = vmatpush1.msra.mxu0 0.0
  %6920 = vmatprep.subr.mxu0 0.0
  %6921 = vmatpush1.msra.mxu0 0.0
  %6922 = vmatprep.subr.mxu0 0.0
  %6923 = vmatpush1.msra.mxu0 0.0
  %6924 = vmatprep.subr.mxu0 0.0
  %6925 = vmatpush1.msra.mxu0 0.0
  %6926 = vmatprep.subr.mxu0 0.0
  %6927 = vmatpush1.msra.mxu0 0.0
  %6928 = vmatprep.subr.mxu0 0.0
  %6929 = vmatpush1.msra.mxu0 0.0
  %6930 = vmatprep.subr.mxu0 0.0
  %6931 = vmatpush1.msra.mxu0 0.0
  %6932 = vmatprep.subr.mxu0 0.0
  %6933 = vmatpush1.msra.mxu0 0.0
  %6934 = vmatprep.subr.mxu0 0.0
  %6935 = vmatpush1.msra.mxu0 0.0
  %6936 = vmatprep.subr.mxu0 0.0
  %6937 = vmatpush1.msra.mxu0 0.0
  %6938 = vmatprep.subr.mxu0 0.0
  %6939 = vmatpush1.msra.mxu0 0.0
  %6940 = vmatprep.subr.mxu0 0.0
  %6941 = vmatpush1.msra.mxu0 0.0
  %6942 = vmatprep.subr.mxu0 0.0
  %6943 = vmatpush1.msra.mxu0 0.0
  %6944 = vmatprep.subr.mxu0 0.0
  %6945 = vmatpush1.msra.mxu0 0.0
  %6946 = vmatprep.subr.mxu0 0.0
  %6947 = vmatpush1.msra.mxu0 0.0
  %6948 = vmatprep.subr.mxu0 0.0
  %6949 = vmatpush1.msra.mxu0 0.0
  %6950 = vmatprep.subr.mxu0 0.0
  %6951 = vmatpush1.msra.mxu0 0.0
  %6952 = vmatprep.subr.mxu0 0.0
  %6953 = vmatpush1.msra.mxu0 0.0
  %6954 = vmatprep.subr.mxu0 0.0
  %6955 = vmatpush1.msra.mxu0 0.0
  %6956 = vmatprep.subr.mxu0 0.0
  %6957 = vmatpush1.msra.mxu0 0.0
  %6958 = vmatprep.subr.mxu0 0.0
  %6959 = vmatpush1.msra.mxu0 0.0
  %6960 = vmatprep.subr.mxu0 0.0
  %6961 = vmatpush1.msra.mxu0 0.0
  %6962 = vmatprep.subr.mxu0 0.0
  %6963 = vmatpush1.msra.mxu0 0.0
  %6964 = vmatprep.subr.mxu0 0.0
  %6965 = vmatpush1.msra.mxu0 0.0
  %6966 = vmatprep.subr.mxu0 0.0
  %6967 = vmatpush1.msra.mxu0 0.0
  %6968 = vmatprep.mubr.f32.mxu0 0.0
  %v6969 = vand.u32 %v6514, 4294901760
  %6970 = vmatmul.mubr.f32.gmra.mrb[0].mxu0 %v6969
  %v6971 = vpop.f32.mrb[0].mxu0
  %v6972 = vadd.f32 %v6899, %v6971
  %v6973 = vpop.f32.mrb[0].mxu0
  %6974 = vdwg.mxu0
  %v6975 = vlaneseq
  %v6976 = vshrl.u32 %v6975, 7
  %v6977 = vsub.s32 0, %v6976
  %v6978 = vrot.slane %v6508, %v6977
  %v6979 = vmul.f32 %v5324, %v6978
  %v6980 = vlaneseq
  %v6981 = vshrl.u32 %v6980, 7
  %v6982 = vsub.s32 0, %v6981
  %v6983 = vrot.slane %v6972, %v6982
  %v6984 = vadd.f32 %v6979, %v6983
  %v6985 = vmax.f32 %v6984, 0.0
  %6986 = vst [vmem:[%s5] sm:$0xff] %v6985
  // Predicated region
  $region22: #{unet_down_forward.1} parent=0 // pred_check
    _
  $region23: #{unet_down_forward.1} parent=0 // pred_check_branch
    %6988 = sbr.rel (0) target = $region25
  $region24: #{unet_down_forward.1} parent=0 // pred_region
    _
  $region25: #{unet_down_forward.1} parent=0 // pred_fallthru
    _
  // Predicated region
  $region26: #{unet_down_forward.1} parent=0 // pred_check
    _
  $region27: #{unet_down_forward.1} parent=0 // pred_check_branch
    %6990 = sbr.rel (0) target = $region29
  $region28: #{unet_down_forward.1} parent=0 // pred_region
    _
  $region29: #{unet_down_forward.1} parent=0 // pred_fallthru
    _

</llo_original>
